<compile_context>
chip_gen: v6e
topology: v6e:2x2x1
jax: 0.10.0
libtpu: 0.0.40
codegen_flags: <defaults>
</compile_context>

<pallas_src>
import jax
import jax.numpy as jnp
from jax import lax
from jax.experimental import pallas as pl
from jax.experimental.pallas import tpu as pltpu

# ----------------------------- small config ---------------------------------
B = 2
IN_CHANNELS = 4        # X_Net_3D in_channels
IMAGE_SIZE = 8         # image_size (divisible by SPA_PATCH)
DIM = 16               # dim (divisible by CHN_PATCH)
NUM_CLASSES = 8
SPA_PATCH = 4
CHN_PATCH = 4
HEADS = 4              # ViT3D defaults
DIM_HEAD = 128
MLP_DIM = 128
NUM_ENC = 5            # encoder_down_1 reused 5 times

NC = DIM // CHN_PATCH                 # 4 channel patches
NH = NW = IMAGE_SIZE // SPA_PATCH     # 2 x 2 spatial patches
N_CELLS = NH * NW                     # 4
N_TOKENS = NC * N_CELLS               # 16
PATCH_DIM = CHN_PATCH * SPA_PATCH * SPA_PATCH   # 64
INNER_DIM = HEADS * DIM_HEAD          # 512
ROWS = B * N_TOKENS                   # 32 token rows, order (c, cell, b)
GROUPS = N_CELLS * B                  # 8 coarse-volume rows, order (cell, b)
SCALE = DIM_HEAD ** -0.5


# ----------------------------- in-kernel helpers ------------------------------
def _erf(x):
    # Abramowitz & Stegun 7.1.26, |err| < 1.5e-7; uses only exp/mul/add/select.
    # TODO(synk): this approximates torch's exact erf-based GELU to ~1e-7.
    ax = jnp.abs(x)
    t = 1.0 / (1.0 + 0.3275911 * ax)
    poly = t * (0.254829592 + t * (-0.284496736 + t * (1.421413741 +
               t * (-1.453152027 + t * 1.061405429))))
    y = 1.0 - poly * jnp.exp(-ax * ax)
    return jnp.where(x >= 0.0, y, -y)


def _layernorm(x, g, b, eps):
    mu = jnp.mean(x, axis=-1, keepdims=True)
    xc = x - mu
    var = jnp.mean(xc * xc, axis=-1, keepdims=True)
    return xc * lax.rsqrt(var + eps) * g + b


# ----------------------------- fused encoder kernel ---------------------------
def _fused_encoder_kernel(
    t0_ref, mask_ref, pos_ref, pe_w_ref, qkv_w_ref, wo_ref,
    ff_w1_ref, ff_w2_ref, rhs_ref, tail_ref, w3dmap_ref,
    v16_ref, vmisc_ref, sel_ref, out_ref,
):
    f32 = jnp.float32

    def encode(t):
        # ---- patch embedding: LN -> Linear -> LN, + pos embedding ----
        x = _layernorm(t, vmisc_ref[0:1, 0:PATCH_DIM],
                       vmisc_ref[1:2, 0:PATCH_DIM], 1e-5)
        x = jnp.dot(x, pe_w_ref[...], preferred_element_type=f32) + v16_ref[6:7, :]
        x = _layernorm(x, v16_ref[0:1, :], v16_ref[1:2, :], 1e-5)
        x = x + pos_ref[...]                                           # (32, 16)

        # ---- attention: one fused QKV matmul, heads stacked on sublanes ----
        xn = _layernorm(x, v16_ref[2:3, :], v16_ref[3:4, :], 1e-5)
        qkv = jnp.dot(xn, qkv_w_ref[...], preferred_element_type=f32)  # (32, 1536)

        def stack_heads(proj):                                         # -> (128, 128)
            base = proj * INNER_DIM
            return jnp.concatenate(
                [qkv[:, base + h * DIM_HEAD:base + (h + 1) * DIM_HEAD]
                 for h in range(HEADS)], axis=0)

        q_st = stack_heads(0)            # attention scale folded into q columns
        k_st = stack_heads(1)
        v_st = stack_heads(2)
        s = lax.dot_general(q_st, k_st, (((1,), (1,)), ((), ())),
                            preferred_element_type=f32) + mask_ref[...]     # (128, 128)
        smax = jnp.max(s, axis=-1, keepdims=True)
        p = jnp.exp(s - smax)
        p = p * pl.reciprocal(jnp.sum(p, axis=-1, keepdims=True), approx=True)
        o_st = jnp.dot(p, v_st, preferred_element_type=f32)                 # (128, 128)
        o_cat = jnp.concatenate(
            [o_st[h * ROWS:(h + 1) * ROWS, :] for h in range(HEADS)], axis=1)
        x = jnp.dot(o_cat, wo_ref[...], preferred_element_type=f32) + v16_ref[7:8, :] + x

        # ---- feed-forward: LN -> Linear -> GELU -> Linear, residual ----
        xn = _layernorm(x, v16_ref[4:5, :], v16_ref[5:6, :], 1e-5)
        h = jnp.dot(xn, ff_w1_ref[...], preferred_element_type=f32) + vmisc_ref[2:3, :]
        h = 0.5 * h * (1.0 + _erf(h * (2.0 ** -0.5)))                       # exact GELU
        h = jnp.dot(h, ff_w2_ref[...], preferred_element_type=f32) + v16_ref[8:9, :]
        x = h + x                                                            # (32, 16)

        # ---- Conv3d(nc -> 1, k=1): weight-map multiply + selection matmul ----
        y = jnp.dot(sel_ref[0:GROUPS, :], x * w3dmap_ref[...],
                    preferred_element_type=f32) + v16_ref[9:10, :]           # (8, 16)

        # ---- volume LayerNorm stats (upsample is replication -> same stats) ----
        inv_n = 1.0 / float(N_CELLS * DIM)
        bsel = sel_ref[8:8 + B, 0:GROUPS]                                    # (2, 8)
        bsel_t = sel_ref[16:16 + GROUPS, 0:B]                                # (8, 2)
        s1 = jnp.dot(bsel, jnp.sum(y, axis=-1, keepdims=True),
                     preferred_element_type=f32)                             # (2, 1)
        s2 = jnp.dot(bsel, jnp.sum(y * y, axis=-1, keepdims=True),
                     preferred_element_type=f32)
        mu = s1 * inv_n
        rstd = lax.rsqrt(jnp.maximum(s2 * inv_n - mu * mu, 0.0) + 1e-6)
        mu_r = jnp.dot(bsel_t, mu, preferred_element_type=f32)               # (8, 1)
        rstd_r = jnp.dot(bsel_t, rstd, preferred_element_type=f32)
        return (y - mu_r) * rstd_r                                           # (8, 16)

    def tail(ynorm):
        # fused (replication upsample -> volume-LN affine -> 1x1 seg conv ->
        # next patchify): block-diag LHS via tile-matmul + mask, one matmul.
        bd = jnp.dot(ynorm, tail_ref[ROWS + GROUPS:ROWS + GROUPS + DIM, :],
                     preferred_element_type=f32) * tail_ref[ROWS:ROWS + GROUPS, :]
        full = jnp.dot(bd, rhs_ref[...], preferred_element_type=f32)         # (8, 256)
        t_next = jnp.concatenate(
            [full[:, c * PATCH_DIM:(c + 1) * PATCH_DIM] for c in range(NC)], axis=0)
        return t_next + tail_ref[0:ROWS, :]                                   # (32, 64)

    t_last = lax.fori_loop(0, NUM_ENC - 1, lambda _, t: tail(encode(t)),
                           t0_ref[...])
    out_ref[...] = encode(t_last)


# ----------------------------- host-side preparation --------------------------
def _prepare_encoder_inputs(params):
    enc = params['enc']
    f32 = jnp.float32

    # additive mask, block-diagonal over (head, batch): row order (c, cell, b)
    bat = jnp.arange(ROWS) % B
    same_b = bat[:, None] == bat[None, :]                              # (32, 32)
    hid = jnp.arange(HEADS * ROWS) // ROWS
    same_h = hid[:, None] == hid[None, :]                              # (128, 128)
    mask = jnp.where(same_h & jnp.tile(same_b, (HEADS, HEADS)), 0.0, -1e30).astype(f32)

    # positional embedding permuted to row order (c, cell, b); token id = c*4+cell
    pos = enc['pos_emb'][0].reshape(NC, N_CELLS, DIM)
    pos = jnp.broadcast_to(pos[:, :, None, :], (NC, N_CELLS, B, DIM))
    pos = pos.reshape(ROWS, DIM).astype(f32)

    # fused QKV weight with the attention scale folded into the Q columns
    qkv_w = enc['qkv_w'].astype(f32)                                   # (16, 1536)
    qkv_w = jnp.concatenate([qkv_w[:, :INNER_DIM] * SCALE, qkv_w[:, INNER_DIM:]], axis=1)

    # Conv3d(nc -> 1, k=1): per-row weight map + selection matrices
    w3d = enc['c3d_w'].astype(f32)
    w3dmap = jnp.broadcast_to(w3d[:, None, None], (NC, GROUPS, DIM)).reshape(ROWS, DIM)
    b3d_row = jnp.broadcast_to(jnp.reshape(enc['c3d_b'].astype(f32), (1, 1)), (1, DIM))

    grp = jnp.arange(GROUPS)                                           # group = cell*B + b
    col = jnp.arange(ROWS)                                             # row   = c*8 + cell*2 + b
    csel = ((col[None, :] % GROUPS) == grp[:, None]).astype(f32)       # (8, 32)
    bsel = ((grp[None, :] % B) == jnp.arange(B)[:, None]).astype(f32)  # (2, 8)
    sel = jnp.zeros((24, ROWS), f32)
    sel = sel.at[0:GROUPS, :].set(csel)
    sel = sel.at[8:8 + B, 0:GROUPS].set(bsel)
    sel = sel.at[16:16 + GROUPS, 0:B].set(bsel.T)

    # fold (upsample -> volume-LN affine -> 1x1 seg conv -> next patchify)
    seg_w_r = enc['seg_w'].astype(f32).reshape(NC, CHN_PATCH, DIM)     # (c, pc, d)
    gam = enc['bn_g'].astype(f32).reshape(DIM, NH, SPA_PATCH, NW, SPA_PATCH)
    gam = jnp.transpose(gam, (1, 3, 0, 2, 4)).reshape(N_CELLS, DIM, SPA_PATCH * SPA_PATCH)
    bet = enc['bn_b'].astype(f32).reshape(DIM, NH, SPA_PATCH, NW, SPA_PATCH)
    bet = jnp.transpose(bet, (1, 3, 0, 2, 4)).reshape(N_CELLS, DIM, SPA_PATCH * SPA_PATCH)
    rhs = jnp.einsum('cpd,xdf->xdcpf', seg_w_r, gam)
    rhs = rhs.reshape(N_CELLS * DIM, NC * PATCH_DIM)                   # (64, 256)
    cst = jnp.einsum('cpd,xdf->xcpf', seg_w_r, bet)
    cst = cst + enc['seg_b'].astype(f32).reshape(1, NC, CHN_PATCH, 1)  # (cell, c, pc, f)
    cst = jnp.transpose(cst.reshape(N_CELLS, NC, PATCH_DIM), (1, 0, 2))
    cst = jnp.broadcast_to(cst[:, :, None, :], (NC, N_CELLS, B, PATCH_DIM)).reshape(ROWS, PATCH_DIM)
    colmask = ((jnp.arange(N_CELLS * DIM)[None, :] // DIM) == (grp[:, None] // B)).astype(f32)
    tilemat = jnp.tile(jnp.eye(DIM, dtype=f32), (1, N_CELLS))          # (16, 64)
    tail_pack = jnp.concatenate([cst, colmask, tilemat], axis=0)       # (56, 64)

    # packed small row vectors (cuts operand count / DMA descriptors)
    def row(v, width):
        return jnp.reshape(v.astype(f32), (1, width))
    v16 = jnp.concatenate([
        row(enc['pe_ln2_g'], DIM), row(enc['pe_ln2_b'], DIM),
        row(enc['attn_ln_g'], DIM), row(enc['attn_ln_b'], DIM),
        row(enc['ff_ln_g'], DIM), row(enc['ff_ln_b'], DIM),
        row(enc['pe_b'], DIM), row(enc['out_b'], DIM),
        row(enc['ff_b2'], DIM), b3d_row,
    ], axis=0)                                                         # (10, 16)
    vmisc = jnp.zeros((3, MLP_DIM), f32)
    vmisc = vmisc.at[0, :PATCH_DIM].set(enc['pe_ln1_g'].astype(f32))
    vmisc = vmisc.at[1, :PATCH_DIM].set(enc['pe_ln1_b'].astype(f32))
    vmisc = vmisc.at[2, :].set(enc['ff_b1'].astype(f32))

    return (mask, pos, enc['pe_w'].astype(f32), qkv_w, enc['out_w'].astype(f32),
            enc['ff_w1'].astype(f32), enc['ff_w2'].astype(f32),
            rhs, tail_pack, w3dmap, v16, vmisc, sel)


def _stem_and_patchify(params, hsi):
    # TODO(synk): the one-time 3x3 stem conv / first patchify / final decode stay
    # in XLA (not on the hot path).
    img = hsi[:, 0]                                                    # (B, Cin, H, W)
    stem = lax.conv_general_dilated(
        img, params['init_w'], window_strides=(1, 1), padding='SAME',
        dimension_numbers=('NCHW', 'OIHW', 'NCHW'))
    stem = stem + params['init_b'][None, :, None, None]                # (B, DIM, H, W)
    t = stem.reshape(B, NC, CHN_PATCH, NH, SPA_PATCH, NW, SPA_PATCH)
    t = jnp.transpose(t, (1, 3, 5, 0, 2, 4, 6))                        # (c, h, w, b, pc, p1, p2)
    return t.reshape(ROWS, PATCH_DIM)                                  # rows (c, cell, b)


def _decode_tail(params, ynorm):
    enc = params['enc']
    y = ynorm.reshape(NH, NW, B, DIM)                                  # rows (cell, b)
    y = jnp.transpose(y, (2, 3, 0, 1))                                 # (B, DIM, nh, nw)
    y = jnp.broadcast_to(y[:, :, :, None, :, None],
                         (B, DIM, NH, SPA_PATCH, NW, SPA_PATCH))
    y = y.reshape(B, DIM, IMAGE_SIZE, IMAGE_SIZE)                      # replication upsample
    y = y * enc['bn_g'][None] + enc['bn_b'][None]                      # volume-LN affine
    seg = jnp.einsum('bdhw,ed->behw', y, enc['seg_w']) + enc['seg_b'][None, :, None, None]
    out_seg = (jnp.einsum('behw,qe->bqhw', seg, params['outp_w'])
               + params['outp_b'][None, :, None, None])
    out_cls = out_seg[:, :, IMAGE_SIZE // 2, IMAGE_SIZE // 2]
    return out_seg, out_cls


# ----------------------------- X_Net_3D forward -------------------------------
def x_net_forward(params, hsi):
    t0 = _stem_and_patchify(params, hsi)                               # (32, 64)
    ins = _prepare_encoder_inputs(params)
    vmem = pltpu.MemorySpace.VMEM
    ynorm = pl.pallas_call(
        _fused_encoder_kernel,
        out_shape=jax.ShapeDtypeStruct((GROUPS, DIM), jnp.float32),
        in_specs=[pl.BlockSpec(memory_space=vmem)] * (1 + len(ins)),
        out_specs=pl.BlockSpec(memory_space=vmem),
    )(t0, *ins)                                                        # ONE kernel, 5 encoder passes
    return _decode_tail(params, ynorm)


# ----------------------------- deterministic params ---------------------------
def init_params(key):
    keys = iter(jax.random.split(key, 32))

    def nrm(shape, std=0.1):
        return (std * jax.random.normal(next(keys), shape)).astype(jnp.float32)

    def ones(shape):
        return jnp.ones(shape, jnp.float32)

    def zeros(shape):
        return jnp.zeros(shape, jnp.float32)

    enc = {
        'pe_ln1_g': ones((PATCH_DIM,)), 'pe_ln1_b': zeros((PATCH_DIM,)),
        'pe_w': nrm((PATCH_DIM, DIM)), 'pe_b': nrm((DIM,)),
        'pe_ln2_g': ones((DIM,)), 'pe_ln2_b': zeros((DIM,)),
        'pos_emb': nrm((1, N_TOKENS, DIM), std=1.0),
        'attn_ln_g': ones((DIM,)), 'attn_ln_b': zeros((DIM,)),
        'qkv_w': nrm((DIM, 3 * INNER_DIM)),
        'out_w': nrm((INNER_DIM, DIM)), 'out_b': nrm((DIM,)),
        'ff_ln_g': ones((DIM,)), 'ff_ln_b': zeros((DIM,)),
        'ff_w1': nrm((DIM, MLP_DIM)), 'ff_b1': nrm((MLP_DIM,)),
        'ff_w2': nrm((MLP_DIM, DIM)), 'ff_b2': nrm((DIM,)),
        'c3d_w': nrm((NC,)), 'c3d_b': nrm(()),
        'bn_g': ones((DIM, IMAGE_SIZE, IMAGE_SIZE)),
        'bn_b': zeros((DIM, IMAGE_SIZE, IMAGE_SIZE)),
        'seg_w': nrm((DIM, DIM)), 'seg_b': nrm((DIM,)),
    }
    return {
        'init_w': nrm((DIM, IN_CHANNELS, 3, 3)), 'init_b': nrm((DIM,)),
        'enc': enc,
        'outp_w': nrm((NUM_CLASSES, DIM)), 'outp_b': nrm((NUM_CLASSES,)),
    }


# ----------------------------- main --------------------------------------------
if __name__ == "__main__":
    key = jax.random.PRNGKey(0)
    k_params, k_input = jax.random.split(key)
    params = init_params(k_params)

    hsi = jax.random.normal(
        k_input, (B, 1, IN_CHANNELS, IMAGE_SIZE, IMAGE_SIZE), dtype=jnp.float32)

    fwd = jax.jit(x_net_forward)
    out_seg, out_cls = fwd(params, hsi)
    jax.block_until_ready((out_seg, out_cls))

    assert out_seg.shape == (B, NUM_CLASSES, IMAGE_SIZE, IMAGE_SIZE), out_seg.shape
    assert out_cls.shape == (B, NUM_CLASSES), out_cls.shape
    assert bool(jnp.all(jnp.isfinite(out_seg))) and bool(jnp.all(jnp.isfinite(out_cls)))
    print("KERNEL_OK")
</pallas_src>

<mosaic_0001>
module attributes {stable_mosaic.version = 11 : i64} {
  func.func @_fused_encoder_kernel(%arg0: memref<32x64xf32, #tpu.memory_space<vmem>>, %arg1: memref<128x128xf32, #tpu.memory_space<vmem>>, %arg2: memref<32x16xf32, #tpu.memory_space<vmem>>, %arg3: memref<64x16xf32, #tpu.memory_space<vmem>>, %arg4: memref<16x1536xf32, #tpu.memory_space<vmem>>, %arg5: memref<512x16xf32, #tpu.memory_space<vmem>>, %arg6: memref<16x128xf32, #tpu.memory_space<vmem>>, %arg7: memref<128x16xf32, #tpu.memory_space<vmem>>, %arg8: memref<64x256xf32, #tpu.memory_space<vmem>>, %arg9: memref<56x64xf32, #tpu.memory_space<vmem>>, %arg10: memref<32x16xf32, #tpu.memory_space<vmem>>, %arg11: memref<10x16xf32, #tpu.memory_space<vmem>>, %arg12: memref<3x128xf32, #tpu.memory_space<vmem>>, %arg13: memref<24x32xf32, #tpu.memory_space<vmem>>, %arg14: memref<8x16xf32, #tpu.memory_space<vmem>>) attributes {dimension_semantics = [], scalar_prefetch = 0 : i64, scratch_operands = 0 : i64, tpu.core_type = #tpu.core_type<tc>} {
    %c0 = arith.constant 0 : index
    %c0_0 = arith.constant 0 : index
    %0 = vector.load %arg0[%c0, %c0_0] : memref<32x64xf32, #tpu.memory_space<vmem>>, vector<32x64xf32>
    %c0_i32 = arith.constant 0 : i32
    %c4_i32 = arith.constant 4 : i32
    %1 = arith.addi %c0_i32, %c4_i32 : i32
    %c1_i32 = arith.constant 1 : i32
    %2 = scf.for %arg15 = %c0_i32 to %1 step %c1_i32 iter_args(%arg16 = %0) -> (vector<32x64xf32>)  : i32 {
      %c0_95 = arith.constant 0 : index
      %c0_96 = arith.constant 0 : index
      %225 = vector.load %arg12[%c0_95, %c0_96] : memref<3x128xf32, #tpu.memory_space<vmem>>, vector<1x64xf32>
      %c1_97 = arith.constant 1 : index
      %c0_98 = arith.constant 0 : index
      %226 = vector.load %arg12[%c1_97, %c0_98] : memref<3x128xf32, #tpu.memory_space<vmem>>, vector<1x64xf32>
      %cst_99 = arith.constant dense<0.000000e+00> : vector<32xf32>
      %227 = vector.multi_reduction <add>, %arg16, %cst_99 [1] : vector<32x64xf32> to vector<32xf32>
      %228 = vector.shape_cast %227 : vector<32xf32> to vector<32x1xf32>
      %cst_100 = arith.constant 6.400000e+01 : f32
      %229 = vector.broadcast %cst_100 : f32 to vector<32x1xf32>
      %230 = arith.divf %228, %229 : vector<32x1xf32>
      %231 = vector.broadcast %230 : vector<32x1xf32> to vector<32x64xf32>
      %232 = arith.subf %arg16, %231 : vector<32x64xf32>
      %233 = arith.mulf %232, %232 : vector<32x64xf32>
      %cst_101 = arith.constant dense<0.000000e+00> : vector<32xf32>
      %234 = vector.multi_reduction <add>, %233, %cst_101 [1] : vector<32x64xf32> to vector<32xf32>
      %235 = vector.shape_cast %234 : vector<32xf32> to vector<32x1xf32>
      %cst_102 = arith.constant 6.400000e+01 : f32
      %236 = vector.broadcast %cst_102 : f32 to vector<32x1xf32>
      %237 = arith.divf %235, %236 : vector<32x1xf32>
      %cst_103 = arith.constant 9.99999974E-6 : f32
      %238 = vector.broadcast %cst_103 : f32 to vector<32x1xf32>
      %239 = arith.addf %237, %238 : vector<32x1xf32>
      %240 = math.rsqrt %239 : vector<32x1xf32>
      %241 = vector.broadcast %240 : vector<32x1xf32> to vector<32x64xf32>
      %242 = arith.mulf %232, %241 : vector<32x64xf32>
      %243 = vector.broadcast %225 : vector<1x64xf32> to vector<32x64xf32>
      %244 = arith.mulf %242, %243 : vector<32x64xf32>
      %245 = vector.broadcast %226 : vector<1x64xf32> to vector<32x64xf32>
      %246 = arith.addf %244, %245 : vector<32x64xf32>
      %c0_104 = arith.constant 0 : index
      %c0_105 = arith.constant 0 : index
      %247 = vector.load %arg3[%c0_104, %c0_105] : memref<64x16xf32, #tpu.memory_space<vmem>>, vector<64x16xf32>
      %cst_106 = arith.constant dense<0.000000e+00> : vector<32x16xf32>
      %248 = tpu.matmul %246, %247, %cst_106 {dimension_numbers = #tpu.dot_dimension_numbers<[1], [0], [0], [1], [0, 0, 1, 1], [], []>} : vector<32x64xf32>, vector<64x16xf32>, vector<32x16xf32> -> vector<32x16xf32>
      %c6_107 = arith.constant 6 : index
      %c0_108 = arith.constant 0 : index
      %249 = vector.load %arg11[%c6_107, %c0_108] : memref<10x16xf32, #tpu.memory_space<vmem>>, vector<1x16xf32>
      %250 = vector.broadcast %249 : vector<1x16xf32> to vector<32x16xf32>
      %251 = arith.addf %248, %250 : vector<32x16xf32>
      %c0_109 = arith.constant 0 : index
      %c0_110 = arith.constant 0 : index
      %252 = vector.load %arg11[%c0_109, %c0_110] : memref<10x16xf32, #tpu.memory_space<vmem>>, vector<1x16xf32>
      %c1_111 = arith.constant 1 : index
      %c0_112 = arith.constant 0 : index
      %253 = vector.load %arg11[%c1_111, %c0_112] : memref<10x16xf32, #tpu.memory_space<vmem>>, vector<1x16xf32>
      %cst_113 = arith.constant dense<0.000000e+00> : vector<32xf32>
      %254 = vector.multi_reduction <add>, %251, %cst_113 [1] : vector<32x16xf32> to vector<32xf32>
      %255 = vector.shape_cast %254 : vector<32xf32> to vector<32x1xf32>
      %cst_114 = arith.constant 1.600000e+01 : f32
      %256 = vector.broadcast %cst_114 : f32 to vector<32x1xf32>
      %257 = arith.divf %255, %256 : vector<32x1xf32>
      %258 = vector.broadcast %257 : vector<32x1xf32> to vector<32x16xf32>
      %259 = arith.subf %251, %258 : vector<32x16xf32>
      %260 = arith.mulf %259, %259 : vector<32x16xf32>
      %cst_115 = arith.constant dense<0.000000e+00> : vector<32xf32>
      %261 = vector.multi_reduction <add>, %260, %cst_115 [1] : vector<32x16xf32> to vector<32xf32>
      %262 = vector.shape_cast %261 : vector<32xf32> to vector<32x1xf32>
      %cst_116 = arith.constant 1.600000e+01 : f32
      %263 = vector.broadcast %cst_116 : f32 to vector<32x1xf32>
      %264 = arith.divf %262, %263 : vector<32x1xf32>
      %cst_117 = arith.constant 9.99999974E-6 : f32
      %265 = vector.broadcast %cst_117 : f32 to vector<32x1xf32>
      %266 = arith.addf %264, %265 : vector<32x1xf32>
      %267 = math.rsqrt %266 : vector<32x1xf32>
      %268 = vector.broadcast %267 : vector<32x1xf32> to vector<32x16xf32>
      %269 = arith.mulf %259, %268 : vector<32x16xf32>
      %270 = vector.broadcast %252 : vector<1x16xf32> to vector<32x16xf32>
      %271 = arith.mulf %269, %270 : vector<32x16xf32>
      %272 = vector.broadcast %253 : vector<1x16xf32> to vector<32x16xf32>
      %273 = arith.addf %271, %272 : vector<32x16xf32>
      %c0_118 = arith.constant 0 : index
      %c0_119 = arith.constant 0 : index
      %274 = vector.load %arg2[%c0_118, %c0_119] : memref<32x16xf32, #tpu.memory_space<vmem>>, vector<32x16xf32>
      %275 = arith.addf %273, %274 : vector<32x16xf32>
      %c2_120 = arith.constant 2 : index
      %c0_121 = arith.constant 0 : index
      %276 = vector.load %arg11[%c2_120, %c0_121] : memref<10x16xf32, #tpu.memory_space<vmem>>, vector<1x16xf32>
      %c3_122 = arith.constant 3 : index
      %c0_123 = arith.constant 0 : index
      %277 = vector.load %arg11[%c3_122, %c0_123] : memref<10x16xf32, #tpu.memory_space<vmem>>, vector<1x16xf32>
      %cst_124 = arith.constant dense<0.000000e+00> : vector<32xf32>
      %278 = vector.multi_reduction <add>, %275, %cst_124 [1] : vector<32x16xf32> to vector<32xf32>
      %279 = vector.shape_cast %278 : vector<32xf32> to vector<32x1xf32>
      %cst_125 = arith.constant 1.600000e+01 : f32
      %280 = vector.broadcast %cst_125 : f32 to vector<32x1xf32>
      %281 = arith.divf %279, %280 : vector<32x1xf32>
      %282 = vector.broadcast %281 : vector<32x1xf32> to vector<32x16xf32>
      %283 = arith.subf %275, %282 : vector<32x16xf32>
      %284 = arith.mulf %283, %283 : vector<32x16xf32>
      %cst_126 = arith.constant dense<0.000000e+00> : vector<32xf32>
      %285 = vector.multi_reduction <add>, %284, %cst_126 [1] : vector<32x16xf32> to vector<32xf32>
      %286 = vector.shape_cast %285 : vector<32xf32> to vector<32x1xf32>
      %cst_127 = arith.constant 1.600000e+01 : f32
      %287 = vector.broadcast %cst_127 : f32 to vector<32x1xf32>
      %288 = arith.divf %286, %287 : vector<32x1xf32>
      %cst_128 = arith.constant 9.99999974E-6 : f32
      %289 = vector.broadcast %cst_128 : f32 to vector<32x1xf32>
      %290 = arith.addf %288, %289 : vector<32x1xf32>
      %291 = math.rsqrt %290 : vector<32x1xf32>
      %292 = vector.broadcast %291 : vector<32x1xf32> to vector<32x16xf32>
      %293 = arith.mulf %283, %292 : vector<32x16xf32>
      %294 = vector.broadcast %276 : vector<1x16xf32> to vector<32x16xf32>
      %295 = arith.mulf %293, %294 : vector<32x16xf32>
      %296 = vector.broadcast %277 : vector<1x16xf32> to vector<32x16xf32>
      %297 = arith.addf %295, %296 : vector<32x16xf32>
      %c0_129 = arith.constant 0 : index
      %c0_130 = arith.constant 0 : index
      %298 = vector.load %arg4[%c0_129, %c0_130] : memref<16x1536xf32, #tpu.memory_space<vmem>>, vector<16x1536xf32>
      %cst_131 = arith.constant dense<0.000000e+00> : vector<32x1536xf32>
      %299 = tpu.matmul %297, %298, %cst_131 {dimension_numbers = #tpu.dot_dimension_numbers<[1], [0], [0], [1], [0, 0, 1, 1], [], []>} : vector<32x16xf32>, vector<16x1536xf32>, vector<32x1536xf32> -> vector<32x1536xf32>
      %300 = vector.extract_strided_slice %299 {offsets = [0, 0], sizes = [32, 128], strides = [1, 1]} : vector<32x1536xf32> to vector<32x128xf32>
      %301 = vector.extract_strided_slice %299 {offsets = [0, 128], sizes = [32, 128], strides = [1, 1]} : vector<32x1536xf32> to vector<32x128xf32>
      %302 = vector.extract_strided_slice %299 {offsets = [0, 256], sizes = [32, 128], strides = [1, 1]} : vector<32x1536xf32> to vector<32x128xf32>
      %303 = vector.extract_strided_slice %299 {offsets = [0, 384], sizes = [32, 128], strides = [1, 1]} : vector<32x1536xf32> to vector<32x128xf32>
      %304 = tpu.concatenate %300, %301, %302, %303 in 0 : vector<32x128xf32>, vector<32x128xf32>, vector<32x128xf32>, vector<32x128xf32> -> vector<128x128xf32>
      %305 = vector.extract_strided_slice %299 {offsets = [0, 512], sizes = [32, 128], strides = [1, 1]} : vector<32x1536xf32> to vector<32x128xf32>
      %306 = vector.extract_strided_slice %299 {offsets = [0, 640], sizes = [32, 128], strides = [1, 1]} : vector<32x1536xf32> to vector<32x128xf32>
      %307 = vector.extract_strided_slice %299 {offsets = [0, 768], sizes = [32, 128], strides = [1, 1]} : vector<32x1536xf32> to vector<32x128xf32>
      %308 = vector.extract_strided_slice %299 {offsets = [0, 896], sizes = [32, 128], strides = [1, 1]} : vector<32x1536xf32> to vector<32x128xf32>
      %309 = tpu.concatenate %305, %306, %307, %308 in 0 : vector<32x128xf32>, vector<32x128xf32>, vector<32x128xf32>, vector<32x128xf32> -> vector<128x128xf32>
      %310 = vector.extract_strided_slice %299 {offsets = [0, 1024], sizes = [32, 128], strides = [1, 1]} : vector<32x1536xf32> to vector<32x128xf32>
      %311 = vector.extract_strided_slice %299 {offsets = [0, 1152], sizes = [32, 128], strides = [1, 1]} : vector<32x1536xf32> to vector<32x128xf32>
      %312 = vector.extract_strided_slice %299 {offsets = [0, 1280], sizes = [32, 128], strides = [1, 1]} : vector<32x1536xf32> to vector<32x128xf32>
      %313 = vector.extract_strided_slice %299 {offsets = [0, 1408], sizes = [32, 128], strides = [1, 1]} : vector<32x1536xf32> to vector<32x128xf32>
      %314 = tpu.concatenate %310, %311, %312, %313 in 0 : vector<32x128xf32>, vector<32x128xf32>, vector<32x128xf32>, vector<32x128xf32> -> vector<128x128xf32>
      %cst_132 = arith.constant dense<0.000000e+00> : vector<128x128xf32>
      %315 = tpu.matmul %304, %309, %cst_132 {dimension_numbers = #tpu.dot_dimension_numbers<[1], [1], [0], [0], [0, 0, 1, 0], [], []>} : vector<128x128xf32>, vector<128x128xf32>, vector<128x128xf32> -> vector<128x128xf32>
      %c0_133 = arith.constant 0 : index
      %c0_134 = arith.constant 0 : index
      %316 = vector.load %arg1[%c0_133, %c0_134] : memref<128x128xf32, #tpu.memory_space<vmem>>, vector<128x128xf32>
      %317 = arith.addf %315, %316 : vector<128x128xf32>
      %cst_135 = arith.constant dense<0xFF800000> : vector<128xf32>
      %318 = vector.multi_reduction <maximumf>, %317, %cst_135 [1] : vector<128x128xf32> to vector<128xf32>
      %319 = vector.shape_cast %318 : vector<128xf32> to vector<128x1xf32>
      %320 = vector.broadcast %319 : vector<128x1xf32> to vector<128x128xf32>
      %321 = arith.subf %317, %320 : vector<128x128xf32>
      %322 = math.exp %321 : vector<128x128xf32>
      %cst_136 = arith.constant dense<0.000000e+00> : vector<128xf32>
      %323 = vector.multi_reduction <add>, %322, %cst_136 [1] : vector<128x128xf32> to vector<128xf32>
      %324 = vector.shape_cast %323 : vector<128xf32> to vector<128x1xf32>
      %325 = tpu.reciprocal %324 {approx = true} : vector<128x1xf32> -> vector<128x1xf32>
      %326 = vector.broadcast %325 : vector<128x1xf32> to vector<128x128xf32>
      %327 = arith.mulf %322, %326 : vector<128x128xf32>
      %cst_137 = arith.constant dense<0.000000e+00> : vector<128x128xf32>
      %328 = tpu.matmul %327, %314, %cst_137 {dimension_numbers = #tpu.dot_dimension_numbers<[1], [0], [0], [1], [0, 0, 1, 1], [], []>} : vector<128x128xf32>, vector<128x128xf32>, vector<128x128xf32> -> vector<128x128xf32>
      %329 = vector.extract_strided_slice %328 {offsets = [0, 0], sizes = [32, 128], strides = [1, 1]} : vector<128x128xf32> to vector<32x128xf32>
      %330 = vector.extract_strided_slice %328 {offsets = [32, 0], sizes = [32, 128], strides = [1, 1]} : vector<128x128xf32> to vector<32x128xf32>
      %331 = vector.extract_strided_slice %328 {offsets = [64, 0], sizes = [32, 128], strides = [1, 1]} : vector<128x128xf32> to vector<32x128xf32>
      %332 = vector.extract_strided_slice %328 {offsets = [96, 0], sizes = [32, 128], strides = [1, 1]} : vector<128x128xf32> to vector<32x128xf32>
      %333 = tpu.concatenate %329, %330, %331, %332 in 1 : vector<32x128xf32>, vector<32x128xf32>, vector<32x128xf32>, vector<32x128xf32> -> vector<32x512xf32>
      %c0_138 = arith.constant 0 : index
      %c0_139 = arith.constant 0 : index
      %334 = vector.load %arg5[%c0_138, %c0_139] : memref<512x16xf32, #tpu.memory_space<vmem>>, vector<512x16xf32>
      %cst_140 = arith.constant dense<0.000000e+00> : vector<32x16xf32>
      %335 = tpu.matmul %333, %334, %cst_140 {dimension_numbers = #tpu.dot_dimension_numbers<[1], [0], [0], [1], [0, 0, 1, 1], [], []>} : vector<32x512xf32>, vector<512x16xf32>, vector<32x16xf32> -> vector<32x16xf32>
      %c7_141 = arith.constant 7 : index
      %c0_142 = arith.constant 0 : index
      %336 = vector.load %arg11[%c7_141, %c0_142] : memref<10x16xf32, #tpu.memory_space<vmem>>, vector<1x16xf32>
      %337 = vector.broadcast %336 : vector<1x16xf32> to vector<32x16xf32>
      %338 = arith.addf %335, %337 : vector<32x16xf32>
      %339 = arith.addf %338, %275 : vector<32x16xf32>
      %c4_143 = arith.constant 4 : index
      %c0_144 = arith.constant 0 : index
      %340 = vector.load %arg11[%c4_143, %c0_144] : memref<10x16xf32, #tpu.memory_space<vmem>>, vector<1x16xf32>
      %c5_145 = arith.constant 5 : index
      %c0_146 = arith.constant 0 : index
      %341 = vector.load %arg11[%c5_145, %c0_146] : memref<10x16xf32, #tpu.memory_space<vmem>>, vector<1x16xf32>
      %cst_147 = arith.constant dense<0.000000e+00> : vector<32xf32>
      %342 = vector.multi_reduction <add>, %339, %cst_147 [1] : vector<32x16xf32> to vector<32xf32>
      %343 = vector.shape_cast %342 : vector<32xf32> to vector<32x1xf32>
      %cst_148 = arith.constant 1.600000e+01 : f32
      %344 = vector.broadcast %cst_148 : f32 to vector<32x1xf32>
      %345 = arith.divf %343, %344 : vector<32x1xf32>
      %346 = vector.broadcast %345 : vector<32x1xf32> to vector<32x16xf32>
      %347 = arith.subf %339, %346 : vector<32x16xf32>
      %348 = arith.mulf %347, %347 : vector<32x16xf32>
      %cst_149 = arith.constant dense<0.000000e+00> : vector<32xf32>
      %349 = vector.multi_reduction <add>, %348, %cst_149 [1] : vector<32x16xf32> to vector<32xf32>
      %350 = vector.shape_cast %349 : vector<32xf32> to vector<32x1xf32>
      %cst_150 = arith.constant 1.600000e+01 : f32
      %351 = vector.broadcast %cst_150 : f32 to vector<32x1xf32>
      %352 = arith.divf %350, %351 : vector<32x1xf32>
      %cst_151 = arith.constant 9.99999974E-6 : f32
      %353 = vector.broadcast %cst_151 : f32 to vector<32x1xf32>
      %354 = arith.addf %352, %353 : vector<32x1xf32>
      %355 = math.rsqrt %354 : vector<32x1xf32>
      %356 = vector.broadcast %355 : vector<32x1xf32> to vector<32x16xf32>
      %357 = arith.mulf %347, %356 : vector<32x16xf32>
      %358 = vector.broadcast %340 : vector<1x16xf32> to vector<32x16xf32>
      %359 = arith.mulf %357, %358 : vector<32x16xf32>
      %360 = vector.broadcast %341 : vector<1x16xf32> to vector<32x16xf32>
      %361 = arith.addf %359, %360 : vector<32x16xf32>
      %c0_152 = arith.constant 0 : index
      %c0_153 = arith.constant 0 : index
      %362 = vector.load %arg6[%c0_152, %c0_153] : memref<16x128xf32, #tpu.memory_space<vmem>>, vector<16x128xf32>
      %cst_154 = arith.constant dense<0.000000e+00> : vector<32x128xf32>
      %363 = tpu.matmul %361, %362, %cst_154 {dimension_numbers = #tpu.dot_dimension_numbers<[1], [0], [0], [1], [0, 0, 1, 1], [], []>} : vector<32x16xf32>, vector<16x128xf32>, vector<32x128xf32> -> vector<32x128xf32>
      %c2_155 = arith.constant 2 : index
      %c0_156 = arith.constant 0 : index
      %364 = vector.load %arg12[%c2_155, %c0_156] : memref<3x128xf32, #tpu.memory_space<vmem>>, vector<1x128xf32>
      %365 = vector.broadcast %364 : vector<1x128xf32> to vector<32x128xf32>
      %366 = arith.addf %363, %365 : vector<32x128xf32>
      %cst_157 = arith.constant 5.000000e-01 : f32
      %367 = vector.broadcast %cst_157 : f32 to vector<32x128xf32>
      %368 = arith.mulf %367, %366 : vector<32x128xf32>
      %cst_158 = arith.constant 0.707106769 : f32
      %369 = vector.broadcast %cst_158 : f32 to vector<32x128xf32>
      %370 = arith.mulf %366, %369 : vector<32x128xf32>
      %371 = math.absf %370 : vector<32x128xf32>
      %cst_159 = arith.constant 0.327591091 : f32
      %372 = vector.broadcast %cst_159 : f32 to vector<32x128xf32>
      %373 = arith.mulf %372, %371 : vector<32x128xf32>
      %cst_160 = arith.constant 1.000000e+00 : f32
      %374 = vector.broadcast %cst_160 : f32 to vector<32x128xf32>
      %375 = arith.addf %374, %373 : vector<32x128xf32>
      %cst_161 = arith.constant 1.000000e+00 : f32
      %376 = vector.broadcast %cst_161 : f32 to vector<32x128xf32>
      %377 = arith.divf %376, %375 : vector<32x128xf32>
      %cst_162 = arith.constant 1.06140542 : f32
      %378 = vector.broadcast %cst_162 : f32 to vector<32x128xf32>
      %379 = arith.mulf %377, %378 : vector<32x128xf32>
      %cst_163 = arith.constant -1.45315206 : f32
      %380 = vector.broadcast %cst_163 : f32 to vector<32x128xf32>
      %381 = arith.addf %380, %379 : vector<32x128xf32>
      %382 = arith.mulf %377, %381 : vector<32x128xf32>
      %cst_164 = arith.constant 1.42141378 : f32
      %383 = vector.broadcast %cst_164 : f32 to vector<32x128xf32>
      %384 = arith.addf %383, %382 : vector<32x128xf32>
      %385 = arith.mulf %377, %384 : vector<32x128xf32>
      %cst_165 = arith.constant -0.284496725 : f32
      %386 = vector.broadcast %cst_165 : f32 to vector<32x128xf32>
      %387 = arith.addf %386, %385 : vector<32x128xf32>
      %388 = arith.mulf %377, %387 : vector<32x128xf32>
      %cst_166 = arith.constant 0.254829586 : f32
      %389 = vector.broadcast %cst_166 : f32 to vector<32x128xf32>
      %390 = arith.addf %389, %388 : vector<32x128xf32>
      %391 = arith.mulf %377, %390 : vector<32x128xf32>
      %cst_167 = arith.constant 0.000000e+00 : f32
      %392 = vector.broadcast %cst_167 : f32 to vector<32x128xf32>
      %393 = arith.subf %392, %371 : vector<32x128xf32>
      %394 = arith.mulf %393, %371 : vector<32x128xf32>
      %395 = math.exp %394 : vector<32x128xf32>
      %396 = arith.mulf %391, %395 : vector<32x128xf32>
      %cst_168 = arith.constant 1.000000e+00 : f32
      %397 = vector.broadcast %cst_168 : f32 to vector<32x128xf32>
      %398 = arith.subf %397, %396 : vector<32x128xf32>
      %cst_169 = arith.constant 0.000000e+00 : f32
      %399 = vector.broadcast %cst_169 : f32 to vector<32x128xf32>
      %400 = arith.cmpf oge, %370, %399 : vector<32x128xf32>
      %cst_170 = arith.constant 0.000000e+00 : f32
      %401 = vector.broadcast %cst_170 : f32 to vector<32x128xf32>
      %402 = arith.subf %401, %398 : vector<32x128xf32>
      %403 = arith.select %400, %398, %402 : vector<32x128xi1>, vector<32x128xf32>
      %cst_171 = arith.constant 1.000000e+00 : f32
      %404 = vector.broadcast %cst_171 : f32 to vector<32x128xf32>
      %405 = arith.addf %404, %403 : vector<32x128xf32>
      %406 = arith.mulf %368, %405 : vector<32x128xf32>
      %c0_172 = arith.constant 0 : index
      %c0_173 = arith.constant 0 : index
      %407 = vector.load %arg7[%c0_172, %c0_173] : memref<128x16xf32, #tpu.memory_space<vmem>>, vector<128x16xf32>
      %cst_174 = arith.constant dense<0.000000e+00> : vector<32x16xf32>
      %408 = tpu.matmul %406, %407, %cst_174 {dimension_numbers = #tpu.dot_dimension_numbers<[1], [0], [0], [1], [0, 0, 1, 1], [], []>} : vector<32x128xf32>, vector<128x16xf32>, vector<32x16xf32> -> vector<32x16xf32>
      %c8_175 = arith.constant 8 : index
      %c0_176 = arith.constant 0 : index
      %409 = vector.load %arg11[%c8_175, %c0_176] : memref<10x16xf32, #tpu.memory_space<vmem>>, vector<1x16xf32>
      %410 = vector.broadcast %409 : vector<1x16xf32> to vector<32x16xf32>
      %411 = arith.addf %408, %410 : vector<32x16xf32>
      %412 = arith.addf %411, %339 : vector<32x16xf32>
      %c0_177 = arith.constant 0 : index
      %c0_178 = arith.constant 0 : index
      %413 = vector.load %arg13[%c0_177, %c0_178] : memref<24x32xf32, #tpu.memory_space<vmem>>, vector<8x32xf32>
      %c0_179 = arith.constant 0 : index
      %c0_180 = arith.constant 0 : index
      %414 = vector.load %arg10[%c0_179, %c0_180] : memref<32x16xf32, #tpu.memory_space<vmem>>, vector<32x16xf32>
      %415 = arith.mulf %412, %414 : vector<32x16xf32>
      %cst_181 = arith.constant dense<0.000000e+00> : vector<8x16xf32>
      %416 = tpu.matmul %413, %415, %cst_181 {dimension_numbers = #tpu.dot_dimension_numbers<[1], [0], [0], [1], [0, 0, 1, 1], [], []>} : vector<8x32xf32>, vector<32x16xf32>, vector<8x16xf32> -> vector<8x16xf32>
      %c9_182 = arith.constant 9 : index
      %c0_183 = arith.constant 0 : index
      %417 = vector.load %arg11[%c9_182, %c0_183] : memref<10x16xf32, #tpu.memory_space<vmem>>, vector<1x16xf32>
      %418 = vector.broadcast %417 : vector<1x16xf32> to vector<8x16xf32>
      %419 = arith.addf %416, %418 : vector<8x16xf32>
      %c8_184 = arith.constant 8 : index
      %c0_185 = arith.constant 0 : index
      %420 = vector.load %arg13[%c8_184, %c0_185] : memref<24x32xf32, #tpu.memory_space<vmem>>, vector<2x8xf32>
      %c16_186 = arith.constant 16 : index
      %c0_187 = arith.constant 0 : index
      %421 = vector.load %arg13[%c16_186, %c0_187] : memref<24x32xf32, #tpu.memory_space<vmem>>, vector<8x2xf32>
      %cst_188 = arith.constant dense<0.000000e+00> : vector<8xf32>
      %422 = vector.multi_reduction <add>, %419, %cst_188 [1] : vector<8x16xf32> to vector<8xf32>
      %423 = vector.shape_cast %422 : vector<8xf32> to vector<8x1xf32>
      %cst_189 = arith.constant dense<0.000000e+00> : vector<2x1xf32>
      %424 = tpu.matmul %420, %423, %cst_189 {dimension_numbers = #tpu.dot_dimension_numbers<[1], [0], [0], [1], [0, 0, 1, 1], [], []>} : vector<2x8xf32>, vector<8x1xf32>, vector<2x1xf32> -> vector<2x1xf32>
      %425 = arith.mulf %419, %419 : vector<8x16xf32>
      %cst_190 = arith.constant dense<0.000000e+00> : vector<8xf32>
      %426 = vector.multi_reduction <add>, %425, %cst_190 [1] : vector<8x16xf32> to vector<8xf32>
      %427 = vector.shape_cast %426 : vector<8xf32> to vector<8x1xf32>
      %cst_191 = arith.constant dense<0.000000e+00> : vector<2x1xf32>
      %428 = tpu.matmul %420, %427, %cst_191 {dimension_numbers = #tpu.dot_dimension_numbers<[1], [0], [0], [1], [0, 0, 1, 1], [], []>} : vector<2x8xf32>, vector<8x1xf32>, vector<2x1xf32> -> vector<2x1xf32>
      %cst_192 = arith.constant 1.562500e-02 : f32
      %429 = vector.broadcast %cst_192 : f32 to vector<2x1xf32>
      %430 = arith.mulf %424, %429 : vector<2x1xf32>
      %cst_193 = arith.constant 1.562500e-02 : f32
      %431 = vector.broadcast %cst_193 : f32 to vector<2x1xf32>
      %432 = arith.mulf %428, %431 : vector<2x1xf32>
      %433 = arith.mulf %430, %430 : vector<2x1xf32>
      %434 = arith.subf %432, %433 : vector<2x1xf32>
      %cst_194 = arith.constant 0.000000e+00 : f32
      %435 = vector.broadcast %cst_194 : f32 to vector<2x1xf32>
      %436 = arith.maximumf %434, %435 : vector<2x1xf32>
      %cst_195 = arith.constant 9.99999997E-7 : f32
      %437 = vector.broadcast %cst_195 : f32 to vector<2x1xf32>
      %438 = arith.addf %436, %437 : vector<2x1xf32>
      %439 = math.rsqrt %438 : vector<2x1xf32>
      %cst_196 = arith.constant dense<0.000000e+00> : vector<8x1xf32>
      %440 = tpu.matmul %421, %430, %cst_196 {dimension_numbers = #tpu.dot_dimension_numbers<[1], [0], [0], [1], [0, 0, 1, 1], [], []>} : vector<8x2xf32>, vector<2x1xf32>, vector<8x1xf32> -> vector<8x1xf32>
      %cst_197 = arith.constant dense<0.000000e+00> : vector<8x1xf32>
      %441 = tpu.matmul %421, %439, %cst_197 {dimension_numbers = #tpu.dot_dimension_numbers<[1], [0], [0], [1], [0, 0, 1, 1], [], []>} : vector<8x2xf32>, vector<2x1xf32>, vector<8x1xf32> -> vector<8x1xf32>
      %442 = vector.broadcast %440 : vector<8x1xf32> to vector<8x16xf32>
      %443 = arith.subf %419, %442 : vector<8x16xf32>
      %444 = vector.broadcast %441 : vector<8x1xf32> to vector<8x16xf32>
      %445 = arith.mulf %443, %444 : vector<8x16xf32>
      %c40 = arith.constant 40 : index
      %c0_198 = arith.constant 0 : index
      %446 = vector.load %arg9[%c40, %c0_198] : memref<56x64xf32, #tpu.memory_space<vmem>>, vector<16x64xf32>
      %cst_199 = arith.constant dense<0.000000e+00> : vector<8x64xf32>
      %447 = tpu.matmul %445, %446, %cst_199 {dimension_numbers = #tpu.dot_dimension_numbers<[1], [0], [0], [1], [0, 0, 1, 1], [], []>} : vector<8x16xf32>, vector<16x64xf32>, vector<8x64xf32> -> vector<8x64xf32>
      %c32 = arith.constant 32 : index
      %c0_200 = arith.constant 0 : index
      %448 = vector.load %arg9[%c32, %c0_200] : memref<56x64xf32, #tpu.memory_space<vmem>>, vector<8x64xf32>
      %449 = arith.mulf %447, %448 : vector<8x64xf32>
      %c0_201 = arith.constant 0 : index
      %c0_202 = arith.constant 0 : index
      %450 = vector.load %arg8[%c0_201, %c0_202] : memref<64x256xf32, #tpu.memory_space<vmem>>, vector<64x256xf32>
      %cst_203 = arith.constant dense<0.000000e+00> : vector<8x256xf32>
      %451 = tpu.matmul %449, %450, %cst_203 {dimension_numbers = #tpu.dot_dimension_numbers<[1], [0], [0], [1], [0, 0, 1, 1], [], []>} : vector<8x64xf32>, vector<64x256xf32>, vector<8x256xf32> -> vector<8x256xf32>
      %452 = vector.extract_strided_slice %451 {offsets = [0, 0], sizes = [8, 64], strides = [1, 1]} : vector<8x256xf32> to vector<8x64xf32>
      %453 = vector.extract_strided_slice %451 {offsets = [0, 64], sizes = [8, 64], strides = [1, 1]} : vector<8x256xf32> to vector<8x64xf32>
      %454 = vector.extract_strided_slice %451 {offsets = [0, 128], sizes = [8, 64], strides = [1, 1]} : vector<8x256xf32> to vector<8x64xf32>
      %455 = vector.extract_strided_slice %451 {offsets = [0, 192], sizes = [8, 64], strides = [1, 1]} : vector<8x256xf32> to vector<8x64xf32>
      %456 = tpu.concatenate %452, %453, %454, %455 in 0 : vector<8x64xf32>, vector<8x64xf32>, vector<8x64xf32>, vector<8x64xf32> -> vector<32x64xf32>
      %c0_204 = arith.constant 0 : index
      %c0_205 = arith.constant 0 : index
      %457 = vector.load %arg9[%c0_204, %c0_205] : memref<56x64xf32, #tpu.memory_space<vmem>>, vector<32x64xf32>
      %458 = arith.addf %456, %457 : vector<32x64xf32>
      scf.yield %458 : vector<32x64xf32>
    }
    %c0_1 = arith.constant 0 : index
    %c0_2 = arith.constant 0 : index
    %3 = vector.load %arg12[%c0_1, %c0_2] : memref<3x128xf32, #tpu.memory_space<vmem>>, vector<1x64xf32>
    %c1 = arith.constant 1 : index
    %c0_3 = arith.constant 0 : index
    %4 = vector.load %arg12[%c1, %c0_3] : memref<3x128xf32, #tpu.memory_space<vmem>>, vector<1x64xf32>
    %cst = arith.constant dense<0.000000e+00> : vector<32xf32>
    %5 = vector.multi_reduction <add>, %2, %cst [1] : vector<32x64xf32> to vector<32xf32>
    %6 = vector.shape_cast %5 : vector<32xf32> to vector<32x1xf32>
    %cst_4 = arith.constant 6.400000e+01 : f32
    %7 = vector.broadcast %cst_4 : f32 to vector<32x1xf32>
    %8 = arith.divf %6, %7 : vector<32x1xf32>
    %9 = vector.broadcast %8 : vector<32x1xf32> to vector<32x64xf32>
    %10 = arith.subf %2, %9 : vector<32x64xf32>
    %11 = arith.mulf %10, %10 : vector<32x64xf32>
    %cst_5 = arith.constant dense<0.000000e+00> : vector<32xf32>
    %12 = vector.multi_reduction <add>, %11, %cst_5 [1] : vector<32x64xf32> to vector<32xf32>
    %13 = vector.shape_cast %12 : vector<32xf32> to vector<32x1xf32>
    %cst_6 = arith.constant 6.400000e+01 : f32
    %14 = vector.broadcast %cst_6 : f32 to vector<32x1xf32>
    %15 = arith.divf %13, %14 : vector<32x1xf32>
    %cst_7 = arith.constant 9.99999974E-6 : f32
    %16 = vector.broadcast %cst_7 : f32 to vector<32x1xf32>
    %17 = arith.addf %15, %16 : vector<32x1xf32>
    %18 = math.rsqrt %17 : vector<32x1xf32>
    %19 = vector.broadcast %18 : vector<32x1xf32> to vector<32x64xf32>
    %20 = arith.mulf %10, %19 : vector<32x64xf32>
    %21 = vector.broadcast %3 : vector<1x64xf32> to vector<32x64xf32>
    %22 = arith.mulf %20, %21 : vector<32x64xf32>
    %23 = vector.broadcast %4 : vector<1x64xf32> to vector<32x64xf32>
    %24 = arith.addf %22, %23 : vector<32x64xf32>
    %c0_8 = arith.constant 0 : index
    %c0_9 = arith.constant 0 : index
    %25 = vector.load %arg3[%c0_8, %c0_9] : memref<64x16xf32, #tpu.memory_space<vmem>>, vector<64x16xf32>
    %cst_10 = arith.constant dense<0.000000e+00> : vector<32x16xf32>
    %26 = tpu.matmul %24, %25, %cst_10 {dimension_numbers = #tpu.dot_dimension_numbers<[1], [0], [0], [1], [0, 0, 1, 1], [], []>} : vector<32x64xf32>, vector<64x16xf32>, vector<32x16xf32> -> vector<32x16xf32>
    %c6 = arith.constant 6 : index
    %c0_11 = arith.constant 0 : index
    %27 = vector.load %arg11[%c6, %c0_11] : memref<10x16xf32, #tpu.memory_space<vmem>>, vector<1x16xf32>
    %28 = vector.broadcast %27 : vector<1x16xf32> to vector<32x16xf32>
    %29 = arith.addf %26, %28 : vector<32x16xf32>
    %c0_12 = arith.constant 0 : index
    %c0_13 = arith.constant 0 : index
    %30 = vector.load %arg11[%c0_12, %c0_13] : memref<10x16xf32, #tpu.memory_space<vmem>>, vector<1x16xf32>
    %c1_14 = arith.constant 1 : index
    %c0_15 = arith.constant 0 : index
    %31 = vector.load %arg11[%c1_14, %c0_15] : memref<10x16xf32, #tpu.memory_space<vmem>>, vector<1x16xf32>
    %cst_16 = arith.constant dense<0.000000e+00> : vector<32xf32>
    %32 = vector.multi_reduction <add>, %29, %cst_16 [1] : vector<32x16xf32> to vector<32xf32>
    %33 = vector.shape_cast %32 : vector<32xf32> to vector<32x1xf32>
    %cst_17 = arith.constant 1.600000e+01 : f32
    %34 = vector.broadcast %cst_17 : f32 to vector<32x1xf32>
    %35 = arith.divf %33, %34 : vector<32x1xf32>
    %36 = vector.broadcast %35 : vector<32x1xf32> to vector<32x16xf32>
    %37 = arith.subf %29, %36 : vector<32x16xf32>
    %38 = arith.mulf %37, %37 : vector<32x16xf32>
    %cst_18 = arith.constant dense<0.000000e+00> : vector<32xf32>
    %39 = vector.multi_reduction <add>, %38, %cst_18 [1] : vector<32x16xf32> to vector<32xf32>
    %40 = vector.shape_cast %39 : vector<32xf32> to vector<32x1xf32>
    %cst_19 = arith.constant 1.600000e+01 : f32
    %41 = vector.broadcast %cst_19 : f32 to vector<32x1xf32>
    %42 = arith.divf %40, %41 : vector<32x1xf32>
    %cst_20 = arith.constant 9.99999974E-6 : f32
    %43 = vector.broadcast %cst_20 : f32 to vector<32x1xf32>
    %44 = arith.addf %42, %43 : vector<32x1xf32>
    %45 = math.rsqrt %44 : vector<32x1xf32>
    %46 = vector.broadcast %45 : vector<32x1xf32> to vector<32x16xf32>
    %47 = arith.mulf %37, %46 : vector<32x16xf32>
    %48 = vector.broadcast %30 : vector<1x16xf32> to vector<32x16xf32>
    %49 = arith.mulf %47, %48 : vector<32x16xf32>
    %50 = vector.broadcast %31 : vector<1x16xf32> to vector<32x16xf32>
    %51 = arith.addf %49, %50 : vector<32x16xf32>
    %c0_21 = arith.constant 0 : index
    %c0_22 = arith.constant 0 : index
    %52 = vector.load %arg2[%c0_21, %c0_22] : memref<32x16xf32, #tpu.memory_space<vmem>>, vector<32x16xf32>
    %53 = arith.addf %51, %52 : vector<32x16xf32>
    %c2 = arith.constant 2 : index
    %c0_23 = arith.constant 0 : index
    %54 = vector.load %arg11[%c2, %c0_23] : memref<10x16xf32, #tpu.memory_space<vmem>>, vector<1x16xf32>
    %c3 = arith.constant 3 : index
    %c0_24 = arith.constant 0 : index
    %55 = vector.load %arg11[%c3, %c0_24] : memref<10x16xf32, #tpu.memory_space<vmem>>, vector<1x16xf32>
    %cst_25 = arith.constant dense<0.000000e+00> : vector<32xf32>
    %56 = vector.multi_reduction <add>, %53, %cst_25 [1] : vector<32x16xf32> to vector<32xf32>
    %57 = vector.shape_cast %56 : vector<32xf32> to vector<32x1xf32>
    %cst_26 = arith.constant 1.600000e+01 : f32
    %58 = vector.broadcast %cst_26 : f32 to vector<32x1xf32>
    %59 = arith.divf %57, %58 : vector<32x1xf32>
    %60 = vector.broadcast %59 : vector<32x1xf32> to vector<32x16xf32>
    %61 = arith.subf %53, %60 : vector<32x16xf32>
    %62 = arith.mulf %61, %61 : vector<32x16xf32>
    %cst_27 = arith.constant dense<0.000000e+00> : vector<32xf32>
    %63 = vector.multi_reduction <add>, %62, %cst_27 [1] : vector<32x16xf32> to vector<32xf32>
    %64 = vector.shape_cast %63 : vector<32xf32> to vector<32x1xf32>
    %cst_28 = arith.constant 1.600000e+01 : f32
    %65 = vector.broadcast %cst_28 : f32 to vector<32x1xf32>
    %66 = arith.divf %64, %65 : vector<32x1xf32>
    %cst_29 = arith.constant 9.99999974E-6 : f32
    %67 = vector.broadcast %cst_29 : f32 to vector<32x1xf32>
    %68 = arith.addf %66, %67 : vector<32x1xf32>
    %69 = math.rsqrt %68 : vector<32x1xf32>
    %70 = vector.broadcast %69 : vector<32x1xf32> to vector<32x16xf32>
    %71 = arith.mulf %61, %70 : vector<32x16xf32>
    %72 = vector.broadcast %54 : vector<1x16xf32> to vector<32x16xf32>
    %73 = arith.mulf %71, %72 : vector<32x16xf32>
    %74 = vector.broadcast %55 : vector<1x16xf32> to vector<32x16xf32>
    %75 = arith.addf %73, %74 : vector<32x16xf32>
    %c0_30 = arith.constant 0 : index
    %c0_31 = arith.constant 0 : index
    %76 = vector.load %arg4[%c0_30, %c0_31] : memref<16x1536xf32, #tpu.memory_space<vmem>>, vector<16x1536xf32>
    %cst_32 = arith.constant dense<0.000000e+00> : vector<32x1536xf32>
    %77 = tpu.matmul %75, %76, %cst_32 {dimension_numbers = #tpu.dot_dimension_numbers<[1], [0], [0], [1], [0, 0, 1, 1], [], []>} : vector<32x16xf32>, vector<16x1536xf32>, vector<32x1536xf32> -> vector<32x1536xf32>
    %78 = vector.extract_strided_slice %77 {offsets = [0, 0], sizes = [32, 128], strides = [1, 1]} : vector<32x1536xf32> to vector<32x128xf32>
    %79 = vector.extract_strided_slice %77 {offsets = [0, 128], sizes = [32, 128], strides = [1, 1]} : vector<32x1536xf32> to vector<32x128xf32>
    %80 = vector.extract_strided_slice %77 {offsets = [0, 256], sizes = [32, 128], strides = [1, 1]} : vector<32x1536xf32> to vector<32x128xf32>
    %81 = vector.extract_strided_slice %77 {offsets = [0, 384], sizes = [32, 128], strides = [1, 1]} : vector<32x1536xf32> to vector<32x128xf32>
    %82 = tpu.concatenate %78, %79, %80, %81 in 0 : vector<32x128xf32>, vector<32x128xf32>, vector<32x128xf32>, vector<32x128xf32> -> vector<128x128xf32>
    %83 = vector.extract_strided_slice %77 {offsets = [0, 512], sizes = [32, 128], strides = [1, 1]} : vector<32x1536xf32> to vector<32x128xf32>
    %84 = vector.extract_strided_slice %77 {offsets = [0, 640], sizes = [32, 128], strides = [1, 1]} : vector<32x1536xf32> to vector<32x128xf32>
    %85 = vector.extract_strided_slice %77 {offsets = [0, 768], sizes = [32, 128], strides = [1, 1]} : vector<32x1536xf32> to vector<32x128xf32>
    %86 = vector.extract_strided_slice %77 {offsets = [0, 896], sizes = [32, 128], strides = [1, 1]} : vector<32x1536xf32> to vector<32x128xf32>
    %87 = tpu.concatenate %83, %84, %85, %86 in 0 : vector<32x128xf32>, vector<32x128xf32>, vector<32x128xf32>, vector<32x128xf32> -> vector<128x128xf32>
    %88 = vector.extract_strided_slice %77 {offsets = [0, 1024], sizes = [32, 128], strides = [1, 1]} : vector<32x1536xf32> to vector<32x128xf32>
    %89 = vector.extract_strided_slice %77 {offsets = [0, 1152], sizes = [32, 128], strides = [1, 1]} : vector<32x1536xf32> to vector<32x128xf32>
    %90 = vector.extract_strided_slice %77 {offsets = [0, 1280], sizes = [32, 128], strides = [1, 1]} : vector<32x1536xf32> to vector<32x128xf32>
    %91 = vector.extract_strided_slice %77 {offsets = [0, 1408], sizes = [32, 128], strides = [1, 1]} : vector<32x1536xf32> to vector<32x128xf32>
    %92 = tpu.concatenate %88, %89, %90, %91 in 0 : vector<32x128xf32>, vector<32x128xf32>, vector<32x128xf32>, vector<32x128xf32> -> vector<128x128xf32>
    %cst_33 = arith.constant dense<0.000000e+00> : vector<128x128xf32>
    %93 = tpu.matmul %82, %87, %cst_33 {dimension_numbers = #tpu.dot_dimension_numbers<[1], [1], [0], [0], [0, 0, 1, 0], [], []>} : vector<128x128xf32>, vector<128x128xf32>, vector<128x128xf32> -> vector<128x128xf32>
    %c0_34 = arith.constant 0 : index
    %c0_35 = arith.constant 0 : index
    %94 = vector.load %arg1[%c0_34, %c0_35] : memref<128x128xf32, #tpu.memory_space<vmem>>, vector<128x128xf32>
    %95 = arith.addf %93, %94 : vector<128x128xf32>
    %cst_36 = arith.constant dense<0xFF800000> : vector<128xf32>
    %96 = vector.multi_reduction <maximumf>, %95, %cst_36 [1] : vector<128x128xf32> to vector<128xf32>
    %97 = vector.shape_cast %96 : vector<128xf32> to vector<128x1xf32>
    %98 = vector.broadcast %97 : vector<128x1xf32> to vector<128x128xf32>
    %99 = arith.subf %95, %98 : vector<128x128xf32>
    %100 = math.exp %99 : vector<128x128xf32>
    %cst_37 = arith.constant dense<0.000000e+00> : vector<128xf32>
    %101 = vector.multi_reduction <add>, %100, %cst_37 [1] : vector<128x128xf32> to vector<128xf32>
    %102 = vector.shape_cast %101 : vector<128xf32> to vector<128x1xf32>
    %103 = tpu.reciprocal %102 {approx = true} : vector<128x1xf32> -> vector<128x1xf32>
    %104 = vector.broadcast %103 : vector<128x1xf32> to vector<128x128xf32>
    %105 = arith.mulf %100, %104 : vector<128x128xf32>
    %cst_38 = arith.constant dense<0.000000e+00> : vector<128x128xf32>
    %106 = tpu.matmul %105, %92, %cst_38 {dimension_numbers = #tpu.dot_dimension_numbers<[1], [0], [0], [1], [0, 0, 1, 1], [], []>} : vector<128x128xf32>, vector<128x128xf32>, vector<128x128xf32> -> vector<128x128xf32>
    %107 = vector.extract_strided_slice %106 {offsets = [0, 0], sizes = [32, 128], strides = [1, 1]} : vector<128x128xf32> to vector<32x128xf32>
    %108 = vector.extract_strided_slice %106 {offsets = [32, 0], sizes = [32, 128], strides = [1, 1]} : vector<128x128xf32> to vector<32x128xf32>
    %109 = vector.extract_strided_slice %106 {offsets = [64, 0], sizes = [32, 128], strides = [1, 1]} : vector<128x128xf32> to vector<32x128xf32>
    %110 = vector.extract_strided_slice %106 {offsets = [96, 0], sizes = [32, 128], strides = [1, 1]} : vector<128x128xf32> to vector<32x128xf32>
    %111 = tpu.concatenate %107, %108, %109, %110 in 1 : vector<32x128xf32>, vector<32x128xf32>, vector<32x128xf32>, vector<32x128xf32> -> vector<32x512xf32>
    %c0_39 = arith.constant 0 : index
    %c0_40 = arith.constant 0 : index
    %112 = vector.load %arg5[%c0_39, %c0_40] : memref<512x16xf32, #tpu.memory_space<vmem>>, vector<512x16xf32>
    %cst_41 = arith.constant dense<0.000000e+00> : vector<32x16xf32>
    %113 = tpu.matmul %111, %112, %cst_41 {dimension_numbers = #tpu.dot_dimension_numbers<[1], [0], [0], [1], [0, 0, 1, 1], [], []>} : vector<32x512xf32>, vector<512x16xf32>, vector<32x16xf32> -> vector<32x16xf32>
    %c7 = arith.constant 7 : index
    %c0_42 = arith.constant 0 : index
    %114 = vector.load %arg11[%c7, %c0_42] : memref<10x16xf32, #tpu.memory_space<vmem>>, vector<1x16xf32>
    %115 = vector.broadcast %114 : vector<1x16xf32> to vector<32x16xf32>
    %116 = arith.addf %113, %115 : vector<32x16xf32>
    %117 = arith.addf %116, %53 : vector<32x16xf32>
    %c4 = arith.constant 4 : index
    %c0_43 = arith.constant 0 : index
    %118 = vector.load %arg11[%c4, %c0_43] : memref<10x16xf32, #tpu.memory_space<vmem>>, vector<1x16xf32>
    %c5 = arith.constant 5 : index
    %c0_44 = arith.constant 0 : index
    %119 = vector.load %arg11[%c5, %c0_44] : memref<10x16xf32, #tpu.memory_space<vmem>>, vector<1x16xf32>
    %cst_45 = arith.constant dense<0.000000e+00> : vector<32xf32>
    %120 = vector.multi_reduction <add>, %117, %cst_45 [1] : vector<32x16xf32> to vector<32xf32>
    %121 = vector.shape_cast %120 : vector<32xf32> to vector<32x1xf32>
    %cst_46 = arith.constant 1.600000e+01 : f32
    %122 = vector.broadcast %cst_46 : f32 to vector<32x1xf32>
    %123 = arith.divf %121, %122 : vector<32x1xf32>
    %124 = vector.broadcast %123 : vector<32x1xf32> to vector<32x16xf32>
    %125 = arith.subf %117, %124 : vector<32x16xf32>
    %126 = arith.mulf %125, %125 : vector<32x16xf32>
    %cst_47 = arith.constant dense<0.000000e+00> : vector<32xf32>
    %127 = vector.multi_reduction <add>, %126, %cst_47 [1] : vector<32x16xf32> to vector<32xf32>
    %128 = vector.shape_cast %127 : vector<32xf32> to vector<32x1xf32>
    %cst_48 = arith.constant 1.600000e+01 : f32
    %129 = vector.broadcast %cst_48 : f32 to vector<32x1xf32>
    %130 = arith.divf %128, %129 : vector<32x1xf32>
    %cst_49 = arith.constant 9.99999974E-6 : f32
    %131 = vector.broadcast %cst_49 : f32 to vector<32x1xf32>
    %132 = arith.addf %130, %131 : vector<32x1xf32>
    %133 = math.rsqrt %132 : vector<32x1xf32>
    %134 = vector.broadcast %133 : vector<32x1xf32> to vector<32x16xf32>
    %135 = arith.mulf %125, %134 : vector<32x16xf32>
    %136 = vector.broadcast %118 : vector<1x16xf32> to vector<32x16xf32>
    %137 = arith.mulf %135, %136 : vector<32x16xf32>
    %138 = vector.broadcast %119 : vector<1x16xf32> to vector<32x16xf32>
    %139 = arith.addf %137, %138 : vector<32x16xf32>
    %c0_50 = arith.constant 0 : index
    %c0_51 = arith.constant 0 : index
    %140 = vector.load %arg6[%c0_50, %c0_51] : memref<16x128xf32, #tpu.memory_space<vmem>>, vector<16x128xf32>
    %cst_52 = arith.constant dense<0.000000e+00> : vector<32x128xf32>
    %141 = tpu.matmul %139, %140, %cst_52 {dimension_numbers = #tpu.dot_dimension_numbers<[1], [0], [0], [1], [0, 0, 1, 1], [], []>} : vector<32x16xf32>, vector<16x128xf32>, vector<32x128xf32> -> vector<32x128xf32>
    %c2_53 = arith.constant 2 : index
    %c0_54 = arith.constant 0 : index
    %142 = vector.load %arg12[%c2_53, %c0_54] : memref<3x128xf32, #tpu.memory_space<vmem>>, vector<1x128xf32>
    %143 = vector.broadcast %142 : vector<1x128xf32> to vector<32x128xf32>
    %144 = arith.addf %141, %143 : vector<32x128xf32>
    %cst_55 = arith.constant 5.000000e-01 : f32
    %145 = vector.broadcast %cst_55 : f32 to vector<32x128xf32>
    %146 = arith.mulf %145, %144 : vector<32x128xf32>
    %cst_56 = arith.constant 0.707106769 : f32
    %147 = vector.broadcast %cst_56 : f32 to vector<32x128xf32>
    %148 = arith.mulf %144, %147 : vector<32x128xf32>
    %149 = math.absf %148 : vector<32x128xf32>
    %cst_57 = arith.constant 0.327591091 : f32
    %150 = vector.broadcast %cst_57 : f32 to vector<32x128xf32>
    %151 = arith.mulf %150, %149 : vector<32x128xf32>
    %cst_58 = arith.constant 1.000000e+00 : f32
    %152 = vector.broadcast %cst_58 : f32 to vector<32x128xf32>
    %153 = arith.addf %152, %151 : vector<32x128xf32>
    %cst_59 = arith.constant 1.000000e+00 : f32
    %154 = vector.broadcast %cst_59 : f32 to vector<32x128xf32>
    %155 = arith.divf %154, %153 : vector<32x128xf32>
    %cst_60 = arith.constant 1.06140542 : f32
    %156 = vector.broadcast %cst_60 : f32 to vector<32x128xf32>
    %157 = arith.mulf %155, %156 : vector<32x128xf32>
    %cst_61 = arith.constant -1.45315206 : f32
    %158 = vector.broadcast %cst_61 : f32 to vector<32x128xf32>
    %159 = arith.addf %158, %157 : vector<32x128xf32>
    %160 = arith.mulf %155, %159 : vector<32x128xf32>
    %cst_62 = arith.constant 1.42141378 : f32
    %161 = vector.broadcast %cst_62 : f32 to vector<32x128xf32>
    %162 = arith.addf %161, %160 : vector<32x128xf32>
    %163 = arith.mulf %155, %162 : vector<32x128xf32>
    %cst_63 = arith.constant -0.284496725 : f32
    %164 = vector.broadcast %cst_63 : f32 to vector<32x128xf32>
    %165 = arith.addf %164, %163 : vector<32x128xf32>
    %166 = arith.mulf %155, %165 : vector<32x128xf32>
    %cst_64 = arith.constant 0.254829586 : f32
    %167 = vector.broadcast %cst_64 : f32 to vector<32x128xf32>
    %168 = arith.addf %167, %166 : vector<32x128xf32>
    %169 = arith.mulf %155, %168 : vector<32x128xf32>
    %cst_65 = arith.constant 0.000000e+00 : f32
    %170 = vector.broadcast %cst_65 : f32 to vector<32x128xf32>
    %171 = arith.subf %170, %149 : vector<32x128xf32>
    %172 = arith.mulf %171, %149 : vector<32x128xf32>
    %173 = math.exp %172 : vector<32x128xf32>
    %174 = arith.mulf %169, %173 : vector<32x128xf32>
    %cst_66 = arith.constant 1.000000e+00 : f32
    %175 = vector.broadcast %cst_66 : f32 to vector<32x128xf32>
    %176 = arith.subf %175, %174 : vector<32x128xf32>
    %cst_67 = arith.constant 0.000000e+00 : f32
    %177 = vector.broadcast %cst_67 : f32 to vector<32x128xf32>
    %178 = arith.cmpf oge, %148, %177 : vector<32x128xf32>
    %cst_68 = arith.constant 0.000000e+00 : f32
    %179 = vector.broadcast %cst_68 : f32 to vector<32x128xf32>
    %180 = arith.subf %179, %176 : vector<32x128xf32>
    %181 = arith.select %178, %176, %180 : vector<32x128xi1>, vector<32x128xf32>
    %cst_69 = arith.constant 1.000000e+00 : f32
    %182 = vector.broadcast %cst_69 : f32 to vector<32x128xf32>
    %183 = arith.addf %182, %181 : vector<32x128xf32>
    %184 = arith.mulf %146, %183 : vector<32x128xf32>
    %c0_70 = arith.constant 0 : index
    %c0_71 = arith.constant 0 : index
    %185 = vector.load %arg7[%c0_70, %c0_71] : memref<128x16xf32, #tpu.memory_space<vmem>>, vector<128x16xf32>
    %cst_72 = arith.constant dense<0.000000e+00> : vector<32x16xf32>
    %186 = tpu.matmul %184, %185, %cst_72 {dimension_numbers = #tpu.dot_dimension_numbers<[1], [0], [0], [1], [0, 0, 1, 1], [], []>} : vector<32x128xf32>, vector<128x16xf32>, vector<32x16xf32> -> vector<32x16xf32>
    %c8 = arith.constant 8 : index
    %c0_73 = arith.constant 0 : index
    %187 = vector.load %arg11[%c8, %c0_73] : memref<10x16xf32, #tpu.memory_space<vmem>>, vector<1x16xf32>
    %188 = vector.broadcast %187 : vector<1x16xf32> to vector<32x16xf32>
    %189 = arith.addf %186, %188 : vector<32x16xf32>
    %190 = arith.addf %189, %117 : vector<32x16xf32>
    %c0_74 = arith.constant 0 : index
    %c0_75 = arith.constant 0 : index
    %191 = vector.load %arg13[%c0_74, %c0_75] : memref<24x32xf32, #tpu.memory_space<vmem>>, vector<8x32xf32>
    %c0_76 = arith.constant 0 : index
    %c0_77 = arith.constant 0 : index
    %192 = vector.load %arg10[%c0_76, %c0_77] : memref<32x16xf32, #tpu.memory_space<vmem>>, vector<32x16xf32>
    %193 = arith.mulf %190, %192 : vector<32x16xf32>
    %cst_78 = arith.constant dense<0.000000e+00> : vector<8x16xf32>
    %194 = tpu.matmul %191, %193, %cst_78 {dimension_numbers = #tpu.dot_dimension_numbers<[1], [0], [0], [1], [0, 0, 1, 1], [], []>} : vector<8x32xf32>, vector<32x16xf32>, vector<8x16xf32> -> vector<8x16xf32>
    %c9 = arith.constant 9 : index
    %c0_79 = arith.constant 0 : index
    %195 = vector.load %arg11[%c9, %c0_79] : memref<10x16xf32, #tpu.memory_space<vmem>>, vector<1x16xf32>
    %196 = vector.broadcast %195 : vector<1x16xf32> to vector<8x16xf32>
    %197 = arith.addf %194, %196 : vector<8x16xf32>
    %c8_80 = arith.constant 8 : index
    %c0_81 = arith.constant 0 : index
    %198 = vector.load %arg13[%c8_80, %c0_81] : memref<24x32xf32, #tpu.memory_space<vmem>>, vector<2x8xf32>
    %c16 = arith.constant 16 : index
    %c0_82 = arith.constant 0 : index
    %199 = vector.load %arg13[%c16, %c0_82] : memref<24x32xf32, #tpu.memory_space<vmem>>, vector<8x2xf32>
    %cst_83 = arith.constant dense<0.000000e+00> : vector<8xf32>
    %200 = vector.multi_reduction <add>, %197, %cst_83 [1] : vector<8x16xf32> to vector<8xf32>
    %201 = vector.shape_cast %200 : vector<8xf32> to vector<8x1xf32>
    %cst_84 = arith.constant dense<0.000000e+00> : vector<2x1xf32>
    %202 = tpu.matmul %198, %201, %cst_84 {dimension_numbers = #tpu.dot_dimension_numbers<[1], [0], [0], [1], [0, 0, 1, 1], [], []>} : vector<2x8xf32>, vector<8x1xf32>, vector<2x1xf32> -> vector<2x1xf32>
    %203 = arith.mulf %197, %197 : vector<8x16xf32>
    %cst_85 = arith.constant dense<0.000000e+00> : vector<8xf32>
    %204 = vector.multi_reduction <add>, %203, %cst_85 [1] : vector<8x16xf32> to vector<8xf32>
    %205 = vector.shape_cast %204 : vector<8xf32> to vector<8x1xf32>
    %cst_86 = arith.constant dense<0.000000e+00> : vector<2x1xf32>
    %206 = tpu.matmul %198, %205, %cst_86 {dimension_numbers = #tpu.dot_dimension_numbers<[1], [0], [0], [1], [0, 0, 1, 1], [], []>} : vector<2x8xf32>, vector<8x1xf32>, vector<2x1xf32> -> vector<2x1xf32>
    %cst_87 = arith.constant 1.562500e-02 : f32
    %207 = vector.broadcast %cst_87 : f32 to vector<2x1xf32>
    %208 = arith.mulf %202, %207 : vector<2x1xf32>
    %cst_88 = arith.constant 1.562500e-02 : f32
    %209 = vector.broadcast %cst_88 : f32 to vector<2x1xf32>
    %210 = arith.mulf %206, %209 : vector<2x1xf32>
    %211 = arith.mulf %208, %208 : vector<2x1xf32>
    %212 = arith.subf %210, %211 : vector<2x1xf32>
    %cst_89 = arith.constant 0.000000e+00 : f32
    %213 = vector.broadcast %cst_89 : f32 to vector<2x1xf32>
    %214 = arith.maximumf %212, %213 : vector<2x1xf32>
    %cst_90 = arith.constant 9.99999997E-7 : f32
    %215 = vector.broadcast %cst_90 : f32 to vector<2x1xf32>
    %216 = arith.addf %214, %215 : vector<2x1xf32>
    %217 = math.rsqrt %216 : vector<2x1xf32>
    %cst_91 = arith.constant dense<0.000000e+00> : vector<8x1xf32>
    %218 = tpu.matmul %199, %208, %cst_91 {dimension_numbers = #tpu.dot_dimension_numbers<[1], [0], [0], [1], [0, 0, 1, 1], [], []>} : vector<8x2xf32>, vector<2x1xf32>, vector<8x1xf32> -> vector<8x1xf32>
    %cst_92 = arith.constant dense<0.000000e+00> : vector<8x1xf32>
    %219 = tpu.matmul %199, %217, %cst_92 {dimension_numbers = #tpu.dot_dimension_numbers<[1], [0], [0], [1], [0, 0, 1, 1], [], []>} : vector<8x2xf32>, vector<2x1xf32>, vector<8x1xf32> -> vector<8x1xf32>
    %220 = vector.broadcast %218 : vector<8x1xf32> to vector<8x16xf32>
    %221 = arith.subf %197, %220 : vector<8x16xf32>
    %222 = vector.broadcast %219 : vector<8x1xf32> to vector<8x16xf32>
    %223 = arith.mulf %221, %222 : vector<8x16xf32>
    %c0_93 = arith.constant 0 : index
    %c0_94 = arith.constant 0 : index
    %224 = vector.load %arg14[%c0_93, %c0_94] : memref<8x16xf32, #tpu.memory_space<vmem>>, vector<8x16xf32>
    tpu.vector_store %arg14[%c0_93, %c0_94], %223 {strides = array<i32>} : memref<8x16xf32, #tpu.memory_space<vmem>>, vector<8x16xf32>,
    return
  }
}

</mosaic_0001>

<llo_original>
// kernel: tile.19
$region0: #{tile.19}
  %s0 = inlined_call_operand.vmem [shape: f32[16,4,16], index: 0, kind: input, shape index: {}]
  %s1 = inlined_call_operand.vmem [shape: f32[16,64], index: 1, kind: output, shape index: {}]
  $region1: #{tile.19} parent=0
    #allocation0 [shape = 'u8[65536]{0}', space=vmem, size = 0x10000, scoped, tag = 'scoped mem for input reshape']
    %s3 = sshll.u32 1, 4
    %s4 = ssub.s32 %s3, 1
    %s5 = smul.addr 4, 15
    %s6 = scalar_lea.vmem %s0, %s5
    %v7 = vld [vmem:[%s6] sm:%s4]
    %s8 = scalar_lea.vmem [#allocation0], 120
    %9 = vst [vmem:[%s8] sm:%s4] %v7
    %s10 = smul.addr 4, 14
    %s11 = scalar_lea.vmem %s0, %s10
    %v12 = vld [vmem:[%s11] sm:%s4]
    %s13 = scalar_lea.vmem [#allocation0], 112
    %14 = vst [vmem:[%s13] sm:%s4] %v12
    %s15 = smul.addr 4, 13
    %s16 = scalar_lea.vmem %s0, %s15
    %v17 = vld [vmem:[%s16] sm:%s4]
    %s18 = scalar_lea.vmem [#allocation0], 104
    %19 = vst [vmem:[%s18] sm:%s4] %v17
    %s20 = smul.addr 4, 12
    %s21 = scalar_lea.vmem %s0, %s20
    %v22 = vld [vmem:[%s21] sm:%s4]
    %s23 = scalar_lea.vmem [#allocation0], 96
    %24 = vst [vmem:[%s23] sm:%s4] %v22
    %s25 = smul.addr 4, 11
    %s26 = scalar_lea.vmem %s0, %s25
    %v27 = vld [vmem:[%s26] sm:%s4]
    %s28 = scalar_lea.vmem [#allocation0], 88
    %29 = vst [vmem:[%s28] sm:%s4] %v27
    %s30 = smul.addr 4, 10
    %s31 = scalar_lea.vmem %s0, %s30
    %v32 = vld [vmem:[%s31] sm:%s4]
    %s33 = scalar_lea.vmem [#allocation0], 80
    %34 = vst [vmem:[%s33] sm:%s4] %v32
    %s35 = smul.addr 4, 9
    %s36 = scalar_lea.vmem %s0, %s35
    %v37 = vld [vmem:[%s36] sm:%s4]
    %s38 = scalar_lea.vmem [#allocation0], 72
    %39 = vst [vmem:[%s38] sm:%s4] %v37
    %s40 = smul.addr 4, 8
    %s41 = scalar_lea.vmem %s0, %s40
    %v42 = vld [vmem:[%s41] sm:%s4]
    %s43 = scalar_lea.vmem [#allocation0], 64
    %44 = vst [vmem:[%s43] sm:%s4] %v42
    %s45 = smul.addr 4, 7
    %s46 = scalar_lea.vmem %s0, %s45
    %v47 = vld [vmem:[%s46] sm:%s4]
    %s48 = scalar_lea.vmem [#allocation0], 56
    %49 = vst [vmem:[%s48] sm:%s4] %v47
    %s50 = smul.addr 4, 6
    %s51 = scalar_lea.vmem %s0, %s50
    %v52 = vld [vmem:[%s51] sm:%s4]
    %s53 = scalar_lea.vmem [#allocation0], 48
    %54 = vst [vmem:[%s53] sm:%s4] %v52
    %s55 = smul.addr 4, 5
    %s56 = scalar_lea.vmem %s0, %s55
    %v57 = vld [vmem:[%s56] sm:%s4]
    %s58 = scalar_lea.vmem [#allocation0], 40
    %59 = vst [vmem:[%s58] sm:%s4] %v57
    %s60 = smul.addr 4, 4
    %s61 = scalar_lea.vmem %s0, %s60
    %v62 = vld [vmem:[%s61] sm:%s4]
    %s63 = scalar_lea.vmem [#allocation0], 32
    %64 = vst [vmem:[%s63] sm:%s4] %v62
    %s65 = smul.addr 4, 3
    %s66 = scalar_lea.vmem %s0, %s65
    %v67 = vld [vmem:[%s66] sm:%s4]
    %s68 = scalar_lea.vmem [#allocation0], 24
    %69 = vst [vmem:[%s68] sm:%s4] %v67
    %s70 = smul.addr 4, 2
    %s71 = scalar_lea.vmem %s0, %s70
    %v72 = vld [vmem:[%s71] sm:%s4]
    %s73 = scalar_lea.vmem [#allocation0], 16
    %74 = vst [vmem:[%s73] sm:%s4] %v72
    %s75 = scalar_lea.vmem %s0, 4
    %v76 = vld [vmem:[%s75] sm:%s4]
    %s77 = scalar_lea.vmem [#allocation0], 8
    %78 = vst [vmem:[%s77] sm:%s4] %v76
    %v79 = vld [vmem:[%s0] sm:%s4]
    %80 = vst [vmem:[#allocation0] sm:%s4] %v79
    %v81 = vld [vmem:[#allocation0] ss:$8 sm:$0xf]
    %v82 = vld [vmem:[#allocation0] ss:$8 sm:$0xf0]
    %vm83 = vcmask 1047556
    %v84 = vsel %vm83, %v82, %v81
    %vm85 = vcmask 130048
    %86 = vst.msk [vmem:[%s1] sm:$0xff] %vm85, %v84
    %s87 = scalar_lea.vmem [#allocation0], 64
    %v88 = vld [vmem:[%s87] ss:$8 sm:$0xf]
    %s89 = scalar_lea.vmem [#allocation0], 64
    %v90 = vld [vmem:[%s89] ss:$8 sm:$0xf0]
    %vm91 = vcmask 1047556
    %v92 = vsel %vm91, %v90, %v88
    %vm93 = vcmask 130048
    %s94 = scalar_lea.vmem %s1, 8
    %95 = vst.msk [vmem:[%s94] sm:$0xff] %vm93, %v92
    %s96 = scalar_lea.vmem [#allocation0], 3
    %v97 = vld [vmem:[%s96] ss:$8 sm:$0xf]
    %s98 = scalar_lea.vmem [#allocation0], 3
    %v99 = vld [vmem:[%s98] ss:$8 sm:$0xf0]
    %vm100 = vcmask 1047556
    %v101 = vsel %vm100, %v99, %v97
    %102 = vrot.lane.b32.xlu0 %v101, 48
    %v103 = vpop.permute.xlu0 %102
    %vm104 = vcmask 523648
    %105 = vst.msk [vmem:[%s1] sm:$0xff] %vm104, %v103
    %s106 = scalar_lea.vmem [#allocation0], 67
    %v107 = vld [vmem:[%s106] ss:$8 sm:$0xf]
    %s108 = scalar_lea.vmem [#allocation0], 67
    %v109 = vld [vmem:[%s108] ss:$8 sm:$0xf0]
    %vm110 = vcmask 1047556
    %v111 = vsel %vm110, %v109, %v107
    %112 = vrot.lane.b32.xlu0 %v111, 48
    %v113 = vpop.permute.xlu0 %112
    %vm114 = vcmask 523648
    %s115 = scalar_lea.vmem %s1, 8
    %116 = vst.msk [vmem:[%s115] sm:$0xff] %vm114, %v113
    %s117 = scalar_lea.vmem [#allocation0], 2
    %v118 = vld [vmem:[%s117] ss:$8 sm:$0xf]
    %s119 = scalar_lea.vmem [#allocation0], 2
    %v120 = vld [vmem:[%s119] ss:$8 sm:$0xf0]
    %vm121 = vcmask 1047556
    %v122 = vsel %vm121, %v120, %v118
    %123 = vrot.lane.b32.xlu0 %v122, 32
    %v124 = vpop.permute.xlu0 %123
    %vm125 = vcmask 392448
    %126 = vst.msk [vmem:[%s1] sm:$0xff] %vm125, %v124
    %s127 = scalar_lea.vmem [#allocation0], 66
    %v128 = vld [vmem:[%s127] ss:$8 sm:$0xf]
    %s129 = scalar_lea.vmem [#allocation0], 66
    %v130 = vld [vmem:[%s129] ss:$8 sm:$0xf0]
    %vm131 = vcmask 1047556
    %v132 = vsel %vm131, %v130, %v128
    %133 = vrot.lane.b32.xlu0 %v132, 32
    %v134 = vpop.permute.xlu0 %133
    %vm135 = vcmask 392448
    %s136 = scalar_lea.vmem %s1, 8
    %137 = vst.msk [vmem:[%s136] sm:$0xff] %vm135, %v134
    %s138 = scalar_lea.vmem [#allocation0], 1
    %v139 = vld [vmem:[%s138] ss:$8 sm:$0xf]
    %s140 = scalar_lea.vmem [#allocation0], 1
    %v141 = vld [vmem:[%s140] ss:$8 sm:$0xf0]
    %vm142 = vcmask 1047556
    %v143 = vsel %vm142, %v141, %v139
    %144 = vrot.lane.b32.xlu0 %v143, 16
    %v145 = vpop.permute.xlu0 %144
    %vm146 = vcmask 261248
    %147 = vst.msk [vmem:[%s1] sm:$0xff] %vm146, %v145
    %s148 = scalar_lea.vmem [#allocation0], 65
    %v149 = vld [vmem:[%s148] ss:$8 sm:$0xf]
    %s150 = scalar_lea.vmem [#allocation0], 65
    %v151 = vld [vmem:[%s150] ss:$8 sm:$0xf0]
    %vm152 = vcmask 1047556
    %v153 = vsel %vm152, %v151, %v149
    %154 = vrot.lane.b32.xlu0 %v153, 16
    %v155 = vpop.permute.xlu0 %154
    %vm156 = vcmask 261248
    %s157 = scalar_lea.vmem %s1, 8
    %158 = vst.msk [vmem:[%s157] sm:$0xff] %vm156, %v155

// kernel: tile.13
$region0: #{tile.13}
  #allocation0 [shape = 's32[1]{0}', space=sflag, size = 0x4, scoped, tag = 'scoped memory for tile.13']
  %s0 = inlined_call_operand.vmem [shape: pred[32,32], index: 0, kind: input, shape index: {}]
  %s1 = inlined_call_operand.vmem [shape: pred[4,32,4,32], index: 1, kind: output, shape index: {}]
  // Predicated region
  $region2: #{tile.13} parent=0 // pred_check
    _
  $region3: #{tile.13} parent=0 // pred_check_branch
    %3 = sbr.rel (0) target = $region5
  $region4: #{tile.13} parent=0 // pred_region
    _
  $region5: #{tile.13} parent=0 // pred_fallthru
    _
  %v4 = vld [vmem:[%s0] ss:$0 sm:$0xff]
  %v6 = vshra.s32 %v4, 0
  %v7 = vand.u32 %v6, 255
  %v8 = vpack.c.b16 0, %v7
  %v9 = vpack.c.b8 0, %v8
  %s11 = ssub.s32 2, 1
  %12 = vst [vmem:[%s1] sm:%s11] %v9
  %s13 = scalar_lea.vmem %s1, 32
  %v14 = vpack.c.b16 0, %v7
  %v15 = vpack.c.b8 0, %v14
  %s17 = ssub.s32 2, 1
  %18 = vst [vmem:[%s13] sm:%s17] %v15
  %s19 = scalar_lea.vmem %s1, 64
  %v20 = vpack.c.b16 0, %v7
  %v21 = vpack.c.b8 0, %v20
  %s23 = ssub.s32 2, 1
  %24 = vst [vmem:[%s19] sm:%s23] %v21
  %s25 = scalar_lea.vmem %s1, 96
  %v26 = vpack.c.b16 0, %v7
  %v27 = vpack.c.b8 0, %v26
  %s29 = ssub.s32 2, 1
  %30 = vst [vmem:[%s25] sm:%s29] %v27
  %v31 = vld [vmem:[%s0] ss:$0 sm:$0xff]
  %v33 = vshra.s32 %v31, 8
  %v34 = vand.u32 %v33, 255
  %s35 = scalar_lea.vmem %s1, 1
  %v36 = vpack.c.b16 0, %v34
  %v37 = vpack.c.b8 0, %v36
  %s39 = ssub.s32 2, 1
  %40 = vst [vmem:[%s35] sm:%s39] %v37
  %s41 = scalar_lea.vmem %s1, 33
  %v42 = vpack.c.b16 0, %v34
  %v43 = vpack.c.b8 0, %v42
  %s45 = ssub.s32 2, 1
  %46 = vst [vmem:[%s41] sm:%s45] %v43
  %s47 = scalar_lea.vmem %s1, 65
  %v48 = vpack.c.b16 0, %v34
  %v49 = vpack.c.b8 0, %v48
  %s51 = ssub.s32 2, 1
  %52 = vst [vmem:[%s47] sm:%s51] %v49
  %s53 = scalar_lea.vmem %s1, 97
  %v54 = vpack.c.b16 0, %v34
  %v55 = vpack.c.b8 0, %v54
  %s57 = ssub.s32 2, 1
  %58 = vst [vmem:[%s53] sm:%s57] %v55
  %v59 = vld [vmem:[%s0] ss:$0 sm:$0xff]
  %v61 = vshra.s32 %v59, 16
  %v62 = vand.u32 %v61, 255
  %s63 = scalar_lea.vmem %s1, 2
  %v64 = vpack.c.b16 0, %v62
  %v65 = vpack.c.b8 0, %v64
  %s67 = ssub.s32 2, 1
  %68 = vst [vmem:[%s63] sm:%s67] %v65
  %s69 = scalar_lea.vmem %s1, 34
  %v70 = vpack.c.b16 0, %v62
  %v71 = vpack.c.b8 0, %v70
  %s73 = ssub.s32 2, 1
  %74 = vst [vmem:[%s69] sm:%s73] %v71
  %s75 = scalar_lea.vmem %s1, 66
  %v76 = vpack.c.b16 0, %v62
  %v77 = vpack.c.b8 0, %v76
  %s79 = ssub.s32 2, 1
  %80 = vst [vmem:[%s75] sm:%s79] %v77
  %s81 = scalar_lea.vmem %s1, 98
  %v82 = vpack.c.b16 0, %v62
  %v83 = vpack.c.b8 0, %v82
  %s85 = ssub.s32 2, 1
  %86 = vst [vmem:[%s81] sm:%s85] %v83
  %v87 = vld [vmem:[%s0] ss:$0 sm:$0xff]
  %v89 = vshra.s32 %v87, 24
  %v90 = vand.u32 %v89, 255
  %s91 = scalar_lea.vmem %s1, 3
  %v92 = vpack.c.b16 0, %v90
  %v93 = vpack.c.b8 0, %v92
  %s95 = ssub.s32 2, 1
  %96 = vst [vmem:[%s91] sm:%s95] %v93
  %s97 = scalar_lea.vmem %s1, 35
  %v98 = vpack.c.b16 0, %v90
  %v99 = vpack.c.b8 0, %v98
  %s101 = ssub.s32 2, 1
  %102 = vst [vmem:[%s97] sm:%s101] %v99
  %s103 = scalar_lea.vmem %s1, 67
  %v104 = vpack.c.b16 0, %v90
  %v105 = vpack.c.b8 0, %v104
  %s107 = ssub.s32 2, 1
  %108 = vst [vmem:[%s103] sm:%s107] %v105
  %s109 = scalar_lea.vmem %s1, 99
  %v110 = vpack.c.b16 0, %v90
  %v111 = vpack.c.b8 0, %v110
  %s113 = ssub.s32 2, 1
  %114 = vst [vmem:[%s109] sm:%s113] %v111
  %s115 = scalar_lea.vmem %s0, 1
  %v116 = vld [vmem:[%s115] ss:$0 sm:$0xff]
  %v118 = vshra.s32 %v116, 0
  %v119 = vand.u32 %v118, 255
  %s120 = scalar_lea.vmem %s1, 4
  %v121 = vpack.c.b16 0, %v119
  %v122 = vpack.c.b8 0, %v121
  %s124 = ssub.s32 2, 1
  %125 = vst [vmem:[%s120] sm:%s124] %v122
  %s126 = scalar_lea.vmem %s1, 36
  %v127 = vpack.c.b16 0, %v119
  %v128 = vpack.c.b8 0, %v127
  %s130 = ssub.s32 2, 1
  %131 = vst [vmem:[%s126] sm:%s130] %v128
  %s132 = scalar_lea.vmem %s1, 68
  %v133 = vpack.c.b16 0, %v119
  %v134 = vpack.c.b8 0, %v133
  %s136 = ssub.s32 2, 1
  %137 = vst [vmem:[%s132] sm:%s136] %v134
  %s138 = scalar_lea.vmem %s1, 100
  %v139 = vpack.c.b16 0, %v119
  %v140 = vpack.c.b8 0, %v139
  %s142 = ssub.s32 2, 1
  %143 = vst [vmem:[%s138] sm:%s142] %v140
  %s144 = scalar_lea.vmem %s0, 1
  %v145 = vld [vmem:[%s144] ss:$0 sm:$0xff]
  %v147 = vshra.s32 %v145, 8
  %v148 = vand.u32 %v147, 255
  %s149 = scalar_lea.vmem %s1, 5
  %v150 = vpack.c.b16 0, %v148
  %v151 = vpack.c.b8 0, %v150
  %s153 = ssub.s32 2, 1
  %154 = vst [vmem:[%s149] sm:%s153] %v151
  %s155 = scalar_lea.vmem %s1, 37
  %v156 = vpack.c.b16 0, %v148
  %v157 = vpack.c.b8 0, %v156
  %s159 = ssub.s32 2, 1
  %160 = vst [vmem:[%s155] sm:%s159] %v157
  %s161 = scalar_lea.vmem %s1, 69
  %v162 = vpack.c.b16 0, %v148
  %v163 = vpack.c.b8 0, %v162
  %s165 = ssub.s32 2, 1
  %166 = vst [vmem:[%s161] sm:%s165] %v163
  %s167 = scalar_lea.vmem %s1, 101
  %v168 = vpack.c.b16 0, %v148
  %v169 = vpack.c.b8 0, %v168
  %s171 = ssub.s32 2, 1
  %172 = vst [vmem:[%s167] sm:%s171] %v169
  %s173 = scalar_lea.vmem %s0, 1
  %v174 = vld [vmem:[%s173] ss:$0 sm:$0xff]
  %v176 = vshra.s32 %v174, 16
  %v177 = vand.u32 %v176, 255
  %s178 = scalar_lea.vmem %s1, 6
  %v179 = vpack.c.b16 0, %v177
  %v180 = vpack.c.b8 0, %v179
  %s182 = ssub.s32 2, 1
  %183 = vst [vmem:[%s178] sm:%s182] %v180
  %s184 = scalar_lea.vmem %s1, 38
  %v185 = vpack.c.b16 0, %v177
  %v186 = vpack.c.b8 0, %v185
  %s188 = ssub.s32 2, 1
  %189 = vst [vmem:[%s184] sm:%s188] %v186
  %s190 = scalar_lea.vmem %s1, 70
  %v191 = vpack.c.b16 0, %v177
  %v192 = vpack.c.b8 0, %v191
  %s194 = ssub.s32 2, 1
  %195 = vst [vmem:[%s190] sm:%s194] %v192
  %s196 = scalar_lea.vmem %s1, 102
  %v197 = vpack.c.b16 0, %v177
  %v198 = vpack.c.b8 0, %v197
  %s200 = ssub.s32 2, 1
  %201 = vst [vmem:[%s196] sm:%s200] %v198
  %s202 = scalar_lea.vmem %s0, 1
  %v203 = vld [vmem:[%s202] ss:$0 sm:$0xff]
  %v205 = vshra.s32 %v203, 24
  %v206 = vand.u32 %v205, 255
  %s207 = scalar_lea.vmem %s1, 7
  %v208 = vpack.c.b16 0, %v206
  %v209 = vpack.c.b8 0, %v208
  %s211 = ssub.s32 2, 1
  %212 = vst [vmem:[%s207] sm:%s211] %v209
  %s213 = scalar_lea.vmem %s1, 39
  %v214 = vpack.c.b16 0, %v206
  %v215 = vpack.c.b8 0, %v214
  %s217 = ssub.s32 2, 1
  %218 = vst [vmem:[%s213] sm:%s217] %v215
  %s219 = scalar_lea.vmem %s1, 71
  %v220 = vpack.c.b16 0, %v206
  %v221 = vpack.c.b8 0, %v220
  %s223 = ssub.s32 2, 1
  %224 = vst [vmem:[%s219] sm:%s223] %v221
  %s225 = scalar_lea.vmem %s1, 103
  %v226 = vpack.c.b16 0, %v206
  %v227 = vpack.c.b8 0, %v226
  %s229 = ssub.s32 2, 1
  %230 = vst [vmem:[%s225] sm:%s229] %v227
  %s231 = scalar_lea.vmem %s0, 2
  %v232 = vld [vmem:[%s231] ss:$0 sm:$0xff]
  %v234 = vshra.s32 %v232, 0
  %v235 = vand.u32 %v234, 255
  %s236 = scalar_lea.vmem %s1, 8
  %v237 = vpack.c.b16 0, %v235
  %v238 = vpack.c.b8 0, %v237
  %s240 = ssub.s32 2, 1
  %241 = vst [vmem:[%s236] sm:%s240] %v238
  %s242 = scalar_lea.vmem %s1, 40
  %v243 = vpack.c.b16 0, %v235
  %v244 = vpack.c.b8 0, %v243
  %s246 = ssub.s32 2, 1
  %247 = vst [vmem:[%s242] sm:%s246] %v244
  %s248 = scalar_lea.vmem %s1, 72
  %v249 = vpack.c.b16 0, %v235
  %v250 = vpack.c.b8 0, %v249
  %s252 = ssub.s32 2, 1
  %253 = vst [vmem:[%s248] sm:%s252] %v250
  %s254 = scalar_lea.vmem %s1, 104
  %v255 = vpack.c.b16 0, %v235
  %v256 = vpack.c.b8 0, %v255
  %s258 = ssub.s32 2, 1
  %259 = vst [vmem:[%s254] sm:%s258] %v256
  %s260 = scalar_lea.vmem %s0, 2
  %v261 = vld [vmem:[%s260] ss:$0 sm:$0xff]
  %v263 = vshra.s32 %v261, 8
  %v264 = vand.u32 %v263, 255
  %s265 = scalar_lea.vmem %s1, 9
  %v266 = vpack.c.b16 0, %v264
  %v267 = vpack.c.b8 0, %v266
  %s269 = ssub.s32 2, 1
  %270 = vst [vmem:[%s265] sm:%s269] %v267
  %s271 = scalar_lea.vmem %s1, 41
  %v272 = vpack.c.b16 0, %v264
  %v273 = vpack.c.b8 0, %v272
  %s275 = ssub.s32 2, 1
  %276 = vst [vmem:[%s271] sm:%s275] %v273
  %s277 = scalar_lea.vmem %s1, 73
  %v278 = vpack.c.b16 0, %v264
  %v279 = vpack.c.b8 0, %v278
  %s281 = ssub.s32 2, 1
  %282 = vst [vmem:[%s277] sm:%s281] %v279
  %s283 = scalar_lea.vmem %s1, 105
  %v284 = vpack.c.b16 0, %v264
  %v285 = vpack.c.b8 0, %v284
  %s287 = ssub.s32 2, 1
  %288 = vst [vmem:[%s283] sm:%s287] %v285
  %s289 = scalar_lea.vmem %s0, 2
  %v290 = vld [vmem:[%s289] ss:$0 sm:$0xff]
  %v292 = vshra.s32 %v290, 16
  %v293 = vand.u32 %v292, 255
  %s294 = scalar_lea.vmem %s1, 10
  %v295 = vpack.c.b16 0, %v293
  %v296 = vpack.c.b8 0, %v295
  %s298 = ssub.s32 2, 1
  %299 = vst [vmem:[%s294] sm:%s298] %v296
  %s300 = scalar_lea.vmem %s1, 42
  %v301 = vpack.c.b16 0, %v293
  %v302 = vpack.c.b8 0, %v301
  %s304 = ssub.s32 2, 1
  %305 = vst [vmem:[%s300] sm:%s304] %v302
  %s306 = scalar_lea.vmem %s1, 74
  %v307 = vpack.c.b16 0, %v293
  %v308 = vpack.c.b8 0, %v307
  %s310 = ssub.s32 2, 1
  %311 = vst [vmem:[%s306] sm:%s310] %v308
  %s312 = scalar_lea.vmem %s1, 106
  %v313 = vpack.c.b16 0, %v293
  %v314 = vpack.c.b8 0, %v313
  %s316 = ssub.s32 2, 1
  %317 = vst [vmem:[%s312] sm:%s316] %v314
  %s318 = scalar_lea.vmem %s0, 2
  %v319 = vld [vmem:[%s318] ss:$0 sm:$0xff]
  %v321 = vshra.s32 %v319, 24
  %v322 = vand.u32 %v321, 255
  %s323 = scalar_lea.vmem %s1, 11
  %v324 = vpack.c.b16 0, %v322
  %v325 = vpack.c.b8 0, %v324
  %s327 = ssub.s32 2, 1
  %328 = vst [vmem:[%s323] sm:%s327] %v325
  %s329 = scalar_lea.vmem %s1, 43
  %v330 = vpack.c.b16 0, %v322
  %v331 = vpack.c.b8 0, %v330
  %s333 = ssub.s32 2, 1
  %334 = vst [vmem:[%s329] sm:%s333] %v331
  %s335 = scalar_lea.vmem %s1, 75
  %v336 = vpack.c.b16 0, %v322
  %v337 = vpack.c.b8 0, %v336
  %s339 = ssub.s32 2, 1
  %340 = vst [vmem:[%s335] sm:%s339] %v337
  %s341 = scalar_lea.vmem %s1, 107
  %v342 = vpack.c.b16 0, %v322
  %v343 = vpack.c.b8 0, %v342
  %s345 = ssub.s32 2, 1
  %346 = vst [vmem:[%s341] sm:%s345] %v343
  %s347 = scalar_lea.vmem %s0, 2
  %s348 = scalar_lea.vmem %s347, 1
  %v349 = vld [vmem:[%s348] ss:$0 sm:$0xff]
  %v351 = vshra.s32 %v349, 0
  %v352 = vand.u32 %v351, 255
  %s353 = scalar_lea.vmem %s1, 12
  %v354 = vpack.c.b16 0, %v352
  %v355 = vpack.c.b8 0, %v354
  %s357 = ssub.s32 2, 1
  %358 = vst [vmem:[%s353] sm:%s357] %v355
  %s359 = scalar_lea.vmem %s1, 44
  %v360 = vpack.c.b16 0, %v352
  %v361 = vpack.c.b8 0, %v360
  %s363 = ssub.s32 2, 1
  %364 = vst [vmem:[%s359] sm:%s363] %v361
  %s365 = scalar_lea.vmem %s1, 76
  %v366 = vpack.c.b16 0, %v352
  %v367 = vpack.c.b8 0, %v366
  %s369 = ssub.s32 2, 1
  %370 = vst [vmem:[%s365] sm:%s369] %v367
  %s371 = scalar_lea.vmem %s1, 108
  %v372 = vpack.c.b16 0, %v352
  %v373 = vpack.c.b8 0, %v372
  %s375 = ssub.s32 2, 1
  %376 = vst [vmem:[%s371] sm:%s375] %v373
  %s377 = scalar_lea.vmem %s0, 2
  %s378 = scalar_lea.vmem %s377, 1
  %v379 = vld [vmem:[%s378] ss:$0 sm:$0xff]
  %v381 = vshra.s32 %v379, 8
  %v382 = vand.u32 %v381, 255
  %s383 = scalar_lea.vmem %s1, 13
  %v384 = vpack.c.b16 0, %v382
  %v385 = vpack.c.b8 0, %v384
  %s387 = ssub.s32 2, 1
  %388 = vst [vmem:[%s383] sm:%s387] %v385
  %s389 = scalar_lea.vmem %s1, 45
  %v390 = vpack.c.b16 0, %v382
  %v391 = vpack.c.b8 0, %v390
  %s393 = ssub.s32 2, 1
  %394 = vst [vmem:[%s389] sm:%s393] %v391
  %s395 = scalar_lea.vmem %s1, 77
  %v396 = vpack.c.b16 0, %v382
  %v397 = vpack.c.b8 0, %v396
  %s399 = ssub.s32 2, 1
  %400 = vst [vmem:[%s395] sm:%s399] %v397
  %s401 = scalar_lea.vmem %s1, 109
  %v402 = vpack.c.b16 0, %v382
  %v403 = vpack.c.b8 0, %v402
  %s405 = ssub.s32 2, 1
  %406 = vst [vmem:[%s401] sm:%s405] %v403
  %s407 = scalar_lea.vmem %s0, 2
  %s408 = scalar_lea.vmem %s407, 1
  %v409 = vld [vmem:[%s408] ss:$0 sm:$0xff]
  %v411 = vshra.s32 %v409, 16
  %v412 = vand.u32 %v411, 255
  %s413 = scalar_lea.vmem %s1, 14
  %v414 = vpack.c.b16 0, %v412
  %v415 = vpack.c.b8 0, %v414
  %s417 = ssub.s32 2, 1
  %418 = vst [vmem:[%s413] sm:%s417] %v415
  %s419 = scalar_lea.vmem %s1, 46
  %v420 = vpack.c.b16 0, %v412
  %v421 = vpack.c.b8 0, %v420
  %s423 = ssub.s32 2, 1
  %424 = vst [vmem:[%s419] sm:%s423] %v421
  %s425 = scalar_lea.vmem %s1, 78
  %v426 = vpack.c.b16 0, %v412
  %v427 = vpack.c.b8 0, %v426
  %s429 = ssub.s32 2, 1
  %430 = vst [vmem:[%s425] sm:%s429] %v427
  %s431 = scalar_lea.vmem %s1, 110
  %v432 = vpack.c.b16 0, %v412
  %v433 = vpack.c.b8 0, %v432
  %s435 = ssub.s32 2, 1
  %436 = vst [vmem:[%s431] sm:%s435] %v433
  %s437 = scalar_lea.vmem %s0, 2
  %s438 = scalar_lea.vmem %s437, 1
  %v439 = vld [vmem:[%s438] ss:$0 sm:$0xff]
  %v441 = vshra.s32 %v439, 24
  %v442 = vand.u32 %v441, 255
  %s443 = scalar_lea.vmem %s1, 15
  %v444 = vpack.c.b16 0, %v442
  %v445 = vpack.c.b8 0, %v444
  %s447 = ssub.s32 2, 1
  %448 = vst [vmem:[%s443] sm:%s447] %v445
  %s449 = scalar_lea.vmem %s1, 47
  %v450 = vpack.c.b16 0, %v442
  %v451 = vpack.c.b8 0, %v450
  %s453 = ssub.s32 2, 1
  %454 = vst [vmem:[%s449] sm:%s453] %v451
  %s455 = scalar_lea.vmem %s1, 79
  %v456 = vpack.c.b16 0, %v442
  %v457 = vpack.c.b8 0, %v456
  %s459 = ssub.s32 2, 1
  %460 = vst [vmem:[%s455] sm:%s459] %v457
  %s461 = scalar_lea.vmem %s1, 111
  %v462 = vpack.c.b16 0, %v442
  %v463 = vpack.c.b8 0, %v462
  %s465 = ssub.s32 2, 1
  %466 = vst [vmem:[%s461] sm:%s465] %v463
  %s467 = scalar_lea.vmem %s0, 4
  %v468 = vld [vmem:[%s467] ss:$0 sm:$0xff]
  %v470 = vshra.s32 %v468, 0
  %v471 = vand.u32 %v470, 255
  %s472 = scalar_lea.vmem %s1, 16
  %v473 = vpack.c.b16 0, %v471
  %v474 = vpack.c.b8 0, %v473
  %s476 = ssub.s32 2, 1
  %477 = vst [vmem:[%s472] sm:%s476] %v474
  %s478 = scalar_lea.vmem %s1, 48
  %v479 = vpack.c.b16 0, %v471
  %v480 = vpack.c.b8 0, %v479
  %s482 = ssub.s32 2, 1
  %483 = vst [vmem:[%s478] sm:%s482] %v480
  %s484 = scalar_lea.vmem %s1, 80
  %v485 = vpack.c.b16 0, %v471
  %v486 = vpack.c.b8 0, %v485
  %s488 = ssub.s32 2, 1
  %489 = vst [vmem:[%s484] sm:%s488] %v486
  %s490 = scalar_lea.vmem %s1, 112
  %v491 = vpack.c.b16 0, %v471
  %v492 = vpack.c.b8 0, %v491
  %s494 = ssub.s32 2, 1
  %495 = vst [vmem:[%s490] sm:%s494] %v492
  %s496 = scalar_lea.vmem %s0, 4
  %v497 = vld [vmem:[%s496] ss:$0 sm:$0xff]
  %v499 = vshra.s32 %v497, 8
  %v500 = vand.u32 %v499, 255
  %s501 = scalar_lea.vmem %s1, 17
  %v502 = vpack.c.b16 0, %v500
  %v503 = vpack.c.b8 0, %v502
  %s505 = ssub.s32 2, 1
  %506 = vst [vmem:[%s501] sm:%s505] %v503
  %s507 = scalar_lea.vmem %s1, 49
  %v508 = vpack.c.b16 0, %v500
  %v509 = vpack.c.b8 0, %v508
  %s511 = ssub.s32 2, 1
  %512 = vst [vmem:[%s507] sm:%s511] %v509
  %s513 = scalar_lea.vmem %s1, 81
  %v514 = vpack.c.b16 0, %v500
  %v515 = vpack.c.b8 0, %v514
  %s517 = ssub.s32 2, 1
  %518 = vst [vmem:[%s513] sm:%s517] %v515
  %s519 = scalar_lea.vmem %s1, 113
  %v520 = vpack.c.b16 0, %v500
  %v521 = vpack.c.b8 0, %v520
  %s523 = ssub.s32 2, 1
  %524 = vst [vmem:[%s519] sm:%s523] %v521
  %s525 = scalar_lea.vmem %s0, 4
  %v526 = vld [vmem:[%s525] ss:$0 sm:$0xff]
  %v528 = vshra.s32 %v526, 16
  %v529 = vand.u32 %v528, 255
  %s530 = scalar_lea.vmem %s1, 18
  %v531 = vpack.c.b16 0, %v529
  %v532 = vpack.c.b8 0, %v531
  %s534 = ssub.s32 2, 1
  %535 = vst [vmem:[%s530] sm:%s534] %v532
  %s536 = scalar_lea.vmem %s1, 50
  %v537 = vpack.c.b16 0, %v529
  %v538 = vpack.c.b8 0, %v537
  %s540 = ssub.s32 2, 1
  %541 = vst [vmem:[%s536] sm:%s540] %v538
  %s542 = scalar_lea.vmem %s1, 82
  %v543 = vpack.c.b16 0, %v529
  %v544 = vpack.c.b8 0, %v543
  %s546 = ssub.s32 2, 1
  %547 = vst [vmem:[%s542] sm:%s546] %v544
  %s548 = scalar_lea.vmem %s1, 114
  %v549 = vpack.c.b16 0, %v529
  %v550 = vpack.c.b8 0, %v549
  %s552 = ssub.s32 2, 1
  %553 = vst [vmem:[%s548] sm:%s552] %v550
  %s554 = scalar_lea.vmem %s0, 4
  %v555 = vld [vmem:[%s554] ss:$0 sm:$0xff]
  %v557 = vshra.s32 %v555, 24
  %v558 = vand.u32 %v557, 255
  %s559 = scalar_lea.vmem %s1, 19
  %v560 = vpack.c.b16 0, %v558
  %v561 = vpack.c.b8 0, %v560
  %s563 = ssub.s32 2, 1
  %564 = vst [vmem:[%s559] sm:%s563] %v561
  %s565 = scalar_lea.vmem %s1, 51
  %v566 = vpack.c.b16 0, %v558
  %v567 = vpack.c.b8 0, %v566
  %s569 = ssub.s32 2, 1
  %570 = vst [vmem:[%s565] sm:%s569] %v567
  %s571 = scalar_lea.vmem %s1, 83
  %v572 = vpack.c.b16 0, %v558
  %v573 = vpack.c.b8 0, %v572
  %s575 = ssub.s32 2, 1
  %576 = vst [vmem:[%s571] sm:%s575] %v573
  %s577 = scalar_lea.vmem %s1, 115
  %v578 = vpack.c.b16 0, %v558
  %v579 = vpack.c.b8 0, %v578
  %s581 = ssub.s32 2, 1
  %582 = vst [vmem:[%s577] sm:%s581] %v579
  %s583 = scalar_lea.vmem %s0, 4
  %s584 = scalar_lea.vmem %s583, 1
  %v585 = vld [vmem:[%s584] ss:$0 sm:$0xff]
  %v587 = vshra.s32 %v585, 0
  %v588 = vand.u32 %v587, 255
  %s589 = scalar_lea.vmem %s1, 20
  %v590 = vpack.c.b16 0, %v588
  %v591 = vpack.c.b8 0, %v590
  %s593 = ssub.s32 2, 1
  %594 = vst [vmem:[%s589] sm:%s593] %v591
  %s595 = scalar_lea.vmem %s1, 52
  %v596 = vpack.c.b16 0, %v588
  %v597 = vpack.c.b8 0, %v596
  %s599 = ssub.s32 2, 1
  %600 = vst [vmem:[%s595] sm:%s599] %v597
  %s601 = scalar_lea.vmem %s1, 84
  %v602 = vpack.c.b16 0, %v588
  %v603 = vpack.c.b8 0, %v602
  %s605 = ssub.s32 2, 1
  %606 = vst [vmem:[%s601] sm:%s605] %v603
  %s607 = scalar_lea.vmem %s1, 116
  %v608 = vpack.c.b16 0, %v588
  %v609 = vpack.c.b8 0, %v608
  %s611 = ssub.s32 2, 1
  %612 = vst [vmem:[%s607] sm:%s611] %v609
  %s613 = scalar_lea.vmem %s0, 4
  %s614 = scalar_lea.vmem %s613, 1
  %v615 = vld [vmem:[%s614] ss:$0 sm:$0xff]
  %v617 = vshra.s32 %v615, 8
  %v618 = vand.u32 %v617, 255
  %s619 = scalar_lea.vmem %s1, 21
  %v620 = vpack.c.b16 0, %v618
  %v621 = vpack.c.b8 0, %v620
  %s623 = ssub.s32 2, 1
  %624 = vst [vmem:[%s619] sm:%s623] %v621
  %s625 = scalar_lea.vmem %s1, 53
  %v626 = vpack.c.b16 0, %v618
  %v627 = vpack.c.b8 0, %v626
  %s629 = ssub.s32 2, 1
  %630 = vst [vmem:[%s625] sm:%s629] %v627
  %s631 = scalar_lea.vmem %s1, 85
  %v632 = vpack.c.b16 0, %v618
  %v633 = vpack.c.b8 0, %v632
  %s635 = ssub.s32 2, 1
  %636 = vst [vmem:[%s631] sm:%s635] %v633
  %s637 = scalar_lea.vmem %s1, 117
  %v638 = vpack.c.b16 0, %v618
  %v639 = vpack.c.b8 0, %v638
  %s641 = ssub.s32 2, 1
  %642 = vst [vmem:[%s637] sm:%s641] %v639
  %s643 = scalar_lea.vmem %s0, 4
  %s644 = scalar_lea.vmem %s643, 1
  %v645 = vld [vmem:[%s644] ss:$0 sm:$0xff]
  %v647 = vshra.s32 %v645, 16
  %v648 = vand.u32 %v647, 255
  %s649 = scalar_lea.vmem %s1, 22
  %v650 = vpack.c.b16 0, %v648
  %v651 = vpack.c.b8 0, %v650
  %s653 = ssub.s32 2, 1
  %654 = vst [vmem:[%s649] sm:%s653] %v651
  %s655 = scalar_lea.vmem %s1, 54
  %v656 = vpack.c.b16 0, %v648
  %v657 = vpack.c.b8 0, %v656
  %s659 = ssub.s32 2, 1
  %660 = vst [vmem:[%s655] sm:%s659] %v657
  %s661 = scalar_lea.vmem %s1, 86
  %v662 = vpack.c.b16 0, %v648
  %v663 = vpack.c.b8 0, %v662
  %s665 = ssub.s32 2, 1
  %666 = vst [vmem:[%s661] sm:%s665] %v663
  %s667 = scalar_lea.vmem %s1, 118
  %v668 = vpack.c.b16 0, %v648
  %v669 = vpack.c.b8 0, %v668
  %s671 = ssub.s32 2, 1
  %672 = vst [vmem:[%s667] sm:%s671] %v669
  %s673 = scalar_lea.vmem %s0, 4
  %s674 = scalar_lea.vmem %s673, 1
  %v675 = vld [vmem:[%s674] ss:$0 sm:$0xff]
  %v677 = vshra.s32 %v675, 24
  %v678 = vand.u32 %v677, 255
  %s679 = scalar_lea.vmem %s1, 23
  %v680 = vpack.c.b16 0, %v678
  %v681 = vpack.c.b8 0, %v680
  %s683 = ssub.s32 2, 1
  %684 = vst [vmem:[%s679] sm:%s683] %v681
  %s685 = scalar_lea.vmem %s1, 55
  %v686 = vpack.c.b16 0, %v678
  %v687 = vpack.c.b8 0, %v686
  %s689 = ssub.s32 2, 1
  %690 = vst [vmem:[%s685] sm:%s689] %v687
  %s691 = scalar_lea.vmem %s1, 87
  %v692 = vpack.c.b16 0, %v678
  %v693 = vpack.c.b8 0, %v692
  %s695 = ssub.s32 2, 1
  %696 = vst [vmem:[%s691] sm:%s695] %v693
  %s697 = scalar_lea.vmem %s1, 119
  %v698 = vpack.c.b16 0, %v678
  %v699 = vpack.c.b8 0, %v698
  %s701 = ssub.s32 2, 1
  %702 = vst [vmem:[%s697] sm:%s701] %v699
  %s703 = scalar_lea.vmem %s0, 6
  %v704 = vld [vmem:[%s703] ss:$0 sm:$0xff]
  %v706 = vshra.s32 %v704, 0
  %v707 = vand.u32 %v706, 255
  %s708 = scalar_lea.vmem %s1, 24
  %v709 = vpack.c.b16 0, %v707
  %v710 = vpack.c.b8 0, %v709
  %s712 = ssub.s32 2, 1
  %713 = vst [vmem:[%s708] sm:%s712] %v710
  %s714 = scalar_lea.vmem %s1, 56
  %v715 = vpack.c.b16 0, %v707
  %v716 = vpack.c.b8 0, %v715
  %s718 = ssub.s32 2, 1
  %719 = vst [vmem:[%s714] sm:%s718] %v716
  %s720 = scalar_lea.vmem %s1, 88
  %v721 = vpack.c.b16 0, %v707
  %v722 = vpack.c.b8 0, %v721
  %s724 = ssub.s32 2, 1
  %725 = vst [vmem:[%s720] sm:%s724] %v722
  %s726 = scalar_lea.vmem %s1, 120
  %v727 = vpack.c.b16 0, %v707
  %v728 = vpack.c.b8 0, %v727
  %s730 = ssub.s32 2, 1
  %731 = vst [vmem:[%s726] sm:%s730] %v728
  %s732 = scalar_lea.vmem %s0, 6
  %v733 = vld [vmem:[%s732] ss:$0 sm:$0xff]
  %v735 = vshra.s32 %v733, 8
  %v736 = vand.u32 %v735, 255
  %s737 = scalar_lea.vmem %s1, 25
  %v738 = vpack.c.b16 0, %v736
  %v739 = vpack.c.b8 0, %v738
  %s741 = ssub.s32 2, 1
  %742 = vst [vmem:[%s737] sm:%s741] %v739
  %s743 = scalar_lea.vmem %s1, 57
  %v744 = vpack.c.b16 0, %v736
  %v745 = vpack.c.b8 0, %v744
  %s747 = ssub.s32 2, 1
  %748 = vst [vmem:[%s743] sm:%s747] %v745
  %s749 = scalar_lea.vmem %s1, 89
  %v750 = vpack.c.b16 0, %v736
  %v751 = vpack.c.b8 0, %v750
  %s753 = ssub.s32 2, 1
  %754 = vst [vmem:[%s749] sm:%s753] %v751
  %s755 = scalar_lea.vmem %s1, 121
  %v756 = vpack.c.b16 0, %v736
  %v757 = vpack.c.b8 0, %v756
  %s759 = ssub.s32 2, 1
  %760 = vst [vmem:[%s755] sm:%s759] %v757
  %s761 = scalar_lea.vmem %s0, 6
  %v762 = vld [vmem:[%s761] ss:$0 sm:$0xff]
  %v764 = vshra.s32 %v762, 16
  %v765 = vand.u32 %v764, 255
  %s766 = scalar_lea.vmem %s1, 26
  %v767 = vpack.c.b16 0, %v765
  %v768 = vpack.c.b8 0, %v767
  %s770 = ssub.s32 2, 1
  %771 = vst [vmem:[%s766] sm:%s770] %v768
  %s772 = scalar_lea.vmem %s1, 58
  %v773 = vpack.c.b16 0, %v765
  %v774 = vpack.c.b8 0, %v773
  %s776 = ssub.s32 2, 1
  %777 = vst [vmem:[%s772] sm:%s776] %v774
  %s778 = scalar_lea.vmem %s1, 90
  %v779 = vpack.c.b16 0, %v765
  %v780 = vpack.c.b8 0, %v779
  %s782 = ssub.s32 2, 1
  %783 = vst [vmem:[%s778] sm:%s782] %v780
  %s784 = scalar_lea.vmem %s1, 122
  %v785 = vpack.c.b16 0, %v765
  %v786 = vpack.c.b8 0, %v785
  %s788 = ssub.s32 2, 1
  %789 = vst [vmem:[%s784] sm:%s788] %v786
  %s790 = scalar_lea.vmem %s0, 6
  %v791 = vld [vmem:[%s790] ss:$0 sm:$0xff]
  %v793 = vshra.s32 %v791, 24
  %v794 = vand.u32 %v793, 255
  %s795 = scalar_lea.vmem %s1, 27
  %v796 = vpack.c.b16 0, %v794
  %v797 = vpack.c.b8 0, %v796
  %s799 = ssub.s32 2, 1
  %800 = vst [vmem:[%s795] sm:%s799] %v797
  %s801 = scalar_lea.vmem %s1, 59
  %v802 = vpack.c.b16 0, %v794
  %v803 = vpack.c.b8 0, %v802
  %s805 = ssub.s32 2, 1
  %806 = vst [vmem:[%s801] sm:%s805] %v803
  %s807 = scalar_lea.vmem %s1, 91
  %v808 = vpack.c.b16 0, %v794
  %v809 = vpack.c.b8 0, %v808
  %s811 = ssub.s32 2, 1
  %812 = vst [vmem:[%s807] sm:%s811] %v809
  %s813 = scalar_lea.vmem %s1, 123
  %v814 = vpack.c.b16 0, %v794
  %v815 = vpack.c.b8 0, %v814
  %s817 = ssub.s32 2, 1
  %818 = vst [vmem:[%s813] sm:%s817] %v815
  %s819 = scalar_lea.vmem %s0, 6
  %s820 = scalar_lea.vmem %s819, 1
  %v821 = vld [vmem:[%s820] ss:$0 sm:$0xff]
  %v823 = vshra.s32 %v821, 0
  %v824 = vand.u32 %v823, 255
  %s825 = scalar_lea.vmem %s1, 28
  %v826 = vpack.c.b16 0, %v824
  %v827 = vpack.c.b8 0, %v826
  %s829 = ssub.s32 2, 1
  %830 = vst [vmem:[%s825] sm:%s829] %v827
  %s831 = scalar_lea.vmem %s1, 60
  %v832 = vpack.c.b16 0, %v824
  %v833 = vpack.c.b8 0, %v832
  %s835 = ssub.s32 2, 1
  %836 = vst [vmem:[%s831] sm:%s835] %v833
  %s837 = scalar_lea.vmem %s1, 92
  %v838 = vpack.c.b16 0, %v824
  %v839 = vpack.c.b8 0, %v838
  %s841 = ssub.s32 2, 1
  %842 = vst [vmem:[%s837] sm:%s841] %v839
  %s843 = scalar_lea.vmem %s1, 124
  %v844 = vpack.c.b16 0, %v824
  %v845 = vpack.c.b8 0, %v844
  %s847 = ssub.s32 2, 1
  %848 = vst [vmem:[%s843] sm:%s847] %v845
  %s849 = scalar_lea.vmem %s0, 6
  %s850 = scalar_lea.vmem %s849, 1
  %v851 = vld [vmem:[%s850] ss:$0 sm:$0xff]
  %v853 = vshra.s32 %v851, 8
  %v854 = vand.u32 %v853, 255
  %s855 = scalar_lea.vmem %s1, 29
  %v856 = vpack.c.b16 0, %v854
  %v857 = vpack.c.b8 0, %v856
  %s859 = ssub.s32 2, 1
  %860 = vst [vmem:[%s855] sm:%s859] %v857
  %s861 = scalar_lea.vmem %s1, 61
  %v862 = vpack.c.b16 0, %v854
  %v863 = vpack.c.b8 0, %v862
  %s865 = ssub.s32 2, 1
  %866 = vst [vmem:[%s861] sm:%s865] %v863
  %s867 = scalar_lea.vmem %s1, 93
  %v868 = vpack.c.b16 0, %v854
  %v869 = vpack.c.b8 0, %v868
  %s871 = ssub.s32 2, 1
  %872 = vst [vmem:[%s867] sm:%s871] %v869
  %s873 = scalar_lea.vmem %s1, 125
  %v874 = vpack.c.b16 0, %v854
  %v875 = vpack.c.b8 0, %v874
  %s877 = ssub.s32 2, 1
  %878 = vst [vmem:[%s873] sm:%s877] %v875
  %s879 = scalar_lea.vmem %s0, 6
  %s880 = scalar_lea.vmem %s879, 1
  %v881 = vld [vmem:[%s880] ss:$0 sm:$0xff]
  %v883 = vshra.s32 %v881, 16
  %v884 = vand.u32 %v883, 255
  %s885 = scalar_lea.vmem %s1, 30
  %v886 = vpack.c.b16 0, %v884
  %v887 = vpack.c.b8 0, %v886
  %s889 = ssub.s32 2, 1
  %890 = vst [vmem:[%s885] sm:%s889] %v887
  %s891 = scalar_lea.vmem %s1, 62
  %v892 = vpack.c.b16 0, %v884
  %v893 = vpack.c.b8 0, %v892
  %s895 = ssub.s32 2, 1
  %896 = vst [vmem:[%s891] sm:%s895] %v893
  %s897 = scalar_lea.vmem %s1, 94
  %v898 = vpack.c.b16 0, %v884
  %v899 = vpack.c.b8 0, %v898
  %s901 = ssub.s32 2, 1
  %902 = vst [vmem:[%s897] sm:%s901] %v899
  %s903 = scalar_lea.vmem %s1, 126
  %v904 = vpack.c.b16 0, %v884
  %v905 = vpack.c.b8 0, %v904
  %s907 = ssub.s32 2, 1
  %908 = vst [vmem:[%s903] sm:%s907] %v905
  %s909 = scalar_lea.vmem %s0, 6
  %s910 = scalar_lea.vmem %s909, 1
  %v911 = vld [vmem:[%s910] ss:$0 sm:$0xff]
  %v913 = vshra.s32 %v911, 24
  %v914 = vand.u32 %v913, 255
  %s915 = scalar_lea.vmem %s1, 31
  %v916 = vpack.c.b16 0, %v914
  %v917 = vpack.c.b8 0, %v916
  %s919 = ssub.s32 2, 1
  %920 = vst [vmem:[%s915] sm:%s919] %v917
  %s921 = scalar_lea.vmem %s1, 63
  %v922 = vpack.c.b16 0, %v914
  %v923 = vpack.c.b8 0, %v922
  %s925 = ssub.s32 2, 1
  %926 = vst [vmem:[%s921] sm:%s925] %v923
  %s927 = scalar_lea.vmem %s1, 95
  %v928 = vpack.c.b16 0, %v914
  %v929 = vpack.c.b8 0, %v928
  %s931 = ssub.s32 2, 1
  %932 = vst [vmem:[%s927] sm:%s931] %v929
  %s933 = scalar_lea.vmem %s1, 127
  %v934 = vpack.c.b16 0, %v914
  %v935 = vpack.c.b8 0, %v934
  %s937 = ssub.s32 2, 1
  %938 = vst [vmem:[%s933] sm:%s937] %v935

// kernel: tile.14
$region0: #{tile.14}
  %s0 = inlined_call_operand.vmem [shape: pred[4,32,4,32], index: 0, kind: input, shape index: {}]
  %s1 = inlined_call_operand.vmem [shape: pred[128,128], index: 1, kind: output, shape index: {}]
  $region1: #{tile.14} parent=0
    #allocation0 [shape = 'u8[65536]{0}', space=vmem, size = 0x10000, scoped, tag = 'scoped mem for output reshape']
    #allocation1 [shape = 'u8[524288]{0}', space=vmem, size = 0x80000, scoped, tag = 'scoped mem for input reshape']
    %s3 = smul.u32 1, 4
    %s4 = sshll.u32 1, %s3
    %s5 = ssub.s32 %s4, 1
    %s6 = sand.u32 %s5, 15
    %p7 = scmp.ne.s32.totalorder %s6, 0
    %s8 = scalar_select %p7, 1, 0
    %s9 = sand.u32 %s5, 240
    %p10 = scmp.ne.s32.totalorder %s9, 0
    %s11 = scalar_select %p10, 2, 0
    %s12 = sor.u32 %s8, %s11
    %s13 = smul.addr 1, 127
    %s14 = scalar_lea.vmem %s0, %s13
    %v15 = vld [vmem:[%s14] sm:%s12]
    %v16 = vunpack.c.0.s8 %v15
    %v17 = vunpack.c.1.s8 %v15
    %v18 = vunpack.c.2.s8 %v15
    %v19 = vunpack.c.3.s8 %v15
    %s20 = scalar_lea.vmem [#allocation1], 1016
    %21 = vst [vmem:[%s20] sm:%s5] %v16
    %s22 = sand.u32 %s5, 15
    %p23 = scmp.ne.s32.totalorder %s22, 0
    %s24 = scalar_select %p23, 1, 0
    %s25 = sand.u32 %s5, 240
    %p26 = scmp.ne.s32.totalorder %s25, 0
    %s27 = scalar_select %p26, 2, 0
    %s28 = sor.u32 %s24, %s27
    %s29 = smul.addr 1, 126
    %s30 = scalar_lea.vmem %s0, %s29
    %v31 = vld [vmem:[%s30] sm:%s28]
    %v32 = vunpack.c.0.s8 %v31
    %v33 = vunpack.c.1.s8 %v31
    %v34 = vunpack.c.2.s8 %v31
    %v35 = vunpack.c.3.s8 %v31
    %s36 = scalar_lea.vmem [#allocation1], 1008
    %37 = vst [vmem:[%s36] sm:%s5] %v32
    %s38 = sand.u32 %s5, 15
    %p39 = scmp.ne.s32.totalorder %s38, 0
    %s40 = scalar_select %p39, 1, 0
    %s41 = sand.u32 %s5, 240
    %p42 = scmp.ne.s32.totalorder %s41, 0
    %s43 = scalar_select %p42, 2, 0
    %s44 = sor.u32 %s40, %s43
    %s45 = smul.addr 1, 125
    %s46 = scalar_lea.vmem %s0, %s45
    %v47 = vld [vmem:[%s46] sm:%s44]
    %v48 = vunpack.c.0.s8 %v47
    %v49 = vunpack.c.1.s8 %v47
    %v50 = vunpack.c.2.s8 %v47
    %v51 = vunpack.c.3.s8 %v47
    %s52 = scalar_lea.vmem [#allocation1], 1000
    %53 = vst [vmem:[%s52] sm:%s5] %v48
    %s54 = sand.u32 %s5, 15
    %p55 = scmp.ne.s32.totalorder %s54, 0
    %s56 = scalar_select %p55, 1, 0
    %s57 = sand.u32 %s5, 240
    %p58 = scmp.ne.s32.totalorder %s57, 0
    %s59 = scalar_select %p58, 2, 0
    %s60 = sor.u32 %s56, %s59
    %s61 = smul.addr 1, 124
    %s62 = scalar_lea.vmem %s0, %s61
    %v63 = vld [vmem:[%s62] sm:%s60]
    %v64 = vunpack.c.0.s8 %v63
    %v65 = vunpack.c.1.s8 %v63
    %v66 = vunpack.c.2.s8 %v63
    %v67 = vunpack.c.3.s8 %v63
    %s68 = scalar_lea.vmem [#allocation1], 992
    %69 = vst [vmem:[%s68] sm:%s5] %v64
    %s70 = sand.u32 %s5, 15
    %p71 = scmp.ne.s32.totalorder %s70, 0
    %s72 = scalar_select %p71, 1, 0
    %s73 = sand.u32 %s5, 240
    %p74 = scmp.ne.s32.totalorder %s73, 0
    %s75 = scalar_select %p74, 2, 0
    %s76 = sor.u32 %s72, %s75
    %s77 = smul.addr 1, 123
    %s78 = scalar_lea.vmem %s0, %s77
    %v79 = vld [vmem:[%s78] sm:%s76]
    %v80 = vunpack.c.0.s8 %v79
    %v81 = vunpack.c.1.s8 %v79
    %v82 = vunpack.c.2.s8 %v79
    %v83 = vunpack.c.3.s8 %v79
    %s84 = scalar_lea.vmem [#allocation1], 984
    %85 = vst [vmem:[%s84] sm:%s5] %v80
    %s86 = sand.u32 %s5, 15
    %p87 = scmp.ne.s32.totalorder %s86, 0
    %s88 = scalar_select %p87, 1, 0
    %s89 = sand.u32 %s5, 240
    %p90 = scmp.ne.s32.totalorder %s89, 0
    %s91 = scalar_select %p90, 2, 0
    %s92 = sor.u32 %s88, %s91
    %s93 = smul.addr 1, 122
    %s94 = scalar_lea.vmem %s0, %s93
    %v95 = vld [vmem:[%s94] sm:%s92]
    %v96 = vunpack.c.0.s8 %v95
    %v97 = vunpack.c.1.s8 %v95
    %v98 = vunpack.c.2.s8 %v95
    %v99 = vunpack.c.3.s8 %v95
    %s100 = scalar_lea.vmem [#allocation1], 976
    %101 = vst [vmem:[%s100] sm:%s5] %v96
    %s102 = sand.u32 %s5, 15
    %p103 = scmp.ne.s32.totalorder %s102, 0
    %s104 = scalar_select %p103, 1, 0
    %s105 = sand.u32 %s5, 240
    %p106 = scmp.ne.s32.totalorder %s105, 0
    %s107 = scalar_select %p106, 2, 0
    %s108 = sor.u32 %s104, %s107
    %s109 = smul.addr 1, 121
    %s110 = scalar_lea.vmem %s0, %s109
    %v111 = vld [vmem:[%s110] sm:%s108]
    %v112 = vunpack.c.0.s8 %v111
    %v113 = vunpack.c.1.s8 %v111
    %v114 = vunpack.c.2.s8 %v111
    %v115 = vunpack.c.3.s8 %v111
    %s116 = scalar_lea.vmem [#allocation1], 968
    %117 = vst [vmem:[%s116] sm:%s5] %v112
    %s118 = sand.u32 %s5, 15
    %p119 = scmp.ne.s32.totalorder %s118, 0
    %s120 = scalar_select %p119, 1, 0
    %s121 = sand.u32 %s5, 240
    %p122 = scmp.ne.s32.totalorder %s121, 0
    %s123 = scalar_select %p122, 2, 0
    %s124 = sor.u32 %s120, %s123
    %s125 = smul.addr 1, 120
    %s126 = scalar_lea.vmem %s0, %s125
    %v127 = vld [vmem:[%s126] sm:%s124]
    %v128 = vunpack.c.0.s8 %v127
    %v129 = vunpack.c.1.s8 %v127
    %v130 = vunpack.c.2.s8 %v127
    %v131 = vunpack.c.3.s8 %v127
    %s132 = scalar_lea.vmem [#allocation1], 960
    %133 = vst [vmem:[%s132] sm:%s5] %v128
    %s134 = sand.u32 %s5, 15
    %p135 = scmp.ne.s32.totalorder %s134, 0
    %s136 = scalar_select %p135, 1, 0
    %s137 = sand.u32 %s5, 240
    %p138 = scmp.ne.s32.totalorder %s137, 0
    %s139 = scalar_select %p138, 2, 0
    %s140 = sor.u32 %s136, %s139
    %s141 = smul.addr 1, 119
    %s142 = scalar_lea.vmem %s0, %s141
    %v143 = vld [vmem:[%s142] sm:%s140]
    %v144 = vunpack.c.0.s8 %v143
    %v145 = vunpack.c.1.s8 %v143
    %v146 = vunpack.c.2.s8 %v143
    %v147 = vunpack.c.3.s8 %v143
    %s148 = scalar_lea.vmem [#allocation1], 952
    %149 = vst [vmem:[%s148] sm:%s5] %v144
    %s150 = sand.u32 %s5, 15
    %p151 = scmp.ne.s32.totalorder %s150, 0
    %s152 = scalar_select %p151, 1, 0
    %s153 = sand.u32 %s5, 240
    %p154 = scmp.ne.s32.totalorder %s153, 0
    %s155 = scalar_select %p154, 2, 0
    %s156 = sor.u32 %s152, %s155
    %s157 = smul.addr 1, 118
    %s158 = scalar_lea.vmem %s0, %s157
    %v159 = vld [vmem:[%s158] sm:%s156]
    %v160 = vunpack.c.0.s8 %v159
    %v161 = vunpack.c.1.s8 %v159
    %v162 = vunpack.c.2.s8 %v159
    %v163 = vunpack.c.3.s8 %v159
    %s164 = scalar_lea.vmem [#allocation1], 944
    %165 = vst [vmem:[%s164] sm:%s5] %v160
    %s166 = sand.u32 %s5, 15
    %p167 = scmp.ne.s32.totalorder %s166, 0
    %s168 = scalar_select %p167, 1, 0
    %s169 = sand.u32 %s5, 240
    %p170 = scmp.ne.s32.totalorder %s169, 0
    %s171 = scalar_select %p170, 2, 0
    %s172 = sor.u32 %s168, %s171
    %s173 = smul.addr 1, 117
    %s174 = scalar_lea.vmem %s0, %s173
    %v175 = vld [vmem:[%s174] sm:%s172]
    %v176 = vunpack.c.0.s8 %v175
    %v177 = vunpack.c.1.s8 %v175
    %v178 = vunpack.c.2.s8 %v175
    %v179 = vunpack.c.3.s8 %v175
    %s180 = scalar_lea.vmem [#allocation1], 936
    %181 = vst [vmem:[%s180] sm:%s5] %v176
    %s182 = sand.u32 %s5, 15
    %p183 = scmp.ne.s32.totalorder %s182, 0
    %s184 = scalar_select %p183, 1, 0
    %s185 = sand.u32 %s5, 240
    %p186 = scmp.ne.s32.totalorder %s185, 0
    %s187 = scalar_select %p186, 2, 0
    %s188 = sor.u32 %s184, %s187
    %s189 = smul.addr 1, 116
    %s190 = scalar_lea.vmem %s0, %s189
    %v191 = vld [vmem:[%s190] sm:%s188]
    %v192 = vunpack.c.0.s8 %v191
    %v193 = vunpack.c.1.s8 %v191
    %v194 = vunpack.c.2.s8 %v191
    %v195 = vunpack.c.3.s8 %v191
    %s196 = scalar_lea.vmem [#allocation1], 928
    %197 = vst [vmem:[%s196] sm:%s5] %v192
    %s198 = sand.u32 %s5, 15
    %p199 = scmp.ne.s32.totalorder %s198, 0
    %s200 = scalar_select %p199, 1, 0
    %s201 = sand.u32 %s5, 240
    %p202 = scmp.ne.s32.totalorder %s201, 0
    %s203 = scalar_select %p202, 2, 0
    %s204 = sor.u32 %s200, %s203
    %s205 = smul.addr 1, 115
    %s206 = scalar_lea.vmem %s0, %s205
    %v207 = vld [vmem:[%s206] sm:%s204]
    %v208 = vunpack.c.0.s8 %v207
    %v209 = vunpack.c.1.s8 %v207
    %v210 = vunpack.c.2.s8 %v207
    %v211 = vunpack.c.3.s8 %v207
    %s212 = scalar_lea.vmem [#allocation1], 920
    %213 = vst [vmem:[%s212] sm:%s5] %v208
    %s214 = sand.u32 %s5, 15
    %p215 = scmp.ne.s32.totalorder %s214, 0
    %s216 = scalar_select %p215, 1, 0
    %s217 = sand.u32 %s5, 240
    %p218 = scmp.ne.s32.totalorder %s217, 0
    %s219 = scalar_select %p218, 2, 0
    %s220 = sor.u32 %s216, %s219
    %s221 = smul.addr 1, 114
    %s222 = scalar_lea.vmem %s0, %s221
    %v223 = vld [vmem:[%s222] sm:%s220]
    %v224 = vunpack.c.0.s8 %v223
    %v225 = vunpack.c.1.s8 %v223
    %v226 = vunpack.c.2.s8 %v223
    %v227 = vunpack.c.3.s8 %v223
    %s228 = scalar_lea.vmem [#allocation1], 912
    %229 = vst [vmem:[%s228] sm:%s5] %v224
    %s230 = sand.u32 %s5, 15
    %p231 = scmp.ne.s32.totalorder %s230, 0
    %s232 = scalar_select %p231, 1, 0
    %s233 = sand.u32 %s5, 240
    %p234 = scmp.ne.s32.totalorder %s233, 0
    %s235 = scalar_select %p234, 2, 0
    %s236 = sor.u32 %s232, %s235
    %s237 = smul.addr 1, 113
    %s238 = scalar_lea.vmem %s0, %s237
    %v239 = vld [vmem:[%s238] sm:%s236]
    %v240 = vunpack.c.0.s8 %v239
    %v241 = vunpack.c.1.s8 %v239
    %v242 = vunpack.c.2.s8 %v239
    %v243 = vunpack.c.3.s8 %v239
    %s244 = scalar_lea.vmem [#allocation1], 904
    %245 = vst [vmem:[%s244] sm:%s5] %v240
    %s246 = sand.u32 %s5, 15
    %p247 = scmp.ne.s32.totalorder %s246, 0
    %s248 = scalar_select %p247, 1, 0
    %s249 = sand.u32 %s5, 240
    %p250 = scmp.ne.s32.totalorder %s249, 0
    %s251 = scalar_select %p250, 2, 0
    %s252 = sor.u32 %s248, %s251
    %s253 = smul.addr 1, 112
    %s254 = scalar_lea.vmem %s0, %s253
    %v255 = vld [vmem:[%s254] sm:%s252]
    %v256 = vunpack.c.0.s8 %v255
    %v257 = vunpack.c.1.s8 %v255
    %v258 = vunpack.c.2.s8 %v255
    %v259 = vunpack.c.3.s8 %v255
    %s260 = scalar_lea.vmem [#allocation1], 896
    %261 = vst [vmem:[%s260] sm:%s5] %v256
    %s262 = sand.u32 %s5, 15
    %p263 = scmp.ne.s32.totalorder %s262, 0
    %s264 = scalar_select %p263, 1, 0
    %s265 = sand.u32 %s5, 240
    %p266 = scmp.ne.s32.totalorder %s265, 0
    %s267 = scalar_select %p266, 2, 0
    %s268 = sor.u32 %s264, %s267
    %s269 = smul.addr 1, 111
    %s270 = scalar_lea.vmem %s0, %s269
    %v271 = vld [vmem:[%s270] sm:%s268]
    %v272 = vunpack.c.0.s8 %v271
    %v273 = vunpack.c.1.s8 %v271
    %v274 = vunpack.c.2.s8 %v271
    %v275 = vunpack.c.3.s8 %v271
    %s276 = scalar_lea.vmem [#allocation1], 888
    %277 = vst [vmem:[%s276] sm:%s5] %v272
    %s278 = sand.u32 %s5, 15
    %p279 = scmp.ne.s32.totalorder %s278, 0
    %s280 = scalar_select %p279, 1, 0
    %s281 = sand.u32 %s5, 240
    %p282 = scmp.ne.s32.totalorder %s281, 0
    %s283 = scalar_select %p282, 2, 0
    %s284 = sor.u32 %s280, %s283
    %s285 = smul.addr 1, 110
    %s286 = scalar_lea.vmem %s0, %s285
    %v287 = vld [vmem:[%s286] sm:%s284]
    %v288 = vunpack.c.0.s8 %v287
    %v289 = vunpack.c.1.s8 %v287
    %v290 = vunpack.c.2.s8 %v287
    %v291 = vunpack.c.3.s8 %v287
    %s292 = scalar_lea.vmem [#allocation1], 880
    %293 = vst [vmem:[%s292] sm:%s5] %v288
    %s294 = sand.u32 %s5, 15
    %p295 = scmp.ne.s32.totalorder %s294, 0
    %s296 = scalar_select %p295, 1, 0
    %s297 = sand.u32 %s5, 240
    %p298 = scmp.ne.s32.totalorder %s297, 0
    %s299 = scalar_select %p298, 2, 0
    %s300 = sor.u32 %s296, %s299
    %s301 = smul.addr 1, 109
    %s302 = scalar_lea.vmem %s0, %s301
    %v303 = vld [vmem:[%s302] sm:%s300]
    %v304 = vunpack.c.0.s8 %v303
    %v305 = vunpack.c.1.s8 %v303
    %v306 = vunpack.c.2.s8 %v303
    %v307 = vunpack.c.3.s8 %v303
    %s308 = scalar_lea.vmem [#allocation1], 872
    %309 = vst [vmem:[%s308] sm:%s5] %v304
    %s310 = sand.u32 %s5, 15
    %p311 = scmp.ne.s32.totalorder %s310, 0
    %s312 = scalar_select %p311, 1, 0
    %s313 = sand.u32 %s5, 240
    %p314 = scmp.ne.s32.totalorder %s313, 0
    %s315 = scalar_select %p314, 2, 0
    %s316 = sor.u32 %s312, %s315
    %s317 = smul.addr 1, 108
    %s318 = scalar_lea.vmem %s0, %s317
    %v319 = vld [vmem:[%s318] sm:%s316]
    %v320 = vunpack.c.0.s8 %v319
    %v321 = vunpack.c.1.s8 %v319
    %v322 = vunpack.c.2.s8 %v319
    %v323 = vunpack.c.3.s8 %v319
    %s324 = scalar_lea.vmem [#allocation1], 864
    %325 = vst [vmem:[%s324] sm:%s5] %v320
    %s326 = sand.u32 %s5, 15
    %p327 = scmp.ne.s32.totalorder %s326, 0
    %s328 = scalar_select %p327, 1, 0
    %s329 = sand.u32 %s5, 240
    %p330 = scmp.ne.s32.totalorder %s329, 0
    %s331 = scalar_select %p330, 2, 0
    %s332 = sor.u32 %s328, %s331
    %s333 = smul.addr 1, 107
    %s334 = scalar_lea.vmem %s0, %s333
    %v335 = vld [vmem:[%s334] sm:%s332]
    %v336 = vunpack.c.0.s8 %v335
    %v337 = vunpack.c.1.s8 %v335
    %v338 = vunpack.c.2.s8 %v335
    %v339 = vunpack.c.3.s8 %v335
    %s340 = scalar_lea.vmem [#allocation1], 856
    %341 = vst [vmem:[%s340] sm:%s5] %v336
    %s342 = sand.u32 %s5, 15
    %p343 = scmp.ne.s32.totalorder %s342, 0
    %s344 = scalar_select %p343, 1, 0
    %s345 = sand.u32 %s5, 240
    %p346 = scmp.ne.s32.totalorder %s345, 0
    %s347 = scalar_select %p346, 2, 0
    %s348 = sor.u32 %s344, %s347
    %s349 = smul.addr 1, 106
    %s350 = scalar_lea.vmem %s0, %s349
    %v351 = vld [vmem:[%s350] sm:%s348]
    %v352 = vunpack.c.0.s8 %v351
    %v353 = vunpack.c.1.s8 %v351
    %v354 = vunpack.c.2.s8 %v351
    %v355 = vunpack.c.3.s8 %v351
    %s356 = scalar_lea.vmem [#allocation1], 848
    %357 = vst [vmem:[%s356] sm:%s5] %v352
    %s358 = sand.u32 %s5, 15
    %p359 = scmp.ne.s32.totalorder %s358, 0
    %s360 = scalar_select %p359, 1, 0
    %s361 = sand.u32 %s5, 240
    %p362 = scmp.ne.s32.totalorder %s361, 0
    %s363 = scalar_select %p362, 2, 0
    %s364 = sor.u32 %s360, %s363
    %s365 = smul.addr 1, 105
    %s366 = scalar_lea.vmem %s0, %s365
    %v367 = vld [vmem:[%s366] sm:%s364]
    %v368 = vunpack.c.0.s8 %v367
    %v369 = vunpack.c.1.s8 %v367
    %v370 = vunpack.c.2.s8 %v367
    %v371 = vunpack.c.3.s8 %v367
    %s372 = scalar_lea.vmem [#allocation1], 840
    %373 = vst [vmem:[%s372] sm:%s5] %v368
    %s374 = sand.u32 %s5, 15
    %p375 = scmp.ne.s32.totalorder %s374, 0
    %s376 = scalar_select %p375, 1, 0
    %s377 = sand.u32 %s5, 240
    %p378 = scmp.ne.s32.totalorder %s377, 0
    %s379 = scalar_select %p378, 2, 0
    %s380 = sor.u32 %s376, %s379
    %s381 = smul.addr 1, 104
    %s382 = scalar_lea.vmem %s0, %s381
    %v383 = vld [vmem:[%s382] sm:%s380]
    %v384 = vunpack.c.0.s8 %v383
    %v385 = vunpack.c.1.s8 %v383
    %v386 = vunpack.c.2.s8 %v383
    %v387 = vunpack.c.3.s8 %v383
    %s388 = scalar_lea.vmem [#allocation1], 832
    %389 = vst [vmem:[%s388] sm:%s5] %v384
    %s390 = sand.u32 %s5, 15
    %p391 = scmp.ne.s32.totalorder %s390, 0
    %s392 = scalar_select %p391, 1, 0
    %s393 = sand.u32 %s5, 240
    %p394 = scmp.ne.s32.totalorder %s393, 0
    %s395 = scalar_select %p394, 2, 0
    %s396 = sor.u32 %s392, %s395
    %s397 = smul.addr 1, 103
    %s398 = scalar_lea.vmem %s0, %s397
    %v399 = vld [vmem:[%s398] sm:%s396]
    %v400 = vunpack.c.0.s8 %v399
    %v401 = vunpack.c.1.s8 %v399
    %v402 = vunpack.c.2.s8 %v399
    %v403 = vunpack.c.3.s8 %v399
    %s404 = scalar_lea.vmem [#allocation1], 824
    %405 = vst [vmem:[%s404] sm:%s5] %v400
    %s406 = sand.u32 %s5, 15
    %p407 = scmp.ne.s32.totalorder %s406, 0
    %s408 = scalar_select %p407, 1, 0
    %s409 = sand.u32 %s5, 240
    %p410 = scmp.ne.s32.totalorder %s409, 0
    %s411 = scalar_select %p410, 2, 0
    %s412 = sor.u32 %s408, %s411
    %s413 = smul.addr 1, 102
    %s414 = scalar_lea.vmem %s0, %s413
    %v415 = vld [vmem:[%s414] sm:%s412]
    %v416 = vunpack.c.0.s8 %v415
    %v417 = vunpack.c.1.s8 %v415
    %v418 = vunpack.c.2.s8 %v415
    %v419 = vunpack.c.3.s8 %v415
    %s420 = scalar_lea.vmem [#allocation1], 816
    %421 = vst [vmem:[%s420] sm:%s5] %v416
    %s422 = sand.u32 %s5, 15
    %p423 = scmp.ne.s32.totalorder %s422, 0
    %s424 = scalar_select %p423, 1, 0
    %s425 = sand.u32 %s5, 240
    %p426 = scmp.ne.s32.totalorder %s425, 0
    %s427 = scalar_select %p426, 2, 0
    %s428 = sor.u32 %s424, %s427
    %s429 = smul.addr 1, 101
    %s430 = scalar_lea.vmem %s0, %s429
    %v431 = vld [vmem:[%s430] sm:%s428]
    %v432 = vunpack.c.0.s8 %v431
    %v433 = vunpack.c.1.s8 %v431
    %v434 = vunpack.c.2.s8 %v431
    %v435 = vunpack.c.3.s8 %v431
    %s436 = scalar_lea.vmem [#allocation1], 808
    %437 = vst [vmem:[%s436] sm:%s5] %v432
    %s438 = sand.u32 %s5, 15
    %p439 = scmp.ne.s32.totalorder %s438, 0
    %s440 = scalar_select %p439, 1, 0
    %s441 = sand.u32 %s5, 240
    %p442 = scmp.ne.s32.totalorder %s441, 0
    %s443 = scalar_select %p442, 2, 0
    %s444 = sor.u32 %s440, %s443
    %s445 = smul.addr 1, 100
    %s446 = scalar_lea.vmem %s0, %s445
    %v447 = vld [vmem:[%s446] sm:%s444]
    %v448 = vunpack.c.0.s8 %v447
    %v449 = vunpack.c.1.s8 %v447
    %v450 = vunpack.c.2.s8 %v447
    %v451 = vunpack.c.3.s8 %v447
    %s452 = scalar_lea.vmem [#allocation1], 800
    %453 = vst [vmem:[%s452] sm:%s5] %v448
    %s454 = sand.u32 %s5, 15
    %p455 = scmp.ne.s32.totalorder %s454, 0
    %s456 = scalar_select %p455, 1, 0
    %s457 = sand.u32 %s5, 240
    %p458 = scmp.ne.s32.totalorder %s457, 0
    %s459 = scalar_select %p458, 2, 0
    %s460 = sor.u32 %s456, %s459
    %s461 = smul.addr 1, 99
    %s462 = scalar_lea.vmem %s0, %s461
    %v463 = vld [vmem:[%s462] sm:%s460]
    %v464 = vunpack.c.0.s8 %v463
    %v465 = vunpack.c.1.s8 %v463
    %v466 = vunpack.c.2.s8 %v463
    %v467 = vunpack.c.3.s8 %v463
    %s468 = scalar_lea.vmem [#allocation1], 792
    %469 = vst [vmem:[%s468] sm:%s5] %v464
    %s470 = sand.u32 %s5, 15
    %p471 = scmp.ne.s32.totalorder %s470, 0
    %s472 = scalar_select %p471, 1, 0
    %s473 = sand.u32 %s5, 240
    %p474 = scmp.ne.s32.totalorder %s473, 0
    %s475 = scalar_select %p474, 2, 0
    %s476 = sor.u32 %s472, %s475
    %s477 = smul.addr 1, 98
    %s478 = scalar_lea.vmem %s0, %s477
    %v479 = vld [vmem:[%s478] sm:%s476]
    %v480 = vunpack.c.0.s8 %v479
    %v481 = vunpack.c.1.s8 %v479
    %v482 = vunpack.c.2.s8 %v479
    %v483 = vunpack.c.3.s8 %v479
    %s484 = scalar_lea.vmem [#allocation1], 784
    %485 = vst [vmem:[%s484] sm:%s5] %v480
    %s486 = sand.u32 %s5, 15
    %p487 = scmp.ne.s32.totalorder %s486, 0
    %s488 = scalar_select %p487, 1, 0
    %s489 = sand.u32 %s5, 240
    %p490 = scmp.ne.s32.totalorder %s489, 0
    %s491 = scalar_select %p490, 2, 0
    %s492 = sor.u32 %s488, %s491
    %s493 = smul.addr 1, 97
    %s494 = scalar_lea.vmem %s0, %s493
    %v495 = vld [vmem:[%s494] sm:%s492]
    %v496 = vunpack.c.0.s8 %v495
    %v497 = vunpack.c.1.s8 %v495
    %v498 = vunpack.c.2.s8 %v495
    %v499 = vunpack.c.3.s8 %v495
    %s500 = scalar_lea.vmem [#allocation1], 776
    %501 = vst [vmem:[%s500] sm:%s5] %v496
    %s502 = sand.u32 %s5, 15
    %p503 = scmp.ne.s32.totalorder %s502, 0
    %s504 = scalar_select %p503, 1, 0
    %s505 = sand.u32 %s5, 240
    %p506 = scmp.ne.s32.totalorder %s505, 0
    %s507 = scalar_select %p506, 2, 0
    %s508 = sor.u32 %s504, %s507
    %s509 = smul.addr 1, 96
    %s510 = scalar_lea.vmem %s0, %s509
    %v511 = vld [vmem:[%s510] sm:%s508]
    %v512 = vunpack.c.0.s8 %v511
    %v513 = vunpack.c.1.s8 %v511
    %v514 = vunpack.c.2.s8 %v511
    %v515 = vunpack.c.3.s8 %v511
    %s516 = scalar_lea.vmem [#allocation1], 768
    %517 = vst [vmem:[%s516] sm:%s5] %v512
    %s518 = sand.u32 %s5, 15
    %p519 = scmp.ne.s32.totalorder %s518, 0
    %s520 = scalar_select %p519, 1, 0
    %s521 = sand.u32 %s5, 240
    %p522 = scmp.ne.s32.totalorder %s521, 0
    %s523 = scalar_select %p522, 2, 0
    %s524 = sor.u32 %s520, %s523
    %s525 = smul.addr 1, 95
    %s526 = scalar_lea.vmem %s0, %s525
    %v527 = vld [vmem:[%s526] sm:%s524]
    %v528 = vunpack.c.0.s8 %v527
    %v529 = vunpack.c.1.s8 %v527
    %v530 = vunpack.c.2.s8 %v527
    %v531 = vunpack.c.3.s8 %v527
    %s532 = scalar_lea.vmem [#allocation1], 760
    %533 = vst [vmem:[%s532] sm:%s5] %v528
    %s534 = sand.u32 %s5, 15
    %p535 = scmp.ne.s32.totalorder %s534, 0
    %s536 = scalar_select %p535, 1, 0
    %s537 = sand.u32 %s5, 240
    %p538 = scmp.ne.s32.totalorder %s537, 0
    %s539 = scalar_select %p538, 2, 0
    %s540 = sor.u32 %s536, %s539
    %s541 = smul.addr 1, 94
    %s542 = scalar_lea.vmem %s0, %s541
    %v543 = vld [vmem:[%s542] sm:%s540]
    %v544 = vunpack.c.0.s8 %v543
    %v545 = vunpack.c.1.s8 %v543
    %v546 = vunpack.c.2.s8 %v543
    %v547 = vunpack.c.3.s8 %v543
    %s548 = scalar_lea.vmem [#allocation1], 752
    %549 = vst [vmem:[%s548] sm:%s5] %v544
    %s550 = sand.u32 %s5, 15
    %p551 = scmp.ne.s32.totalorder %s550, 0
    %s552 = scalar_select %p551, 1, 0
    %s553 = sand.u32 %s5, 240
    %p554 = scmp.ne.s32.totalorder %s553, 0
    %s555 = scalar_select %p554, 2, 0
    %s556 = sor.u32 %s552, %s555
    %s557 = smul.addr 1, 93
    %s558 = scalar_lea.vmem %s0, %s557
    %v559 = vld [vmem:[%s558] sm:%s556]
    %v560 = vunpack.c.0.s8 %v559
    %v561 = vunpack.c.1.s8 %v559
    %v562 = vunpack.c.2.s8 %v559
    %v563 = vunpack.c.3.s8 %v559
    %s564 = scalar_lea.vmem [#allocation1], 744
    %565 = vst [vmem:[%s564] sm:%s5] %v560
    %s566 = sand.u32 %s5, 15
    %p567 = scmp.ne.s32.totalorder %s566, 0
    %s568 = scalar_select %p567, 1, 0
    %s569 = sand.u32 %s5, 240
    %p570 = scmp.ne.s32.totalorder %s569, 0
    %s571 = scalar_select %p570, 2, 0
    %s572 = sor.u32 %s568, %s571
    %s573 = smul.addr 1, 92
    %s574 = scalar_lea.vmem %s0, %s573
    %v575 = vld [vmem:[%s574] sm:%s572]
    %v576 = vunpack.c.0.s8 %v575
    %v577 = vunpack.c.1.s8 %v575
    %v578 = vunpack.c.2.s8 %v575
    %v579 = vunpack.c.3.s8 %v575
    %s580 = scalar_lea.vmem [#allocation1], 736
    %581 = vst [vmem:[%s580] sm:%s5] %v576
    %s582 = sand.u32 %s5, 15
    %p583 = scmp.ne.s32.totalorder %s582, 0
    %s584 = scalar_select %p583, 1, 0
    %s585 = sand.u32 %s5, 240
    %p586 = scmp.ne.s32.totalorder %s585, 0
    %s587 = scalar_select %p586, 2, 0
    %s588 = sor.u32 %s584, %s587
    %s589 = smul.addr 1, 91
    %s590 = scalar_lea.vmem %s0, %s589
    %v591 = vld [vmem:[%s590] sm:%s588]
    %v592 = vunpack.c.0.s8 %v591
    %v593 = vunpack.c.1.s8 %v591
    %v594 = vunpack.c.2.s8 %v591
    %v595 = vunpack.c.3.s8 %v591
    %s596 = scalar_lea.vmem [#allocation1], 728
    %597 = vst [vmem:[%s596] sm:%s5] %v592
    %s598 = sand.u32 %s5, 15
    %p599 = scmp.ne.s32.totalorder %s598, 0
    %s600 = scalar_select %p599, 1, 0
    %s601 = sand.u32 %s5, 240
    %p602 = scmp.ne.s32.totalorder %s601, 0
    %s603 = scalar_select %p602, 2, 0
    %s604 = sor.u32 %s600, %s603
    %s605 = smul.addr 1, 90
    %s606 = scalar_lea.vmem %s0, %s605
    %v607 = vld [vmem:[%s606] sm:%s604]
    %v608 = vunpack.c.0.s8 %v607
    %v609 = vunpack.c.1.s8 %v607
    %v610 = vunpack.c.2.s8 %v607
    %v611 = vunpack.c.3.s8 %v607
    %s612 = scalar_lea.vmem [#allocation1], 720
    %613 = vst [vmem:[%s612] sm:%s5] %v608
    %s614 = sand.u32 %s5, 15
    %p615 = scmp.ne.s32.totalorder %s614, 0
    %s616 = scalar_select %p615, 1, 0
    %s617 = sand.u32 %s5, 240
    %p618 = scmp.ne.s32.totalorder %s617, 0
    %s619 = scalar_select %p618, 2, 0
    %s620 = sor.u32 %s616, %s619
    %s621 = smul.addr 1, 89
    %s622 = scalar_lea.vmem %s0, %s621
    %v623 = vld [vmem:[%s622] sm:%s620]
    %v624 = vunpack.c.0.s8 %v623
    %v625 = vunpack.c.1.s8 %v623
    %v626 = vunpack.c.2.s8 %v623
    %v627 = vunpack.c.3.s8 %v623
    %s628 = scalar_lea.vmem [#allocation1], 712
    %629 = vst [vmem:[%s628] sm:%s5] %v624
    %s630 = sand.u32 %s5, 15
    %p631 = scmp.ne.s32.totalorder %s630, 0
    %s632 = scalar_select %p631, 1, 0
    %s633 = sand.u32 %s5, 240
    %p634 = scmp.ne.s32.totalorder %s633, 0
    %s635 = scalar_select %p634, 2, 0
    %s636 = sor.u32 %s632, %s635
    %s637 = smul.addr 1, 88
    %s638 = scalar_lea.vmem %s0, %s637
    %v639 = vld [vmem:[%s638] sm:%s636]
    %v640 = vunpack.c.0.s8 %v639
    %v641 = vunpack.c.1.s8 %v639
    %v642 = vunpack.c.2.s8 %v639
    %v643 = vunpack.c.3.s8 %v639
    %s644 = scalar_lea.vmem [#allocation1], 704
    %645 = vst [vmem:[%s644] sm:%s5] %v640
    %s646 = sand.u32 %s5, 15
    %p647 = scmp.ne.s32.totalorder %s646, 0
    %s648 = scalar_select %p647, 1, 0
    %s649 = sand.u32 %s5, 240
    %p650 = scmp.ne.s32.totalorder %s649, 0
    %s651 = scalar_select %p650, 2, 0
    %s652 = sor.u32 %s648, %s651
    %s653 = smul.addr 1, 87
    %s654 = scalar_lea.vmem %s0, %s653
    %v655 = vld [vmem:[%s654] sm:%s652]
    %v656 = vunpack.c.0.s8 %v655
    %v657 = vunpack.c.1.s8 %v655
    %v658 = vunpack.c.2.s8 %v655
    %v659 = vunpack.c.3.s8 %v655
    %s660 = scalar_lea.vmem [#allocation1], 696
    %661 = vst [vmem:[%s660] sm:%s5] %v656
    %s662 = sand.u32 %s5, 15
    %p663 = scmp.ne.s32.totalorder %s662, 0
    %s664 = scalar_select %p663, 1, 0
    %s665 = sand.u32 %s5, 240
    %p666 = scmp.ne.s32.totalorder %s665, 0
    %s667 = scalar_select %p666, 2, 0
    %s668 = sor.u32 %s664, %s667
    %s669 = smul.addr 1, 86
    %s670 = scalar_lea.vmem %s0, %s669
    %v671 = vld [vmem:[%s670] sm:%s668]
    %v672 = vunpack.c.0.s8 %v671
    %v673 = vunpack.c.1.s8 %v671
    %v674 = vunpack.c.2.s8 %v671
    %v675 = vunpack.c.3.s8 %v671
    %s676 = scalar_lea.vmem [#allocation1], 688
    %677 = vst [vmem:[%s676] sm:%s5] %v672
    %s678 = sand.u32 %s5, 15
    %p679 = scmp.ne.s32.totalorder %s678, 0
    %s680 = scalar_select %p679, 1, 0
    %s681 = sand.u32 %s5, 240
    %p682 = scmp.ne.s32.totalorder %s681, 0
    %s683 = scalar_select %p682, 2, 0
    %s684 = sor.u32 %s680, %s683
    %s685 = smul.addr 1, 85
    %s686 = scalar_lea.vmem %s0, %s685
    %v687 = vld [vmem:[%s686] sm:%s684]
    %v688 = vunpack.c.0.s8 %v687
    %v689 = vunpack.c.1.s8 %v687
    %v690 = vunpack.c.2.s8 %v687
    %v691 = vunpack.c.3.s8 %v687
    %s692 = scalar_lea.vmem [#allocation1], 680
    %693 = vst [vmem:[%s692] sm:%s5] %v688
    %s694 = sand.u32 %s5, 15
    %p695 = scmp.ne.s32.totalorder %s694, 0
    %s696 = scalar_select %p695, 1, 0
    %s697 = sand.u32 %s5, 240
    %p698 = scmp.ne.s32.totalorder %s697, 0
    %s699 = scalar_select %p698, 2, 0
    %s700 = sor.u32 %s696, %s699
    %s701 = smul.addr 1, 84
    %s702 = scalar_lea.vmem %s0, %s701
    %v703 = vld [vmem:[%s702] sm:%s700]
    %v704 = vunpack.c.0.s8 %v703
    %v705 = vunpack.c.1.s8 %v703
    %v706 = vunpack.c.2.s8 %v703
    %v707 = vunpack.c.3.s8 %v703
    %s708 = scalar_lea.vmem [#allocation1], 672
    %709 = vst [vmem:[%s708] sm:%s5] %v704
    %s710 = sand.u32 %s5, 15
    %p711 = scmp.ne.s32.totalorder %s710, 0
    %s712 = scalar_select %p711, 1, 0
    %s713 = sand.u32 %s5, 240
    %p714 = scmp.ne.s32.totalorder %s713, 0
    %s715 = scalar_select %p714, 2, 0
    %s716 = sor.u32 %s712, %s715
    %s717 = smul.addr 1, 83
    %s718 = scalar_lea.vmem %s0, %s717
    %v719 = vld [vmem:[%s718] sm:%s716]
    %v720 = vunpack.c.0.s8 %v719
    %v721 = vunpack.c.1.s8 %v719
    %v722 = vunpack.c.2.s8 %v719
    %v723 = vunpack.c.3.s8 %v719
    %s724 = scalar_lea.vmem [#allocation1], 664
    %725 = vst [vmem:[%s724] sm:%s5] %v720
    %s726 = sand.u32 %s5, 15
    %p727 = scmp.ne.s32.totalorder %s726, 0
    %s728 = scalar_select %p727, 1, 0
    %s729 = sand.u32 %s5, 240
    %p730 = scmp.ne.s32.totalorder %s729, 0
    %s731 = scalar_select %p730, 2, 0
    %s732 = sor.u32 %s728, %s731
    %s733 = smul.addr 1, 82
    %s734 = scalar_lea.vmem %s0, %s733
    %v735 = vld [vmem:[%s734] sm:%s732]
    %v736 = vunpack.c.0.s8 %v735
    %v737 = vunpack.c.1.s8 %v735
    %v738 = vunpack.c.2.s8 %v735
    %v739 = vunpack.c.3.s8 %v735
    %s740 = scalar_lea.vmem [#allocation1], 656
    %741 = vst [vmem:[%s740] sm:%s5] %v736
    %s742 = sand.u32 %s5, 15
    %p743 = scmp.ne.s32.totalorder %s742, 0
    %s744 = scalar_select %p743, 1, 0
    %s745 = sand.u32 %s5, 240
    %p746 = scmp.ne.s32.totalorder %s745, 0
    %s747 = scalar_select %p746, 2, 0
    %s748 = sor.u32 %s744, %s747
    %s749 = smul.addr 1, 81
    %s750 = scalar_lea.vmem %s0, %s749
    %v751 = vld [vmem:[%s750] sm:%s748]
    %v752 = vunpack.c.0.s8 %v751
    %v753 = vunpack.c.1.s8 %v751
    %v754 = vunpack.c.2.s8 %v751
    %v755 = vunpack.c.3.s8 %v751
    %s756 = scalar_lea.vmem [#allocation1], 648
    %757 = vst [vmem:[%s756] sm:%s5] %v752
    %s758 = sand.u32 %s5, 15
    %p759 = scmp.ne.s32.totalorder %s758, 0
    %s760 = scalar_select %p759, 1, 0
    %s761 = sand.u32 %s5, 240
    %p762 = scmp.ne.s32.totalorder %s761, 0
    %s763 = scalar_select %p762, 2, 0
    %s764 = sor.u32 %s760, %s763
    %s765 = smul.addr 1, 80
    %s766 = scalar_lea.vmem %s0, %s765
    %v767 = vld [vmem:[%s766] sm:%s764]
    %v768 = vunpack.c.0.s8 %v767
    %v769 = vunpack.c.1.s8 %v767
    %v770 = vunpack.c.2.s8 %v767
    %v771 = vunpack.c.3.s8 %v767
    %s772 = scalar_lea.vmem [#allocation1], 640
    %773 = vst [vmem:[%s772] sm:%s5] %v768
    %s774 = sand.u32 %s5, 15
    %p775 = scmp.ne.s32.totalorder %s774, 0
    %s776 = scalar_select %p775, 1, 0
    %s777 = sand.u32 %s5, 240
    %p778 = scmp.ne.s32.totalorder %s777, 0
    %s779 = scalar_select %p778, 2, 0
    %s780 = sor.u32 %s776, %s779
    %s781 = smul.addr 1, 79
    %s782 = scalar_lea.vmem %s0, %s781
    %v783 = vld [vmem:[%s782] sm:%s780]
    %v784 = vunpack.c.0.s8 %v783
    %v785 = vunpack.c.1.s8 %v783
    %v786 = vunpack.c.2.s8 %v783
    %v787 = vunpack.c.3.s8 %v783
    %s788 = scalar_lea.vmem [#allocation1], 632
    %789 = vst [vmem:[%s788] sm:%s5] %v784
    %s790 = sand.u32 %s5, 15
    %p791 = scmp.ne.s32.totalorder %s790, 0
    %s792 = scalar_select %p791, 1, 0
    %s793 = sand.u32 %s5, 240
    %p794 = scmp.ne.s32.totalorder %s793, 0
    %s795 = scalar_select %p794, 2, 0
    %s796 = sor.u32 %s792, %s795
    %s797 = smul.addr 1, 78
    %s798 = scalar_lea.vmem %s0, %s797
    %v799 = vld [vmem:[%s798] sm:%s796]
    %v800 = vunpack.c.0.s8 %v799
    %v801 = vunpack.c.1.s8 %v799
    %v802 = vunpack.c.2.s8 %v799
    %v803 = vunpack.c.3.s8 %v799
    %s804 = scalar_lea.vmem [#allocation1], 624
    %805 = vst [vmem:[%s804] sm:%s5] %v800
    %s806 = sand.u32 %s5, 15
    %p807 = scmp.ne.s32.totalorder %s806, 0
    %s808 = scalar_select %p807, 1, 0
    %s809 = sand.u32 %s5, 240
    %p810 = scmp.ne.s32.totalorder %s809, 0
    %s811 = scalar_select %p810, 2, 0
    %s812 = sor.u32 %s808, %s811
    %s813 = smul.addr 1, 77
    %s814 = scalar_lea.vmem %s0, %s813
    %v815 = vld [vmem:[%s814] sm:%s812]
    %v816 = vunpack.c.0.s8 %v815
    %v817 = vunpack.c.1.s8 %v815
    %v818 = vunpack.c.2.s8 %v815
    %v819 = vunpack.c.3.s8 %v815
    %s820 = scalar_lea.vmem [#allocation1], 616
    %821 = vst [vmem:[%s820] sm:%s5] %v816
    %s822 = sand.u32 %s5, 15
    %p823 = scmp.ne.s32.totalorder %s822, 0
    %s824 = scalar_select %p823, 1, 0
    %s825 = sand.u32 %s5, 240
    %p826 = scmp.ne.s32.totalorder %s825, 0
    %s827 = scalar_select %p826, 2, 0
    %s828 = sor.u32 %s824, %s827
    %s829 = smul.addr 1, 76
    %s830 = scalar_lea.vmem %s0, %s829
    %v831 = vld [vmem:[%s830] sm:%s828]
    %v832 = vunpack.c.0.s8 %v831
    %v833 = vunpack.c.1.s8 %v831
    %v834 = vunpack.c.2.s8 %v831
    %v835 = vunpack.c.3.s8 %v831
    %s836 = scalar_lea.vmem [#allocation1], 608
    %837 = vst [vmem:[%s836] sm:%s5] %v832
    %s838 = sand.u32 %s5, 15
    %p839 = scmp.ne.s32.totalorder %s838, 0
    %s840 = scalar_select %p839, 1, 0
    %s841 = sand.u32 %s5, 240
    %p842 = scmp.ne.s32.totalorder %s841, 0
    %s843 = scalar_select %p842, 2, 0
    %s844 = sor.u32 %s840, %s843
    %s845 = smul.addr 1, 75
    %s846 = scalar_lea.vmem %s0, %s845
    %v847 = vld [vmem:[%s846] sm:%s844]
    %v848 = vunpack.c.0.s8 %v847
    %v849 = vunpack.c.1.s8 %v847
    %v850 = vunpack.c.2.s8 %v847
    %v851 = vunpack.c.3.s8 %v847
    %s852 = scalar_lea.vmem [#allocation1], 600
    %853 = vst [vmem:[%s852] sm:%s5] %v848
    %s854 = sand.u32 %s5, 15
    %p855 = scmp.ne.s32.totalorder %s854, 0
    %s856 = scalar_select %p855, 1, 0
    %s857 = sand.u32 %s5, 240
    %p858 = scmp.ne.s32.totalorder %s857, 0
    %s859 = scalar_select %p858, 2, 0
    %s860 = sor.u32 %s856, %s859
    %s861 = smul.addr 1, 74
    %s862 = scalar_lea.vmem %s0, %s861
    %v863 = vld [vmem:[%s862] sm:%s860]
    %v864 = vunpack.c.0.s8 %v863
    %v865 = vunpack.c.1.s8 %v863
    %v866 = vunpack.c.2.s8 %v863
    %v867 = vunpack.c.3.s8 %v863
    %s868 = scalar_lea.vmem [#allocation1], 592
    %869 = vst [vmem:[%s868] sm:%s5] %v864
    %s870 = sand.u32 %s5, 15
    %p871 = scmp.ne.s32.totalorder %s870, 0
    %s872 = scalar_select %p871, 1, 0
    %s873 = sand.u32 %s5, 240
    %p874 = scmp.ne.s32.totalorder %s873, 0
    %s875 = scalar_select %p874, 2, 0
    %s876 = sor.u32 %s872, %s875
    %s877 = smul.addr 1, 73
    %s878 = scalar_lea.vmem %s0, %s877
    %v879 = vld [vmem:[%s878] sm:%s876]
    %v880 = vunpack.c.0.s8 %v879
    %v881 = vunpack.c.1.s8 %v879
    %v882 = vunpack.c.2.s8 %v879
    %v883 = vunpack.c.3.s8 %v879
    %s884 = scalar_lea.vmem [#allocation1], 584
    %885 = vst [vmem:[%s884] sm:%s5] %v880
    %s886 = sand.u32 %s5, 15
    %p887 = scmp.ne.s32.totalorder %s886, 0
    %s888 = scalar_select %p887, 1, 0
    %s889 = sand.u32 %s5, 240
    %p890 = scmp.ne.s32.totalorder %s889, 0
    %s891 = scalar_select %p890, 2, 0
    %s892 = sor.u32 %s888, %s891
    %s893 = smul.addr 1, 72
    %s894 = scalar_lea.vmem %s0, %s893
    %v895 = vld [vmem:[%s894] sm:%s892]
    %v896 = vunpack.c.0.s8 %v895
    %v897 = vunpack.c.1.s8 %v895
    %v898 = vunpack.c.2.s8 %v895
    %v899 = vunpack.c.3.s8 %v895
    %s900 = scalar_lea.vmem [#allocation1], 576
    %901 = vst [vmem:[%s900] sm:%s5] %v896
    %s902 = sand.u32 %s5, 15
    %p903 = scmp.ne.s32.totalorder %s902, 0
    %s904 = scalar_select %p903, 1, 0
    %s905 = sand.u32 %s5, 240
    %p906 = scmp.ne.s32.totalorder %s905, 0
    %s907 = scalar_select %p906, 2, 0
    %s908 = sor.u32 %s904, %s907
    %s909 = smul.addr 1, 71
    %s910 = scalar_lea.vmem %s0, %s909
    %v911 = vld [vmem:[%s910] sm:%s908]
    %v912 = vunpack.c.0.s8 %v911
    %v913 = vunpack.c.1.s8 %v911
    %v914 = vunpack.c.2.s8 %v911
    %v915 = vunpack.c.3.s8 %v911
    %s916 = scalar_lea.vmem [#allocation1], 568
    %917 = vst [vmem:[%s916] sm:%s5] %v912
    %s918 = sand.u32 %s5, 15
    %p919 = scmp.ne.s32.totalorder %s918, 0
    %s920 = scalar_select %p919, 1, 0
    %s921 = sand.u32 %s5, 240
    %p922 = scmp.ne.s32.totalorder %s921, 0
    %s923 = scalar_select %p922, 2, 0
    %s924 = sor.u32 %s920, %s923
    %s925 = smul.addr 1, 70
    %s926 = scalar_lea.vmem %s0, %s925
    %v927 = vld [vmem:[%s926] sm:%s924]
    %v928 = vunpack.c.0.s8 %v927
    %v929 = vunpack.c.1.s8 %v927
    %v930 = vunpack.c.2.s8 %v927
    %v931 = vunpack.c.3.s8 %v927
    %s932 = scalar_lea.vmem [#allocation1], 560
    %933 = vst [vmem:[%s932] sm:%s5] %v928
    %s934 = sand.u32 %s5, 15
    %p935 = scmp.ne.s32.totalorder %s934, 0
    %s936 = scalar_select %p935, 1, 0
    %s937 = sand.u32 %s5, 240
    %p938 = scmp.ne.s32.totalorder %s937, 0
    %s939 = scalar_select %p938, 2, 0
    %s940 = sor.u32 %s936, %s939
    %s941 = smul.addr 1, 69
    %s942 = scalar_lea.vmem %s0, %s941
    %v943 = vld [vmem:[%s942] sm:%s940]
    %v944 = vunpack.c.0.s8 %v943
    %v945 = vunpack.c.1.s8 %v943
    %v946 = vunpack.c.2.s8 %v943
    %v947 = vunpack.c.3.s8 %v943
    %s948 = scalar_lea.vmem [#allocation1], 552
    %949 = vst [vmem:[%s948] sm:%s5] %v944
    %s950 = sand.u32 %s5, 15
    %p951 = scmp.ne.s32.totalorder %s950, 0
    %s952 = scalar_select %p951, 1, 0
    %s953 = sand.u32 %s5, 240
    %p954 = scmp.ne.s32.totalorder %s953, 0
    %s955 = scalar_select %p954, 2, 0
    %s956 = sor.u32 %s952, %s955
    %s957 = smul.addr 1, 68
    %s958 = scalar_lea.vmem %s0, %s957
    %v959 = vld [vmem:[%s958] sm:%s956]
    %v960 = vunpack.c.0.s8 %v959
    %v961 = vunpack.c.1.s8 %v959
    %v962 = vunpack.c.2.s8 %v959
    %v963 = vunpack.c.3.s8 %v959
    %s964 = scalar_lea.vmem [#allocation1], 544
    %965 = vst [vmem:[%s964] sm:%s5] %v960
    %s966 = sand.u32 %s5, 15
    %p967 = scmp.ne.s32.totalorder %s966, 0
    %s968 = scalar_select %p967, 1, 0
    %s969 = sand.u32 %s5, 240
    %p970 = scmp.ne.s32.totalorder %s969, 0
    %s971 = scalar_select %p970, 2, 0
    %s972 = sor.u32 %s968, %s971
    %s973 = smul.addr 1, 67
    %s974 = scalar_lea.vmem %s0, %s973
    %v975 = vld [vmem:[%s974] sm:%s972]
    %v976 = vunpack.c.0.s8 %v975
    %v977 = vunpack.c.1.s8 %v975
    %v978 = vunpack.c.2.s8 %v975
    %v979 = vunpack.c.3.s8 %v975
    %s980 = scalar_lea.vmem [#allocation1], 536
    %981 = vst [vmem:[%s980] sm:%s5] %v976
    %s982 = sand.u32 %s5, 15
    %p983 = scmp.ne.s32.totalorder %s982, 0
    %s984 = scalar_select %p983, 1, 0
    %s985 = sand.u32 %s5, 240
    %p986 = scmp.ne.s32.totalorder %s985, 0
    %s987 = scalar_select %p986, 2, 0
    %s988 = sor.u32 %s984, %s987
    %s989 = smul.addr 1, 66
    %s990 = scalar_lea.vmem %s0, %s989
    %v991 = vld [vmem:[%s990] sm:%s988]
    %v992 = vunpack.c.0.s8 %v991
    %v993 = vunpack.c.1.s8 %v991
    %v994 = vunpack.c.2.s8 %v991
    %v995 = vunpack.c.3.s8 %v991
    %s996 = scalar_lea.vmem [#allocation1], 528
    %997 = vst [vmem:[%s996] sm:%s5] %v992
    %s998 = sand.u32 %s5, 15
    %p999 = scmp.ne.s32.totalorder %s998, 0
    %s1000 = scalar_select %p999, 1, 0
    %s1001 = sand.u32 %s5, 240
    %p1002 = scmp.ne.s32.totalorder %s1001, 0
    %s1003 = scalar_select %p1002, 2, 0
    %s1004 = sor.u32 %s1000, %s1003
    %s1005 = smul.addr 1, 65
    %s1006 = scalar_lea.vmem %s0, %s1005
    %v1007 = vld [vmem:[%s1006] sm:%s1004]
    %v1008 = vunpack.c.0.s8 %v1007
    %v1009 = vunpack.c.1.s8 %v1007
    %v1010 = vunpack.c.2.s8 %v1007
    %v1011 = vunpack.c.3.s8 %v1007
    %s1012 = scalar_lea.vmem [#allocation1], 520
    %1013 = vst [vmem:[%s1012] sm:%s5] %v1008
    %s1014 = sand.u32 %s5, 15
    %p1015 = scmp.ne.s32.totalorder %s1014, 0
    %s1016 = scalar_select %p1015, 1, 0
    %s1017 = sand.u32 %s5, 240
    %p1018 = scmp.ne.s32.totalorder %s1017, 0
    %s1019 = scalar_select %p1018, 2, 0
    %s1020 = sor.u32 %s1016, %s1019
    %s1021 = smul.addr 1, 64
    %s1022 = scalar_lea.vmem %s0, %s1021
    %v1023 = vld [vmem:[%s1022] sm:%s1020]
    %v1024 = vunpack.c.0.s8 %v1023
    %v1025 = vunpack.c.1.s8 %v1023
    %v1026 = vunpack.c.2.s8 %v1023
    %v1027 = vunpack.c.3.s8 %v1023
    %s1028 = scalar_lea.vmem [#allocation1], 512
    %1029 = vst [vmem:[%s1028] sm:%s5] %v1024
    %s1030 = sand.u32 %s5, 15
    %p1031 = scmp.ne.s32.totalorder %s1030, 0
    %s1032 = scalar_select %p1031, 1, 0
    %s1033 = sand.u32 %s5, 240
    %p1034 = scmp.ne.s32.totalorder %s1033, 0
    %s1035 = scalar_select %p1034, 2, 0
    %s1036 = sor.u32 %s1032, %s1035
    %s1037 = smul.addr 1, 63
    %s1038 = scalar_lea.vmem %s0, %s1037
    %v1039 = vld [vmem:[%s1038] sm:%s1036]
    %v1040 = vunpack.c.0.s8 %v1039
    %v1041 = vunpack.c.1.s8 %v1039
    %v1042 = vunpack.c.2.s8 %v1039
    %v1043 = vunpack.c.3.s8 %v1039
    %s1044 = scalar_lea.vmem [#allocation1], 504
    %1045 = vst [vmem:[%s1044] sm:%s5] %v1040
    %s1046 = sand.u32 %s5, 15
    %p1047 = scmp.ne.s32.totalorder %s1046, 0
    %s1048 = scalar_select %p1047, 1, 0
    %s1049 = sand.u32 %s5, 240
    %p1050 = scmp.ne.s32.totalorder %s1049, 0
    %s1051 = scalar_select %p1050, 2, 0
    %s1052 = sor.u32 %s1048, %s1051
    %s1053 = smul.addr 1, 62
    %s1054 = scalar_lea.vmem %s0, %s1053
    %v1055 = vld [vmem:[%s1054] sm:%s1052]
    %v1056 = vunpack.c.0.s8 %v1055
    %v1057 = vunpack.c.1.s8 %v1055
    %v1058 = vunpack.c.2.s8 %v1055
    %v1059 = vunpack.c.3.s8 %v1055
    %s1060 = scalar_lea.vmem [#allocation1], 496
    %1061 = vst [vmem:[%s1060] sm:%s5] %v1056
    %s1062 = sand.u32 %s5, 15
    %p1063 = scmp.ne.s32.totalorder %s1062, 0
    %s1064 = scalar_select %p1063, 1, 0
    %s1065 = sand.u32 %s5, 240
    %p1066 = scmp.ne.s32.totalorder %s1065, 0
    %s1067 = scalar_select %p1066, 2, 0
    %s1068 = sor.u32 %s1064, %s1067
    %s1069 = smul.addr 1, 61
    %s1070 = scalar_lea.vmem %s0, %s1069
    %v1071 = vld [vmem:[%s1070] sm:%s1068]
    %v1072 = vunpack.c.0.s8 %v1071
    %v1073 = vunpack.c.1.s8 %v1071
    %v1074 = vunpack.c.2.s8 %v1071
    %v1075 = vunpack.c.3.s8 %v1071
    %s1076 = scalar_lea.vmem [#allocation1], 488
    %1077 = vst [vmem:[%s1076] sm:%s5] %v1072
    %s1078 = sand.u32 %s5, 15
    %p1079 = scmp.ne.s32.totalorder %s1078, 0
    %s1080 = scalar_select %p1079, 1, 0
    %s1081 = sand.u32 %s5, 240
    %p1082 = scmp.ne.s32.totalorder %s1081, 0
    %s1083 = scalar_select %p1082, 2, 0
    %s1084 = sor.u32 %s1080, %s1083
    %s1085 = smul.addr 1, 60
    %s1086 = scalar_lea.vmem %s0, %s1085
    %v1087 = vld [vmem:[%s1086] sm:%s1084]
    %v1088 = vunpack.c.0.s8 %v1087
    %v1089 = vunpack.c.1.s8 %v1087
    %v1090 = vunpack.c.2.s8 %v1087
    %v1091 = vunpack.c.3.s8 %v1087
    %s1092 = scalar_lea.vmem [#allocation1], 480
    %1093 = vst [vmem:[%s1092] sm:%s5] %v1088
    %s1094 = sand.u32 %s5, 15
    %p1095 = scmp.ne.s32.totalorder %s1094, 0
    %s1096 = scalar_select %p1095, 1, 0
    %s1097 = sand.u32 %s5, 240
    %p1098 = scmp.ne.s32.totalorder %s1097, 0
    %s1099 = scalar_select %p1098, 2, 0
    %s1100 = sor.u32 %s1096, %s1099
    %s1101 = smul.addr 1, 59
    %s1102 = scalar_lea.vmem %s0, %s1101
    %v1103 = vld [vmem:[%s1102] sm:%s1100]
    %v1104 = vunpack.c.0.s8 %v1103
    %v1105 = vunpack.c.1.s8 %v1103
    %v1106 = vunpack.c.2.s8 %v1103
    %v1107 = vunpack.c.3.s8 %v1103
    %s1108 = scalar_lea.vmem [#allocation1], 472
    %1109 = vst [vmem:[%s1108] sm:%s5] %v1104
    %s1110 = sand.u32 %s5, 15
    %p1111 = scmp.ne.s32.totalorder %s1110, 0
    %s1112 = scalar_select %p1111, 1, 0
    %s1113 = sand.u32 %s5, 240
    %p1114 = scmp.ne.s32.totalorder %s1113, 0
    %s1115 = scalar_select %p1114, 2, 0
    %s1116 = sor.u32 %s1112, %s1115
    %s1117 = smul.addr 1, 58
    %s1118 = scalar_lea.vmem %s0, %s1117
    %v1119 = vld [vmem:[%s1118] sm:%s1116]
    %v1120 = vunpack.c.0.s8 %v1119
    %v1121 = vunpack.c.1.s8 %v1119
    %v1122 = vunpack.c.2.s8 %v1119
    %v1123 = vunpack.c.3.s8 %v1119
    %s1124 = scalar_lea.vmem [#allocation1], 464
    %1125 = vst [vmem:[%s1124] sm:%s5] %v1120
    %s1126 = sand.u32 %s5, 15
    %p1127 = scmp.ne.s32.totalorder %s1126, 0
    %s1128 = scalar_select %p1127, 1, 0
    %s1129 = sand.u32 %s5, 240
    %p1130 = scmp.ne.s32.totalorder %s1129, 0
    %s1131 = scalar_select %p1130, 2, 0
    %s1132 = sor.u32 %s1128, %s1131
    %s1133 = smul.addr 1, 57
    %s1134 = scalar_lea.vmem %s0, %s1133
    %v1135 = vld [vmem:[%s1134] sm:%s1132]
    %v1136 = vunpack.c.0.s8 %v1135
    %v1137 = vunpack.c.1.s8 %v1135
    %v1138 = vunpack.c.2.s8 %v1135
    %v1139 = vunpack.c.3.s8 %v1135
    %s1140 = scalar_lea.vmem [#allocation1], 456
    %1141 = vst [vmem:[%s1140] sm:%s5] %v1136
    %s1142 = sand.u32 %s5, 15
    %p1143 = scmp.ne.s32.totalorder %s1142, 0
    %s1144 = scalar_select %p1143, 1, 0
    %s1145 = sand.u32 %s5, 240
    %p1146 = scmp.ne.s32.totalorder %s1145, 0
    %s1147 = scalar_select %p1146, 2, 0
    %s1148 = sor.u32 %s1144, %s1147
    %s1149 = smul.addr 1, 56
    %s1150 = scalar_lea.vmem %s0, %s1149
    %v1151 = vld [vmem:[%s1150] sm:%s1148]
    %v1152 = vunpack.c.0.s8 %v1151
    %v1153 = vunpack.c.1.s8 %v1151
    %v1154 = vunpack.c.2.s8 %v1151
    %v1155 = vunpack.c.3.s8 %v1151
    %s1156 = scalar_lea.vmem [#allocation1], 448
    %1157 = vst [vmem:[%s1156] sm:%s5] %v1152
    %s1158 = sand.u32 %s5, 15
    %p1159 = scmp.ne.s32.totalorder %s1158, 0
    %s1160 = scalar_select %p1159, 1, 0
    %s1161 = sand.u32 %s5, 240
    %p1162 = scmp.ne.s32.totalorder %s1161, 0
    %s1163 = scalar_select %p1162, 2, 0
    %s1164 = sor.u32 %s1160, %s1163
    %s1165 = smul.addr 1, 55
    %s1166 = scalar_lea.vmem %s0, %s1165
    %v1167 = vld [vmem:[%s1166] sm:%s1164]
    %v1168 = vunpack.c.0.s8 %v1167
    %v1169 = vunpack.c.1.s8 %v1167
    %v1170 = vunpack.c.2.s8 %v1167
    %v1171 = vunpack.c.3.s8 %v1167
    %s1172 = scalar_lea.vmem [#allocation1], 440
    %1173 = vst [vmem:[%s1172] sm:%s5] %v1168
    %s1174 = sand.u32 %s5, 15
    %p1175 = scmp.ne.s32.totalorder %s1174, 0
    %s1176 = scalar_select %p1175, 1, 0
    %s1177 = sand.u32 %s5, 240
    %p1178 = scmp.ne.s32.totalorder %s1177, 0
    %s1179 = scalar_select %p1178, 2, 0
    %s1180 = sor.u32 %s1176, %s1179
    %s1181 = smul.addr 1, 54
    %s1182 = scalar_lea.vmem %s0, %s1181
    %v1183 = vld [vmem:[%s1182] sm:%s1180]
    %v1184 = vunpack.c.0.s8 %v1183
    %v1185 = vunpack.c.1.s8 %v1183
    %v1186 = vunpack.c.2.s8 %v1183
    %v1187 = vunpack.c.3.s8 %v1183
    %s1188 = scalar_lea.vmem [#allocation1], 432
    %1189 = vst [vmem:[%s1188] sm:%s5] %v1184
    %s1190 = sand.u32 %s5, 15
    %p1191 = scmp.ne.s32.totalorder %s1190, 0
    %s1192 = scalar_select %p1191, 1, 0
    %s1193 = sand.u32 %s5, 240
    %p1194 = scmp.ne.s32.totalorder %s1193, 0
    %s1195 = scalar_select %p1194, 2, 0
    %s1196 = sor.u32 %s1192, %s1195
    %s1197 = smul.addr 1, 53
    %s1198 = scalar_lea.vmem %s0, %s1197
    %v1199 = vld [vmem:[%s1198] sm:%s1196]
    %v1200 = vunpack.c.0.s8 %v1199
    %v1201 = vunpack.c.1.s8 %v1199
    %v1202 = vunpack.c.2.s8 %v1199
    %v1203 = vunpack.c.3.s8 %v1199
    %s1204 = scalar_lea.vmem [#allocation1], 424
    %1205 = vst [vmem:[%s1204] sm:%s5] %v1200
    %s1206 = sand.u32 %s5, 15
    %p1207 = scmp.ne.s32.totalorder %s1206, 0
    %s1208 = scalar_select %p1207, 1, 0
    %s1209 = sand.u32 %s5, 240
    %p1210 = scmp.ne.s32.totalorder %s1209, 0
    %s1211 = scalar_select %p1210, 2, 0
    %s1212 = sor.u32 %s1208, %s1211
    %s1213 = smul.addr 1, 52
    %s1214 = scalar_lea.vmem %s0, %s1213
    %v1215 = vld [vmem:[%s1214] sm:%s1212]
    %v1216 = vunpack.c.0.s8 %v1215
    %v1217 = vunpack.c.1.s8 %v1215
    %v1218 = vunpack.c.2.s8 %v1215
    %v1219 = vunpack.c.3.s8 %v1215
    %s1220 = scalar_lea.vmem [#allocation1], 416
    %1221 = vst [vmem:[%s1220] sm:%s5] %v1216
    %s1222 = sand.u32 %s5, 15
    %p1223 = scmp.ne.s32.totalorder %s1222, 0
    %s1224 = scalar_select %p1223, 1, 0
    %s1225 = sand.u32 %s5, 240
    %p1226 = scmp.ne.s32.totalorder %s1225, 0
    %s1227 = scalar_select %p1226, 2, 0
    %s1228 = sor.u32 %s1224, %s1227
    %s1229 = smul.addr 1, 51
    %s1230 = scalar_lea.vmem %s0, %s1229
    %v1231 = vld [vmem:[%s1230] sm:%s1228]
    %v1232 = vunpack.c.0.s8 %v1231
    %v1233 = vunpack.c.1.s8 %v1231
    %v1234 = vunpack.c.2.s8 %v1231
    %v1235 = vunpack.c.3.s8 %v1231
    %s1236 = scalar_lea.vmem [#allocation1], 408
    %1237 = vst [vmem:[%s1236] sm:%s5] %v1232
    %s1238 = sand.u32 %s5, 15
    %p1239 = scmp.ne.s32.totalorder %s1238, 0
    %s1240 = scalar_select %p1239, 1, 0
    %s1241 = sand.u32 %s5, 240
    %p1242 = scmp.ne.s32.totalorder %s1241, 0
    %s1243 = scalar_select %p1242, 2, 0
    %s1244 = sor.u32 %s1240, %s1243
    %s1245 = smul.addr 1, 50
    %s1246 = scalar_lea.vmem %s0, %s1245
    %v1247 = vld [vmem:[%s1246] sm:%s1244]
    %v1248 = vunpack.c.0.s8 %v1247
    %v1249 = vunpack.c.1.s8 %v1247
    %v1250 = vunpack.c.2.s8 %v1247
    %v1251 = vunpack.c.3.s8 %v1247
    %s1252 = scalar_lea.vmem [#allocation1], 400
    %1253 = vst [vmem:[%s1252] sm:%s5] %v1248
    %s1254 = sand.u32 %s5, 15
    %p1255 = scmp.ne.s32.totalorder %s1254, 0
    %s1256 = scalar_select %p1255, 1, 0
    %s1257 = sand.u32 %s5, 240
    %p1258 = scmp.ne.s32.totalorder %s1257, 0
    %s1259 = scalar_select %p1258, 2, 0
    %s1260 = sor.u32 %s1256, %s1259
    %s1261 = smul.addr 1, 49
    %s1262 = scalar_lea.vmem %s0, %s1261
    %v1263 = vld [vmem:[%s1262] sm:%s1260]
    %v1264 = vunpack.c.0.s8 %v1263
    %v1265 = vunpack.c.1.s8 %v1263
    %v1266 = vunpack.c.2.s8 %v1263
    %v1267 = vunpack.c.3.s8 %v1263
    %s1268 = scalar_lea.vmem [#allocation1], 392
    %1269 = vst [vmem:[%s1268] sm:%s5] %v1264
    %s1270 = sand.u32 %s5, 15
    %p1271 = scmp.ne.s32.totalorder %s1270, 0
    %s1272 = scalar_select %p1271, 1, 0
    %s1273 = sand.u32 %s5, 240
    %p1274 = scmp.ne.s32.totalorder %s1273, 0
    %s1275 = scalar_select %p1274, 2, 0
    %s1276 = sor.u32 %s1272, %s1275
    %s1277 = smul.addr 1, 48
    %s1278 = scalar_lea.vmem %s0, %s1277
    %v1279 = vld [vmem:[%s1278] sm:%s1276]
    %v1280 = vunpack.c.0.s8 %v1279
    %v1281 = vunpack.c.1.s8 %v1279
    %v1282 = vunpack.c.2.s8 %v1279
    %v1283 = vunpack.c.3.s8 %v1279
    %s1284 = scalar_lea.vmem [#allocation1], 384
    %1285 = vst [vmem:[%s1284] sm:%s5] %v1280
    %s1286 = sand.u32 %s5, 15
    %p1287 = scmp.ne.s32.totalorder %s1286, 0
    %s1288 = scalar_select %p1287, 1, 0
    %s1289 = sand.u32 %s5, 240
    %p1290 = scmp.ne.s32.totalorder %s1289, 0
    %s1291 = scalar_select %p1290, 2, 0
    %s1292 = sor.u32 %s1288, %s1291
    %s1293 = smul.addr 1, 47
    %s1294 = scalar_lea.vmem %s0, %s1293
    %v1295 = vld [vmem:[%s1294] sm:%s1292]
    %v1296 = vunpack.c.0.s8 %v1295
    %v1297 = vunpack.c.1.s8 %v1295
    %v1298 = vunpack.c.2.s8 %v1295
    %v1299 = vunpack.c.3.s8 %v1295
    %s1300 = scalar_lea.vmem [#allocation1], 376
    %1301 = vst [vmem:[%s1300] sm:%s5] %v1296
    %s1302 = sand.u32 %s5, 15
    %p1303 = scmp.ne.s32.totalorder %s1302, 0
    %s1304 = scalar_select %p1303, 1, 0
    %s1305 = sand.u32 %s5, 240
    %p1306 = scmp.ne.s32.totalorder %s1305, 0
    %s1307 = scalar_select %p1306, 2, 0
    %s1308 = sor.u32 %s1304, %s1307
    %s1309 = smul.addr 1, 46
    %s1310 = scalar_lea.vmem %s0, %s1309
    %v1311 = vld [vmem:[%s1310] sm:%s1308]
    %v1312 = vunpack.c.0.s8 %v1311
    %v1313 = vunpack.c.1.s8 %v1311
    %v1314 = vunpack.c.2.s8 %v1311
    %v1315 = vunpack.c.3.s8 %v1311
    %s1316 = scalar_lea.vmem [#allocation1], 368
    %1317 = vst [vmem:[%s1316] sm:%s5] %v1312
    %s1318 = sand.u32 %s5, 15
    %p1319 = scmp.ne.s32.totalorder %s1318, 0
    %s1320 = scalar_select %p1319, 1, 0
    %s1321 = sand.u32 %s5, 240
    %p1322 = scmp.ne.s32.totalorder %s1321, 0
    %s1323 = scalar_select %p1322, 2, 0
    %s1324 = sor.u32 %s1320, %s1323
    %s1325 = smul.addr 1, 45
    %s1326 = scalar_lea.vmem %s0, %s1325
    %v1327 = vld [vmem:[%s1326] sm:%s1324]
    %v1328 = vunpack.c.0.s8 %v1327
    %v1329 = vunpack.c.1.s8 %v1327
    %v1330 = vunpack.c.2.s8 %v1327
    %v1331 = vunpack.c.3.s8 %v1327
    %s1332 = scalar_lea.vmem [#allocation1], 360
    %1333 = vst [vmem:[%s1332] sm:%s5] %v1328
    %s1334 = sand.u32 %s5, 15
    %p1335 = scmp.ne.s32.totalorder %s1334, 0
    %s1336 = scalar_select %p1335, 1, 0
    %s1337 = sand.u32 %s5, 240
    %p1338 = scmp.ne.s32.totalorder %s1337, 0
    %s1339 = scalar_select %p1338, 2, 0
    %s1340 = sor.u32 %s1336, %s1339
    %s1341 = smul.addr 1, 44
    %s1342 = scalar_lea.vmem %s0, %s1341
    %v1343 = vld [vmem:[%s1342] sm:%s1340]
    %v1344 = vunpack.c.0.s8 %v1343
    %v1345 = vunpack.c.1.s8 %v1343
    %v1346 = vunpack.c.2.s8 %v1343
    %v1347 = vunpack.c.3.s8 %v1343
    %s1348 = scalar_lea.vmem [#allocation1], 352
    %1349 = vst [vmem:[%s1348] sm:%s5] %v1344
    %s1350 = sand.u32 %s5, 15
    %p1351 = scmp.ne.s32.totalorder %s1350, 0
    %s1352 = scalar_select %p1351, 1, 0
    %s1353 = sand.u32 %s5, 240
    %p1354 = scmp.ne.s32.totalorder %s1353, 0
    %s1355 = scalar_select %p1354, 2, 0
    %s1356 = sor.u32 %s1352, %s1355
    %s1357 = smul.addr 1, 43
    %s1358 = scalar_lea.vmem %s0, %s1357
    %v1359 = vld [vmem:[%s1358] sm:%s1356]
    %v1360 = vunpack.c.0.s8 %v1359
    %v1361 = vunpack.c.1.s8 %v1359
    %v1362 = vunpack.c.2.s8 %v1359
    %v1363 = vunpack.c.3.s8 %v1359
    %s1364 = scalar_lea.vmem [#allocation1], 344
    %1365 = vst [vmem:[%s1364] sm:%s5] %v1360
    %s1366 = sand.u32 %s5, 15
    %p1367 = scmp.ne.s32.totalorder %s1366, 0
    %s1368 = scalar_select %p1367, 1, 0
    %s1369 = sand.u32 %s5, 240
    %p1370 = scmp.ne.s32.totalorder %s1369, 0
    %s1371 = scalar_select %p1370, 2, 0
    %s1372 = sor.u32 %s1368, %s1371
    %s1373 = smul.addr 1, 42
    %s1374 = scalar_lea.vmem %s0, %s1373
    %v1375 = vld [vmem:[%s1374] sm:%s1372]
    %v1376 = vunpack.c.0.s8 %v1375
    %v1377 = vunpack.c.1.s8 %v1375
    %v1378 = vunpack.c.2.s8 %v1375
    %v1379 = vunpack.c.3.s8 %v1375
    %s1380 = scalar_lea.vmem [#allocation1], 336
    %1381 = vst [vmem:[%s1380] sm:%s5] %v1376
    %s1382 = sand.u32 %s5, 15
    %p1383 = scmp.ne.s32.totalorder %s1382, 0
    %s1384 = scalar_select %p1383, 1, 0
    %s1385 = sand.u32 %s5, 240
    %p1386 = scmp.ne.s32.totalorder %s1385, 0
    %s1387 = scalar_select %p1386, 2, 0
    %s1388 = sor.u32 %s1384, %s1387
    %s1389 = smul.addr 1, 41
    %s1390 = scalar_lea.vmem %s0, %s1389
    %v1391 = vld [vmem:[%s1390] sm:%s1388]
    %v1392 = vunpack.c.0.s8 %v1391
    %v1393 = vunpack.c.1.s8 %v1391
    %v1394 = vunpack.c.2.s8 %v1391
    %v1395 = vunpack.c.3.s8 %v1391
    %s1396 = scalar_lea.vmem [#allocation1], 328
    %1397 = vst [vmem:[%s1396] sm:%s5] %v1392
    %s1398 = sand.u32 %s5, 15
    %p1399 = scmp.ne.s32.totalorder %s1398, 0
    %s1400 = scalar_select %p1399, 1, 0
    %s1401 = sand.u32 %s5, 240
    %p1402 = scmp.ne.s32.totalorder %s1401, 0
    %s1403 = scalar_select %p1402, 2, 0
    %s1404 = sor.u32 %s1400, %s1403
    %s1405 = smul.addr 1, 40
    %s1406 = scalar_lea.vmem %s0, %s1405
    %v1407 = vld [vmem:[%s1406] sm:%s1404]
    %v1408 = vunpack.c.0.s8 %v1407
    %v1409 = vunpack.c.1.s8 %v1407
    %v1410 = vunpack.c.2.s8 %v1407
    %v1411 = vunpack.c.3.s8 %v1407
    %s1412 = scalar_lea.vmem [#allocation1], 320
    %1413 = vst [vmem:[%s1412] sm:%s5] %v1408
    %s1414 = sand.u32 %s5, 15
    %p1415 = scmp.ne.s32.totalorder %s1414, 0
    %s1416 = scalar_select %p1415, 1, 0
    %s1417 = sand.u32 %s5, 240
    %p1418 = scmp.ne.s32.totalorder %s1417, 0
    %s1419 = scalar_select %p1418, 2, 0
    %s1420 = sor.u32 %s1416, %s1419
    %s1421 = smul.addr 1, 39
    %s1422 = scalar_lea.vmem %s0, %s1421
    %v1423 = vld [vmem:[%s1422] sm:%s1420]
    %v1424 = vunpack.c.0.s8 %v1423
    %v1425 = vunpack.c.1.s8 %v1423
    %v1426 = vunpack.c.2.s8 %v1423
    %v1427 = vunpack.c.3.s8 %v1423
    %s1428 = scalar_lea.vmem [#allocation1], 312
    %1429 = vst [vmem:[%s1428] sm:%s5] %v1424
    %s1430 = sand.u32 %s5, 15
    %p1431 = scmp.ne.s32.totalorder %s1430, 0
    %s1432 = scalar_select %p1431, 1, 0
    %s1433 = sand.u32 %s5, 240
    %p1434 = scmp.ne.s32.totalorder %s1433, 0
    %s1435 = scalar_select %p1434, 2, 0
    %s1436 = sor.u32 %s1432, %s1435
    %s1437 = smul.addr 1, 38
    %s1438 = scalar_lea.vmem %s0, %s1437
    %v1439 = vld [vmem:[%s1438] sm:%s1436]
    %v1440 = vunpack.c.0.s8 %v1439
    %v1441 = vunpack.c.1.s8 %v1439
    %v1442 = vunpack.c.2.s8 %v1439
    %v1443 = vunpack.c.3.s8 %v1439
    %s1444 = scalar_lea.vmem [#allocation1], 304
    %1445 = vst [vmem:[%s1444] sm:%s5] %v1440
    %s1446 = sand.u32 %s5, 15
    %p1447 = scmp.ne.s32.totalorder %s1446, 0
    %s1448 = scalar_select %p1447, 1, 0
    %s1449 = sand.u32 %s5, 240
    %p1450 = scmp.ne.s32.totalorder %s1449, 0
    %s1451 = scalar_select %p1450, 2, 0
    %s1452 = sor.u32 %s1448, %s1451
    %s1453 = smul.addr 1, 37
    %s1454 = scalar_lea.vmem %s0, %s1453
    %v1455 = vld [vmem:[%s1454] sm:%s1452]
    %v1456 = vunpack.c.0.s8 %v1455
    %v1457 = vunpack.c.1.s8 %v1455
    %v1458 = vunpack.c.2.s8 %v1455
    %v1459 = vunpack.c.3.s8 %v1455
    %s1460 = scalar_lea.vmem [#allocation1], 296
    %1461 = vst [vmem:[%s1460] sm:%s5] %v1456
    %s1462 = sand.u32 %s5, 15
    %p1463 = scmp.ne.s32.totalorder %s1462, 0
    %s1464 = scalar_select %p1463, 1, 0
    %s1465 = sand.u32 %s5, 240
    %p1466 = scmp.ne.s32.totalorder %s1465, 0
    %s1467 = scalar_select %p1466, 2, 0
    %s1468 = sor.u32 %s1464, %s1467
    %s1469 = smul.addr 1, 36
    %s1470 = scalar_lea.vmem %s0, %s1469
    %v1471 = vld [vmem:[%s1470] sm:%s1468]
    %v1472 = vunpack.c.0.s8 %v1471
    %v1473 = vunpack.c.1.s8 %v1471
    %v1474 = vunpack.c.2.s8 %v1471
    %v1475 = vunpack.c.3.s8 %v1471
    %s1476 = scalar_lea.vmem [#allocation1], 288
    %1477 = vst [vmem:[%s1476] sm:%s5] %v1472
    %s1478 = sand.u32 %s5, 15
    %p1479 = scmp.ne.s32.totalorder %s1478, 0
    %s1480 = scalar_select %p1479, 1, 0
    %s1481 = sand.u32 %s5, 240
    %p1482 = scmp.ne.s32.totalorder %s1481, 0
    %s1483 = scalar_select %p1482, 2, 0
    %s1484 = sor.u32 %s1480, %s1483
    %s1485 = smul.addr 1, 35
    %s1486 = scalar_lea.vmem %s0, %s1485
    %v1487 = vld [vmem:[%s1486] sm:%s1484]
    %v1488 = vunpack.c.0.s8 %v1487
    %v1489 = vunpack.c.1.s8 %v1487
    %v1490 = vunpack.c.2.s8 %v1487
    %v1491 = vunpack.c.3.s8 %v1487
    %s1492 = scalar_lea.vmem [#allocation1], 280
    %1493 = vst [vmem:[%s1492] sm:%s5] %v1488
    %s1494 = sand.u32 %s5, 15
    %p1495 = scmp.ne.s32.totalorder %s1494, 0
    %s1496 = scalar_select %p1495, 1, 0
    %s1497 = sand.u32 %s5, 240
    %p1498 = scmp.ne.s32.totalorder %s1497, 0
    %s1499 = scalar_select %p1498, 2, 0
    %s1500 = sor.u32 %s1496, %s1499
    %s1501 = smul.addr 1, 34
    %s1502 = scalar_lea.vmem %s0, %s1501
    %v1503 = vld [vmem:[%s1502] sm:%s1500]
    %v1504 = vunpack.c.0.s8 %v1503
    %v1505 = vunpack.c.1.s8 %v1503
    %v1506 = vunpack.c.2.s8 %v1503
    %v1507 = vunpack.c.3.s8 %v1503
    %s1508 = scalar_lea.vmem [#allocation1], 272
    %1509 = vst [vmem:[%s1508] sm:%s5] %v1504
    %s1510 = sand.u32 %s5, 15
    %p1511 = scmp.ne.s32.totalorder %s1510, 0
    %s1512 = scalar_select %p1511, 1, 0
    %s1513 = sand.u32 %s5, 240
    %p1514 = scmp.ne.s32.totalorder %s1513, 0
    %s1515 = scalar_select %p1514, 2, 0
    %s1516 = sor.u32 %s1512, %s1515
    %s1517 = smul.addr 1, 33
    %s1518 = scalar_lea.vmem %s0, %s1517
    %v1519 = vld [vmem:[%s1518] sm:%s1516]
    %v1520 = vunpack.c.0.s8 %v1519
    %v1521 = vunpack.c.1.s8 %v1519
    %v1522 = vunpack.c.2.s8 %v1519
    %v1523 = vunpack.c.3.s8 %v1519
    %s1524 = scalar_lea.vmem [#allocation1], 264
    %1525 = vst [vmem:[%s1524] sm:%s5] %v1520
    %s1526 = sand.u32 %s5, 15
    %p1527 = scmp.ne.s32.totalorder %s1526, 0
    %s1528 = scalar_select %p1527, 1, 0
    %s1529 = sand.u32 %s5, 240
    %p1530 = scmp.ne.s32.totalorder %s1529, 0
    %s1531 = scalar_select %p1530, 2, 0
    %s1532 = sor.u32 %s1528, %s1531
    %s1533 = smul.addr 1, 32
    %s1534 = scalar_lea.vmem %s0, %s1533
    %v1535 = vld [vmem:[%s1534] sm:%s1532]
    %v1536 = vunpack.c.0.s8 %v1535
    %v1537 = vunpack.c.1.s8 %v1535
    %v1538 = vunpack.c.2.s8 %v1535
    %v1539 = vunpack.c.3.s8 %v1535
    %s1540 = scalar_lea.vmem [#allocation1], 256
    %1541 = vst [vmem:[%s1540] sm:%s5] %v1536
    %s1542 = sand.u32 %s5, 15
    %p1543 = scmp.ne.s32.totalorder %s1542, 0
    %s1544 = scalar_select %p1543, 1, 0
    %s1545 = sand.u32 %s5, 240
    %p1546 = scmp.ne.s32.totalorder %s1545, 0
    %s1547 = scalar_select %p1546, 2, 0
    %s1548 = sor.u32 %s1544, %s1547
    %s1549 = smul.addr 1, 31
    %s1550 = scalar_lea.vmem %s0, %s1549
    %v1551 = vld [vmem:[%s1550] sm:%s1548]
    %v1552 = vunpack.c.0.s8 %v1551
    %v1553 = vunpack.c.1.s8 %v1551
    %v1554 = vunpack.c.2.s8 %v1551
    %v1555 = vunpack.c.3.s8 %v1551
    %s1556 = scalar_lea.vmem [#allocation1], 248
    %1557 = vst [vmem:[%s1556] sm:%s5] %v1552
    %s1558 = sand.u32 %s5, 15
    %p1559 = scmp.ne.s32.totalorder %s1558, 0
    %s1560 = scalar_select %p1559, 1, 0
    %s1561 = sand.u32 %s5, 240
    %p1562 = scmp.ne.s32.totalorder %s1561, 0
    %s1563 = scalar_select %p1562, 2, 0
    %s1564 = sor.u32 %s1560, %s1563
    %s1565 = smul.addr 1, 30
    %s1566 = scalar_lea.vmem %s0, %s1565
    %v1567 = vld [vmem:[%s1566] sm:%s1564]
    %v1568 = vunpack.c.0.s8 %v1567
    %v1569 = vunpack.c.1.s8 %v1567
    %v1570 = vunpack.c.2.s8 %v1567
    %v1571 = vunpack.c.3.s8 %v1567
    %s1572 = scalar_lea.vmem [#allocation1], 240
    %1573 = vst [vmem:[%s1572] sm:%s5] %v1568
    %s1574 = sand.u32 %s5, 15
    %p1575 = scmp.ne.s32.totalorder %s1574, 0
    %s1576 = scalar_select %p1575, 1, 0
    %s1577 = sand.u32 %s5, 240
    %p1578 = scmp.ne.s32.totalorder %s1577, 0
    %s1579 = scalar_select %p1578, 2, 0
    %s1580 = sor.u32 %s1576, %s1579
    %s1581 = smul.addr 1, 29
    %s1582 = scalar_lea.vmem %s0, %s1581
    %v1583 = vld [vmem:[%s1582] sm:%s1580]
    %v1584 = vunpack.c.0.s8 %v1583
    %v1585 = vunpack.c.1.s8 %v1583
    %v1586 = vunpack.c.2.s8 %v1583
    %v1587 = vunpack.c.3.s8 %v1583
    %s1588 = scalar_lea.vmem [#allocation1], 232
    %1589 = vst [vmem:[%s1588] sm:%s5] %v1584
    %s1590 = sand.u32 %s5, 15
    %p1591 = scmp.ne.s32.totalorder %s1590, 0
    %s1592 = scalar_select %p1591, 1, 0
    %s1593 = sand.u32 %s5, 240
    %p1594 = scmp.ne.s32.totalorder %s1593, 0
    %s1595 = scalar_select %p1594, 2, 0
    %s1596 = sor.u32 %s1592, %s1595
    %s1597 = smul.addr 1, 28
    %s1598 = scalar_lea.vmem %s0, %s1597
    %v1599 = vld [vmem:[%s1598] sm:%s1596]
    %v1600 = vunpack.c.0.s8 %v1599
    %v1601 = vunpack.c.1.s8 %v1599
    %v1602 = vunpack.c.2.s8 %v1599
    %v1603 = vunpack.c.3.s8 %v1599
    %s1604 = scalar_lea.vmem [#allocation1], 224
    %1605 = vst [vmem:[%s1604] sm:%s5] %v1600
    %s1606 = sand.u32 %s5, 15
    %p1607 = scmp.ne.s32.totalorder %s1606, 0
    %s1608 = scalar_select %p1607, 1, 0
    %s1609 = sand.u32 %s5, 240
    %p1610 = scmp.ne.s32.totalorder %s1609, 0
    %s1611 = scalar_select %p1610, 2, 0
    %s1612 = sor.u32 %s1608, %s1611
    %s1613 = smul.addr 1, 27
    %s1614 = scalar_lea.vmem %s0, %s1613
    %v1615 = vld [vmem:[%s1614] sm:%s1612]
    %v1616 = vunpack.c.0.s8 %v1615
    %v1617 = vunpack.c.1.s8 %v1615
    %v1618 = vunpack.c.2.s8 %v1615
    %v1619 = vunpack.c.3.s8 %v1615
    %s1620 = scalar_lea.vmem [#allocation1], 216
    %1621 = vst [vmem:[%s1620] sm:%s5] %v1616
    %s1622 = sand.u32 %s5, 15
    %p1623 = scmp.ne.s32.totalorder %s1622, 0
    %s1624 = scalar_select %p1623, 1, 0
    %s1625 = sand.u32 %s5, 240
    %p1626 = scmp.ne.s32.totalorder %s1625, 0
    %s1627 = scalar_select %p1626, 2, 0
    %s1628 = sor.u32 %s1624, %s1627
    %s1629 = smul.addr 1, 26
    %s1630 = scalar_lea.vmem %s0, %s1629
    %v1631 = vld [vmem:[%s1630] sm:%s1628]
    %v1632 = vunpack.c.0.s8 %v1631
    %v1633 = vunpack.c.1.s8 %v1631
    %v1634 = vunpack.c.2.s8 %v1631
    %v1635 = vunpack.c.3.s8 %v1631
    %s1636 = scalar_lea.vmem [#allocation1], 208
    %1637 = vst [vmem:[%s1636] sm:%s5] %v1632
    %s1638 = sand.u32 %s5, 15
    %p1639 = scmp.ne.s32.totalorder %s1638, 0
    %s1640 = scalar_select %p1639, 1, 0
    %s1641 = sand.u32 %s5, 240
    %p1642 = scmp.ne.s32.totalorder %s1641, 0
    %s1643 = scalar_select %p1642, 2, 0
    %s1644 = sor.u32 %s1640, %s1643
    %s1645 = smul.addr 1, 25
    %s1646 = scalar_lea.vmem %s0, %s1645
    %v1647 = vld [vmem:[%s1646] sm:%s1644]
    %v1648 = vunpack.c.0.s8 %v1647
    %v1649 = vunpack.c.1.s8 %v1647
    %v1650 = vunpack.c.2.s8 %v1647
    %v1651 = vunpack.c.3.s8 %v1647
    %s1652 = scalar_lea.vmem [#allocation1], 200
    %1653 = vst [vmem:[%s1652] sm:%s5] %v1648
    %s1654 = sand.u32 %s5, 15
    %p1655 = scmp.ne.s32.totalorder %s1654, 0
    %s1656 = scalar_select %p1655, 1, 0
    %s1657 = sand.u32 %s5, 240
    %p1658 = scmp.ne.s32.totalorder %s1657, 0
    %s1659 = scalar_select %p1658, 2, 0
    %s1660 = sor.u32 %s1656, %s1659
    %s1661 = smul.addr 1, 24
    %s1662 = scalar_lea.vmem %s0, %s1661
    %v1663 = vld [vmem:[%s1662] sm:%s1660]
    %v1664 = vunpack.c.0.s8 %v1663
    %v1665 = vunpack.c.1.s8 %v1663
    %v1666 = vunpack.c.2.s8 %v1663
    %v1667 = vunpack.c.3.s8 %v1663
    %s1668 = scalar_lea.vmem [#allocation1], 192
    %1669 = vst [vmem:[%s1668] sm:%s5] %v1664
    %s1670 = sand.u32 %s5, 15
    %p1671 = scmp.ne.s32.totalorder %s1670, 0
    %s1672 = scalar_select %p1671, 1, 0
    %s1673 = sand.u32 %s5, 240
    %p1674 = scmp.ne.s32.totalorder %s1673, 0
    %s1675 = scalar_select %p1674, 2, 0
    %s1676 = sor.u32 %s1672, %s1675
    %s1677 = smul.addr 1, 23
    %s1678 = scalar_lea.vmem %s0, %s1677
    %v1679 = vld [vmem:[%s1678] sm:%s1676]
    %v1680 = vunpack.c.0.s8 %v1679
    %v1681 = vunpack.c.1.s8 %v1679
    %v1682 = vunpack.c.2.s8 %v1679
    %v1683 = vunpack.c.3.s8 %v1679
    %s1684 = scalar_lea.vmem [#allocation1], 184
    %1685 = vst [vmem:[%s1684] sm:%s5] %v1680
    %s1686 = sand.u32 %s5, 15
    %p1687 = scmp.ne.s32.totalorder %s1686, 0
    %s1688 = scalar_select %p1687, 1, 0
    %s1689 = sand.u32 %s5, 240
    %p1690 = scmp.ne.s32.totalorder %s1689, 0
    %s1691 = scalar_select %p1690, 2, 0
    %s1692 = sor.u32 %s1688, %s1691
    %s1693 = smul.addr 1, 22
    %s1694 = scalar_lea.vmem %s0, %s1693
    %v1695 = vld [vmem:[%s1694] sm:%s1692]
    %v1696 = vunpack.c.0.s8 %v1695
    %v1697 = vunpack.c.1.s8 %v1695
    %v1698 = vunpack.c.2.s8 %v1695
    %v1699 = vunpack.c.3.s8 %v1695
    %s1700 = scalar_lea.vmem [#allocation1], 176
    %1701 = vst [vmem:[%s1700] sm:%s5] %v1696
    %s1702 = sand.u32 %s5, 15
    %p1703 = scmp.ne.s32.totalorder %s1702, 0
    %s1704 = scalar_select %p1703, 1, 0
    %s1705 = sand.u32 %s5, 240
    %p1706 = scmp.ne.s32.totalorder %s1705, 0
    %s1707 = scalar_select %p1706, 2, 0
    %s1708 = sor.u32 %s1704, %s1707
    %s1709 = smul.addr 1, 21
    %s1710 = scalar_lea.vmem %s0, %s1709
    %v1711 = vld [vmem:[%s1710] sm:%s1708]
    %v1712 = vunpack.c.0.s8 %v1711
    %v1713 = vunpack.c.1.s8 %v1711
    %v1714 = vunpack.c.2.s8 %v1711
    %v1715 = vunpack.c.3.s8 %v1711
    %s1716 = scalar_lea.vmem [#allocation1], 168
    %1717 = vst [vmem:[%s1716] sm:%s5] %v1712
    %s1718 = sand.u32 %s5, 15
    %p1719 = scmp.ne.s32.totalorder %s1718, 0
    %s1720 = scalar_select %p1719, 1, 0
    %s1721 = sand.u32 %s5, 240
    %p1722 = scmp.ne.s32.totalorder %s1721, 0
    %s1723 = scalar_select %p1722, 2, 0
    %s1724 = sor.u32 %s1720, %s1723
    %s1725 = smul.addr 1, 20
    %s1726 = scalar_lea.vmem %s0, %s1725
    %v1727 = vld [vmem:[%s1726] sm:%s1724]
    %v1728 = vunpack.c.0.s8 %v1727
    %v1729 = vunpack.c.1.s8 %v1727
    %v1730 = vunpack.c.2.s8 %v1727
    %v1731 = vunpack.c.3.s8 %v1727
    %s1732 = scalar_lea.vmem [#allocation1], 160
    %1733 = vst [vmem:[%s1732] sm:%s5] %v1728
    %s1734 = sand.u32 %s5, 15
    %p1735 = scmp.ne.s32.totalorder %s1734, 0
    %s1736 = scalar_select %p1735, 1, 0
    %s1737 = sand.u32 %s5, 240
    %p1738 = scmp.ne.s32.totalorder %s1737, 0
    %s1739 = scalar_select %p1738, 2, 0
    %s1740 = sor.u32 %s1736, %s1739
    %s1741 = smul.addr 1, 19
    %s1742 = scalar_lea.vmem %s0, %s1741
    %v1743 = vld [vmem:[%s1742] sm:%s1740]
    %v1744 = vunpack.c.0.s8 %v1743
    %v1745 = vunpack.c.1.s8 %v1743
    %v1746 = vunpack.c.2.s8 %v1743
    %v1747 = vunpack.c.3.s8 %v1743
    %s1748 = scalar_lea.vmem [#allocation1], 152
    %1749 = vst [vmem:[%s1748] sm:%s5] %v1744
    %s1750 = sand.u32 %s5, 15
    %p1751 = scmp.ne.s32.totalorder %s1750, 0
    %s1752 = scalar_select %p1751, 1, 0
    %s1753 = sand.u32 %s5, 240
    %p1754 = scmp.ne.s32.totalorder %s1753, 0
    %s1755 = scalar_select %p1754, 2, 0
    %s1756 = sor.u32 %s1752, %s1755
    %s1757 = smul.addr 1, 18
    %s1758 = scalar_lea.vmem %s0, %s1757
    %v1759 = vld [vmem:[%s1758] sm:%s1756]
    %v1760 = vunpack.c.0.s8 %v1759
    %v1761 = vunpack.c.1.s8 %v1759
    %v1762 = vunpack.c.2.s8 %v1759
    %v1763 = vunpack.c.3.s8 %v1759
    %s1764 = scalar_lea.vmem [#allocation1], 144
    %1765 = vst [vmem:[%s1764] sm:%s5] %v1760
    %s1766 = sand.u32 %s5, 15
    %p1767 = scmp.ne.s32.totalorder %s1766, 0
    %s1768 = scalar_select %p1767, 1, 0
    %s1769 = sand.u32 %s5, 240
    %p1770 = scmp.ne.s32.totalorder %s1769, 0
    %s1771 = scalar_select %p1770, 2, 0
    %s1772 = sor.u32 %s1768, %s1771
    %s1773 = smul.addr 1, 17
    %s1774 = scalar_lea.vmem %s0, %s1773
    %v1775 = vld [vmem:[%s1774] sm:%s1772]
    %v1776 = vunpack.c.0.s8 %v1775
    %v1777 = vunpack.c.1.s8 %v1775
    %v1778 = vunpack.c.2.s8 %v1775
    %v1779 = vunpack.c.3.s8 %v1775
    %s1780 = scalar_lea.vmem [#allocation1], 136
    %1781 = vst [vmem:[%s1780] sm:%s5] %v1776
    %s1782 = sand.u32 %s5, 15
    %p1783 = scmp.ne.s32.totalorder %s1782, 0
    %s1784 = scalar_select %p1783, 1, 0
    %s1785 = sand.u32 %s5, 240
    %p1786 = scmp.ne.s32.totalorder %s1785, 0
    %s1787 = scalar_select %p1786, 2, 0
    %s1788 = sor.u32 %s1784, %s1787
    %s1789 = smul.addr 1, 16
    %s1790 = scalar_lea.vmem %s0, %s1789
    %v1791 = vld [vmem:[%s1790] sm:%s1788]
    %v1792 = vunpack.c.0.s8 %v1791
    %v1793 = vunpack.c.1.s8 %v1791
    %v1794 = vunpack.c.2.s8 %v1791
    %v1795 = vunpack.c.3.s8 %v1791
    %s1796 = scalar_lea.vmem [#allocation1], 128
    %1797 = vst [vmem:[%s1796] sm:%s5] %v1792
    %s1798 = sand.u32 %s5, 15
    %p1799 = scmp.ne.s32.totalorder %s1798, 0
    %s1800 = scalar_select %p1799, 1, 0
    %s1801 = sand.u32 %s5, 240
    %p1802 = scmp.ne.s32.totalorder %s1801, 0
    %s1803 = scalar_select %p1802, 2, 0
    %s1804 = sor.u32 %s1800, %s1803
    %s1805 = smul.addr 1, 15
    %s1806 = scalar_lea.vmem %s0, %s1805
    %v1807 = vld [vmem:[%s1806] sm:%s1804]
    %v1808 = vunpack.c.0.s8 %v1807
    %v1809 = vunpack.c.1.s8 %v1807
    %v1810 = vunpack.c.2.s8 %v1807
    %v1811 = vunpack.c.3.s8 %v1807
    %s1812 = scalar_lea.vmem [#allocation1], 120
    %1813 = vst [vmem:[%s1812] sm:%s5] %v1808
    %s1814 = sand.u32 %s5, 15
    %p1815 = scmp.ne.s32.totalorder %s1814, 0
    %s1816 = scalar_select %p1815, 1, 0
    %s1817 = sand.u32 %s5, 240
    %p1818 = scmp.ne.s32.totalorder %s1817, 0
    %s1819 = scalar_select %p1818, 2, 0
    %s1820 = sor.u32 %s1816, %s1819
    %s1821 = smul.addr 1, 14
    %s1822 = scalar_lea.vmem %s0, %s1821
    %v1823 = vld [vmem:[%s1822] sm:%s1820]
    %v1824 = vunpack.c.0.s8 %v1823
    %v1825 = vunpack.c.1.s8 %v1823
    %v1826 = vunpack.c.2.s8 %v1823
    %v1827 = vunpack.c.3.s8 %v1823
    %s1828 = scalar_lea.vmem [#allocation1], 112
    %1829 = vst [vmem:[%s1828] sm:%s5] %v1824
    %s1830 = sand.u32 %s5, 15
    %p1831 = scmp.ne.s32.totalorder %s1830, 0
    %s1832 = scalar_select %p1831, 1, 0
    %s1833 = sand.u32 %s5, 240
    %p1834 = scmp.ne.s32.totalorder %s1833, 0
    %s1835 = scalar_select %p1834, 2, 0
    %s1836 = sor.u32 %s1832, %s1835
    %s1837 = smul.addr 1, 13
    %s1838 = scalar_lea.vmem %s0, %s1837
    %v1839 = vld [vmem:[%s1838] sm:%s1836]
    %v1840 = vunpack.c.0.s8 %v1839
    %v1841 = vunpack.c.1.s8 %v1839
    %v1842 = vunpack.c.2.s8 %v1839
    %v1843 = vunpack.c.3.s8 %v1839
    %s1844 = scalar_lea.vmem [#allocation1], 104
    %1845 = vst [vmem:[%s1844] sm:%s5] %v1840
    %s1846 = sand.u32 %s5, 15
    %p1847 = scmp.ne.s32.totalorder %s1846, 0
    %s1848 = scalar_select %p1847, 1, 0
    %s1849 = sand.u32 %s5, 240
    %p1850 = scmp.ne.s32.totalorder %s1849, 0
    %s1851 = scalar_select %p1850, 2, 0
    %s1852 = sor.u32 %s1848, %s1851
    %s1853 = smul.addr 1, 12
    %s1854 = scalar_lea.vmem %s0, %s1853
    %v1855 = vld [vmem:[%s1854] sm:%s1852]
    %v1856 = vunpack.c.0.s8 %v1855
    %v1857 = vunpack.c.1.s8 %v1855
    %v1858 = vunpack.c.2.s8 %v1855
    %v1859 = vunpack.c.3.s8 %v1855
    %s1860 = scalar_lea.vmem [#allocation1], 96
    %1861 = vst [vmem:[%s1860] sm:%s5] %v1856
    %s1862 = sand.u32 %s5, 15
    %p1863 = scmp.ne.s32.totalorder %s1862, 0
    %s1864 = scalar_select %p1863, 1, 0
    %s1865 = sand.u32 %s5, 240
    %p1866 = scmp.ne.s32.totalorder %s1865, 0
    %s1867 = scalar_select %p1866, 2, 0
    %s1868 = sor.u32 %s1864, %s1867
    %s1869 = smul.addr 1, 11
    %s1870 = scalar_lea.vmem %s0, %s1869
    %v1871 = vld [vmem:[%s1870] sm:%s1868]
    %v1872 = vunpack.c.0.s8 %v1871
    %v1873 = vunpack.c.1.s8 %v1871
    %v1874 = vunpack.c.2.s8 %v1871
    %v1875 = vunpack.c.3.s8 %v1871
    %s1876 = scalar_lea.vmem [#allocation1], 88
    %1877 = vst [vmem:[%s1876] sm:%s5] %v1872
    %s1878 = sand.u32 %s5, 15
    %p1879 = scmp.ne.s32.totalorder %s1878, 0
    %s1880 = scalar_select %p1879, 1, 0
    %s1881 = sand.u32 %s5, 240
    %p1882 = scmp.ne.s32.totalorder %s1881, 0
    %s1883 = scalar_select %p1882, 2, 0
    %s1884 = sor.u32 %s1880, %s1883
    %s1885 = smul.addr 1, 10
    %s1886 = scalar_lea.vmem %s0, %s1885
    %v1887 = vld [vmem:[%s1886] sm:%s1884]
    %v1888 = vunpack.c.0.s8 %v1887
    %v1889 = vunpack.c.1.s8 %v1887
    %v1890 = vunpack.c.2.s8 %v1887
    %v1891 = vunpack.c.3.s8 %v1887
    %s1892 = scalar_lea.vmem [#allocation1], 80
    %1893 = vst [vmem:[%s1892] sm:%s5] %v1888
    %s1894 = sand.u32 %s5, 15
    %p1895 = scmp.ne.s32.totalorder %s1894, 0
    %s1896 = scalar_select %p1895, 1, 0
    %s1897 = sand.u32 %s5, 240
    %p1898 = scmp.ne.s32.totalorder %s1897, 0
    %s1899 = scalar_select %p1898, 2, 0
    %s1900 = sor.u32 %s1896, %s1899
    %s1901 = smul.addr 1, 9
    %s1902 = scalar_lea.vmem %s0, %s1901
    %v1903 = vld [vmem:[%s1902] sm:%s1900]
    %v1904 = vunpack.c.0.s8 %v1903
    %v1905 = vunpack.c.1.s8 %v1903
    %v1906 = vunpack.c.2.s8 %v1903
    %v1907 = vunpack.c.3.s8 %v1903
    %s1908 = scalar_lea.vmem [#allocation1], 72
    %1909 = vst [vmem:[%s1908] sm:%s5] %v1904
    %s1910 = sand.u32 %s5, 15
    %p1911 = scmp.ne.s32.totalorder %s1910, 0
    %s1912 = scalar_select %p1911, 1, 0
    %s1913 = sand.u32 %s5, 240
    %p1914 = scmp.ne.s32.totalorder %s1913, 0
    %s1915 = scalar_select %p1914, 2, 0
    %s1916 = sor.u32 %s1912, %s1915
    %s1917 = smul.addr 1, 8
    %s1918 = scalar_lea.vmem %s0, %s1917
    %v1919 = vld [vmem:[%s1918] sm:%s1916]
    %v1920 = vunpack.c.0.s8 %v1919
    %v1921 = vunpack.c.1.s8 %v1919
    %v1922 = vunpack.c.2.s8 %v1919
    %v1923 = vunpack.c.3.s8 %v1919
    %s1924 = scalar_lea.vmem [#allocation1], 64
    %1925 = vst [vmem:[%s1924] sm:%s5] %v1920
    %s1926 = sand.u32 %s5, 15
    %p1927 = scmp.ne.s32.totalorder %s1926, 0
    %s1928 = scalar_select %p1927, 1, 0
    %s1929 = sand.u32 %s5, 240
    %p1930 = scmp.ne.s32.totalorder %s1929, 0
    %s1931 = scalar_select %p1930, 2, 0
    %s1932 = sor.u32 %s1928, %s1931
    %s1933 = smul.addr 1, 7
    %s1934 = scalar_lea.vmem %s0, %s1933
    %v1935 = vld [vmem:[%s1934] sm:%s1932]
    %v1936 = vunpack.c.0.s8 %v1935
    %v1937 = vunpack.c.1.s8 %v1935
    %v1938 = vunpack.c.2.s8 %v1935
    %v1939 = vunpack.c.3.s8 %v1935
    %s1940 = scalar_lea.vmem [#allocation1], 56
    %1941 = vst [vmem:[%s1940] sm:%s5] %v1936
    %s1942 = sand.u32 %s5, 15
    %p1943 = scmp.ne.s32.totalorder %s1942, 0
    %s1944 = scalar_select %p1943, 1, 0
    %s1945 = sand.u32 %s5, 240
    %p1946 = scmp.ne.s32.totalorder %s1945, 0
    %s1947 = scalar_select %p1946, 2, 0
    %s1948 = sor.u32 %s1944, %s1947
    %s1949 = smul.addr 1, 6
    %s1950 = scalar_lea.vmem %s0, %s1949
    %v1951 = vld [vmem:[%s1950] sm:%s1948]
    %v1952 = vunpack.c.0.s8 %v1951
    %v1953 = vunpack.c.1.s8 %v1951
    %v1954 = vunpack.c.2.s8 %v1951
    %v1955 = vunpack.c.3.s8 %v1951
    %s1956 = scalar_lea.vmem [#allocation1], 48
    %1957 = vst [vmem:[%s1956] sm:%s5] %v1952
    %s1958 = sand.u32 %s5, 15
    %p1959 = scmp.ne.s32.totalorder %s1958, 0
    %s1960 = scalar_select %p1959, 1, 0
    %s1961 = sand.u32 %s5, 240
    %p1962 = scmp.ne.s32.totalorder %s1961, 0
    %s1963 = scalar_select %p1962, 2, 0
    %s1964 = sor.u32 %s1960, %s1963
    %s1965 = smul.addr 1, 5
    %s1966 = scalar_lea.vmem %s0, %s1965
    %v1967 = vld [vmem:[%s1966] sm:%s1964]
    %v1968 = vunpack.c.0.s8 %v1967
    %v1969 = vunpack.c.1.s8 %v1967
    %v1970 = vunpack.c.2.s8 %v1967
    %v1971 = vunpack.c.3.s8 %v1967
    %s1972 = scalar_lea.vmem [#allocation1], 40
    %1973 = vst [vmem:[%s1972] sm:%s5] %v1968
    %s1974 = sand.u32 %s5, 15
    %p1975 = scmp.ne.s32.totalorder %s1974, 0
    %s1976 = scalar_select %p1975, 1, 0
    %s1977 = sand.u32 %s5, 240
    %p1978 = scmp.ne.s32.totalorder %s1977, 0
    %s1979 = scalar_select %p1978, 2, 0
    %s1980 = sor.u32 %s1976, %s1979
    %s1981 = smul.addr 1, 4
    %s1982 = scalar_lea.vmem %s0, %s1981
    %v1983 = vld [vmem:[%s1982] sm:%s1980]
    %v1984 = vunpack.c.0.s8 %v1983
    %v1985 = vunpack.c.1.s8 %v1983
    %v1986 = vunpack.c.2.s8 %v1983
    %v1987 = vunpack.c.3.s8 %v1983
    %s1988 = scalar_lea.vmem [#allocation1], 32
    %1989 = vst [vmem:[%s1988] sm:%s5] %v1984
    %s1990 = sand.u32 %s5, 15
    %p1991 = scmp.ne.s32.totalorder %s1990, 0
    %s1992 = scalar_select %p1991, 1, 0
    %s1993 = sand.u32 %s5, 240
    %p1994 = scmp.ne.s32.totalorder %s1993, 0
    %s1995 = scalar_select %p1994, 2, 0
    %s1996 = sor.u32 %s1992, %s1995
    %s1997 = smul.addr 1, 3
    %s1998 = scalar_lea.vmem %s0, %s1997
    %v1999 = vld [vmem:[%s1998] sm:%s1996]
    %v2000 = vunpack.c.0.s8 %v1999
    %v2001 = vunpack.c.1.s8 %v1999
    %v2002 = vunpack.c.2.s8 %v1999
    %v2003 = vunpack.c.3.s8 %v1999
    %s2004 = scalar_lea.vmem [#allocation1], 24
    %2005 = vst [vmem:[%s2004] sm:%s5] %v2000
    %s2006 = sand.u32 %s5, 15
    %p2007 = scmp.ne.s32.totalorder %s2006, 0
    %s2008 = scalar_select %p2007, 1, 0
    %s2009 = sand.u32 %s5, 240
    %p2010 = scmp.ne.s32.totalorder %s2009, 0
    %s2011 = scalar_select %p2010, 2, 0
    %s2012 = sor.u32 %s2008, %s2011
    %s2013 = smul.addr 1, 2
    %s2014 = scalar_lea.vmem %s0, %s2013
    %v2015 = vld [vmem:[%s2014] sm:%s2012]
    %v2016 = vunpack.c.0.s8 %v2015
    %v2017 = vunpack.c.1.s8 %v2015
    %v2018 = vunpack.c.2.s8 %v2015
    %v2019 = vunpack.c.3.s8 %v2015
    %s2020 = scalar_lea.vmem [#allocation1], 16
    %2021 = vst [vmem:[%s2020] sm:%s5] %v2016
    %s2022 = sand.u32 %s5, 15
    %p2023 = scmp.ne.s32.totalorder %s2022, 0
    %s2024 = scalar_select %p2023, 1, 0
    %s2025 = sand.u32 %s5, 240
    %p2026 = scmp.ne.s32.totalorder %s2025, 0
    %s2027 = scalar_select %p2026, 2, 0
    %s2028 = sor.u32 %s2024, %s2027
    %s2029 = scalar_lea.vmem %s0, 1
    %v2030 = vld [vmem:[%s2029] sm:%s2028]
    %v2031 = vunpack.c.0.s8 %v2030
    %v2032 = vunpack.c.1.s8 %v2030
    %v2033 = vunpack.c.2.s8 %v2030
    %v2034 = vunpack.c.3.s8 %v2030
    %s2035 = scalar_lea.vmem [#allocation1], 8
    %2036 = vst [vmem:[%s2035] sm:%s5] %v2031
    %s2037 = sand.u32 %s5, 15
    %p2038 = scmp.ne.s32.totalorder %s2037, 0
    %s2039 = scalar_select %p2038, 1, 0
    %s2040 = sand.u32 %s5, 240
    %p2041 = scmp.ne.s32.totalorder %s2040, 0
    %s2042 = scalar_select %p2041, 2, 0
    %s2043 = sor.u32 %s2039, %s2042
    %v2044 = vld [vmem:[%s0] sm:%s2043]
    %v2045 = vunpack.c.0.s8 %v2044
    %v2046 = vunpack.c.1.s8 %v2044
    %v2047 = vunpack.c.2.s8 %v2044
    %v2048 = vunpack.c.3.s8 %v2044
    %2049 = vst [vmem:[#allocation1] sm:%s5] %v2045
    %v2050 = vld [vmem:[#allocation1] ss:$8 sm:$0xf]
    %v2051 = vld [vmem:[#allocation1] ss:$8 sm:$0xf0]
    %vm2052 = vcmask 1047556
    %v2053 = vsel %vm2052, %v2051, %v2050
    %vm2054 = vcmask 261120
    %2055 = vst.msk [vmem:[#allocation0] sm:$0xff] %vm2054, %v2053
    %s2056 = scalar_lea.vmem [#allocation1], 64
    %v2057 = vld [vmem:[%s2056] ss:$8 sm:$0xf]
    %s2058 = scalar_lea.vmem [#allocation1], 64
    %v2059 = vld [vmem:[%s2058] ss:$8 sm:$0xf0]
    %vm2060 = vcmask 1047556
    %v2061 = vsel %vm2060, %v2059, %v2057
    %vm2062 = vcmask 261120
    %s2063 = scalar_lea.vmem [#allocation0], 8
    %2064 = vst.msk [vmem:[%s2063] sm:$0xff] %vm2062, %v2061
    %s2065 = scalar_lea.vmem [#allocation1], 128
    %v2066 = vld [vmem:[%s2065] ss:$8 sm:$0xf]
    %s2067 = scalar_lea.vmem [#allocation1], 128
    %v2068 = vld [vmem:[%s2067] ss:$8 sm:$0xf0]
    %vm2069 = vcmask 1047556
    %v2070 = vsel %vm2069, %v2068, %v2066
    %vm2071 = vcmask 261120
    %s2072 = scalar_lea.vmem [#allocation0], 16
    %2073 = vst.msk [vmem:[%s2072] sm:$0xff] %vm2071, %v2070
    %s2074 = scalar_lea.vmem [#allocation1], 192
    %v2075 = vld [vmem:[%s2074] ss:$8 sm:$0xf]
    %s2076 = scalar_lea.vmem [#allocation1], 192
    %v2077 = vld [vmem:[%s2076] ss:$8 sm:$0xf0]
    %vm2078 = vcmask 1047556
    %v2079 = vsel %vm2078, %v2077, %v2075
    %vm2080 = vcmask 261120
    %s2081 = scalar_lea.vmem [#allocation0], 24
    %2082 = vst.msk [vmem:[%s2081] sm:$0xff] %vm2080, %v2079
    %s2083 = scalar_lea.vmem [#allocation1], 256
    %v2084 = vld [vmem:[%s2083] ss:$8 sm:$0xf]
    %s2085 = scalar_lea.vmem [#allocation1], 256
    %v2086 = vld [vmem:[%s2085] ss:$8 sm:$0xf0]
    %vm2087 = vcmask 1047556
    %v2088 = vsel %vm2087, %v2086, %v2084
    %vm2089 = vcmask 261120
    %s2090 = scalar_lea.vmem [#allocation0], 32
    %2091 = vst.msk [vmem:[%s2090] sm:$0xff] %vm2089, %v2088
    %s2092 = scalar_lea.vmem [#allocation1], 320
    %v2093 = vld [vmem:[%s2092] ss:$8 sm:$0xf]
    %s2094 = scalar_lea.vmem [#allocation1], 320
    %v2095 = vld [vmem:[%s2094] ss:$8 sm:$0xf0]
    %vm2096 = vcmask 1047556
    %v2097 = vsel %vm2096, %v2095, %v2093
    %vm2098 = vcmask 261120
    %s2099 = scalar_lea.vmem [#allocation0], 40
    %2100 = vst.msk [vmem:[%s2099] sm:$0xff] %vm2098, %v2097
    %s2101 = scalar_lea.vmem [#allocation1], 384
    %v2102 = vld [vmem:[%s2101] ss:$8 sm:$0xf]
    %s2103 = scalar_lea.vmem [#allocation1], 384
    %v2104 = vld [vmem:[%s2103] ss:$8 sm:$0xf0]
    %vm2105 = vcmask 1047556
    %v2106 = vsel %vm2105, %v2104, %v2102
    %vm2107 = vcmask 261120
    %s2108 = scalar_lea.vmem [#allocation0], 48
    %2109 = vst.msk [vmem:[%s2108] sm:$0xff] %vm2107, %v2106
    %s2110 = scalar_lea.vmem [#allocation1], 448
    %v2111 = vld [vmem:[%s2110] ss:$8 sm:$0xf]
    %s2112 = scalar_lea.vmem [#allocation1], 448
    %v2113 = vld [vmem:[%s2112] ss:$8 sm:$0xf0]
    %vm2114 = vcmask 1047556
    %v2115 = vsel %vm2114, %v2113, %v2111
    %vm2116 = vcmask 261120
    %s2117 = scalar_lea.vmem [#allocation0], 56
    %2118 = vst.msk [vmem:[%s2117] sm:$0xff] %vm2116, %v2115
    %s2119 = scalar_lea.vmem [#allocation1], 512
    %v2120 = vld [vmem:[%s2119] ss:$8 sm:$0xf]
    %s2121 = scalar_lea.vmem [#allocation1], 512
    %v2122 = vld [vmem:[%s2121] ss:$8 sm:$0xf0]
    %vm2123 = vcmask 1047556
    %v2124 = vsel %vm2123, %v2122, %v2120
    %vm2125 = vcmask 261120
    %s2126 = scalar_lea.vmem [#allocation0], 64
    %2127 = vst.msk [vmem:[%s2126] sm:$0xff] %vm2125, %v2124
    %s2128 = scalar_lea.vmem [#allocation1], 576
    %v2129 = vld [vmem:[%s2128] ss:$8 sm:$0xf]
    %s2130 = scalar_lea.vmem [#allocation1], 576
    %v2131 = vld [vmem:[%s2130] ss:$8 sm:$0xf0]
    %vm2132 = vcmask 1047556
    %v2133 = vsel %vm2132, %v2131, %v2129
    %vm2134 = vcmask 261120
    %s2135 = scalar_lea.vmem [#allocation0], 72
    %2136 = vst.msk [vmem:[%s2135] sm:$0xff] %vm2134, %v2133
    %s2137 = scalar_lea.vmem [#allocation1], 640
    %v2138 = vld [vmem:[%s2137] ss:$8 sm:$0xf]
    %s2139 = scalar_lea.vmem [#allocation1], 640
    %v2140 = vld [vmem:[%s2139] ss:$8 sm:$0xf0]
    %vm2141 = vcmask 1047556
    %v2142 = vsel %vm2141, %v2140, %v2138
    %vm2143 = vcmask 261120
    %s2144 = scalar_lea.vmem [#allocation0], 80
    %2145 = vst.msk [vmem:[%s2144] sm:$0xff] %vm2143, %v2142
    %s2146 = scalar_lea.vmem [#allocation1], 704
    %v2147 = vld [vmem:[%s2146] ss:$8 sm:$0xf]
    %s2148 = scalar_lea.vmem [#allocation1], 704
    %v2149 = vld [vmem:[%s2148] ss:$8 sm:$0xf0]
    %vm2150 = vcmask 1047556
    %v2151 = vsel %vm2150, %v2149, %v2147
    %vm2152 = vcmask 261120
    %s2153 = scalar_lea.vmem [#allocation0], 88
    %2154 = vst.msk [vmem:[%s2153] sm:$0xff] %vm2152, %v2151
    %s2155 = scalar_lea.vmem [#allocation1], 768
    %v2156 = vld [vmem:[%s2155] ss:$8 sm:$0xf]
    %s2157 = scalar_lea.vmem [#allocation1], 768
    %v2158 = vld [vmem:[%s2157] ss:$8 sm:$0xf0]
    %vm2159 = vcmask 1047556
    %v2160 = vsel %vm2159, %v2158, %v2156
    %vm2161 = vcmask 261120
    %s2162 = scalar_lea.vmem [#allocation0], 96
    %2163 = vst.msk [vmem:[%s2162] sm:$0xff] %vm2161, %v2160
    %s2164 = scalar_lea.vmem [#allocation1], 832
    %v2165 = vld [vmem:[%s2164] ss:$8 sm:$0xf]
    %s2166 = scalar_lea.vmem [#allocation1], 832
    %v2167 = vld [vmem:[%s2166] ss:$8 sm:$0xf0]
    %vm2168 = vcmask 1047556
    %v2169 = vsel %vm2168, %v2167, %v2165
    %vm2170 = vcmask 261120
    %s2171 = scalar_lea.vmem [#allocation0], 104
    %2172 = vst.msk [vmem:[%s2171] sm:$0xff] %vm2170, %v2169
    %s2173 = scalar_lea.vmem [#allocation1], 896
    %v2174 = vld [vmem:[%s2173] ss:$8 sm:$0xf]
    %s2175 = scalar_lea.vmem [#allocation1], 896
    %v2176 = vld [vmem:[%s2175] ss:$8 sm:$0xf0]
    %vm2177 = vcmask 1047556
    %v2178 = vsel %vm2177, %v2176, %v2174
    %vm2179 = vcmask 261120
    %s2180 = scalar_lea.vmem [#allocation0], 112
    %2181 = vst.msk [vmem:[%s2180] sm:$0xff] %vm2179, %v2178
    %s2182 = scalar_lea.vmem [#allocation1], 960
    %v2183 = vld [vmem:[%s2182] ss:$8 sm:$0xf]
    %s2184 = scalar_lea.vmem [#allocation1], 960
    %v2185 = vld [vmem:[%s2184] ss:$8 sm:$0xf0]
    %vm2186 = vcmask 1047556
    %v2187 = vsel %vm2186, %v2185, %v2183
    %vm2188 = vcmask 261120
    %s2189 = scalar_lea.vmem [#allocation0], 120
    %2190 = vst.msk [vmem:[%s2189] sm:$0xff] %vm2188, %v2187
    %s2191 = scalar_lea.vmem [#allocation1], 3
    %v2192 = vld [vmem:[%s2191] ss:$8 sm:$0xf]
    %s2193 = scalar_lea.vmem [#allocation1], 3
    %v2194 = vld [vmem:[%s2193] ss:$8 sm:$0xf0]
    %vm2195 = vcmask 1047556
    %v2196 = vsel %vm2195, %v2194, %v2192
    %2197 = vrot.lane.b32.xlu0 %v2196, 96
    %v2198 = vpop.permute.xlu0 %2197
    %vm2199 = vcmask 1048320
    %2200 = vst.msk [vmem:[#allocation0] sm:$0xff] %vm2199, %v2198
    %s2201 = scalar_lea.vmem [#allocation1], 259
    %v2202 = vld [vmem:[%s2201] ss:$8 sm:$0xf]
    %s2203 = scalar_lea.vmem [#allocation1], 259
    %v2204 = vld [vmem:[%s2203] ss:$8 sm:$0xf0]
    %vm2205 = vcmask 1047556
    %v2206 = vsel %vm2205, %v2204, %v2202
    %2207 = vrot.lane.b32.xlu0 %v2206, 96
    %v2208 = vpop.permute.xlu0 %2207
    %vm2209 = vcmask 1048320
    %s2210 = scalar_lea.vmem [#allocation0], 32
    %2211 = vst.msk [vmem:[%s2210] sm:$0xff] %vm2209, %v2208
    %s2212 = scalar_lea.vmem [#allocation1], 515
    %v2213 = vld [vmem:[%s2212] ss:$8 sm:$0xf]
    %s2214 = scalar_lea.vmem [#allocation1], 515
    %v2215 = vld [vmem:[%s2214] ss:$8 sm:$0xf0]
    %vm2216 = vcmask 1047556
    %v2217 = vsel %vm2216, %v2215, %v2213
    %2218 = vrot.lane.b32.xlu0 %v2217, 96
    %v2219 = vpop.permute.xlu0 %2218
    %vm2220 = vcmask 1048320
    %s2221 = scalar_lea.vmem [#allocation0], 64
    %2222 = vst.msk [vmem:[%s2221] sm:$0xff] %vm2220, %v2219
    %s2223 = scalar_lea.vmem [#allocation1], 771
    %v2224 = vld [vmem:[%s2223] ss:$8 sm:$0xf]
    %s2225 = scalar_lea.vmem [#allocation1], 771
    %v2226 = vld [vmem:[%s2225] ss:$8 sm:$0xf0]
    %vm2227 = vcmask 1047556
    %v2228 = vsel %vm2227, %v2226, %v2224
    %2229 = vrot.lane.b32.xlu0 %v2228, 96
    %v2230 = vpop.permute.xlu0 %2229
    %vm2231 = vcmask 1048320
    %s2232 = scalar_lea.vmem [#allocation0], 96
    %2233 = vst.msk [vmem:[%s2232] sm:$0xff] %vm2231, %v2230
    %s2234 = scalar_lea.vmem [#allocation1], 67
    %v2235 = vld [vmem:[%s2234] ss:$8 sm:$0xf]
    %s2236 = scalar_lea.vmem [#allocation1], 67
    %v2237 = vld [vmem:[%s2236] ss:$8 sm:$0xf0]
    %vm2238 = vcmask 1047556
    %v2239 = vsel %vm2238, %v2237, %v2235
    %2240 = vrot.lane.b32.xlu0 %v2239, 96
    %v2241 = vpop.permute.xlu0 %2240
    %vm2242 = vcmask 1048320
    %s2243 = scalar_lea.vmem [#allocation0], 8
    %2244 = vst.msk [vmem:[%s2243] sm:$0xff] %vm2242, %v2241
    %s2245 = scalar_lea.vmem [#allocation1], 323
    %v2246 = vld [vmem:[%s2245] ss:$8 sm:$0xf]
    %s2247 = scalar_lea.vmem [#allocation1], 323
    %v2248 = vld [vmem:[%s2247] ss:$8 sm:$0xf0]
    %vm2249 = vcmask 1047556
    %v2250 = vsel %vm2249, %v2248, %v2246
    %2251 = vrot.lane.b32.xlu0 %v2250, 96
    %v2252 = vpop.permute.xlu0 %2251
    %vm2253 = vcmask 1048320
    %s2254 = scalar_lea.vmem [#allocation0], 40
    %2255 = vst.msk [vmem:[%s2254] sm:$0xff] %vm2253, %v2252
    %s2256 = scalar_lea.vmem [#allocation1], 579
    %v2257 = vld [vmem:[%s2256] ss:$8 sm:$0xf]
    %s2258 = scalar_lea.vmem [#allocation1], 579
    %v2259 = vld [vmem:[%s2258] ss:$8 sm:$0xf0]
    %vm2260 = vcmask 1047556
    %v2261 = vsel %vm2260, %v2259, %v2257
    %2262 = vrot.lane.b32.xlu0 %v2261, 96
    %v2263 = vpop.permute.xlu0 %2262
    %vm2264 = vcmask 1048320
    %s2265 = scalar_lea.vmem [#allocation0], 72
    %2266 = vst.msk [vmem:[%s2265] sm:$0xff] %vm2264, %v2263
    %s2267 = scalar_lea.vmem [#allocation1], 835
    %v2268 = vld [vmem:[%s2267] ss:$8 sm:$0xf]
    %s2269 = scalar_lea.vmem [#allocation1], 835
    %v2270 = vld [vmem:[%s2269] ss:$8 sm:$0xf0]
    %vm2271 = vcmask 1047556
    %v2272 = vsel %vm2271, %v2270, %v2268
    %2273 = vrot.lane.b32.xlu0 %v2272, 96
    %v2274 = vpop.permute.xlu0 %2273
    %vm2275 = vcmask 1048320
    %s2276 = scalar_lea.vmem [#allocation0], 104
    %2277 = vst.msk [vmem:[%s2276] sm:$0xff] %vm2275, %v2274
    %s2278 = scalar_lea.vmem [#allocation1], 131
    %v2279 = vld [vmem:[%s2278] ss:$8 sm:$0xf]
    %s2280 = scalar_lea.vmem [#allocation1], 131
    %v2281 = vld [vmem:[%s2280] ss:$8 sm:$0xf0]
    %vm2282 = vcmask 1047556
    %v2283 = vsel %vm2282, %v2281, %v2279
    %2284 = vrot.lane.b32.xlu0 %v2283, 96
    %v2285 = vpop.permute.xlu0 %2284
    %vm2286 = vcmask 1048320
    %s2287 = scalar_lea.vmem [#allocation0], 16
    %2288 = vst.msk [vmem:[%s2287] sm:$0xff] %vm2286, %v2285
    %s2289 = scalar_lea.vmem [#allocation1], 387
    %v2290 = vld [vmem:[%s2289] ss:$8 sm:$0xf]
    %s2291 = scalar_lea.vmem [#allocation1], 387
    %v2292 = vld [vmem:[%s2291] ss:$8 sm:$0xf0]
    %vm2293 = vcmask 1047556
    %v2294 = vsel %vm2293, %v2292, %v2290
    %2295 = vrot.lane.b32.xlu0 %v2294, 96
    %v2296 = vpop.permute.xlu0 %2295
    %vm2297 = vcmask 1048320
    %s2298 = scalar_lea.vmem [#allocation0], 48
    %2299 = vst.msk [vmem:[%s2298] sm:$0xff] %vm2297, %v2296
    %s2300 = scalar_lea.vmem [#allocation1], 643
    %v2301 = vld [vmem:[%s2300] ss:$8 sm:$0xf]
    %s2302 = scalar_lea.vmem [#allocation1], 643
    %v2303 = vld [vmem:[%s2302] ss:$8 sm:$0xf0]
    %vm2304 = vcmask 1047556
    %v2305 = vsel %vm2304, %v2303, %v2301
    %2306 = vrot.lane.b32.xlu0 %v2305, 96
    %v2307 = vpop.permute.xlu0 %2306
    %vm2308 = vcmask 1048320
    %s2309 = scalar_lea.vmem [#allocation0], 80
    %2310 = vst.msk [vmem:[%s2309] sm:$0xff] %vm2308, %v2307
    %s2311 = scalar_lea.vmem [#allocation1], 899
    %v2312 = vld [vmem:[%s2311] ss:$8 sm:$0xf]
    %s2313 = scalar_lea.vmem [#allocation1], 899
    %v2314 = vld [vmem:[%s2313] ss:$8 sm:$0xf0]
    %vm2315 = vcmask 1047556
    %v2316 = vsel %vm2315, %v2314, %v2312
    %2317 = vrot.lane.b32.xlu0 %v2316, 96
    %v2318 = vpop.permute.xlu0 %2317
    %vm2319 = vcmask 1048320
    %s2320 = scalar_lea.vmem [#allocation0], 112
    %2321 = vst.msk [vmem:[%s2320] sm:$0xff] %vm2319, %v2318
    %s2322 = scalar_lea.vmem [#allocation1], 195
    %v2323 = vld [vmem:[%s2322] ss:$8 sm:$0xf]
    %s2324 = scalar_lea.vmem [#allocation1], 195
    %v2325 = vld [vmem:[%s2324] ss:$8 sm:$0xf0]
    %vm2326 = vcmask 1047556
    %v2327 = vsel %vm2326, %v2325, %v2323
    %2328 = vrot.lane.b32.xlu0 %v2327, 96
    %v2329 = vpop.permute.xlu0 %2328
    %vm2330 = vcmask 1048320
    %s2331 = scalar_lea.vmem [#allocation0], 24
    %2332 = vst.msk [vmem:[%s2331] sm:$0xff] %vm2330, %v2329
    %s2333 = scalar_lea.vmem [#allocation1], 451
    %v2334 = vld [vmem:[%s2333] ss:$8 sm:$0xf]
    %s2335 = scalar_lea.vmem [#allocation1], 451
    %v2336 = vld [vmem:[%s2335] ss:$8 sm:$0xf0]
    %vm2337 = vcmask 1047556
    %v2338 = vsel %vm2337, %v2336, %v2334
    %2339 = vrot.lane.b32.xlu0 %v2338, 96
    %v2340 = vpop.permute.xlu0 %2339
    %vm2341 = vcmask 1048320
    %s2342 = scalar_lea.vmem [#allocation0], 56
    %2343 = vst.msk [vmem:[%s2342] sm:$0xff] %vm2341, %v2340
    %s2344 = scalar_lea.vmem [#allocation1], 707
    %v2345 = vld [vmem:[%s2344] ss:$8 sm:$0xf]
    %s2346 = scalar_lea.vmem [#allocation1], 707
    %v2347 = vld [vmem:[%s2346] ss:$8 sm:$0xf0]
    %vm2348 = vcmask 1047556
    %v2349 = vsel %vm2348, %v2347, %v2345
    %2350 = vrot.lane.b32.xlu0 %v2349, 96
    %v2351 = vpop.permute.xlu0 %2350
    %vm2352 = vcmask 1048320
    %s2353 = scalar_lea.vmem [#allocation0], 88
    %2354 = vst.msk [vmem:[%s2353] sm:$0xff] %vm2352, %v2351
    %s2355 = scalar_lea.vmem [#allocation1], 963
    %v2356 = vld [vmem:[%s2355] ss:$8 sm:$0xf]
    %s2357 = scalar_lea.vmem [#allocation1], 963
    %v2358 = vld [vmem:[%s2357] ss:$8 sm:$0xf0]
    %vm2359 = vcmask 1047556
    %v2360 = vsel %vm2359, %v2358, %v2356
    %2361 = vrot.lane.b32.xlu0 %v2360, 96
    %v2362 = vpop.permute.xlu0 %2361
    %vm2363 = vcmask 1048320
    %s2364 = scalar_lea.vmem [#allocation0], 120
    %2365 = vst.msk [vmem:[%s2364] sm:$0xff] %vm2363, %v2362
    %s2366 = scalar_lea.vmem [#allocation1], 2
    %v2367 = vld [vmem:[%s2366] ss:$8 sm:$0xf]
    %s2368 = scalar_lea.vmem [#allocation1], 2
    %v2369 = vld [vmem:[%s2368] ss:$8 sm:$0xf0]
    %vm2370 = vcmask 1047556
    %v2371 = vsel %vm2370, %v2369, %v2367
    %2372 = vrot.lane.b32.xlu0 %v2371, 64
    %v2373 = vpop.permute.xlu0 %2372
    %vm2374 = vcmask 785920
    %2375 = vst.msk [vmem:[#allocation0] sm:$0xff] %vm2374, %v2373
    %s2376 = scalar_lea.vmem [#allocation1], 258
    %v2377 = vld [vmem:[%s2376] ss:$8 sm:$0xf]
    %s2378 = scalar_lea.vmem [#allocation1], 258
    %v2379 = vld [vmem:[%s2378] ss:$8 sm:$0xf0]
    %vm2380 = vcmask 1047556
    %v2381 = vsel %vm2380, %v2379, %v2377
    %2382 = vrot.lane.b32.xlu0 %v2381, 64
    %v2383 = vpop.permute.xlu0 %2382
    %vm2384 = vcmask 785920
    %s2385 = scalar_lea.vmem [#allocation0], 32
    %2386 = vst.msk [vmem:[%s2385] sm:$0xff] %vm2384, %v2383
    %s2387 = scalar_lea.vmem [#allocation1], 514
    %v2388 = vld [vmem:[%s2387] ss:$8 sm:$0xf]
    %s2389 = scalar_lea.vmem [#allocation1], 514
    %v2390 = vld [vmem:[%s2389] ss:$8 sm:$0xf0]
    %vm2391 = vcmask 1047556
    %v2392 = vsel %vm2391, %v2390, %v2388
    %2393 = vrot.lane.b32.xlu0 %v2392, 64
    %v2394 = vpop.permute.xlu0 %2393
    %vm2395 = vcmask 785920
    %s2396 = scalar_lea.vmem [#allocation0], 64
    %2397 = vst.msk [vmem:[%s2396] sm:$0xff] %vm2395, %v2394
    %s2398 = scalar_lea.vmem [#allocation1], 770
    %v2399 = vld [vmem:[%s2398] ss:$8 sm:$0xf]
    %s2400 = scalar_lea.vmem [#allocation1], 770
    %v2401 = vld [vmem:[%s2400] ss:$8 sm:$0xf0]
    %vm2402 = vcmask 1047556
    %v2403 = vsel %vm2402, %v2401, %v2399
    %2404 = vrot.lane.b32.xlu0 %v2403, 64
    %v2405 = vpop.permute.xlu0 %2404
    %vm2406 = vcmask 785920
    %s2407 = scalar_lea.vmem [#allocation0], 96
    %2408 = vst.msk [vmem:[%s2407] sm:$0xff] %vm2406, %v2405
    %s2409 = scalar_lea.vmem [#allocation1], 66
    %v2410 = vld [vmem:[%s2409] ss:$8 sm:$0xf]
    %s2411 = scalar_lea.vmem [#allocation1], 66
    %v2412 = vld [vmem:[%s2411] ss:$8 sm:$0xf0]
    %vm2413 = vcmask 1047556
    %v2414 = vsel %vm2413, %v2412, %v2410
    %2415 = vrot.lane.b32.xlu0 %v2414, 64
    %v2416 = vpop.permute.xlu0 %2415
    %vm2417 = vcmask 785920
    %s2418 = scalar_lea.vmem [#allocation0], 8
    %2419 = vst.msk [vmem:[%s2418] sm:$0xff] %vm2417, %v2416
    %s2420 = scalar_lea.vmem [#allocation1], 322
    %v2421 = vld [vmem:[%s2420] ss:$8 sm:$0xf]
    %s2422 = scalar_lea.vmem [#allocation1], 322
    %v2423 = vld [vmem:[%s2422] ss:$8 sm:$0xf0]
    %vm2424 = vcmask 1047556
    %v2425 = vsel %vm2424, %v2423, %v2421
    %2426 = vrot.lane.b32.xlu0 %v2425, 64
    %v2427 = vpop.permute.xlu0 %2426
    %vm2428 = vcmask 785920
    %s2429 = scalar_lea.vmem [#allocation0], 40
    %2430 = vst.msk [vmem:[%s2429] sm:$0xff] %vm2428, %v2427
    %s2431 = scalar_lea.vmem [#allocation1], 578
    %v2432 = vld [vmem:[%s2431] ss:$8 sm:$0xf]
    %s2433 = scalar_lea.vmem [#allocation1], 578
    %v2434 = vld [vmem:[%s2433] ss:$8 sm:$0xf0]
    %vm2435 = vcmask 1047556
    %v2436 = vsel %vm2435, %v2434, %v2432
    %2437 = vrot.lane.b32.xlu0 %v2436, 64
    %v2438 = vpop.permute.xlu0 %2437
    %vm2439 = vcmask 785920
    %s2440 = scalar_lea.vmem [#allocation0], 72
    %2441 = vst.msk [vmem:[%s2440] sm:$0xff] %vm2439, %v2438
    %s2442 = scalar_lea.vmem [#allocation1], 834
    %v2443 = vld [vmem:[%s2442] ss:$8 sm:$0xf]
    %s2444 = scalar_lea.vmem [#allocation1], 834
    %v2445 = vld [vmem:[%s2444] ss:$8 sm:$0xf0]
    %vm2446 = vcmask 1047556
    %v2447 = vsel %vm2446, %v2445, %v2443
    %2448 = vrot.lane.b32.xlu0 %v2447, 64
    %v2449 = vpop.permute.xlu0 %2448
    %vm2450 = vcmask 785920
    %s2451 = scalar_lea.vmem [#allocation0], 104
    %2452 = vst.msk [vmem:[%s2451] sm:$0xff] %vm2450, %v2449
    %s2453 = scalar_lea.vmem [#allocation1], 130
    %v2454 = vld [vmem:[%s2453] ss:$8 sm:$0xf]
    %s2455 = scalar_lea.vmem [#allocation1], 130
    %v2456 = vld [vmem:[%s2455] ss:$8 sm:$0xf0]
    %vm2457 = vcmask 1047556
    %v2458 = vsel %vm2457, %v2456, %v2454
    %2459 = vrot.lane.b32.xlu0 %v2458, 64
    %v2460 = vpop.permute.xlu0 %2459
    %vm2461 = vcmask 785920
    %s2462 = scalar_lea.vmem [#allocation0], 16
    %2463 = vst.msk [vmem:[%s2462] sm:$0xff] %vm2461, %v2460
    %s2464 = scalar_lea.vmem [#allocation1], 386
    %v2465 = vld [vmem:[%s2464] ss:$8 sm:$0xf]
    %s2466 = scalar_lea.vmem [#allocation1], 386
    %v2467 = vld [vmem:[%s2466] ss:$8 sm:$0xf0]
    %vm2468 = vcmask 1047556
    %v2469 = vsel %vm2468, %v2467, %v2465
    %2470 = vrot.lane.b32.xlu0 %v2469, 64
    %v2471 = vpop.permute.xlu0 %2470
    %vm2472 = vcmask 785920
    %s2473 = scalar_lea.vmem [#allocation0], 48
    %2474 = vst.msk [vmem:[%s2473] sm:$0xff] %vm2472, %v2471
    %s2475 = scalar_lea.vmem [#allocation1], 642
    %v2476 = vld [vmem:[%s2475] ss:$8 sm:$0xf]
    %s2477 = scalar_lea.vmem [#allocation1], 642
    %v2478 = vld [vmem:[%s2477] ss:$8 sm:$0xf0]
    %vm2479 = vcmask 1047556
    %v2480 = vsel %vm2479, %v2478, %v2476
    %2481 = vrot.lane.b32.xlu0 %v2480, 64
    %v2482 = vpop.permute.xlu0 %2481
    %vm2483 = vcmask 785920
    %s2484 = scalar_lea.vmem [#allocation0], 80
    %2485 = vst.msk [vmem:[%s2484] sm:$0xff] %vm2483, %v2482
    %s2486 = scalar_lea.vmem [#allocation1], 898
    %v2487 = vld [vmem:[%s2486] ss:$8 sm:$0xf]
    %s2488 = scalar_lea.vmem [#allocation1], 898
    %v2489 = vld [vmem:[%s2488] ss:$8 sm:$0xf0]
    %vm2490 = vcmask 1047556
    %v2491 = vsel %vm2490, %v2489, %v2487
    %2492 = vrot.lane.b32.xlu0 %v2491, 64
    %v2493 = vpop.permute.xlu0 %2492
    %vm2494 = vcmask 785920
    %s2495 = scalar_lea.vmem [#allocation0], 112
    %2496 = vst.msk [vmem:[%s2495] sm:$0xff] %vm2494, %v2493
    %s2497 = scalar_lea.vmem [#allocation1], 194
    %v2498 = vld [vmem:[%s2497] ss:$8 sm:$0xf]
    %s2499 = scalar_lea.vmem [#allocation1], 194
    %v2500 = vld [vmem:[%s2499] ss:$8 sm:$0xf0]
    %vm2501 = vcmask 1047556
    %v2502 = vsel %vm2501, %v2500, %v2498
    %2503 = vrot.lane.b32.xlu0 %v2502, 64
    %v2504 = vpop.permute.xlu0 %2503
    %vm2505 = vcmask 785920
    %s2506 = scalar_lea.vmem [#allocation0], 24
    %2507 = vst.msk [vmem:[%s2506] sm:$0xff] %vm2505, %v2504
    %s2508 = scalar_lea.vmem [#allocation1], 450
    %v2509 = vld [vmem:[%s2508] ss:$8 sm:$0xf]
    %s2510 = scalar_lea.vmem [#allocation1], 450
    %v2511 = vld [vmem:[%s2510] ss:$8 sm:$0xf0]
    %vm2512 = vcmask 1047556
    %v2513 = vsel %vm2512, %v2511, %v2509
    %2514 = vrot.lane.b32.xlu0 %v2513, 64
    %v2515 = vpop.permute.xlu0 %2514
    %vm2516 = vcmask 785920
    %s2517 = scalar_lea.vmem [#allocation0], 56
    %2518 = vst.msk [vmem:[%s2517] sm:$0xff] %vm2516, %v2515
    %s2519 = scalar_lea.vmem [#allocation1], 706
    %v2520 = vld [vmem:[%s2519] ss:$8 sm:$0xf]
    %s2521 = scalar_lea.vmem [#allocation1], 706
    %v2522 = vld [vmem:[%s2521] ss:$8 sm:$0xf0]
    %vm2523 = vcmask 1047556
    %v2524 = vsel %vm2523, %v2522, %v2520
    %2525 = vrot.lane.b32.xlu0 %v2524, 64
    %v2526 = vpop.permute.xlu0 %2525
    %vm2527 = vcmask 785920
    %s2528 = scalar_lea.vmem [#allocation0], 88
    %2529 = vst.msk [vmem:[%s2528] sm:$0xff] %vm2527, %v2526
    %s2530 = scalar_lea.vmem [#allocation1], 962
    %v2531 = vld [vmem:[%s2530] ss:$8 sm:$0xf]
    %s2532 = scalar_lea.vmem [#allocation1], 962
    %v2533 = vld [vmem:[%s2532] ss:$8 sm:$0xf0]
    %vm2534 = vcmask 1047556
    %v2535 = vsel %vm2534, %v2533, %v2531
    %2536 = vrot.lane.b32.xlu0 %v2535, 64
    %v2537 = vpop.permute.xlu0 %2536
    %vm2538 = vcmask 785920
    %s2539 = scalar_lea.vmem [#allocation0], 120
    %2540 = vst.msk [vmem:[%s2539] sm:$0xff] %vm2538, %v2537
    %s2541 = scalar_lea.vmem [#allocation1], 1
    %v2542 = vld [vmem:[%s2541] ss:$8 sm:$0xf]
    %s2543 = scalar_lea.vmem [#allocation1], 1
    %v2544 = vld [vmem:[%s2543] ss:$8 sm:$0xf0]
    %vm2545 = vcmask 1047556
    %v2546 = vsel %vm2545, %v2544, %v2542
    %2547 = vrot.lane.b32.xlu0 %v2546, 32
    %v2548 = vpop.permute.xlu0 %2547
    %vm2549 = vcmask 523520
    %2550 = vst.msk [vmem:[#allocation0] sm:$0xff] %vm2549, %v2548
    %s2551 = scalar_lea.vmem [#allocation1], 257
    %v2552 = vld [vmem:[%s2551] ss:$8 sm:$0xf]
    %s2553 = scalar_lea.vmem [#allocation1], 257
    %v2554 = vld [vmem:[%s2553] ss:$8 sm:$0xf0]
    %vm2555 = vcmask 1047556
    %v2556 = vsel %vm2555, %v2554, %v2552
    %2557 = vrot.lane.b32.xlu0 %v2556, 32
    %v2558 = vpop.permute.xlu0 %2557
    %vm2559 = vcmask 523520
    %s2560 = scalar_lea.vmem [#allocation0], 32
    %2561 = vst.msk [vmem:[%s2560] sm:$0xff] %vm2559, %v2558
    %s2562 = scalar_lea.vmem [#allocation1], 513
    %v2563 = vld [vmem:[%s2562] ss:$8 sm:$0xf]
    %s2564 = scalar_lea.vmem [#allocation1], 513
    %v2565 = vld [vmem:[%s2564] ss:$8 sm:$0xf0]
    %vm2566 = vcmask 1047556
    %v2567 = vsel %vm2566, %v2565, %v2563
    %2568 = vrot.lane.b32.xlu0 %v2567, 32
    %v2569 = vpop.permute.xlu0 %2568
    %vm2570 = vcmask 523520
    %s2571 = scalar_lea.vmem [#allocation0], 64
    %2572 = vst.msk [vmem:[%s2571] sm:$0xff] %vm2570, %v2569
    %s2573 = scalar_lea.vmem [#allocation1], 769
    %v2574 = vld [vmem:[%s2573] ss:$8 sm:$0xf]
    %s2575 = scalar_lea.vmem [#allocation1], 769
    %v2576 = vld [vmem:[%s2575] ss:$8 sm:$0xf0]
    %vm2577 = vcmask 1047556
    %v2578 = vsel %vm2577, %v2576, %v2574
    %2579 = vrot.lane.b32.xlu0 %v2578, 32
    %v2580 = vpop.permute.xlu0 %2579
    %vm2581 = vcmask 523520
    %s2582 = scalar_lea.vmem [#allocation0], 96
    %2583 = vst.msk [vmem:[%s2582] sm:$0xff] %vm2581, %v2580
    %s2584 = scalar_lea.vmem [#allocation1], 65
    %v2585 = vld [vmem:[%s2584] ss:$8 sm:$0xf]
    %s2586 = scalar_lea.vmem [#allocation1], 65
    %v2587 = vld [vmem:[%s2586] ss:$8 sm:$0xf0]
    %vm2588 = vcmask 1047556
    %v2589 = vsel %vm2588, %v2587, %v2585
    %2590 = vrot.lane.b32.xlu0 %v2589, 32
    %v2591 = vpop.permute.xlu0 %2590
    %vm2592 = vcmask 523520
    %s2593 = scalar_lea.vmem [#allocation0], 8
    %2594 = vst.msk [vmem:[%s2593] sm:$0xff] %vm2592, %v2591
    %s2595 = scalar_lea.vmem [#allocation1], 321
    %v2596 = vld [vmem:[%s2595] ss:$8 sm:$0xf]
    %s2597 = scalar_lea.vmem [#allocation1], 321
    %v2598 = vld [vmem:[%s2597] ss:$8 sm:$0xf0]
    %vm2599 = vcmask 1047556
    %v2600 = vsel %vm2599, %v2598, %v2596
    %2601 = vrot.lane.b32.xlu0 %v2600, 32
    %v2602 = vpop.permute.xlu0 %2601
    %vm2603 = vcmask 523520
    %s2604 = scalar_lea.vmem [#allocation0], 40
    %2605 = vst.msk [vmem:[%s2604] sm:$0xff] %vm2603, %v2602
    %s2606 = scalar_lea.vmem [#allocation1], 577
    %v2607 = vld [vmem:[%s2606] ss:$8 sm:$0xf]
    %s2608 = scalar_lea.vmem [#allocation1], 577
    %v2609 = vld [vmem:[%s2608] ss:$8 sm:$0xf0]
    %vm2610 = vcmask 1047556
    %v2611 = vsel %vm2610, %v2609, %v2607
    %2612 = vrot.lane.b32.xlu0 %v2611, 32
    %v2613 = vpop.permute.xlu0 %2612
    %vm2614 = vcmask 523520
    %s2615 = scalar_lea.vmem [#allocation0], 72
    %2616 = vst.msk [vmem:[%s2615] sm:$0xff] %vm2614, %v2613
    %s2617 = scalar_lea.vmem [#allocation1], 833
    %v2618 = vld [vmem:[%s2617] ss:$8 sm:$0xf]
    %s2619 = scalar_lea.vmem [#allocation1], 833
    %v2620 = vld [vmem:[%s2619] ss:$8 sm:$0xf0]
    %vm2621 = vcmask 1047556
    %v2622 = vsel %vm2621, %v2620, %v2618
    %2623 = vrot.lane.b32.xlu0 %v2622, 32
    %v2624 = vpop.permute.xlu0 %2623
    %vm2625 = vcmask 523520
    %s2626 = scalar_lea.vmem [#allocation0], 104
    %2627 = vst.msk [vmem:[%s2626] sm:$0xff] %vm2625, %v2624
    %s2628 = scalar_lea.vmem [#allocation1], 129
    %v2629 = vld [vmem:[%s2628] ss:$8 sm:$0xf]
    %s2630 = scalar_lea.vmem [#allocation1], 129
    %v2631 = vld [vmem:[%s2630] ss:$8 sm:$0xf0]
    %vm2632 = vcmask 1047556
    %v2633 = vsel %vm2632, %v2631, %v2629
    %2634 = vrot.lane.b32.xlu0 %v2633, 32
    %v2635 = vpop.permute.xlu0 %2634
    %vm2636 = vcmask 523520
    %s2637 = scalar_lea.vmem [#allocation0], 16
    %2638 = vst.msk [vmem:[%s2637] sm:$0xff] %vm2636, %v2635
    %s2639 = scalar_lea.vmem [#allocation1], 385
    %v2640 = vld [vmem:[%s2639] ss:$8 sm:$0xf]
    %s2641 = scalar_lea.vmem [#allocation1], 385
    %v2642 = vld [vmem:[%s2641] ss:$8 sm:$0xf0]
    %vm2643 = vcmask 1047556
    %v2644 = vsel %vm2643, %v2642, %v2640
    %2645 = vrot.lane.b32.xlu0 %v2644, 32
    %v2646 = vpop.permute.xlu0 %2645
    %vm2647 = vcmask 523520
    %s2648 = scalar_lea.vmem [#allocation0], 48
    %2649 = vst.msk [vmem:[%s2648] sm:$0xff] %vm2647, %v2646
    %s2650 = scalar_lea.vmem [#allocation1], 641
    %v2651 = vld [vmem:[%s2650] ss:$8 sm:$0xf]
    %s2652 = scalar_lea.vmem [#allocation1], 641
    %v2653 = vld [vmem:[%s2652] ss:$8 sm:$0xf0]
    %vm2654 = vcmask 1047556
    %v2655 = vsel %vm2654, %v2653, %v2651
    %2656 = vrot.lane.b32.xlu0 %v2655, 32
    %v2657 = vpop.permute.xlu0 %2656
    %vm2658 = vcmask 523520
    %s2659 = scalar_lea.vmem [#allocation0], 80
    %2660 = vst.msk [vmem:[%s2659] sm:$0xff] %vm2658, %v2657
    %s2661 = scalar_lea.vmem [#allocation1], 897
    %v2662 = vld [vmem:[%s2661] ss:$8 sm:$0xf]
    %s2663 = scalar_lea.vmem [#allocation1], 897
    %v2664 = vld [vmem:[%s2663] ss:$8 sm:$0xf0]
    %vm2665 = vcmask 1047556
    %v2666 = vsel %vm2665, %v2664, %v2662
    %2667 = vrot.lane.b32.xlu0 %v2666, 32
    %v2668 = vpop.permute.xlu0 %2667
    %vm2669 = vcmask 523520
    %s2670 = scalar_lea.vmem [#allocation0], 112
    %2671 = vst.msk [vmem:[%s2670] sm:$0xff] %vm2669, %v2668
    %s2672 = scalar_lea.vmem [#allocation1], 193
    %v2673 = vld [vmem:[%s2672] ss:$8 sm:$0xf]
    %s2674 = scalar_lea.vmem [#allocation1], 193
    %v2675 = vld [vmem:[%s2674] ss:$8 sm:$0xf0]
    %vm2676 = vcmask 1047556
    %v2677 = vsel %vm2676, %v2675, %v2673
    %2678 = vrot.lane.b32.xlu0 %v2677, 32
    %v2679 = vpop.permute.xlu0 %2678
    %vm2680 = vcmask 523520
    %s2681 = scalar_lea.vmem [#allocation0], 24
    %2682 = vst.msk [vmem:[%s2681] sm:$0xff] %vm2680, %v2679
    %s2683 = scalar_lea.vmem [#allocation1], 449
    %v2684 = vld [vmem:[%s2683] ss:$8 sm:$0xf]
    %s2685 = scalar_lea.vmem [#allocation1], 449
    %v2686 = vld [vmem:[%s2685] ss:$8 sm:$0xf0]
    %vm2687 = vcmask 1047556
    %v2688 = vsel %vm2687, %v2686, %v2684
    %2689 = vrot.lane.b32.xlu0 %v2688, 32
    %v2690 = vpop.permute.xlu0 %2689
    %vm2691 = vcmask 523520
    %s2692 = scalar_lea.vmem [#allocation0], 56
    %2693 = vst.msk [vmem:[%s2692] sm:$0xff] %vm2691, %v2690
    %s2694 = scalar_lea.vmem [#allocation1], 705
    %v2695 = vld [vmem:[%s2694] ss:$8 sm:$0xf]
    %s2696 = scalar_lea.vmem [#allocation1], 705
    %v2697 = vld [vmem:[%s2696] ss:$8 sm:$0xf0]
    %vm2698 = vcmask 1047556
    %v2699 = vsel %vm2698, %v2697, %v2695
    %2700 = vrot.lane.b32.xlu0 %v2699, 32
    %v2701 = vpop.permute.xlu0 %2700
    %vm2702 = vcmask 523520
    %s2703 = scalar_lea.vmem [#allocation0], 88
    %2704 = vst.msk [vmem:[%s2703] sm:$0xff] %vm2702, %v2701
    %s2705 = scalar_lea.vmem [#allocation1], 961
    %v2706 = vld [vmem:[%s2705] ss:$8 sm:$0xf]
    %s2707 = scalar_lea.vmem [#allocation1], 961
    %v2708 = vld [vmem:[%s2707] ss:$8 sm:$0xf0]
    %vm2709 = vcmask 1047556
    %v2710 = vsel %vm2709, %v2708, %v2706
    %2711 = vrot.lane.b32.xlu0 %v2710, 32
    %v2712 = vpop.permute.xlu0 %2711
    %vm2713 = vcmask 523520
    %s2714 = scalar_lea.vmem [#allocation0], 120
    %2715 = vst.msk [vmem:[%s2714] sm:$0xff] %vm2713, %v2712
    %s2717 = smul.u32 2, 4
    %s2718 = sshll.u32 1, %s2717
    %s2719 = ssub.s32 %s2718, 1
    %s2720 = sshrl.u32 %s2717, 2
    %v2721 = vld [vmem:[#allocation0] sm:%s2719]
    %s2722 = sshll.u32 1, %s2720
    %s2723 = ssub.s32 %s2722, 1
    %v2724 = vpack.c.b16 0, %v2721
    %v2725 = vpack.c.b8 0, %v2724
    %2726 = vst [vmem:[%s1] sm:%s2723] %v2725
    %s2727 = scalar_lea.vmem [#allocation0], 8
    %v2728 = vld [vmem:[%s2727] sm:%s2719]
    %s2729 = sshll.u32 1, %s2720
    %s2730 = ssub.s32 %s2729, 1
    %s2731 = scalar_lea.vmem %s1, 2
    %v2732 = vpack.c.b16 0, %v2728
    %v2733 = vpack.c.b8 0, %v2732
    %2734 = vst [vmem:[%s2731] sm:%s2730] %v2733
    %s2735 = scalar_lea.vmem [#allocation0], 16
    %v2736 = vld [vmem:[%s2735] sm:%s2719]
    %s2737 = sshll.u32 1, %s2720
    %s2738 = ssub.s32 %s2737, 1
    %s2739 = smul.addr 2, 2
    %s2740 = scalar_lea.vmem %s1, %s2739
    %v2741 = vpack.c.b16 0, %v2736
    %v2742 = vpack.c.b8 0, %v2741
    %2743 = vst [vmem:[%s2740] sm:%s2738] %v2742
    %s2744 = scalar_lea.vmem [#allocation0], 24
    %v2745 = vld [vmem:[%s2744] sm:%s2719]
    %s2746 = sshll.u32 1, %s2720
    %s2747 = ssub.s32 %s2746, 1
    %s2748 = smul.addr 2, 3
    %s2749 = scalar_lea.vmem %s1, %s2748
    %v2750 = vpack.c.b16 0, %v2745
    %v2751 = vpack.c.b8 0, %v2750
    %2752 = vst [vmem:[%s2749] sm:%s2747] %v2751
    %s2753 = scalar_lea.vmem [#allocation0], 32
    %v2754 = vld [vmem:[%s2753] sm:%s2719]
    %s2755 = sshll.u32 1, %s2720
    %s2756 = ssub.s32 %s2755, 1
    %s2757 = smul.addr 2, 4
    %s2758 = scalar_lea.vmem %s1, %s2757
    %v2759 = vpack.c.b16 0, %v2754
    %v2760 = vpack.c.b8 0, %v2759
    %2761 = vst [vmem:[%s2758] sm:%s2756] %v2760
    %s2762 = scalar_lea.vmem [#allocation0], 40
    %v2763 = vld [vmem:[%s2762] sm:%s2719]
    %s2764 = sshll.u32 1, %s2720
    %s2765 = ssub.s32 %s2764, 1
    %s2766 = smul.addr 2, 5
    %s2767 = scalar_lea.vmem %s1, %s2766
    %v2768 = vpack.c.b16 0, %v2763
    %v2769 = vpack.c.b8 0, %v2768
    %2770 = vst [vmem:[%s2767] sm:%s2765] %v2769
    %s2771 = scalar_lea.vmem [#allocation0], 48
    %v2772 = vld [vmem:[%s2771] sm:%s2719]
    %s2773 = sshll.u32 1, %s2720
    %s2774 = ssub.s32 %s2773, 1
    %s2775 = smul.addr 2, 6
    %s2776 = scalar_lea.vmem %s1, %s2775
    %v2777 = vpack.c.b16 0, %v2772
    %v2778 = vpack.c.b8 0, %v2777
    %2779 = vst [vmem:[%s2776] sm:%s2774] %v2778
    %s2780 = scalar_lea.vmem [#allocation0], 56
    %v2781 = vld [vmem:[%s2780] sm:%s2719]
    %s2782 = sshll.u32 1, %s2720
    %s2783 = ssub.s32 %s2782, 1
    %s2784 = smul.addr 2, 7
    %s2785 = scalar_lea.vmem %s1, %s2784
    %v2786 = vpack.c.b16 0, %v2781
    %v2787 = vpack.c.b8 0, %v2786
    %2788 = vst [vmem:[%s2785] sm:%s2783] %v2787
    %s2789 = scalar_lea.vmem [#allocation0], 64
    %v2790 = vld [vmem:[%s2789] sm:%s2719]
    %s2791 = sshll.u32 1, %s2720
    %s2792 = ssub.s32 %s2791, 1
    %s2793 = smul.addr 2, 8
    %s2794 = scalar_lea.vmem %s1, %s2793
    %v2795 = vpack.c.b16 0, %v2790
    %v2796 = vpack.c.b8 0, %v2795
    %2797 = vst [vmem:[%s2794] sm:%s2792] %v2796
    %s2798 = scalar_lea.vmem [#allocation0], 72
    %v2799 = vld [vmem:[%s2798] sm:%s2719]
    %s2800 = sshll.u32 1, %s2720
    %s2801 = ssub.s32 %s2800, 1
    %s2802 = smul.addr 2, 9
    %s2803 = scalar_lea.vmem %s1, %s2802
    %v2804 = vpack.c.b16 0, %v2799
    %v2805 = vpack.c.b8 0, %v2804
    %2806 = vst [vmem:[%s2803] sm:%s2801] %v2805
    %s2807 = scalar_lea.vmem [#allocation0], 80
    %v2808 = vld [vmem:[%s2807] sm:%s2719]
    %s2809 = sshll.u32 1, %s2720
    %s2810 = ssub.s32 %s2809, 1
    %s2811 = smul.addr 2, 10
    %s2812 = scalar_lea.vmem %s1, %s2811
    %v2813 = vpack.c.b16 0, %v2808
    %v2814 = vpack.c.b8 0, %v2813
    %2815 = vst [vmem:[%s2812] sm:%s2810] %v2814
    %s2816 = scalar_lea.vmem [#allocation0], 88
    %v2817 = vld [vmem:[%s2816] sm:%s2719]
    %s2818 = sshll.u32 1, %s2720
    %s2819 = ssub.s32 %s2818, 1
    %s2820 = smul.addr 2, 11
    %s2821 = scalar_lea.vmem %s1, %s2820
    %v2822 = vpack.c.b16 0, %v2817
    %v2823 = vpack.c.b8 0, %v2822
    %2824 = vst [vmem:[%s2821] sm:%s2819] %v2823
    %s2825 = scalar_lea.vmem [#allocation0], 96
    %v2826 = vld [vmem:[%s2825] sm:%s2719]
    %s2827 = sshll.u32 1, %s2720
    %s2828 = ssub.s32 %s2827, 1
    %s2829 = smul.addr 2, 12
    %s2830 = scalar_lea.vmem %s1, %s2829
    %v2831 = vpack.c.b16 0, %v2826
    %v2832 = vpack.c.b8 0, %v2831
    %2833 = vst [vmem:[%s2830] sm:%s2828] %v2832
    %s2834 = scalar_lea.vmem [#allocation0], 104
    %v2835 = vld [vmem:[%s2834] sm:%s2719]
    %s2836 = sshll.u32 1, %s2720
    %s2837 = ssub.s32 %s2836, 1
    %s2838 = smul.addr 2, 13
    %s2839 = scalar_lea.vmem %s1, %s2838
    %v2840 = vpack.c.b16 0, %v2835
    %v2841 = vpack.c.b8 0, %v2840
    %2842 = vst [vmem:[%s2839] sm:%s2837] %v2841
    %s2843 = scalar_lea.vmem [#allocation0], 112
    %v2844 = vld [vmem:[%s2843] sm:%s2719]
    %s2845 = sshll.u32 1, %s2720
    %s2846 = ssub.s32 %s2845, 1
    %s2847 = smul.addr 2, 14
    %s2848 = scalar_lea.vmem %s1, %s2847
    %v2849 = vpack.c.b16 0, %v2844
    %v2850 = vpack.c.b8 0, %v2849
    %2851 = vst [vmem:[%s2848] sm:%s2846] %v2850
    %s2852 = scalar_lea.vmem [#allocation0], 120
    %v2853 = vld [vmem:[%s2852] sm:%s2719]
    %s2854 = sshll.u32 1, %s2720
    %s2855 = ssub.s32 %s2854, 1
    %s2856 = smul.addr 2, 15
    %s2857 = scalar_lea.vmem %s1, %s2856
    %v2858 = vpack.c.b16 0, %v2853
    %v2859 = vpack.c.b8 0, %v2858
    %2860 = vst [vmem:[%s2857] sm:%s2855] %v2859

// kernel: x_net_forward.1
$region0: #{x_net_forward.1}
  #allocation0 [shape = 'u32[]', space=smem, size = 0x4, offset = 0x4, fixed_abs, tag = 'smem constant byte address 0x4 - core index']
  #allocation1 [shape = 'u32[144,128]{1,0:T(1,128)}', space=vmem, size = 0x12000, scoped, tag = 'internal scratch']
  %s0 = inlined_call_operand.vmem [shape: f32[32,64], index: 0, kind: input, shape index: {}]
  %s1 = inlined_call_operand.vmem [shape: f32[128,128], index: 1, kind: input, shape index: {}]
  %s2 = inlined_call_operand.vmem [shape: f32[32,16], index: 2, kind: input, shape index: {}]
  %s3 = inlined_call_operand.vmem [shape: f32[64,16], index: 3, kind: input, shape index: {}]
  %s4 = inlined_call_operand.vmem [shape: f32[16,1536], index: 4, kind: input, shape index: {}]
  %s5 = inlined_call_operand.vmem [shape: f32[512,16], index: 5, kind: input, shape index: {}]
  %s6 = inlined_call_operand.vmem [shape: f32[16,128], index: 6, kind: input, shape index: {}]
  %s7 = inlined_call_operand.vmem [shape: f32[128,16], index: 7, kind: input, shape index: {}]
  %s8 = inlined_call_operand.vmem [shape: f32[64,256], index: 8, kind: input, shape index: {}]
  %s9 = inlined_call_operand.vmem [shape: f32[56,64], index: 9, kind: input, shape index: {}]
  %s10 = inlined_call_operand.vmem [shape: f32[32,16], index: 10, kind: input, shape index: {}]
  %s11 = inlined_call_operand.vmem [shape: f32[10,16], index: 11, kind: input, shape index: {}]
  %s12 = inlined_call_operand.vmem [shape: f32[3,128], index: 12, kind: input, shape index: {}]
  %s13 = inlined_call_operand.vmem [shape: f32[24,32], index: 13, kind: input, shape index: {}]
  %s14 = inlined_call_operand.vmem [shape: f32[8,16], index: 14, kind: output, shape index: {}]
  %s15 = sld [smem:[#allocation0]]
  $region73: #{x_net_forward.1} parent=0
    _
  %s17 = ssub.s32 1, %s15
  %s18 = scalar_select 0, %s17, %s15
  // Predicated region
  $region2: #{x_net_forward.1} parent=0 // pred_check
    _
  $region3: #{x_net_forward.1} parent=0 // pred_check_branch
    %20 = sbr.rel (0) target = $region5
  $region4: #{x_net_forward.1} parent=0 // pred_region
    _
  $region5: #{x_net_forward.1} parent=0 // pred_fallthru
    _
  // Predicated region
  $region6: #{x_net_forward.1} parent=0 // pred_check
    _
  $region7: #{x_net_forward.1} parent=0 // pred_check_branch
    %22 = sbr.rel (0) target = $region9
  $region8: #{x_net_forward.1} parent=0 // pred_region
    _
  $region9: #{x_net_forward.1} parent=0 // pred_fallthru
    _
  // Predicated region
  $region10: #{x_net_forward.1} parent=0 // pred_check
    _
  $region11: #{x_net_forward.1} parent=0 // pred_check_branch
    %24 = sbr.rel (0) target = $region13
  $region12: #{x_net_forward.1} parent=0 // pred_region
    _
  $region13: #{x_net_forward.1} parent=0 // pred_fallthru
    _
  // Predicated region
  $region14: #{x_net_forward.1} parent=0 // pred_check
    _
  $region15: #{x_net_forward.1} parent=0 // pred_check_branch
    %26 = sbr.rel (0) target = $region17
  $region16: #{x_net_forward.1} parent=0 // pred_region
    _
  $region17: #{x_net_forward.1} parent=0 // pred_fallthru
    _
  // Predicated region
  $region18: #{x_net_forward.1} parent=0 // pred_check
    _
  $region19: #{x_net_forward.1} parent=0 // pred_check_branch
    %28 = sbr.rel (0) target = $region21
  $region20: #{x_net_forward.1} parent=0 // pred_region
    _
  $region21: #{x_net_forward.1} parent=0 // pred_fallthru
    _
  // Predicated region
  $region22: #{x_net_forward.1} parent=0 // pred_check
    _
  $region23: #{x_net_forward.1} parent=0 // pred_check_branch
    %30 = sbr.rel (0) target = $region25
  $region24: #{x_net_forward.1} parent=0 // pred_region
    _
  $region25: #{x_net_forward.1} parent=0 // pred_fallthru
    _
  // Predicated region
  $region26: #{x_net_forward.1} parent=0 // pred_check
    _
  $region27: #{x_net_forward.1} parent=0 // pred_check_branch
    %32 = sbr.rel (0) target = $region29
  $region28: #{x_net_forward.1} parent=0 // pred_region
    _
  $region29: #{x_net_forward.1} parent=0 // pred_fallthru
    _
  // Predicated region
  $region30: #{x_net_forward.1} parent=0 // pred_check
    _
  $region31: #{x_net_forward.1} parent=0 // pred_check_branch
    %34 = sbr.rel (0) target = $region33
  $region32: #{x_net_forward.1} parent=0 // pred_region
    _
  $region33: #{x_net_forward.1} parent=0 // pred_fallthru
    _
  // Predicated region
  $region34: #{x_net_forward.1} parent=0 // pred_check
    _
  $region35: #{x_net_forward.1} parent=0 // pred_check_branch
    %36 = sbr.rel (0) target = $region37
  $region36: #{x_net_forward.1} parent=0 // pred_region
    _
  $region37: #{x_net_forward.1} parent=0 // pred_fallthru
    _
  // Predicated region
  $region38: #{x_net_forward.1} parent=0 // pred_check
    _
  $region39: #{x_net_forward.1} parent=0 // pred_check_branch
    %38 = sbr.rel (0) target = $region41
  $region40: #{x_net_forward.1} parent=0 // pred_region
    _
  $region41: #{x_net_forward.1} parent=0 // pred_fallthru
    _
  // Predicated region
  $region42: #{x_net_forward.1} parent=0 // pred_check
    _
  $region43: #{x_net_forward.1} parent=0 // pred_check_branch
    %40 = sbr.rel (0) target = $region45
  $region44: #{x_net_forward.1} parent=0 // pred_region
    _
  $region45: #{x_net_forward.1} parent=0 // pred_fallthru
    _
  // Predicated region
  $region46: #{x_net_forward.1} parent=0 // pred_check
    _
  $region47: #{x_net_forward.1} parent=0 // pred_check_branch
    %42 = sbr.rel (0) target = $region49
  $region48: #{x_net_forward.1} parent=0 // pred_region
    _
  $region49: #{x_net_forward.1} parent=0 // pred_fallthru
    _
  // Predicated region
  $region50: #{x_net_forward.1} parent=0 // pred_check
    _
  $region51: #{x_net_forward.1} parent=0 // pred_check_branch
    %44 = sbr.rel (0) target = $region53
  $region52: #{x_net_forward.1} parent=0 // pred_region
    _
  $region53: #{x_net_forward.1} parent=0 // pred_fallthru
    _
  // Predicated region
  $region54: #{x_net_forward.1} parent=0 // pred_check
    _
  $region55: #{x_net_forward.1} parent=0 // pred_check_branch
    %46 = sbr.rel (0) target = $region57
  $region56: #{x_net_forward.1} parent=0 // pred_region
    _
  $region57: #{x_net_forward.1} parent=0 // pred_fallthru
    _
  %v47 = vld [vmem:[%s0] sm:$0xff]
  %v48 = vld [vmem:[%s0 + $0x8] sm:$0xff]
  %v49 = vld [vmem:[%s0 + $0x10] sm:$0xff]
  %v50 = vld [vmem:[%s0 + $0x18] sm:$0xff]
  loop: start=0, step=1, limit=4
  $region58: #{x_net_forward.1} parent=0 // loop_pre_header
    _
  $region59: #{x_net_forward.1} parent=0 // loop_header
    %s52 = sphi 0, %s56
    %p53 = scmp.ge.s32.totalorder %s52, 4
    %v57 = vphi %v47, %v2638
    %v58 = vphi %v48, %v2639
    %v59 = vphi %v49, %v2640
    %v60 = vphi %v50, %v2641
  $region60: #{x_net_forward.1} parent=0 // loop_header_branch
    %55 = sbr.rel (%p53) target = $region64
  $region61: #{x_net_forward.1} parent=0 // loop_body
    %v61 = vld [vmem:[%s12] sm:$0x1]
    %v62 = vld [vmem:[%s12 + $0x1] sm:$0x1]
    %vm63 = vcmask 523264
    %v64 = vsel %vm63, %v57, 0.0
    %65 = vadd.xlane.f32.xlu0 %v64
    %v66 = vpop.xlane.xlu0 %65
    %v67 = vsel %vm63, %v58, 0.0
    %68 = vadd.xlane.f32.xlu0 %v67
    %v69 = vpop.xlane.xlu0 %68
    %v70 = vsel %vm63, %v59, 0.0
    %71 = vadd.xlane.f32.xlu0 %v70
    %v72 = vpop.xlane.xlu0 %71
    %v73 = vsel %vm63, %v60, 0.0
    %74 = vadd.xlane.f32.xlu0 %v73
    %v75 = vpop.xlane.xlu0 %74
    %v76 = vrcp.pop 64.0
    %v77 = vmul.f32 %v66, %v76
    %v78 = vmul.f32 %v69, %v76
    %v79 = vmul.f32 %v72, %v76
    %v80 = vmul.f32 %v75, %v76
    %v81 = vsub.f32 %v57, %v77
    %v82 = vsub.f32 %v58, %v78
    %v83 = vsub.f32 %v59, %v79
    %v84 = vsub.f32 %v60, %v80
    %v85 = vmul.f32 %v81, %v81
    %v86 = vmul.f32 %v82, %v82
    %v87 = vmul.f32 %v83, %v83
    %v88 = vmul.f32 %v84, %v84
    %v89 = vsel %vm63, %v85, 0.0
    %90 = vadd.xlane.f32.xlu0 %v89
    %v91 = vpop.xlane.xlu0 %90
    %v92 = vsel %vm63, %v86, 0.0
    %93 = vadd.xlane.f32.xlu0 %v92
    %v94 = vpop.xlane.xlu0 %93
    %v95 = vsel %vm63, %v87, 0.0
    %96 = vadd.xlane.f32.xlu0 %v95
    %v97 = vpop.xlane.xlu0 %96
    %v98 = vsel %vm63, %v88, 0.0
    %99 = vadd.xlane.f32.xlu0 %v98
    %v100 = vpop.xlane.xlu0 %99
    %v101 = vmul.f32 %v91, %v76
    %v102 = vmul.f32 %v94, %v76
    %v103 = vmul.f32 %v97, %v76
    %v104 = vmul.f32 %v100, %v76
    %v105 = vadd.f32 %v101, 1e-05
    %v106 = vadd.f32 %v102, 1e-05
    %v107 = vadd.f32 %v103, 1e-05
    %v108 = vadd.f32 %v104, 1e-05
    %v109 = vrsqrt.pop %v105
    %v110 = vrsqrt.pop %v106
    %v111 = vrsqrt.pop %v107
    %v112 = vrsqrt.pop %v108
    %v113 = vmul.f32 %v81, %v109
    %v114 = vmul.f32 %v82, %v110
    %v115 = vmul.f32 %v83, %v111
    %v116 = vmul.f32 %v84, %v112
    %v117 = vlaneseq
    %v118 = vshrl.u32 %v117, 7
    %v119 = vsub.s32 0, %v118
    %v120 = vrot.slane %v61, %v119
    %v121 = vmul.f32 %v113, %v120
    %v122 = vmul.f32 %v114, %v120
    %v123 = vmul.f32 %v115, %v120
    %v124 = vmul.f32 %v116, %v120
    %v125 = vlaneseq
    %v126 = vshrl.u32 %v125, 7
    %v127 = vsub.s32 0, %v126
    %v128 = vrot.slane %v62, %v127
    %v129 = vadd.f32 %v121, %v128
    %v130 = vadd.f32 %v122, %v128
    %v131 = vadd.f32 %v123, %v128
    %v132 = vadd.f32 %v124, %v128
    %v133 = vld [vmem:[%s3] sm:$0xff]
    %v134 = vld [vmem:[%s3 + $0x8] sm:$0xff]
    %v135 = vld [vmem:[%s3 + $0x10] sm:$0xff]
    %v136 = vld [vmem:[%s3 + $0x18] sm:$0xff]
    %v137 = vld [vmem:[%s3 + $0x20] sm:$0xff]
    %v138 = vld [vmem:[%s3 + $0x28] sm:$0xff]
    %v139 = vld [vmem:[%s3 + $0x30] sm:$0xff]
    %v140 = vld [vmem:[%s3 + $0x38] sm:$0xff]
    %v141 = vld [vmem:[%s11 + $0x6] sm:$0x1]
    %v142 = vlaneseq
    %v143 = vshrl.u32 %v142, 7
    %v144 = vsub.s32 0, %v143
    %v145 = vrot.slane %v141, %v144
    %v147 = vsel %vm63, %v129, 0
    %v150 = vsel %vm63, %v130, 0
    %v153 = vsel %vm63, %v131, 0
    %v156 = vsel %vm63, %v132, 0
    %158 = vmatprep.subr.mxu0 0.0
    %159 = vmatpush1.msra.mxu0 0.0
    %160 = vmatprep.subr.mxu0 0.0
    %161 = vmatpush1.msra.mxu0 0.0
    %162 = vmatprep.subr.mxu0 0.0
    %163 = vmatpush1.msra.mxu0 0.0
    %164 = vmatprep.subr.mxu0 0.0
    %165 = vmatpush1.msra.mxu0 0.0
    %166 = vmatprep.subr.mxu0 0.0
    %167 = vmatpush1.msra.mxu0 0.0
    %168 = vmatprep.subr.mxu0 0.0
    %169 = vmatpush1.msra.mxu0 0.0
    %170 = vmatprep.subr.mxu0 0.0
    %171 = vmatpush1.msra.mxu0 0.0
    %172 = vmatprep.subr.mxu0 0.0
    %173 = vmatpush1.msra.mxu0 0.0
    %174 = vmatprep.subr.mxu0 0.0
    %175 = vmatpush1.msra.mxu0 %v140
    %176 = vmatprep.subr.mxu0 0.0
    %177 = vmatpush1.msra.mxu0 %v139
    %178 = vmatprep.subr.mxu0 0.0
    %179 = vmatpush1.msra.mxu0 %v138
    %180 = vmatprep.subr.mxu0 0.0
    %181 = vmatpush1.msra.mxu0 %v137
    %182 = vmatprep.subr.mxu0 0.0
    %183 = vmatpush1.msra.mxu0 %v136
    %184 = vmatprep.subr.mxu0 0.0
    %185 = vmatpush1.msra.mxu0 %v135
    %186 = vmatprep.subr.mxu0 0.0
    %187 = vmatpush1.msra.mxu0 %v134
    %188 = vmatprep.subr.mxu0 0.0
    %189 = vmatpush1.msra.mxu0 %v133
    %190 = vmatprep.subr.mxu0 0.0
    %191 = vmatpush2.msra.mxu0 0.0
    %192 = vmatprep.subr.mxu0 0.0
    %193 = vmatpush2.msra.mxu0 0.0
    %194 = vmatprep.subr.mxu0 0.0
    %195 = vmatpush2.msra.mxu0 0.0
    %196 = vmatprep.subr.mxu0 0.0
    %197 = vmatpush2.msra.mxu0 0.0
    %198 = vmatprep.subr.mxu0 0.0
    %199 = vmatpush2.msra.mxu0 0.0
    %200 = vmatprep.subr.mxu0 0.0
    %201 = vmatpush2.msra.mxu0 0.0
    %202 = vmatprep.subr.mxu0 0.0
    %203 = vmatpush2.msra.mxu0 0.0
    %204 = vmatprep.subr.mxu0 0.0
    %205 = vmatpush2.msra.mxu0 0.0
    %206 = vmatprep.subr.mxu0 0.0
    %207 = vmatpush2.msra.mxu0 0.0
    %208 = vmatprep.subr.mxu0 0.0
    %209 = vmatpush2.msra.mxu0 0.0
    %210 = vmatprep.subr.mxu0 0.0
    %211 = vmatpush2.msra.mxu0 0.0
    %212 = vmatprep.subr.mxu0 0.0
    %213 = vmatpush2.msra.mxu0 0.0
    %214 = vmatprep.subr.mxu0 0.0
    %215 = vmatpush2.msra.mxu0 0.0
    %216 = vmatprep.subr.mxu0 0.0
    %217 = vmatpush2.msra.mxu0 0.0
    %218 = vmatprep.subr.mxu0 0.0
    %219 = vmatpush2.msra.mxu0 0.0
    %220 = vmatprep.subr.mxu0 0.0
    %221 = vmatpush2.msra.mxu0 0.0
    %222 = vmatprep.mubr.f32.mxu0 0.0
    %223 = vmatmul.mubr.f32.gmra.mxu0 %v147
    %v224 = vpop.f32.mrf.mxu0
    %v225 = vadd.f32 %v145, %v224
    %v226 = vpop.f32.mrf.mxu0
    %227 = vmatprep.mubr.f32.mxu0 0.0
    %228 = vmatmul.mubr.f32.gmra.mxu0 %v150
    %v229 = vpop.f32.mrf.mxu0
    %v230 = vadd.f32 %v145, %v229
    %v231 = vpop.f32.mrf.mxu0
    %232 = vmatprep.mubr.f32.mxu0 0.0
    %233 = vmatmul.mubr.f32.gmra.mxu0 %v153
    %v234 = vpop.f32.mrf.mxu0
    %v235 = vadd.f32 %v145, %v234
    %v236 = vpop.f32.mrf.mxu0
    %237 = vmatprep.mubr.f32.mxu0 0.0
    %238 = vmatmul.mubr.f32.gmra.mxu0 %v156
    %v239 = vpop.f32.mrf.mxu0
    %v240 = vadd.f32 %v145, %v239
    %v241 = vpop.f32.mrf.mxu0
    %242 = vdwg.mxu0
    %v243 = vld [vmem:[%s11] sm:$0x1]
    %v244 = vld [vmem:[%s11 + $0x1] sm:$0x1]
    %vm245 = vcmask 130048
    %v246 = vsel %vm245, %v225, 0.0
    %247 = vadd.xlane.f32.xlu0 %v246
    %v248 = vpop.xlane.xlu0 %247
    %v249 = vsel %vm245, %v230, 0.0
    %250 = vadd.xlane.f32.xlu0 %v249
    %v251 = vpop.xlane.xlu0 %250
    %v252 = vsel %vm245, %v235, 0.0
    %253 = vadd.xlane.f32.xlu0 %v252
    %v254 = vpop.xlane.xlu0 %253
    %v255 = vsel %vm245, %v240, 0.0
    %256 = vadd.xlane.f32.xlu0 %v255
    %v257 = vpop.xlane.xlu0 %256
    %v258 = vrcp.pop 16.0
    %v259 = vmul.f32 %v248, %v258
    %v260 = vmul.f32 %v251, %v258
    %v261 = vmul.f32 %v254, %v258
    %v262 = vmul.f32 %v257, %v258
    %v263 = vsub.f32 %v225, %v259
    %v264 = vsub.f32 %v230, %v260
    %v265 = vsub.f32 %v235, %v261
    %v266 = vsub.f32 %v240, %v262
    %v267 = vmul.f32 %v263, %v263
    %v268 = vmul.f32 %v264, %v264
    %v269 = vmul.f32 %v265, %v265
    %v270 = vmul.f32 %v266, %v266
    %v271 = vsel %vm245, %v267, 0.0
    %272 = vadd.xlane.f32.xlu0 %v271
    %v273 = vpop.xlane.xlu0 %272
    %v274 = vsel %vm245, %v268, 0.0
    %275 = vadd.xlane.f32.xlu0 %v274
    %v276 = vpop.xlane.xlu0 %275
    %v277 = vsel %vm245, %v269, 0.0
    %278 = vadd.xlane.f32.xlu0 %v277
    %v279 = vpop.xlane.xlu0 %278
    %v280 = vsel %vm245, %v270, 0.0
    %281 = vadd.xlane.f32.xlu0 %v280
    %v282 = vpop.xlane.xlu0 %281
    %v283 = vmul.f32 %v273, %v258
    %v284 = vmul.f32 %v276, %v258
    %v285 = vmul.f32 %v279, %v258
    %v286 = vmul.f32 %v282, %v258
    %v287 = vadd.f32 %v283, 1e-05
    %v288 = vadd.f32 %v284, 1e-05
    %v289 = vadd.f32 %v285, 1e-05
    %v290 = vadd.f32 %v286, 1e-05
    %v291 = vrsqrt.pop %v287
    %v292 = vrsqrt.pop %v288
    %v293 = vrsqrt.pop %v289
    %v294 = vrsqrt.pop %v290
    %v295 = vmul.f32 %v263, %v291
    %v296 = vmul.f32 %v264, %v292
    %v297 = vmul.f32 %v265, %v293
    %v298 = vmul.f32 %v266, %v294
    %v299 = vlaneseq
    %v300 = vshrl.u32 %v299, 7
    %v301 = vsub.s32 0, %v300
    %v302 = vrot.slane %v243, %v301
    %v303 = vmul.f32 %v295, %v302
    %v304 = vmul.f32 %v296, %v302
    %v305 = vmul.f32 %v297, %v302
    %v306 = vmul.f32 %v298, %v302
    %v307 = vlaneseq
    %v308 = vshrl.u32 %v307, 7
    %v309 = vsub.s32 0, %v308
    %v310 = vrot.slane %v244, %v309
    %v311 = vadd.f32 %v303, %v310
    %v312 = vadd.f32 %v304, %v310
    %v313 = vadd.f32 %v305, %v310
    %v314 = vadd.f32 %v306, %v310
    %v315 = vld [vmem:[%s2] sm:$0xff]
    %v316 = vld [vmem:[%s2 + $0x8] sm:$0xff]
    %v317 = vld [vmem:[%s2 + $0x10] sm:$0xff]
    %v318 = vld [vmem:[%s2 + $0x18] sm:$0xff]
    %v319 = vadd.f32 %v311, %v315
    %v320 = vadd.f32 %v312, %v316
    %v321 = vadd.f32 %v313, %v317
    %v322 = vadd.f32 %v314, %v318
    %v323 = vld [vmem:[%s11 + $0x2] sm:$0x1]
    %v324 = vld [vmem:[%s11 + $0x3] sm:$0x1]
    %v325 = vsel %vm245, %v319, 0.0
    %326 = vadd.xlane.f32.xlu0 %v325
    %v327 = vpop.xlane.xlu0 %326
    %v328 = vsel %vm245, %v320, 0.0
    %329 = vadd.xlane.f32.xlu0 %v328
    %v330 = vpop.xlane.xlu0 %329
    %v331 = vsel %vm245, %v321, 0.0
    %332 = vadd.xlane.f32.xlu0 %v331
    %v333 = vpop.xlane.xlu0 %332
    %v334 = vsel %vm245, %v322, 0.0
    %335 = vadd.xlane.f32.xlu0 %v334
    %v336 = vpop.xlane.xlu0 %335
    %v337 = vmul.f32 %v327, %v258
    %v338 = vmul.f32 %v330, %v258
    %v339 = vmul.f32 %v333, %v258
    %v340 = vmul.f32 %v336, %v258
    %v341 = vsub.f32 %v319, %v337
    %v342 = vsub.f32 %v320, %v338
    %v343 = vsub.f32 %v321, %v339
    %v344 = vsub.f32 %v322, %v340
    %v345 = vmul.f32 %v341, %v341
    %v346 = vmul.f32 %v342, %v342
    %v347 = vmul.f32 %v343, %v343
    %v348 = vmul.f32 %v344, %v344
    %v349 = vsel %vm245, %v345, 0.0
    %350 = vadd.xlane.f32.xlu0 %v349
    %v351 = vpop.xlane.xlu0 %350
    %v352 = vsel %vm245, %v346, 0.0
    %353 = vadd.xlane.f32.xlu0 %v352
    %v354 = vpop.xlane.xlu0 %353
    %v355 = vsel %vm245, %v347, 0.0
    %356 = vadd.xlane.f32.xlu0 %v355
    %v357 = vpop.xlane.xlu0 %356
    %v358 = vsel %vm245, %v348, 0.0
    %359 = vadd.xlane.f32.xlu0 %v358
    %v360 = vpop.xlane.xlu0 %359
    %v361 = vmul.f32 %v351, %v258
    %v362 = vmul.f32 %v354, %v258
    %v363 = vmul.f32 %v357, %v258
    %v364 = vmul.f32 %v360, %v258
    %v365 = vadd.f32 %v361, 1e-05
    %v366 = vadd.f32 %v362, 1e-05
    %v367 = vadd.f32 %v363, 1e-05
    %v368 = vadd.f32 %v364, 1e-05
    %v369 = vrsqrt.pop %v365
    %v370 = vrsqrt.pop %v366
    %v371 = vrsqrt.pop %v367
    %v372 = vrsqrt.pop %v368
    %v373 = vmul.f32 %v341, %v369
    %v374 = vmul.f32 %v342, %v370
    %v375 = vmul.f32 %v343, %v371
    %v376 = vmul.f32 %v344, %v372
    %v377 = vlaneseq
    %v378 = vshrl.u32 %v377, 7
    %v379 = vsub.s32 0, %v378
    %v380 = vrot.slane %v323, %v379
    %v381 = vmul.f32 %v373, %v380
    %v382 = vmul.f32 %v374, %v380
    %v383 = vmul.f32 %v375, %v380
    %v384 = vmul.f32 %v376, %v380
    %v385 = vlaneseq
    %v386 = vshrl.u32 %v385, 7
    %v387 = vsub.s32 0, %v386
    %v388 = vrot.slane %v324, %v387
    %v389 = vadd.f32 %v381, %v388
    %v390 = vadd.f32 %v382, %v388
    %v391 = vadd.f32 %v383, %v388
    %v392 = vadd.f32 %v384, %v388
    %v393 = vld [vmem:[%s4] sm:$0xff]
    %v394 = vld [vmem:[%s4 + $0x8] sm:$0xff]
    %v395 = vld [vmem:[%s4 + $0x10] sm:$0xff]
    %v396 = vld [vmem:[%s4 + $0x18] sm:$0xff]
    %v397 = vld [vmem:[%s4 + $0x20] sm:$0xff]
    %v398 = vld [vmem:[%s4 + $0x28] sm:$0xff]
    %v399 = vld [vmem:[%s4 + $0x30] sm:$0xff]
    %v400 = vld [vmem:[%s4 + $0x38] sm:$0xff]
    %v401 = vld [vmem:[%s4 + $0x40] sm:$0xff]
    %v402 = vld [vmem:[%s4 + $0x48] sm:$0xff]
    %v403 = vld [vmem:[%s4 + $0x50] sm:$0xff]
    %v404 = vld [vmem:[%s4 + $0x58] sm:$0xff]
    %v405 = vld [vmem:[%s4 + $0x60] sm:$0xff]
    %v406 = vld [vmem:[%s4 + $0x68] sm:$0xff]
    %v407 = vld [vmem:[%s4 + $0x70] sm:$0xff]
    %v408 = vld [vmem:[%s4 + $0x78] sm:$0xff]
    %v409 = vld [vmem:[%s4 + $0x80] sm:$0xff]
    %v410 = vld [vmem:[%s4 + $0x88] sm:$0xff]
    %v411 = vld [vmem:[%s4 + $0x90] sm:$0xff]
    %v412 = vld [vmem:[%s4 + $0x98] sm:$0xff]
    %v413 = vld [vmem:[%s4 + $0xa0] sm:$0xff]
    %v414 = vld [vmem:[%s4 + $0xa8] sm:$0xff]
    %v415 = vld [vmem:[%s4 + $0xb0] sm:$0xff]
    %v416 = vld [vmem:[%s4 + $0xb8] sm:$0xff]
    %v418 = vsel %vm245, %v389, 0
    %v421 = vsel %vm245, %v390, 0
    %v424 = vsel %vm245, %v391, 0
    %v427 = vsel %vm245, %v392, 0
    %429 = vmatprep.subr.mxu0 0.0
    %430 = vmatpush1.msra.mxu0 0.0
    %431 = vmatprep.subr.mxu0 0.0
    %432 = vmatpush1.msra.mxu0 0.0
    %433 = vmatprep.subr.mxu0 0.0
    %434 = vmatpush1.msra.mxu0 0.0
    %435 = vmatprep.subr.mxu0 0.0
    %436 = vmatpush1.msra.mxu0 0.0
    %437 = vmatprep.subr.mxu0 0.0
    %438 = vmatpush1.msra.mxu0 0.0
    %439 = vmatprep.subr.mxu0 0.0
    %440 = vmatpush1.msra.mxu0 0.0
    %441 = vmatprep.subr.mxu0 0.0
    %442 = vmatpush1.msra.mxu0 0.0
    %443 = vmatprep.subr.mxu0 0.0
    %444 = vmatpush1.msra.mxu0 0.0
    %445 = vmatprep.subr.mxu0 0.0
    %446 = vmatpush1.msra.mxu0 0.0
    %447 = vmatprep.subr.mxu0 0.0
    %448 = vmatpush1.msra.mxu0 0.0
    %449 = vmatprep.subr.mxu0 0.0
    %450 = vmatpush1.msra.mxu0 0.0
    %451 = vmatprep.subr.mxu0 0.0
    %452 = vmatpush1.msra.mxu0 0.0
    %453 = vmatprep.subr.mxu0 0.0
    %454 = vmatpush1.msra.mxu0 0.0
    %455 = vmatprep.subr.mxu0 0.0
    %456 = vmatpush1.msra.mxu0 0.0
    %457 = vmatprep.subr.mxu0 %v406
    %458 = vmatpush1.msra.mxu0 %v405
    %459 = vmatprep.subr.mxu0 %v394
    %460 = vmatpush1.msra.mxu0 %v393
    %461 = vmatprep.subr.mxu0 0.0
    %462 = vmatpush2.msra.mxu0 0.0
    %463 = vmatprep.subr.mxu0 0.0
    %464 = vmatpush2.msra.mxu0 0.0
    %465 = vmatprep.subr.mxu0 0.0
    %466 = vmatpush2.msra.mxu0 0.0
    %467 = vmatprep.subr.mxu0 0.0
    %468 = vmatpush2.msra.mxu0 0.0
    %469 = vmatprep.subr.mxu0 0.0
    %470 = vmatpush2.msra.mxu0 0.0
    %471 = vmatprep.subr.mxu0 0.0
    %472 = vmatpush2.msra.mxu0 0.0
    %473 = vmatprep.subr.mxu0 0.0
    %474 = vmatpush2.msra.mxu0 0.0
    %475 = vmatprep.subr.mxu0 0.0
    %476 = vmatpush2.msra.mxu0 0.0
    %477 = vmatprep.subr.mxu0 0.0
    %478 = vmatpush2.msra.mxu0 0.0
    %479 = vmatprep.subr.mxu0 0.0
    %480 = vmatpush2.msra.mxu0 0.0
    %481 = vmatprep.subr.mxu0 0.0
    %482 = vmatpush2.msra.mxu0 0.0
    %483 = vmatprep.subr.mxu0 0.0
    %484 = vmatpush2.msra.mxu0 0.0
    %485 = vmatprep.subr.mxu0 0.0
    %486 = vmatpush2.msra.mxu0 0.0
    %487 = vmatprep.subr.mxu0 0.0
    %488 = vmatpush2.msra.mxu0 0.0
    %489 = vmatprep.subr.mxu0 0.0
    %490 = vmatpush2.msra.mxu0 0.0
    %491 = vmatprep.subr.mxu0 0.0
    %492 = vmatpush2.msra.mxu0 0.0
    %493 = vmatprep.mubr.f32.mxu0 0.0
    %494 = vmatmul.mubr.f32.gmra.mxu0 %v418
    %v495 = vpop.f32.mrf.mxu0
    %v496 = vadd.f32 0.0, %v495
    %v497 = vpop.f32.mrf.mxu0
    %v498 = vadd.f32 0.0, %v497
    %499 = vmatprep.mubr.f32.mxu0 0.0
    %500 = vmatmul.mubr.f32.gmra.mxu0 %v421
    %v501 = vpop.f32.mrf.mxu0
    %v502 = vadd.f32 0.0, %v501
    %v503 = vpop.f32.mrf.mxu0
    %v504 = vadd.f32 0.0, %v503
    %505 = vmatprep.mubr.f32.mxu0 0.0
    %506 = vmatmul.mubr.f32.gmra.mxu0 %v424
    %v507 = vpop.f32.mrf.mxu0
    %v508 = vadd.f32 0.0, %v507
    %v509 = vpop.f32.mrf.mxu0
    %v510 = vadd.f32 0.0, %v509
    %511 = vmatprep.mubr.f32.mxu0 0.0
    %512 = vmatmul.mubr.f32.gmra.mxu0 %v427
    %v513 = vpop.f32.mrf.mxu0
    %v514 = vadd.f32 0.0, %v513
    %v515 = vpop.f32.mrf.mxu0
    %v516 = vadd.f32 0.0, %v515
    %517 = vdwg.mxu0
    %518 = vmatprep.subr.mxu0 0.0
    %519 = vmatpush1.msra.mxu0 0.0
    %520 = vmatprep.subr.mxu0 0.0
    %521 = vmatpush1.msra.mxu0 0.0
    %522 = vmatprep.subr.mxu0 0.0
    %523 = vmatpush1.msra.mxu0 0.0
    %524 = vmatprep.subr.mxu0 0.0
    %525 = vmatpush1.msra.mxu0 0.0
    %526 = vmatprep.subr.mxu0 0.0
    %527 = vmatpush1.msra.mxu0 0.0
    %528 = vmatprep.subr.mxu0 0.0
    %529 = vmatpush1.msra.mxu0 0.0
    %530 = vmatprep.subr.mxu0 0.0
    %531 = vmatpush1.msra.mxu0 0.0
    %532 = vmatprep.subr.mxu0 0.0
    %533 = vmatpush1.msra.mxu0 0.0
    %534 = vmatprep.subr.mxu0 0.0
    %535 = vmatpush1.msra.mxu0 0.0
    %536 = vmatprep.subr.mxu0 0.0
    %537 = vmatpush1.msra.mxu0 0.0
    %538 = vmatprep.subr.mxu0 0.0
    %539 = vmatpush1.msra.mxu0 0.0
    %540 = vmatprep.subr.mxu0 0.0
    %541 = vmatpush1.msra.mxu0 0.0
    %542 = vmatprep.subr.mxu0 0.0
    %543 = vmatpush1.msra.mxu0 0.0
    %544 = vmatprep.subr.mxu0 0.0
    %545 = vmatpush1.msra.mxu0 0.0
    %546 = vmatprep.subr.mxu0 %v408
    %547 = vmatpush1.msra.mxu0 %v407
    %548 = vmatprep.subr.mxu0 %v396
    %549 = vmatpush1.msra.mxu0 %v395
    %550 = vmatprep.subr.mxu0 0.0
    %551 = vmatpush2.msra.mxu0 0.0
    %552 = vmatprep.subr.mxu0 0.0
    %553 = vmatpush2.msra.mxu0 0.0
    %554 = vmatprep.subr.mxu0 0.0
    %555 = vmatpush2.msra.mxu0 0.0
    %556 = vmatprep.subr.mxu0 0.0
    %557 = vmatpush2.msra.mxu0 0.0
    %558 = vmatprep.subr.mxu0 0.0
    %559 = vmatpush2.msra.mxu0 0.0
    %560 = vmatprep.subr.mxu0 0.0
    %561 = vmatpush2.msra.mxu0 0.0
    %562 = vmatprep.subr.mxu0 0.0
    %563 = vmatpush2.msra.mxu0 0.0
    %564 = vmatprep.subr.mxu0 0.0
    %565 = vmatpush2.msra.mxu0 0.0
    %566 = vmatprep.subr.mxu0 0.0
    %567 = vmatpush2.msra.mxu0 0.0
    %568 = vmatprep.subr.mxu0 0.0
    %569 = vmatpush2.msra.mxu0 0.0
    %570 = vmatprep.subr.mxu0 0.0
    %571 = vmatpush2.msra.mxu0 0.0
    %572 = vmatprep.subr.mxu0 0.0
    %573 = vmatpush2.msra.mxu0 0.0
    %574 = vmatprep.subr.mxu0 0.0
    %575 = vmatpush2.msra.mxu0 0.0
    %576 = vmatprep.subr.mxu0 0.0
    %577 = vmatpush2.msra.mxu0 0.0
    %578 = vmatprep.subr.mxu0 0.0
    %579 = vmatpush2.msra.mxu0 0.0
    %580 = vmatprep.subr.mxu0 0.0
    %581 = vmatpush2.msra.mxu0 0.0
    %582 = vmatprep.mubr.f32.mxu0 0.0
    %583 = vmatmul.mubr.f32.gmra.mxu0 %v418
    %v584 = vpop.f32.mrf.mxu0
    %v585 = vadd.f32 0.0, %v584
    %v586 = vpop.f32.mrf.mxu0
    %v587 = vadd.f32 0.0, %v586
    %588 = vmatprep.mubr.f32.mxu0 0.0
    %589 = vmatmul.mubr.f32.gmra.mxu0 %v421
    %v590 = vpop.f32.mrf.mxu0
    %v591 = vadd.f32 0.0, %v590
    %v592 = vpop.f32.mrf.mxu0
    %v593 = vadd.f32 0.0, %v592
    %594 = vmatprep.mubr.f32.mxu0 0.0
    %595 = vmatmul.mubr.f32.gmra.mxu0 %v424
    %v596 = vpop.f32.mrf.mxu0
    %v597 = vadd.f32 0.0, %v596
    %v598 = vpop.f32.mrf.mxu0
    %v599 = vadd.f32 0.0, %v598
    %600 = vmatprep.mubr.f32.mxu0 0.0
    %601 = vmatmul.mubr.f32.gmra.mxu0 %v427
    %v602 = vpop.f32.mrf.mxu0
    %v603 = vadd.f32 0.0, %v602
    %v604 = vpop.f32.mrf.mxu0
    %v605 = vadd.f32 0.0, %v604
    %606 = vdwg.mxu0
    %607 = vmatprep.subr.mxu0 0.0
    %608 = vmatpush1.msra.mxu0 0.0
    %609 = vmatprep.subr.mxu0 0.0
    %610 = vmatpush1.msra.mxu0 0.0
    %611 = vmatprep.subr.mxu0 0.0
    %612 = vmatpush1.msra.mxu0 0.0
    %613 = vmatprep.subr.mxu0 0.0
    %614 = vmatpush1.msra.mxu0 0.0
    %615 = vmatprep.subr.mxu0 0.0
    %616 = vmatpush1.msra.mxu0 0.0
    %617 = vmatprep.subr.mxu0 0.0
    %618 = vmatpush1.msra.mxu0 0.0
    %619 = vmatprep.subr.mxu0 0.0
    %620 = vmatpush1.msra.mxu0 0.0
    %621 = vmatprep.subr.mxu0 0.0
    %622 = vmatpush1.msra.mxu0 0.0
    %623 = vmatprep.subr.mxu0 0.0
    %624 = vmatpush1.msra.mxu0 0.0
    %625 = vmatprep.subr.mxu0 0.0
    %626 = vmatpush1.msra.mxu0 0.0
    %627 = vmatprep.subr.mxu0 0.0
    %628 = vmatpush1.msra.mxu0 0.0
    %629 = vmatprep.subr.mxu0 0.0
    %630 = vmatpush1.msra.mxu0 0.0
    %631 = vmatprep.subr.mxu0 0.0
    %632 = vmatpush1.msra.mxu0 0.0
    %633 = vmatprep.subr.mxu0 0.0
    %634 = vmatpush1.msra.mxu0 0.0
    %635 = vmatprep.subr.mxu0 %v410
    %636 = vmatpush1.msra.mxu0 %v409
    %637 = vmatprep.subr.mxu0 %v398
    %638 = vmatpush1.msra.mxu0 %v397
    %639 = vmatprep.subr.mxu0 0.0
    %640 = vmatpush2.msra.mxu0 0.0
    %641 = vmatprep.subr.mxu0 0.0
    %642 = vmatpush2.msra.mxu0 0.0
    %643 = vmatprep.subr.mxu0 0.0
    %644 = vmatpush2.msra.mxu0 0.0
    %645 = vmatprep.subr.mxu0 0.0
    %646 = vmatpush2.msra.mxu0 0.0
    %647 = vmatprep.subr.mxu0 0.0
    %648 = vmatpush2.msra.mxu0 0.0
    %649 = vmatprep.subr.mxu0 0.0
    %650 = vmatpush2.msra.mxu0 0.0
    %651 = vmatprep.subr.mxu0 0.0
    %652 = vmatpush2.msra.mxu0 0.0
    %653 = vmatprep.subr.mxu0 0.0
    %654 = vmatpush2.msra.mxu0 0.0
    %655 = vmatprep.subr.mxu0 0.0
    %656 = vmatpush2.msra.mxu0 0.0
    %657 = vmatprep.subr.mxu0 0.0
    %658 = vmatpush2.msra.mxu0 0.0
    %659 = vmatprep.subr.mxu0 0.0
    %660 = vmatpush2.msra.mxu0 0.0
    %661 = vmatprep.subr.mxu0 0.0
    %662 = vmatpush2.msra.mxu0 0.0
    %663 = vmatprep.subr.mxu0 0.0
    %664 = vmatpush2.msra.mxu0 0.0
    %665 = vmatprep.subr.mxu0 0.0
    %666 = vmatpush2.msra.mxu0 0.0
    %667 = vmatprep.subr.mxu0 0.0
    %668 = vmatpush2.msra.mxu0 0.0
    %669 = vmatprep.subr.mxu0 0.0
    %670 = vmatpush2.msra.mxu0 0.0
    %671 = vmatprep.mubr.f32.mxu0 0.0
    %672 = vmatmul.mubr.f32.gmra.mxu0 %v418
    %v673 = vpop.f32.mrf.mxu0
    %v674 = vadd.f32 0.0, %v673
    %v675 = vpop.f32.mrf.mxu0
    %v676 = vadd.f32 0.0, %v675
    %677 = vmatprep.mubr.f32.mxu0 0.0
    %678 = vmatmul.mubr.f32.gmra.mxu0 %v421
    %v679 = vpop.f32.mrf.mxu0
    %v680 = vadd.f32 0.0, %v679
    %v681 = vpop.f32.mrf.mxu0
    %v682 = vadd.f32 0.0, %v681
    %683 = vmatprep.mubr.f32.mxu0 0.0
    %684 = vmatmul.mubr.f32.gmra.mxu0 %v424
    %v685 = vpop.f32.mrf.mxu0
    %v686 = vadd.f32 0.0, %v685
    %v687 = vpop.f32.mrf.mxu0
    %v688 = vadd.f32 0.0, %v687
    %689 = vmatprep.mubr.f32.mxu0 0.0
    %690 = vmatmul.mubr.f32.gmra.mxu0 %v427
    %v691 = vpop.f32.mrf.mxu0
    %v692 = vadd.f32 0.0, %v691
    %v693 = vpop.f32.mrf.mxu0
    %v694 = vadd.f32 0.0, %v693
    %695 = vdwg.mxu0
    %696 = vmatprep.subr.mxu0 0.0
    %697 = vmatpush1.msra.mxu0 0.0
    %698 = vmatprep.subr.mxu0 0.0
    %699 = vmatpush1.msra.mxu0 0.0
    %700 = vmatprep.subr.mxu0 0.0
    %701 = vmatpush1.msra.mxu0 0.0
    %702 = vmatprep.subr.mxu0 0.0
    %703 = vmatpush1.msra.mxu0 0.0
    %704 = vmatprep.subr.mxu0 0.0
    %705 = vmatpush1.msra.mxu0 0.0
    %706 = vmatprep.subr.mxu0 0.0
    %707 = vmatpush1.msra.mxu0 0.0
    %708 = vmatprep.subr.mxu0 0.0
    %709 = vmatpush1.msra.mxu0 0.0
    %710 = vmatprep.subr.mxu0 0.0
    %711 = vmatpush1.msra.mxu0 0.0
    %712 = vmatprep.subr.mxu0 0.0
    %713 = vmatpush1.msra.mxu0 0.0
    %714 = vmatprep.subr.mxu0 0.0
    %715 = vmatpush1.msra.mxu0 0.0
    %716 = vmatprep.subr.mxu0 0.0
    %717 = vmatpush1.msra.mxu0 0.0
    %718 = vmatprep.subr.mxu0 0.0
    %719 = vmatpush1.msra.mxu0 0.0
    %720 = vmatprep.subr.mxu0 0.0
    %721 = vmatpush1.msra.mxu0 0.0
    %722 = vmatprep.subr.mxu0 0.0
    %723 = vmatpush1.msra.mxu0 0.0
    %724 = vmatprep.subr.mxu0 %v412
    %725 = vmatpush1.msra.mxu0 %v411
    %726 = vmatprep.subr.mxu0 %v400
    %727 = vmatpush1.msra.mxu0 %v399
    %728 = vmatprep.subr.mxu0 0.0
    %729 = vmatpush2.msra.mxu0 0.0
    %730 = vmatprep.subr.mxu0 0.0
    %731 = vmatpush2.msra.mxu0 0.0
    %732 = vmatprep.subr.mxu0 0.0
    %733 = vmatpush2.msra.mxu0 0.0
    %734 = vmatprep.subr.mxu0 0.0
    %735 = vmatpush2.msra.mxu0 0.0
    %736 = vmatprep.subr.mxu0 0.0
    %737 = vmatpush2.msra.mxu0 0.0
    %738 = vmatprep.subr.mxu0 0.0
    %739 = vmatpush2.msra.mxu0 0.0
    %740 = vmatprep.subr.mxu0 0.0
    %741 = vmatpush2.msra.mxu0 0.0
    %742 = vmatprep.subr.mxu0 0.0
    %743 = vmatpush2.msra.mxu0 0.0
    %744 = vmatprep.subr.mxu0 0.0
    %745 = vmatpush2.msra.mxu0 0.0
    %746 = vmatprep.subr.mxu0 0.0
    %747 = vmatpush2.msra.mxu0 0.0
    %748 = vmatprep.subr.mxu0 0.0
    %749 = vmatpush2.msra.mxu0 0.0
    %750 = vmatprep.subr.mxu0 0.0
    %751 = vmatpush2.msra.mxu0 0.0
    %752 = vmatprep.subr.mxu0 0.0
    %753 = vmatpush2.msra.mxu0 0.0
    %754 = vmatprep.subr.mxu0 0.0
    %755 = vmatpush2.msra.mxu0 0.0
    %756 = vmatprep.subr.mxu0 0.0
    %757 = vmatpush2.msra.mxu0 0.0
    %758 = vmatprep.subr.mxu0 0.0
    %759 = vmatpush2.msra.mxu0 0.0
    %760 = vmatprep.mubr.f32.mxu0 0.0
    %761 = vmatmul.mubr.f32.gmra.mxu0 %v418
    %v762 = vpop.f32.mrf.mxu0
    %v763 = vadd.f32 0.0, %v762
    %v764 = vpop.f32.mrf.mxu0
    %v765 = vadd.f32 0.0, %v764
    %766 = vmatprep.mubr.f32.mxu0 0.0
    %767 = vmatmul.mubr.f32.gmra.mxu0 %v421
    %v768 = vpop.f32.mrf.mxu0
    %v769 = vadd.f32 0.0, %v768
    %v770 = vpop.f32.mrf.mxu0
    %v771 = vadd.f32 0.0, %v770
    %772 = vmatprep.mubr.f32.mxu0 0.0
    %773 = vmatmul.mubr.f32.gmra.mxu0 %v424
    %v774 = vpop.f32.mrf.mxu0
    %v775 = vadd.f32 0.0, %v774
    %v776 = vpop.f32.mrf.mxu0
    %v777 = vadd.f32 0.0, %v776
    %778 = vmatprep.mubr.f32.mxu0 0.0
    %779 = vmatmul.mubr.f32.gmra.mxu0 %v427
    %v780 = vpop.f32.mrf.mxu0
    %v781 = vadd.f32 0.0, %v780
    %v782 = vpop.f32.mrf.mxu0
    %v783 = vadd.f32 0.0, %v782
    %784 = vdwg.mxu0
    %785 = vmatprep.subr.mxu0 0.0
    %786 = vmatpush1.msra.mxu0 0.0
    %787 = vmatprep.subr.mxu0 0.0
    %788 = vmatpush1.msra.mxu0 0.0
    %789 = vmatprep.subr.mxu0 0.0
    %790 = vmatpush1.msra.mxu0 0.0
    %791 = vmatprep.subr.mxu0 0.0
    %792 = vmatpush1.msra.mxu0 0.0
    %793 = vmatprep.subr.mxu0 0.0
    %794 = vmatpush1.msra.mxu0 0.0
    %795 = vmatprep.subr.mxu0 0.0
    %796 = vmatpush1.msra.mxu0 0.0
    %797 = vmatprep.subr.mxu0 0.0
    %798 = vmatpush1.msra.mxu0 0.0
    %799 = vmatprep.subr.mxu0 0.0
    %800 = vmatpush1.msra.mxu0 0.0
    %801 = vmatprep.subr.mxu0 0.0
    %802 = vmatpush1.msra.mxu0 0.0
    %803 = vmatprep.subr.mxu0 0.0
    %804 = vmatpush1.msra.mxu0 0.0
    %805 = vmatprep.subr.mxu0 0.0
    %806 = vmatpush1.msra.mxu0 0.0
    %807 = vmatprep.subr.mxu0 0.0
    %808 = vmatpush1.msra.mxu0 0.0
    %809 = vmatprep.subr.mxu0 0.0
    %810 = vmatpush1.msra.mxu0 0.0
    %811 = vmatprep.subr.mxu0 0.0
    %812 = vmatpush1.msra.mxu0 0.0
    %813 = vmatprep.subr.mxu0 %v414
    %814 = vmatpush1.msra.mxu0 %v413
    %815 = vmatprep.subr.mxu0 %v402
    %816 = vmatpush1.msra.mxu0 %v401
    %817 = vmatprep.subr.mxu0 0.0
    %818 = vmatpush2.msra.mxu0 0.0
    %819 = vmatprep.subr.mxu0 0.0
    %820 = vmatpush2.msra.mxu0 0.0
    %821 = vmatprep.subr.mxu0 0.0
    %822 = vmatpush2.msra.mxu0 0.0
    %823 = vmatprep.subr.mxu0 0.0
    %824 = vmatpush2.msra.mxu0 0.0
    %825 = vmatprep.subr.mxu0 0.0
    %826 = vmatpush2.msra.mxu0 0.0
    %827 = vmatprep.subr.mxu0 0.0
    %828 = vmatpush2.msra.mxu0 0.0
    %829 = vmatprep.subr.mxu0 0.0
    %830 = vmatpush2.msra.mxu0 0.0
    %831 = vmatprep.subr.mxu0 0.0
    %832 = vmatpush2.msra.mxu0 0.0
    %833 = vmatprep.subr.mxu0 0.0
    %834 = vmatpush2.msra.mxu0 0.0
    %835 = vmatprep.subr.mxu0 0.0
    %836 = vmatpush2.msra.mxu0 0.0
    %837 = vmatprep.subr.mxu0 0.0
    %838 = vmatpush2.msra.mxu0 0.0
    %839 = vmatprep.subr.mxu0 0.0
    %840 = vmatpush2.msra.mxu0 0.0
    %841 = vmatprep.subr.mxu0 0.0
    %842 = vmatpush2.msra.mxu0 0.0
    %843 = vmatprep.subr.mxu0 0.0
    %844 = vmatpush2.msra.mxu0 0.0
    %845 = vmatprep.subr.mxu0 0.0
    %846 = vmatpush2.msra.mxu0 0.0
    %847 = vmatprep.subr.mxu0 0.0
    %848 = vmatpush2.msra.mxu0 0.0
    %849 = vmatprep.mubr.f32.mxu0 0.0
    %850 = vmatmul.mubr.f32.gmra.mxu0 %v418
    %v851 = vpop.f32.mrf.mxu0
    %v852 = vadd.f32 0.0, %v851
    %v853 = vpop.f32.mrf.mxu0
    %v854 = vadd.f32 0.0, %v853
    %855 = vmatprep.mubr.f32.mxu0 0.0
    %856 = vmatmul.mubr.f32.gmra.mxu0 %v421
    %v857 = vpop.f32.mrf.mxu0
    %v858 = vadd.f32 0.0, %v857
    %v859 = vpop.f32.mrf.mxu0
    %v860 = vadd.f32 0.0, %v859
    %861 = vmatprep.mubr.f32.mxu0 0.0
    %862 = vmatmul.mubr.f32.gmra.mxu0 %v424
    %v863 = vpop.f32.mrf.mxu0
    %v864 = vadd.f32 0.0, %v863
    %v865 = vpop.f32.mrf.mxu0
    %v866 = vadd.f32 0.0, %v865
    %867 = vmatprep.mubr.f32.mxu0 0.0
    %868 = vmatmul.mubr.f32.gmra.mxu0 %v427
    %v869 = vpop.f32.mrf.mxu0
    %v870 = vadd.f32 0.0, %v869
    %v871 = vpop.f32.mrf.mxu0
    %v872 = vadd.f32 0.0, %v871
    %873 = vdwg.mxu0
    %874 = vmatprep.subr.mxu0 0.0
    %875 = vmatpush1.msra.mxu0 0.0
    %876 = vmatprep.subr.mxu0 0.0
    %877 = vmatpush1.msra.mxu0 0.0
    %878 = vmatprep.subr.mxu0 0.0
    %879 = vmatpush1.msra.mxu0 0.0
    %880 = vmatprep.subr.mxu0 0.0
    %881 = vmatpush1.msra.mxu0 0.0
    %882 = vmatprep.subr.mxu0 0.0
    %883 = vmatpush1.msra.mxu0 0.0
    %884 = vmatprep.subr.mxu0 0.0
    %885 = vmatpush1.msra.mxu0 0.0
    %886 = vmatprep.subr.mxu0 0.0
    %887 = vmatpush1.msra.mxu0 0.0
    %888 = vmatprep.subr.mxu0 0.0
    %889 = vmatpush1.msra.mxu0 0.0
    %890 = vmatprep.subr.mxu0 0.0
    %891 = vmatpush1.msra.mxu0 0.0
    %892 = vmatprep.subr.mxu0 0.0
    %893 = vmatpush1.msra.mxu0 0.0
    %894 = vmatprep.subr.mxu0 0.0
    %895 = vmatpush1.msra.mxu0 0.0
    %896 = vmatprep.subr.mxu0 0.0
    %897 = vmatpush1.msra.mxu0 0.0
    %898 = vmatprep.subr.mxu0 0.0
    %899 = vmatpush1.msra.mxu0 0.0
    %900 = vmatprep.subr.mxu0 0.0
    %901 = vmatpush1.msra.mxu0 0.0
    %902 = vmatprep.subr.mxu0 %v416
    %903 = vmatpush1.msra.mxu0 %v415
    %904 = vmatprep.subr.mxu0 %v404
    %905 = vmatpush1.msra.mxu0 %v403
    %906 = vmatprep.subr.mxu0 0.0
    %907 = vmatpush2.msra.mxu0 0.0
    %908 = vmatprep.subr.mxu0 0.0
    %909 = vmatpush2.msra.mxu0 0.0
    %910 = vmatprep.subr.mxu0 0.0
    %911 = vmatpush2.msra.mxu0 0.0
    %912 = vmatprep.subr.mxu0 0.0
    %913 = vmatpush2.msra.mxu0 0.0
    %914 = vmatprep.subr.mxu0 0.0
    %915 = vmatpush2.msra.mxu0 0.0
    %916 = vmatprep.subr.mxu0 0.0
    %917 = vmatpush2.msra.mxu0 0.0
    %918 = vmatprep.subr.mxu0 0.0
    %919 = vmatpush2.msra.mxu0 0.0
    %920 = vmatprep.subr.mxu0 0.0
    %921 = vmatpush2.msra.mxu0 0.0
    %922 = vmatprep.subr.mxu0 0.0
    %923 = vmatpush2.msra.mxu0 0.0
    %924 = vmatprep.subr.mxu0 0.0
    %925 = vmatpush2.msra.mxu0 0.0
    %926 = vmatprep.subr.mxu0 0.0
    %927 = vmatpush2.msra.mxu0 0.0
    %928 = vmatprep.subr.mxu0 0.0
    %929 = vmatpush2.msra.mxu0 0.0
    %930 = vmatprep.subr.mxu0 0.0
    %931 = vmatpush2.msra.mxu0 0.0
    %932 = vmatprep.subr.mxu0 0.0
    %933 = vmatpush2.msra.mxu0 0.0
    %934 = vmatprep.subr.mxu0 0.0
    %935 = vmatpush2.msra.mxu0 0.0
    %936 = vmatprep.subr.mxu0 0.0
    %937 = vmatpush2.msra.mxu0 0.0
    %938 = vmatprep.mubr.f32.mxu0 0.0
    %939 = vmatmul.mubr.f32.gmra.mxu0 %v418
    %v940 = vpop.f32.mrf.mxu0
    %v941 = vadd.f32 0.0, %v940
    %v942 = vpop.f32.mrf.mxu0
    %v943 = vadd.f32 0.0, %v942
    %944 = vmatprep.mubr.f32.mxu0 0.0
    %945 = vmatmul.mubr.f32.gmra.mxu0 %v421
    %v946 = vpop.f32.mrf.mxu0
    %v947 = vadd.f32 0.0, %v946
    %v948 = vpop.f32.mrf.mxu0
    %v949 = vadd.f32 0.0, %v948
    %950 = vmatprep.mubr.f32.mxu0 0.0
    %951 = vmatmul.mubr.f32.gmra.mxu0 %v424
    %v952 = vpop.f32.mrf.mxu0
    %v953 = vadd.f32 0.0, %v952
    %v954 = vpop.f32.mrf.mxu0
    %v955 = vadd.f32 0.0, %v954
    %956 = vmatprep.mubr.f32.mxu0 0.0
    %957 = vmatmul.mubr.f32.gmra.mxu0 %v427
    %v958 = vpop.f32.mrf.mxu0
    %v959 = vadd.f32 0.0, %v958
    %v960 = vpop.f32.mrf.mxu0
    %v961 = vadd.f32 0.0, %v960
    %962 = vdwg.mxu0
    %v963 = vld [vmem:[%s1] sm:$0xff]
    %v964 = vld [vmem:[%s1 + $0x8] sm:$0xff]
    %v965 = vld [vmem:[%s1 + $0x10] sm:$0xff]
    %v966 = vld [vmem:[%s1 + $0x18] sm:$0xff]
    %v967 = vld [vmem:[%s1 + $0x20] sm:$0xff]
    %v968 = vld [vmem:[%s1 + $0x28] sm:$0xff]
    %v969 = vld [vmem:[%s1 + $0x30] sm:$0xff]
    %v970 = vld [vmem:[%s1 + $0x38] sm:$0xff]
    %v971 = vld [vmem:[%s1 + $0x40] sm:$0xff]
    %v972 = vld [vmem:[%s1 + $0x48] sm:$0xff]
    %v973 = vld [vmem:[%s1 + $0x50] sm:$0xff]
    %v974 = vld [vmem:[%s1 + $0x58] sm:$0xff]
    %v975 = vld [vmem:[%s1 + $0x60] sm:$0xff]
    %v976 = vld [vmem:[%s1 + $0x68] sm:$0xff]
    %v977 = vld [vmem:[%s1 + $0x70] sm:$0xff]
    %v978 = vld [vmem:[%s1 + $0x78] sm:$0xff]
    %979 = vmatprep.subr.mxu0 0.0
    %980 = vmatpush1.xpose.msra.mxu0 %v783
    %981 = vmatprep.subr.mxu0 0.0
    %982 = vmatpush1.xpose.msra.mxu0 %v777
    %983 = vmatprep.subr.mxu0 0.0
    %984 = vmatpush1.xpose.msra.mxu0 %v771
    %985 = vmatprep.subr.mxu0 0.0
    %986 = vmatpush1.xpose.msra.mxu0 %v765
    %987 = vmatprep.subr.mxu0 0.0
    %988 = vmatpush1.xpose.msra.mxu0 %v781
    %989 = vmatprep.subr.mxu0 0.0
    %990 = vmatpush1.xpose.msra.mxu0 %v775
    %991 = vmatprep.subr.mxu0 0.0
    %992 = vmatpush1.xpose.msra.mxu0 %v769
    %993 = vmatprep.subr.mxu0 0.0
    %994 = vmatpush1.xpose.msra.mxu0 %v763
    %995 = vmatprep.subr.mxu0 0.0
    %996 = vmatpush1.xpose.msra.mxu0 %v694
    %997 = vmatprep.subr.mxu0 0.0
    %998 = vmatpush1.xpose.msra.mxu0 %v688
    %999 = vmatprep.subr.mxu0 0.0
    %1000 = vmatpush1.xpose.msra.mxu0 %v682
    %1001 = vmatprep.subr.mxu0 0.0
    %1002 = vmatpush1.xpose.msra.mxu0 %v676
    %1003 = vmatprep.subr.mxu0 0.0
    %1004 = vmatpush1.xpose.msra.mxu0 %v692
    %1005 = vmatprep.subr.mxu0 0.0
    %1006 = vmatpush1.xpose.msra.mxu0 %v686
    %1007 = vmatprep.subr.mxu0 0.0
    %1008 = vmatpush1.xpose.msra.mxu0 %v680
    %1009 = vmatprep.subr.mxu0 0.0
    %1010 = vmatpush1.xpose.msra.mxu0 %v674
    %1011 = vmatprep.subr.mxu0 0.0
    %1012 = vmatpush2.xpose.msra.mxu0 0.0
    %1013 = vmatprep.subr.mxu0 0.0
    %1014 = vmatpush2.xpose.msra.mxu0 0.0
    %1015 = vmatprep.subr.mxu0 0.0
    %1016 = vmatpush2.xpose.msra.mxu0 0.0
    %1017 = vmatprep.subr.mxu0 0.0
    %1018 = vmatpush2.xpose.msra.mxu0 0.0
    %1019 = vmatprep.subr.mxu0 0.0
    %1020 = vmatpush2.xpose.msra.mxu0 0.0
    %1021 = vmatprep.subr.mxu0 0.0
    %1022 = vmatpush2.xpose.msra.mxu0 0.0
    %1023 = vmatprep.subr.mxu0 0.0
    %1024 = vmatpush2.xpose.msra.mxu0 0.0
    %1025 = vmatprep.subr.mxu0 0.0
    %1026 = vmatpush2.xpose.msra.mxu0 0.0
    %1027 = vmatprep.subr.mxu0 0.0
    %1028 = vmatpush2.xpose.msra.mxu0 0.0
    %1029 = vmatprep.subr.mxu0 0.0
    %1030 = vmatpush2.xpose.msra.mxu0 0.0
    %1031 = vmatprep.subr.mxu0 0.0
    %1032 = vmatpush2.xpose.msra.mxu0 0.0
    %1033 = vmatprep.subr.mxu0 0.0
    %1034 = vmatpush2.xpose.msra.mxu0 0.0
    %1035 = vmatprep.subr.mxu0 0.0
    %1036 = vmatpush2.xpose.msra.mxu0 0.0
    %1037 = vmatprep.subr.mxu0 0.0
    %1038 = vmatpush2.xpose.msra.mxu0 0.0
    %1039 = vmatprep.subr.mxu0 0.0
    %1040 = vmatpush2.xpose.msra.mxu0 0.0
    %1041 = vmatprep.subr.mxu0 0.0
    %1042 = vmatpush2.xpose.msra.mxu0 0.0
    %1043 = vmatprep.mubr.f32.mxu0 0.0
    %1044 = vmatmul.mubr.f32.gmra.mxu0 %v496
    %v1045 = vpop.f32.mrf.mxu0
    %v1046 = vadd.f32 %v963, %v1045
    %v1047 = vpop.f32.mrf.mxu0
    %1048 = vmatprep.mubr.f32.mxu0 0.0
    %1049 = vmatmul.mubr.f32.gmra.mxu0 %v502
    %v1050 = vpop.f32.mrf.mxu0
    %v1051 = vadd.f32 %v964, %v1050
    %v1052 = vpop.f32.mrf.mxu0
    %1053 = vmatprep.mubr.f32.mxu0 0.0
    %1054 = vmatmul.mubr.f32.gmra.mxu0 %v508
    %v1055 = vpop.f32.mrf.mxu0
    %v1056 = vadd.f32 %v965, %v1055
    %v1057 = vpop.f32.mrf.mxu0
    %1058 = vmatprep.mubr.f32.mxu0 0.0
    %1059 = vmatmul.mubr.f32.gmra.mxu0 %v514
    %v1060 = vpop.f32.mrf.mxu0
    %v1061 = vadd.f32 %v966, %v1060
    %v1062 = vpop.f32.mrf.mxu0
    %1063 = vmatprep.mubr.f32.mxu0 0.0
    %1064 = vmatmul.mubr.f32.gmra.mxu0 %v498
    %v1065 = vpop.f32.mrf.mxu0
    %v1066 = vadd.f32 %v967, %v1065
    %v1067 = vpop.f32.mrf.mxu0
    %1068 = vmatprep.mubr.f32.mxu0 0.0
    %1069 = vmatmul.mubr.f32.gmra.mxu0 %v504
    %v1070 = vpop.f32.mrf.mxu0
    %v1071 = vadd.f32 %v968, %v1070
    %v1072 = vpop.f32.mrf.mxu0
    %1073 = vmatprep.mubr.f32.mxu0 0.0
    %1074 = vmatmul.mubr.f32.gmra.mxu0 %v510
    %v1075 = vpop.f32.mrf.mxu0
    %v1076 = vadd.f32 %v969, %v1075
    %v1077 = vpop.f32.mrf.mxu0
    %1078 = vmatprep.mubr.f32.mxu0 0.0
    %1079 = vmatmul.mubr.f32.gmra.mxu0 %v516
    %v1080 = vpop.f32.mrf.mxu0
    %v1081 = vadd.f32 %v970, %v1080
    %v1082 = vpop.f32.mrf.mxu0
    %1083 = vmatprep.mubr.f32.mxu0 0.0
    %1084 = vmatmul.mubr.f32.gmra.mxu0 %v585
    %v1085 = vpop.f32.mrf.mxu0
    %v1086 = vadd.f32 %v971, %v1085
    %v1087 = vpop.f32.mrf.mxu0
    %1088 = vmatprep.mubr.f32.mxu0 0.0
    %1089 = vmatmul.mubr.f32.gmra.mxu0 %v591
    %v1090 = vpop.f32.mrf.mxu0
    %v1091 = vadd.f32 %v972, %v1090
    %v1092 = vpop.f32.mrf.mxu0
    %1093 = vmatprep.mubr.f32.mxu0 0.0
    %1094 = vmatmul.mubr.f32.gmra.mxu0 %v597
    %v1095 = vpop.f32.mrf.mxu0
    %v1096 = vadd.f32 %v973, %v1095
    %v1097 = vpop.f32.mrf.mxu0
    %1098 = vmatprep.mubr.f32.mxu0 0.0
    %1099 = vmatmul.mubr.f32.gmra.mxu0 %v603
    %v1100 = vpop.f32.mrf.mxu0
    %v1101 = vadd.f32 %v974, %v1100
    %v1102 = vpop.f32.mrf.mxu0
    %1103 = vmatprep.mubr.f32.mxu0 0.0
    %1104 = vmatmul.mubr.f32.gmra.mxu0 %v587
    %v1105 = vpop.f32.mrf.mxu0
    %v1106 = vadd.f32 %v975, %v1105
    %v1107 = vpop.f32.mrf.mxu0
    %1108 = vmatprep.mubr.f32.mxu0 0.0
    %1109 = vmatmul.mubr.f32.gmra.mxu0 %v593
    %v1110 = vpop.f32.mrf.mxu0
    %v1111 = vadd.f32 %v976, %v1110
    %v1112 = vpop.f32.mrf.mxu0
    %1113 = vmatprep.mubr.f32.mxu0 0.0
    %1114 = vmatmul.mubr.f32.gmra.mxu0 %v599
    %v1115 = vpop.f32.mrf.mxu0
    %v1116 = vadd.f32 %v977, %v1115
    %v1117 = vpop.f32.mrf.mxu0
    %1118 = vmatprep.mubr.f32.mxu0 0.0
    %1119 = vmatmul.mubr.f32.gmra.mxu0 %v605
    %v1120 = vpop.f32.mrf.mxu0
    %v1121 = vadd.f32 %v978, %v1120
    %v1122 = vpop.f32.mrf.mxu0
    %1123 = vdwg.mxu0
    %1124 = vmax.xlane.f32.xlu0 %v1046
    %v1125 = vpop.xlane.xlu0 %1124
    %1126 = vmax.xlane.f32.xlu0 %v1051
    %v1127 = vpop.xlane.xlu0 %1126
    %1128 = vmax.xlane.f32.xlu0 %v1056
    %v1129 = vpop.xlane.xlu0 %1128
    %1130 = vmax.xlane.f32.xlu0 %v1061
    %v1131 = vpop.xlane.xlu0 %1130
    %1132 = vmax.xlane.f32.xlu0 %v1066
    %v1133 = vpop.xlane.xlu0 %1132
    %1134 = vmax.xlane.f32.xlu0 %v1071
    %v1135 = vpop.xlane.xlu0 %1134
    %1136 = vmax.xlane.f32.xlu0 %v1076
    %v1137 = vpop.xlane.xlu0 %1136
    %1138 = vmax.xlane.f32.xlu0 %v1081
    %v1139 = vpop.xlane.xlu0 %1138
    %1140 = vmax.xlane.f32.xlu0 %v1086
    %v1141 = vpop.xlane.xlu0 %1140
    %1142 = vmax.xlane.f32.xlu0 %v1091
    %v1143 = vpop.xlane.xlu0 %1142
    %1144 = vmax.xlane.f32.xlu0 %v1096
    %v1145 = vpop.xlane.xlu0 %1144
    %1146 = vmax.xlane.f32.xlu0 %v1101
    %v1147 = vpop.xlane.xlu0 %1146
    %1148 = vmax.xlane.f32.xlu0 %v1106
    %v1149 = vpop.xlane.xlu0 %1148
    %1150 = vmax.xlane.f32.xlu0 %v1111
    %v1151 = vpop.xlane.xlu0 %1150
    %1152 = vmax.xlane.f32.xlu0 %v1116
    %v1153 = vpop.xlane.xlu0 %1152
    %1154 = vmax.xlane.f32.xlu0 %v1121
    %v1155 = vpop.xlane.xlu0 %1154
    %v1156 = vsub.f32 %v1046, %v1125
    %v1157 = vsub.f32 %v1051, %v1127
    %v1158 = vsub.f32 %v1056, %v1129
    %v1159 = vsub.f32 %v1061, %v1131
    %v1160 = vsub.f32 %v1066, %v1133
    %v1161 = vsub.f32 %v1071, %v1135
    %v1162 = vsub.f32 %v1076, %v1137
    %v1163 = vsub.f32 %v1081, %v1139
    %v1164 = vsub.f32 %v1086, %v1141
    %v1165 = vsub.f32 %v1091, %v1143
    %v1166 = vsub.f32 %v1096, %v1145
    %v1167 = vsub.f32 %v1101, %v1147
    %v1168 = vsub.f32 %v1106, %v1149
    %v1169 = vsub.f32 %v1111, %v1151
    %v1170 = vsub.f32 %v1116, %v1153
    %v1171 = vsub.f32 %v1121, %v1155
    %v1172 = vmul.f32 %v1156, 1.442695
    %v1173 = vpow.pop %v1172
    %v1174 = vmul.f32 %v1157, 1.442695
    %v1175 = vpow.pop %v1174
    %v1176 = vmul.f32 %v1158, 1.442695
    %v1177 = vpow.pop %v1176
    %v1178 = vmul.f32 %v1159, 1.442695
    %v1179 = vpow.pop %v1178
    %v1180 = vmul.f32 %v1160, 1.442695
    %v1181 = vpow.pop %v1180
    %v1182 = vmul.f32 %v1161, 1.442695
    %v1183 = vpow.pop %v1182
    %v1184 = vmul.f32 %v1162, 1.442695
    %v1185 = vpow.pop %v1184
    %v1186 = vmul.f32 %v1163, 1.442695
    %v1187 = vpow.pop %v1186
    %v1188 = vmul.f32 %v1164, 1.442695
    %v1189 = vpow.pop %v1188
    %v1190 = vmul.f32 %v1165, 1.442695
    %v1191 = vpow.pop %v1190
    %v1192 = vmul.f32 %v1166, 1.442695
    %v1193 = vpow.pop %v1192
    %v1194 = vmul.f32 %v1167, 1.442695
    %v1195 = vpow.pop %v1194
    %v1196 = vmul.f32 %v1168, 1.442695
    %v1197 = vpow.pop %v1196
    %v1198 = vmul.f32 %v1169, 1.442695
    %v1199 = vpow.pop %v1198
    %v1200 = vmul.f32 %v1170, 1.442695
    %v1201 = vpow.pop %v1200
    %v1202 = vmul.f32 %v1171, 1.442695
    %v1203 = vpow.pop %v1202
    %1204 = vadd.xlane.f32.xlu0 %v1173
    %v1205 = vpop.xlane.xlu0 %1204
    %1206 = vadd.xlane.f32.xlu0 %v1175
    %v1207 = vpop.xlane.xlu0 %1206
    %1208 = vadd.xlane.f32.xlu0 %v1177
    %v1209 = vpop.xlane.xlu0 %1208
    %1210 = vadd.xlane.f32.xlu0 %v1179
    %v1211 = vpop.xlane.xlu0 %1210
    %1212 = vadd.xlane.f32.xlu0 %v1181
    %v1213 = vpop.xlane.xlu0 %1212
    %1214 = vadd.xlane.f32.xlu0 %v1183
    %v1215 = vpop.xlane.xlu0 %1214
    %1216 = vadd.xlane.f32.xlu0 %v1185
    %v1217 = vpop.xlane.xlu0 %1216
    %1218 = vadd.xlane.f32.xlu0 %v1187
    %v1219 = vpop.xlane.xlu0 %1218
    %1220 = vadd.xlane.f32.xlu0 %v1189
    %v1221 = vpop.xlane.xlu0 %1220
    %1222 = vadd.xlane.f32.xlu0 %v1191
    %v1223 = vpop.xlane.xlu0 %1222
    %1224 = vadd.xlane.f32.xlu0 %v1193
    %v1225 = vpop.xlane.xlu0 %1224
    %1226 = vadd.xlane.f32.xlu0 %v1195
    %v1227 = vpop.xlane.xlu0 %1226
    %1228 = vadd.xlane.f32.xlu0 %v1197
    %v1229 = vpop.xlane.xlu0 %1228
    %1230 = vadd.xlane.f32.xlu0 %v1199
    %v1231 = vpop.xlane.xlu0 %1230
    %1232 = vadd.xlane.f32.xlu0 %v1201
    %v1233 = vpop.xlane.xlu0 %1232
    %1234 = vadd.xlane.f32.xlu0 %v1203
    %v1235 = vpop.xlane.xlu0 %1234
    %v1236 = vrcp.pop %v1205
    %v1237 = vrcp.pop %v1207
    %v1238 = vrcp.pop %v1209
    %v1239 = vrcp.pop %v1211
    %v1240 = vrcp.pop %v1213
    %v1241 = vrcp.pop %v1215
    %v1242 = vrcp.pop %v1217
    %v1243 = vrcp.pop %v1219
    %v1244 = vrcp.pop %v1221
    %v1245 = vrcp.pop %v1223
    %v1246 = vrcp.pop %v1225
    %v1247 = vrcp.pop %v1227
    %v1248 = vrcp.pop %v1229
    %v1249 = vrcp.pop %v1231
    %v1250 = vrcp.pop %v1233
    %v1251 = vrcp.pop %v1235
    %v1252 = vmul.f32 %v1173, %v1236
    %v1253 = vmul.f32 %v1175, %v1237
    %v1254 = vmul.f32 %v1177, %v1238
    %v1255 = vmul.f32 %v1179, %v1239
    %v1256 = vmul.f32 %v1181, %v1240
    %v1257 = vmul.f32 %v1183, %v1241
    %v1258 = vmul.f32 %v1185, %v1242
    %v1259 = vmul.f32 %v1187, %v1243
    %v1260 = vmul.f32 %v1189, %v1244
    %v1261 = vmul.f32 %v1191, %v1245
    %v1262 = vmul.f32 %v1193, %v1246
    %v1263 = vmul.f32 %v1195, %v1247
    %v1264 = vmul.f32 %v1197, %v1248
    %v1265 = vmul.f32 %v1199, %v1249
    %v1266 = vmul.f32 %v1201, %v1250
    %v1267 = vmul.f32 %v1203, %v1251
    %1268 = vmatprep.subr.mxu0 0.0
    %1269 = vmatpush1.msra.mxu0 %v961
    %1270 = vmatprep.subr.mxu0 0.0
    %1271 = vmatpush1.msra.mxu0 %v955
    %1272 = vmatprep.subr.mxu0 0.0
    %1273 = vmatpush1.msra.mxu0 %v949
    %1274 = vmatprep.subr.mxu0 0.0
    %1275 = vmatpush1.msra.mxu0 %v943
    %1276 = vmatprep.subr.mxu0 0.0
    %1277 = vmatpush1.msra.mxu0 %v959
    %1278 = vmatprep.subr.mxu0 0.0
    %1279 = vmatpush1.msra.mxu0 %v953
    %1280 = vmatprep.subr.mxu0 0.0
    %1281 = vmatpush1.msra.mxu0 %v947
    %1282 = vmatprep.subr.mxu0 0.0
    %1283 = vmatpush1.msra.mxu0 %v941
    %1284 = vmatprep.subr.mxu0 0.0
    %1285 = vmatpush1.msra.mxu0 %v872
    %1286 = vmatprep.subr.mxu0 0.0
    %1287 = vmatpush1.msra.mxu0 %v866
    %1288 = vmatprep.subr.mxu0 0.0
    %1289 = vmatpush1.msra.mxu0 %v860
    %1290 = vmatprep.subr.mxu0 0.0
    %1291 = vmatpush1.msra.mxu0 %v854
    %1292 = vmatprep.subr.mxu0 0.0
    %1293 = vmatpush1.msra.mxu0 %v870
    %1294 = vmatprep.subr.mxu0 0.0
    %1295 = vmatpush1.msra.mxu0 %v864
    %1296 = vmatprep.subr.mxu0 0.0
    %1297 = vmatpush1.msra.mxu0 %v858
    %1298 = vmatprep.subr.mxu0 0.0
    %1299 = vmatpush1.msra.mxu0 %v852
    %1300 = vmatprep.subr.mxu0 0.0
    %1301 = vmatpush2.msra.mxu0 0.0
    %1302 = vmatprep.subr.mxu0 0.0
    %1303 = vmatpush2.msra.mxu0 0.0
    %1304 = vmatprep.subr.mxu0 0.0
    %1305 = vmatpush2.msra.mxu0 0.0
    %1306 = vmatprep.subr.mxu0 0.0
    %1307 = vmatpush2.msra.mxu0 0.0
    %1308 = vmatprep.subr.mxu0 0.0
    %1309 = vmatpush2.msra.mxu0 0.0
    %1310 = vmatprep.subr.mxu0 0.0
    %1311 = vmatpush2.msra.mxu0 0.0
    %1312 = vmatprep.subr.mxu0 0.0
    %1313 = vmatpush2.msra.mxu0 0.0
    %1314 = vmatprep.subr.mxu0 0.0
    %1315 = vmatpush2.msra.mxu0 0.0
    %1316 = vmatprep.subr.mxu0 0.0
    %1317 = vmatpush2.msra.mxu0 0.0
    %1318 = vmatprep.subr.mxu0 0.0
    %1319 = vmatpush2.msra.mxu0 0.0
    %1320 = vmatprep.subr.mxu0 0.0
    %1321 = vmatpush2.msra.mxu0 0.0
    %1322 = vmatprep.subr.mxu0 0.0
    %1323 = vmatpush2.msra.mxu0 0.0
    %1324 = vmatprep.subr.mxu0 0.0
    %1325 = vmatpush2.msra.mxu0 0.0
    %1326 = vmatprep.subr.mxu0 0.0
    %1327 = vmatpush2.msra.mxu0 0.0
    %1328 = vmatprep.subr.mxu0 0.0
    %1329 = vmatpush2.msra.mxu0 0.0
    %1330 = vmatprep.subr.mxu0 0.0
    %1331 = vmatpush2.msra.mxu0 0.0
    %1332 = vmatprep.mubr.f32.mxu0 0.0
    %1333 = vmatmul.mubr.f32.gmra.mxu0 %v1252
    %v1334 = vpop.f32.mrf.mxu0
    %v1335 = vadd.f32 0.0, %v1334
    %v1336 = vpop.f32.mrf.mxu0
    %1337 = vmatprep.mubr.f32.mxu0 0.0
    %1338 = vmatmul.mubr.f32.gmra.mxu0 %v1253
    %v1339 = vpop.f32.mrf.mxu0
    %v1340 = vadd.f32 0.0, %v1339
    %v1341 = vpop.f32.mrf.mxu0
    %1342 = vmatprep.mubr.f32.mxu0 0.0
    %1343 = vmatmul.mubr.f32.gmra.mxu0 %v1254
    %v1344 = vpop.f32.mrf.mxu0
    %v1345 = vadd.f32 0.0, %v1344
    %v1346 = vpop.f32.mrf.mxu0
    %1347 = vmatprep.mubr.f32.mxu0 0.0
    %1348 = vmatmul.mubr.f32.gmra.mxu0 %v1255
    %v1349 = vpop.f32.mrf.mxu0
    %v1350 = vadd.f32 0.0, %v1349
    %v1351 = vpop.f32.mrf.mxu0
    %1352 = vmatprep.mubr.f32.mxu0 0.0
    %1353 = vmatmul.mubr.f32.gmra.mxu0 %v1256
    %v1354 = vpop.f32.mrf.mxu0
    %v1355 = vadd.f32 0.0, %v1354
    %v1356 = vpop.f32.mrf.mxu0
    %1357 = vmatprep.mubr.f32.mxu0 0.0
    %1358 = vmatmul.mubr.f32.gmra.mxu0 %v1257
    %v1359 = vpop.f32.mrf.mxu0
    %v1360 = vadd.f32 0.0, %v1359
    %v1361 = vpop.f32.mrf.mxu0
    %1362 = vmatprep.mubr.f32.mxu0 0.0
    %1363 = vmatmul.mubr.f32.gmra.mxu0 %v1258
    %v1364 = vpop.f32.mrf.mxu0
    %v1365 = vadd.f32 0.0, %v1364
    %v1366 = vpop.f32.mrf.mxu0
    %1367 = vmatprep.mubr.f32.mxu0 0.0
    %1368 = vmatmul.mubr.f32.gmra.mxu0 %v1259
    %v1369 = vpop.f32.mrf.mxu0
    %v1370 = vadd.f32 0.0, %v1369
    %v1371 = vpop.f32.mrf.mxu0
    %1372 = vmatprep.mubr.f32.mxu0 0.0
    %1373 = vmatmul.mubr.f32.gmra.mxu0 %v1260
    %v1374 = vpop.f32.mrf.mxu0
    %v1375 = vadd.f32 0.0, %v1374
    %v1376 = vpop.f32.mrf.mxu0
    %1377 = vmatprep.mubr.f32.mxu0 0.0
    %1378 = vmatmul.mubr.f32.gmra.mxu0 %v1261
    %v1379 = vpop.f32.mrf.mxu0
    %v1380 = vadd.f32 0.0, %v1379
    %v1381 = vpop.f32.mrf.mxu0
    %1382 = vmatprep.mubr.f32.mxu0 0.0
    %1383 = vmatmul.mubr.f32.gmra.mxu0 %v1262
    %v1384 = vpop.f32.mrf.mxu0
    %v1385 = vadd.f32 0.0, %v1384
    %v1386 = vpop.f32.mrf.mxu0
    %1387 = vmatprep.mubr.f32.mxu0 0.0
    %1388 = vmatmul.mubr.f32.gmra.mxu0 %v1263
    %v1389 = vpop.f32.mrf.mxu0
    %v1390 = vadd.f32 0.0, %v1389
    %v1391 = vpop.f32.mrf.mxu0
    %1392 = vmatprep.mubr.f32.mxu0 0.0
    %1393 = vmatmul.mubr.f32.gmra.mxu0 %v1264
    %v1394 = vpop.f32.mrf.mxu0
    %v1395 = vadd.f32 0.0, %v1394
    %v1396 = vpop.f32.mrf.mxu0
    %1397 = vmatprep.mubr.f32.mxu0 0.0
    %1398 = vmatmul.mubr.f32.gmra.mxu0 %v1265
    %v1399 = vpop.f32.mrf.mxu0
    %v1400 = vadd.f32 0.0, %v1399
    %v1401 = vpop.f32.mrf.mxu0
    %1402 = vmatprep.mubr.f32.mxu0 0.0
    %1403 = vmatmul.mubr.f32.gmra.mxu0 %v1266
    %v1404 = vpop.f32.mrf.mxu0
    %v1405 = vadd.f32 0.0, %v1404
    %v1406 = vpop.f32.mrf.mxu0
    %1407 = vmatprep.mubr.f32.mxu0 0.0
    %1408 = vmatmul.mubr.f32.gmra.mxu0 %v1267
    %v1409 = vpop.f32.mrf.mxu0
    %v1410 = vadd.f32 0.0, %v1409
    %v1411 = vpop.f32.mrf.mxu0
    %1412 = vdwg.mxu0
    %v1413 = vld [vmem:[%s5] sm:$0xff]
    %v1414 = vld [vmem:[%s5 + $0x8] sm:$0xff]
    %v1415 = vld [vmem:[%s5 + $0x10] sm:$0xff]
    %v1416 = vld [vmem:[%s5 + $0x18] sm:$0xff]
    %v1417 = vld [vmem:[%s5 + $0x20] sm:$0xff]
    %v1418 = vld [vmem:[%s5 + $0x28] sm:$0xff]
    %v1419 = vld [vmem:[%s5 + $0x30] sm:$0xff]
    %v1420 = vld [vmem:[%s5 + $0x38] sm:$0xff]
    %v1421 = vld [vmem:[%s5 + $0x40] sm:$0xff]
    %v1422 = vld [vmem:[%s5 + $0x48] sm:$0xff]
    %v1423 = vld [vmem:[%s5 + $0x50] sm:$0xff]
    %v1424 = vld [vmem:[%s5 + $0x58] sm:$0xff]
    %v1425 = vld [vmem:[%s5 + $0x60] sm:$0xff]
    %v1426 = vld [vmem:[%s5 + $0x68] sm:$0xff]
    %v1427 = vld [vmem:[%s5 + $0x70] sm:$0xff]
    %v1428 = vld [vmem:[%s5 + $0x78] sm:$0xff]
    %v1429 = vld [vmem:[%s5 + $0x80] sm:$0xff]
    %v1430 = vld [vmem:[%s5 + $0x88] sm:$0xff]
    %v1431 = vld [vmem:[%s5 + $0x90] sm:$0xff]
    %v1432 = vld [vmem:[%s5 + $0x98] sm:$0xff]
    %v1433 = vld [vmem:[%s5 + $0xa0] sm:$0xff]
    %v1434 = vld [vmem:[%s5 + $0xa8] sm:$0xff]
    %v1435 = vld [vmem:[%s5 + $0xb0] sm:$0xff]
    %v1436 = vld [vmem:[%s5 + $0xb8] sm:$0xff]
    %v1437 = vld [vmem:[%s5 + $0xc0] sm:$0xff]
    %v1438 = vld [vmem:[%s5 + $0xc8] sm:$0xff]
    %v1439 = vld [vmem:[%s5 + $0xd0] sm:$0xff]
    %v1440 = vld [vmem:[%s5 + $0xd8] sm:$0xff]
    %v1441 = vld [vmem:[%s5 + $0xe0] sm:$0xff]
    %v1442 = vld [vmem:[%s5 + $0xe8] sm:$0xff]
    %v1443 = vld [vmem:[%s5 + $0xf0] sm:$0xff]
    %v1444 = vld [vmem:[%s5 + $0xf8] sm:$0xff]
    %v1445 = vld [vmem:[%s5 + $0x100] sm:$0xff]
    %v1446 = vld [vmem:[%s5 + $0x108] sm:$0xff]
    %v1447 = vld [vmem:[%s5 + $0x110] sm:$0xff]
    %v1448 = vld [vmem:[%s5 + $0x118] sm:$0xff]
    %v1449 = vld [vmem:[%s5 + $0x120] sm:$0xff]
    %v1450 = vld [vmem:[%s5 + $0x128] sm:$0xff]
    %v1451 = vld [vmem:[%s5 + $0x130] sm:$0xff]
    %v1452 = vld [vmem:[%s5 + $0x138] sm:$0xff]
    %v1453 = vld [vmem:[%s5 + $0x140] sm:$0xff]
    %v1454 = vld [vmem:[%s5 + $0x148] sm:$0xff]
    %v1455 = vld [vmem:[%s5 + $0x150] sm:$0xff]
    %v1456 = vld [vmem:[%s5 + $0x158] sm:$0xff]
    %v1457 = vld [vmem:[%s5 + $0x160] sm:$0xff]
    %v1458 = vld [vmem:[%s5 + $0x168] sm:$0xff]
    %v1459 = vld [vmem:[%s5 + $0x170] sm:$0xff]
    %v1460 = vld [vmem:[%s5 + $0x178] sm:$0xff]
    %v1461 = vld [vmem:[%s5 + $0x180] sm:$0xff]
    %v1462 = vld [vmem:[%s5 + $0x188] sm:$0xff]
    %v1463 = vld [vmem:[%s5 + $0x190] sm:$0xff]
    %v1464 = vld [vmem:[%s5 + $0x198] sm:$0xff]
    %v1465 = vld [vmem:[%s5 + $0x1a0] sm:$0xff]
    %v1466 = vld [vmem:[%s5 + $0x1a8] sm:$0xff]
    %v1467 = vld [vmem:[%s5 + $0x1b0] sm:$0xff]
    %v1468 = vld [vmem:[%s5 + $0x1b8] sm:$0xff]
    %v1469 = vld [vmem:[%s5 + $0x1c0] sm:$0xff]
    %v1470 = vld [vmem:[%s5 + $0x1c8] sm:$0xff]
    %v1471 = vld [vmem:[%s5 + $0x1d0] sm:$0xff]
    %v1472 = vld [vmem:[%s5 + $0x1d8] sm:$0xff]
    %v1473 = vld [vmem:[%s5 + $0x1e0] sm:$0xff]
    %v1474 = vld [vmem:[%s5 + $0x1e8] sm:$0xff]
    %v1475 = vld [vmem:[%s5 + $0x1f0] sm:$0xff]
    %v1476 = vld [vmem:[%s5 + $0x1f8] sm:$0xff]
    %v1477 = vld [vmem:[%s11 + $0x7] sm:$0x1]
    %v1478 = vlaneseq
    %v1479 = vshrl.u32 %v1478, 7
    %v1480 = vsub.s32 0, %v1479
    %v1481 = vrot.slane %v1477, %v1480
    %1482 = vmatprep.subr.mxu0 0.0
    %1483 = vmatpush1.msra.mxu0 %v1428
    %1484 = vmatprep.subr.mxu0 0.0
    %1485 = vmatpush1.msra.mxu0 %v1427
    %1486 = vmatprep.subr.mxu0 0.0
    %1487 = vmatpush1.msra.mxu0 %v1426
    %1488 = vmatprep.subr.mxu0 0.0
    %1489 = vmatpush1.msra.mxu0 %v1425
    %1490 = vmatprep.subr.mxu0 0.0
    %1491 = vmatpush1.msra.mxu0 %v1424
    %1492 = vmatprep.subr.mxu0 0.0
    %1493 = vmatpush1.msra.mxu0 %v1423
    %1494 = vmatprep.subr.mxu0 0.0
    %1495 = vmatpush1.msra.mxu0 %v1422
    %1496 = vmatprep.subr.mxu0 0.0
    %1497 = vmatpush1.msra.mxu0 %v1421
    %1498 = vmatprep.subr.mxu0 0.0
    %1499 = vmatpush1.msra.mxu0 %v1420
    %1500 = vmatprep.subr.mxu0 0.0
    %1501 = vmatpush1.msra.mxu0 %v1419
    %1502 = vmatprep.subr.mxu0 0.0
    %1503 = vmatpush1.msra.mxu0 %v1418
    %1504 = vmatprep.subr.mxu0 0.0
    %1505 = vmatpush1.msra.mxu0 %v1417
    %1506 = vmatprep.subr.mxu0 0.0
    %1507 = vmatpush1.msra.mxu0 %v1416
    %1508 = vmatprep.subr.mxu0 0.0
    %1509 = vmatpush1.msra.mxu0 %v1415
    %1510 = vmatprep.subr.mxu0 0.0
    %1511 = vmatpush1.msra.mxu0 %v1414
    %1512 = vmatprep.subr.mxu0 0.0
    %1513 = vmatpush1.msra.mxu0 %v1413
    %1514 = vmatprep.subr.mxu0 0.0
    %1515 = vmatpush2.msra.mxu0 %v1444
    %1516 = vmatprep.subr.mxu0 0.0
    %1517 = vmatpush2.msra.mxu0 %v1443
    %1518 = vmatprep.subr.mxu0 0.0
    %1519 = vmatpush2.msra.mxu0 %v1442
    %1520 = vmatprep.subr.mxu0 0.0
    %1521 = vmatpush2.msra.mxu0 %v1441
    %1522 = vmatprep.subr.mxu0 0.0
    %1523 = vmatpush2.msra.mxu0 %v1440
    %1524 = vmatprep.subr.mxu0 0.0
    %1525 = vmatpush2.msra.mxu0 %v1439
    %1526 = vmatprep.subr.mxu0 0.0
    %1527 = vmatpush2.msra.mxu0 %v1438
    %1528 = vmatprep.subr.mxu0 0.0
    %1529 = vmatpush2.msra.mxu0 %v1437
    %1530 = vmatprep.subr.mxu0 0.0
    %1531 = vmatpush2.msra.mxu0 %v1436
    %1532 = vmatprep.subr.mxu0 0.0
    %1533 = vmatpush2.msra.mxu0 %v1435
    %1534 = vmatprep.subr.mxu0 0.0
    %1535 = vmatpush2.msra.mxu0 %v1434
    %1536 = vmatprep.subr.mxu0 0.0
    %1537 = vmatpush2.msra.mxu0 %v1433
    %1538 = vmatprep.subr.mxu0 0.0
    %1539 = vmatpush2.msra.mxu0 %v1432
    %1540 = vmatprep.subr.mxu0 0.0
    %1541 = vmatpush2.msra.mxu0 %v1431
    %1542 = vmatprep.subr.mxu0 0.0
    %1543 = vmatpush2.msra.mxu0 %v1430
    %1544 = vmatprep.subr.mxu0 0.0
    %1545 = vmatpush2.msra.mxu0 %v1429
    %1546 = vmatprep.mubr.f32.mxu0 %v1355
    %1547 = vmatmul.mubr.f32.gmra.mxu0 %v1335
    %v1548 = vpop.f32.mrf.mxu0
    %v1549 = vadd.f32 %v1481, %v1548
    %v1550 = vpop.f32.mrf.mxu0
    %1551 = vmatprep.mubr.f32.mxu0 %v1360
    %1552 = vmatmul.mubr.f32.gmra.mxu0 %v1340
    %v1553 = vpop.f32.mrf.mxu0
    %v1554 = vadd.f32 %v1481, %v1553
    %v1555 = vpop.f32.mrf.mxu0
    %1556 = vmatprep.mubr.f32.mxu0 %v1365
    %1557 = vmatmul.mubr.f32.gmra.mxu0 %v1345
    %v1558 = vpop.f32.mrf.mxu0
    %v1559 = vadd.f32 %v1481, %v1558
    %v1560 = vpop.f32.mrf.mxu0
    %1561 = vmatprep.mubr.f32.mxu0 %v1370
    %1562 = vmatmul.mubr.f32.gmra.mxu0 %v1350
    %v1563 = vpop.f32.mrf.mxu0
    %v1564 = vadd.f32 %v1481, %v1563
    %v1565 = vpop.f32.mrf.mxu0
    %1566 = vdwg.mxu0
    %1567 = vmatprep.subr.mxu0 0.0
    %1568 = vmatpush1.msra.mxu0 %v1460
    %1569 = vmatprep.subr.mxu0 0.0
    %1570 = vmatpush1.msra.mxu0 %v1459
    %1571 = vmatprep.subr.mxu0 0.0
    %1572 = vmatpush1.msra.mxu0 %v1458
    %1573 = vmatprep.subr.mxu0 0.0
    %1574 = vmatpush1.msra.mxu0 %v1457
    %1575 = vmatprep.subr.mxu0 0.0
    %1576 = vmatpush1.msra.mxu0 %v1456
    %1577 = vmatprep.subr.mxu0 0.0
    %1578 = vmatpush1.msra.mxu0 %v1455
    %1579 = vmatprep.subr.mxu0 0.0
    %1580 = vmatpush1.msra.mxu0 %v1454
    %1581 = vmatprep.subr.mxu0 0.0
    %1582 = vmatpush1.msra.mxu0 %v1453
    %1583 = vmatprep.subr.mxu0 0.0
    %1584 = vmatpush1.msra.mxu0 %v1452
    %1585 = vmatprep.subr.mxu0 0.0
    %1586 = vmatpush1.msra.mxu0 %v1451
    %1587 = vmatprep.subr.mxu0 0.0
    %1588 = vmatpush1.msra.mxu0 %v1450
    %1589 = vmatprep.subr.mxu0 0.0
    %1590 = vmatpush1.msra.mxu0 %v1449
    %1591 = vmatprep.subr.mxu0 0.0
    %1592 = vmatpush1.msra.mxu0 %v1448
    %1593 = vmatprep.subr.mxu0 0.0
    %1594 = vmatpush1.msra.mxu0 %v1447
    %1595 = vmatprep.subr.mxu0 0.0
    %1596 = vmatpush1.msra.mxu0 %v1446
    %1597 = vmatprep.subr.mxu0 0.0
    %1598 = vmatpush1.msra.mxu0 %v1445
    %1599 = vmatprep.subr.mxu0 0.0
    %1600 = vmatpush2.msra.mxu0 %v1476
    %1601 = vmatprep.subr.mxu0 0.0
    %1602 = vmatpush2.msra.mxu0 %v1475
    %1603 = vmatprep.subr.mxu0 0.0
    %1604 = vmatpush2.msra.mxu0 %v1474
    %1605 = vmatprep.subr.mxu0 0.0
    %1606 = vmatpush2.msra.mxu0 %v1473
    %1607 = vmatprep.subr.mxu0 0.0
    %1608 = vmatpush2.msra.mxu0 %v1472
    %1609 = vmatprep.subr.mxu0 0.0
    %1610 = vmatpush2.msra.mxu0 %v1471
    %1611 = vmatprep.subr.mxu0 0.0
    %1612 = vmatpush2.msra.mxu0 %v1470
    %1613 = vmatprep.subr.mxu0 0.0
    %1614 = vmatpush2.msra.mxu0 %v1469
    %1615 = vmatprep.subr.mxu0 0.0
    %1616 = vmatpush2.msra.mxu0 %v1468
    %1617 = vmatprep.subr.mxu0 0.0
    %1618 = vmatpush2.msra.mxu0 %v1467
    %1619 = vmatprep.subr.mxu0 0.0
    %1620 = vmatpush2.msra.mxu0 %v1466
    %1621 = vmatprep.subr.mxu0 0.0
    %1622 = vmatpush2.msra.mxu0 %v1465
    %1623 = vmatprep.subr.mxu0 0.0
    %1624 = vmatpush2.msra.mxu0 %v1464
    %1625 = vmatprep.subr.mxu0 0.0
    %1626 = vmatpush2.msra.mxu0 %v1463
    %1627 = vmatprep.subr.mxu0 0.0
    %1628 = vmatpush2.msra.mxu0 %v1462
    %1629 = vmatprep.subr.mxu0 0.0
    %1630 = vmatpush2.msra.mxu0 %v1461
    %1631 = vmatprep.mubr.f32.mxu0 %v1395
    %1632 = vmatmul.mubr.f32.gmra.mxu0 %v1375
    %v1633 = vpop.f32.mrf.mxu0
    %v1634 = vadd.f32 %v1549, %v1633
    %v1635 = vpop.f32.mrf.mxu0
    %1636 = vmatprep.mubr.f32.mxu0 %v1400
    %1637 = vmatmul.mubr.f32.gmra.mxu0 %v1380
    %v1638 = vpop.f32.mrf.mxu0
    %v1639 = vadd.f32 %v1554, %v1638
    %v1640 = vpop.f32.mrf.mxu0
    %1641 = vmatprep.mubr.f32.mxu0 %v1405
    %1642 = vmatmul.mubr.f32.gmra.mxu0 %v1385
    %v1643 = vpop.f32.mrf.mxu0
    %v1644 = vadd.f32 %v1559, %v1643
    %v1645 = vpop.f32.mrf.mxu0
    %1646 = vmatprep.mubr.f32.mxu0 %v1410
    %1647 = vmatmul.mubr.f32.gmra.mxu0 %v1390
    %v1648 = vpop.f32.mrf.mxu0
    %v1649 = vadd.f32 %v1564, %v1648
    %v1650 = vpop.f32.mrf.mxu0
    %1651 = vdwg.mxu0
    %v1652 = vadd.f32 %v1634, %v319
    %v1653 = vadd.f32 %v1639, %v320
    %v1654 = vadd.f32 %v1644, %v321
    %v1655 = vadd.f32 %v1649, %v322
    %v1656 = vld [vmem:[%s11 + $0x4] sm:$0x1]
    %v1657 = vld [vmem:[%s11 + $0x5] sm:$0x1]
    %v1658 = vsel %vm245, %v1652, 0.0
    %1659 = vadd.xlane.f32.xlu0 %v1658
    %v1660 = vpop.xlane.xlu0 %1659
    %v1661 = vsel %vm245, %v1653, 0.0
    %1662 = vadd.xlane.f32.xlu0 %v1661
    %v1663 = vpop.xlane.xlu0 %1662
    %v1664 = vsel %vm245, %v1654, 0.0
    %1665 = vadd.xlane.f32.xlu0 %v1664
    %v1666 = vpop.xlane.xlu0 %1665
    %v1667 = vsel %vm245, %v1655, 0.0
    %1668 = vadd.xlane.f32.xlu0 %v1667
    %v1669 = vpop.xlane.xlu0 %1668
    %v1670 = vmul.f32 %v1660, %v258
    %v1671 = vmul.f32 %v1663, %v258
    %v1672 = vmul.f32 %v1666, %v258
    %v1673 = vmul.f32 %v1669, %v258
    %v1674 = vsub.f32 %v1652, %v1670
    %v1675 = vsub.f32 %v1653, %v1671
    %v1676 = vsub.f32 %v1654, %v1672
    %v1677 = vsub.f32 %v1655, %v1673
    %v1678 = vmul.f32 %v1674, %v1674
    %v1679 = vmul.f32 %v1675, %v1675
    %v1680 = vmul.f32 %v1676, %v1676
    %v1681 = vmul.f32 %v1677, %v1677
    %v1682 = vsel %vm245, %v1678, 0.0
    %1683 = vadd.xlane.f32.xlu0 %v1682
    %v1684 = vpop.xlane.xlu0 %1683
    %v1685 = vsel %vm245, %v1679, 0.0
    %1686 = vadd.xlane.f32.xlu0 %v1685
    %v1687 = vpop.xlane.xlu0 %1686
    %v1688 = vsel %vm245, %v1680, 0.0
    %1689 = vadd.xlane.f32.xlu0 %v1688
    %v1690 = vpop.xlane.xlu0 %1689
    %v1691 = vsel %vm245, %v1681, 0.0
    %1692 = vadd.xlane.f32.xlu0 %v1691
    %v1693 = vpop.xlane.xlu0 %1692
    %v1694 = vmul.f32 %v1684, %v258
    %v1695 = vmul.f32 %v1687, %v258
    %v1696 = vmul.f32 %v1690, %v258
    %v1697 = vmul.f32 %v1693, %v258
    %v1698 = vadd.f32 %v1694, 1e-05
    %v1699 = vadd.f32 %v1695, 1e-05
    %v1700 = vadd.f32 %v1696, 1e-05
    %v1701 = vadd.f32 %v1697, 1e-05
    %v1702 = vrsqrt.pop %v1698
    %v1703 = vrsqrt.pop %v1699
    %v1704 = vrsqrt.pop %v1700
    %v1705 = vrsqrt.pop %v1701
    %v1706 = vmul.f32 %v1674, %v1702
    %v1707 = vmul.f32 %v1675, %v1703
    %v1708 = vmul.f32 %v1676, %v1704
    %v1709 = vmul.f32 %v1677, %v1705
    %v1710 = vlaneseq
    %v1711 = vshrl.u32 %v1710, 7
    %v1712 = vsub.s32 0, %v1711
    %v1713 = vrot.slane %v1656, %v1712
    %v1714 = vmul.f32 %v1706, %v1713
    %v1715 = vmul.f32 %v1707, %v1713
    %v1716 = vmul.f32 %v1708, %v1713
    %v1717 = vmul.f32 %v1709, %v1713
    %v1718 = vlaneseq
    %v1719 = vshrl.u32 %v1718, 7
    %v1720 = vsub.s32 0, %v1719
    %v1721 = vrot.slane %v1657, %v1720
    %v1722 = vadd.f32 %v1714, %v1721
    %v1723 = vadd.f32 %v1715, %v1721
    %v1724 = vadd.f32 %v1716, %v1721
    %v1725 = vadd.f32 %v1717, %v1721
    %v1726 = vld [vmem:[%s6] sm:$0xff]
    %v1727 = vld [vmem:[%s6 + $0x8] sm:$0xff]
    %v1728 = vld [vmem:[%s12 + $0x2] sm:$0x1]
    %v1729 = vlaneseq
    %v1730 = vshrl.u32 %v1729, 7
    %v1731 = vsub.s32 0, %v1730
    %v1732 = vrot.slane %v1728, %v1731
    %v1734 = vsel %vm245, %v1722, 0
    %v1737 = vsel %vm245, %v1723, 0
    %v1740 = vsel %vm245, %v1724, 0
    %v1743 = vsel %vm245, %v1725, 0
    %1745 = vmatprep.subr.mxu0 0.0
    %1746 = vmatpush1.msra.mxu0 0.0
    %1747 = vmatprep.subr.mxu0 0.0
    %1748 = vmatpush1.msra.mxu0 0.0
    %1749 = vmatprep.subr.mxu0 0.0
    %1750 = vmatpush1.msra.mxu0 0.0
    %1751 = vmatprep.subr.mxu0 0.0
    %1752 = vmatpush1.msra.mxu0 0.0
    %1753 = vmatprep.subr.mxu0 0.0
    %1754 = vmatpush1.msra.mxu0 0.0
    %1755 = vmatprep.subr.mxu0 0.0
    %1756 = vmatpush1.msra.mxu0 0.0
    %1757 = vmatprep.subr.mxu0 0.0
    %1758 = vmatpush1.msra.mxu0 0.0
    %1759 = vmatprep.subr.mxu0 0.0
    %1760 = vmatpush1.msra.mxu0 0.0
    %1761 = vmatprep.subr.mxu0 0.0
    %1762 = vmatpush1.msra.mxu0 0.0
    %1763 = vmatprep.subr.mxu0 0.0
    %1764 = vmatpush1.msra.mxu0 0.0
    %1765 = vmatprep.subr.mxu0 0.0
    %1766 = vmatpush1.msra.mxu0 0.0
    %1767 = vmatprep.subr.mxu0 0.0
    %1768 = vmatpush1.msra.mxu0 0.0
    %1769 = vmatprep.subr.mxu0 0.0
    %1770 = vmatpush1.msra.mxu0 0.0
    %1771 = vmatprep.subr.mxu0 0.0
    %1772 = vmatpush1.msra.mxu0 0.0
    %1773 = vmatprep.subr.mxu0 0.0
    %1774 = vmatpush1.msra.mxu0 %v1727
    %1775 = vmatprep.subr.mxu0 0.0
    %1776 = vmatpush1.msra.mxu0 %v1726
    %1777 = vmatprep.subr.mxu0 0.0
    %1778 = vmatpush2.msra.mxu0 0.0
    %1779 = vmatprep.subr.mxu0 0.0
    %1780 = vmatpush2.msra.mxu0 0.0
    %1781 = vmatprep.subr.mxu0 0.0
    %1782 = vmatpush2.msra.mxu0 0.0
    %1783 = vmatprep.subr.mxu0 0.0
    %1784 = vmatpush2.msra.mxu0 0.0
    %1785 = vmatprep.subr.mxu0 0.0
    %1786 = vmatpush2.msra.mxu0 0.0
    %1787 = vmatprep.subr.mxu0 0.0
    %1788 = vmatpush2.msra.mxu0 0.0
    %1789 = vmatprep.subr.mxu0 0.0
    %1790 = vmatpush2.msra.mxu0 0.0
    %1791 = vmatprep.subr.mxu0 0.0
    %1792 = vmatpush2.msra.mxu0 0.0
    %1793 = vmatprep.subr.mxu0 0.0
    %1794 = vmatpush2.msra.mxu0 0.0
    %1795 = vmatprep.subr.mxu0 0.0
    %1796 = vmatpush2.msra.mxu0 0.0
    %1797 = vmatprep.subr.mxu0 0.0
    %1798 = vmatpush2.msra.mxu0 0.0
    %1799 = vmatprep.subr.mxu0 0.0
    %1800 = vmatpush2.msra.mxu0 0.0
    %1801 = vmatprep.subr.mxu0 0.0
    %1802 = vmatpush2.msra.mxu0 0.0
    %1803 = vmatprep.subr.mxu0 0.0
    %1804 = vmatpush2.msra.mxu0 0.0
    %1805 = vmatprep.subr.mxu0 0.0
    %1806 = vmatpush2.msra.mxu0 0.0
    %1807 = vmatprep.subr.mxu0 0.0
    %1808 = vmatpush2.msra.mxu0 0.0
    %1809 = vmatprep.mubr.f32.mxu0 0.0
    %1810 = vmatmul.mubr.f32.gmra.mxu0 %v1734
    %v1811 = vpop.f32.mrf.mxu0
    %v1812 = vadd.f32 %v1732, %v1811
    %v1813 = vpop.f32.mrf.mxu0
    %1814 = vmatprep.mubr.f32.mxu0 0.0
    %1815 = vmatmul.mubr.f32.gmra.mxu0 %v1737
    %v1816 = vpop.f32.mrf.mxu0
    %v1817 = vadd.f32 %v1732, %v1816
    %v1818 = vpop.f32.mrf.mxu0
    %1819 = vmatprep.mubr.f32.mxu0 0.0
    %1820 = vmatmul.mubr.f32.gmra.mxu0 %v1740
    %v1821 = vpop.f32.mrf.mxu0
    %v1822 = vadd.f32 %v1732, %v1821
    %v1823 = vpop.f32.mrf.mxu0
    %1824 = vmatprep.mubr.f32.mxu0 0.0
    %1825 = vmatmul.mubr.f32.gmra.mxu0 %v1743
    %v1826 = vpop.f32.mrf.mxu0
    %v1827 = vadd.f32 %v1732, %v1826
    %v1828 = vpop.f32.mrf.mxu0
    %1829 = vdwg.mxu0
    %v1830 = vmul.f32 %v1812, 0.5
    %v1831 = vmul.f32 %v1817, 0.5
    %v1832 = vmul.f32 %v1822, 0.5
    %v1833 = vmul.f32 %v1827, 0.5
    %v1834 = vmul.f32 %v1812, 0.70710677
    %v1835 = vmul.f32 %v1817, 0.70710677
    %v1836 = vmul.f32 %v1822, 0.70710677
    %v1837 = vmul.f32 %v1827, 0.70710677
    %v1838 = vand.u32 2147483647, %v1834
    %v1839 = vand.u32 2147483647, %v1835
    %v1840 = vand.u32 2147483647, %v1836
    %v1841 = vand.u32 2147483647, %v1837
    %v1842 = vmul.f32 %v1838, 0.3275911
    %v1843 = vmul.f32 %v1839, 0.3275911
    %v1844 = vmul.f32 %v1840, 0.3275911
    %v1845 = vmul.f32 %v1841, 0.3275911
    %v1846 = vadd.f32 %v1842, 1.0
    %v1847 = vadd.f32 %v1843, 1.0
    %v1848 = vadd.f32 %v1844, 1.0
    %v1849 = vadd.f32 %v1845, 1.0
    %v1850 = vrcp.pop %v1846
    %v1851 = vmul.f32 1.0, %v1850
    %v1852 = vrcp.pop %v1847
    %v1853 = vmul.f32 1.0, %v1852
    %v1854 = vrcp.pop %v1848
    %v1855 = vmul.f32 1.0, %v1854
    %v1856 = vrcp.pop %v1849
    %v1857 = vmul.f32 1.0, %v1856
    %v1858 = vmul.f32 %v1851, 1.0614054
    %v1859 = vmul.f32 %v1853, 1.0614054
    %v1860 = vmul.f32 %v1855, 1.0614054
    %v1861 = vmul.f32 %v1857, 1.0614054
    %v1862 = vadd.f32 %v1858, -1.4531521
    %v1863 = vadd.f32 %v1859, -1.4531521
    %v1864 = vadd.f32 %v1860, -1.4531521
    %v1865 = vadd.f32 %v1861, -1.4531521
    %v1866 = vmul.f32 %v1851, %v1862
    %v1867 = vmul.f32 %v1853, %v1863
    %v1868 = vmul.f32 %v1855, %v1864
    %v1869 = vmul.f32 %v1857, %v1865
    %v1870 = vadd.f32 %v1866, 1.4214138
    %v1871 = vadd.f32 %v1867, 1.4214138
    %v1872 = vadd.f32 %v1868, 1.4214138
    %v1873 = vadd.f32 %v1869, 1.4214138
    %v1874 = vmul.f32 %v1851, %v1870
    %v1875 = vmul.f32 %v1853, %v1871
    %v1876 = vmul.f32 %v1855, %v1872
    %v1877 = vmul.f32 %v1857, %v1873
    %v1878 = vadd.f32 %v1874, -0.28449672
    %v1879 = vadd.f32 %v1875, -0.28449672
    %v1880 = vadd.f32 %v1876, -0.28449672
    %v1881 = vadd.f32 %v1877, -0.28449672
    %v1882 = vmul.f32 %v1851, %v1878
    %v1883 = vmul.f32 %v1853, %v1879
    %v1884 = vmul.f32 %v1855, %v1880
    %v1885 = vmul.f32 %v1857, %v1881
    %v1886 = vadd.f32 %v1882, 0.2548296
    %v1887 = vadd.f32 %v1883, 0.2548296
    %v1888 = vadd.f32 %v1884, 0.2548296
    %v1889 = vadd.f32 %v1885, 0.2548296
    %v1890 = vmul.f32 %v1851, %v1886
    %v1891 = vmul.f32 %v1853, %v1887
    %v1892 = vmul.f32 %v1855, %v1888
    %v1893 = vmul.f32 %v1857, %v1889
    %v1894 = vsub.f32 0.0, %v1838
    %v1895 = vsub.f32 0.0, %v1839
    %v1896 = vsub.f32 0.0, %v1840
    %v1897 = vsub.f32 0.0, %v1841
    %v1898 = vmul.f32 %v1894, %v1838
    %v1899 = vmul.f32 %v1895, %v1839
    %v1900 = vmul.f32 %v1896, %v1840
    %v1901 = vmul.f32 %v1897, %v1841
    %v1902 = vmul.f32 %v1898, 1.442695
    %v1903 = vpow.pop %v1902
    %v1904 = vmul.f32 %v1899, 1.442695
    %v1905 = vpow.pop %v1904
    %v1906 = vmul.f32 %v1900, 1.442695
    %v1907 = vpow.pop %v1906
    %v1908 = vmul.f32 %v1901, 1.442695
    %v1909 = vpow.pop %v1908
    %v1910 = vmul.f32 %v1890, %v1903
    %v1911 = vmul.f32 %v1891, %v1905
    %v1912 = vmul.f32 %v1892, %v1907
    %v1913 = vmul.f32 %v1893, %v1909
    %v1914 = vsub.f32 1.0, %v1910
    %v1915 = vsub.f32 1.0, %v1911
    %v1916 = vsub.f32 1.0, %v1912
    %v1917 = vsub.f32 1.0, %v1913
    %vm1918 = vcmp.ge.f32.partialorder %v1834, 0.0
    %vm1919 = vcmp.ge.f32.partialorder %v1835, 0.0
    %vm1920 = vcmp.ge.f32.partialorder %v1836, 0.0
    %vm1921 = vcmp.ge.f32.partialorder %v1837, 0.0
    %v1922 = vsub.f32 0.0, %v1914
    %v1923 = vsub.f32 0.0, %v1915
    %v1924 = vsub.f32 0.0, %v1916
    %v1925 = vsub.f32 0.0, %v1917
    %v1926 = vsel %vm1918, %v1914, %v1922
    %v1927 = vsel %vm1919, %v1915, %v1923
    %v1928 = vsel %vm1920, %v1916, %v1924
    %v1929 = vsel %vm1921, %v1917, %v1925
    %v1930 = vadd.f32 %v1926, 1.0
    %v1931 = vadd.f32 %v1927, 1.0
    %v1932 = vadd.f32 %v1928, 1.0
    %v1933 = vadd.f32 %v1929, 1.0
    %v1934 = vmul.f32 %v1830, %v1930
    %v1935 = vmul.f32 %v1831, %v1931
    %v1936 = vmul.f32 %v1832, %v1932
    %v1937 = vmul.f32 %v1833, %v1933
    %v1938 = vld [vmem:[%s7] sm:$0xff]
    %v1939 = vld [vmem:[%s7 + $0x8] sm:$0xff]
    %v1940 = vld [vmem:[%s7 + $0x10] sm:$0xff]
    %v1941 = vld [vmem:[%s7 + $0x18] sm:$0xff]
    %v1942 = vld [vmem:[%s7 + $0x20] sm:$0xff]
    %v1943 = vld [vmem:[%s7 + $0x28] sm:$0xff]
    %v1944 = vld [vmem:[%s7 + $0x30] sm:$0xff]
    %v1945 = vld [vmem:[%s7 + $0x38] sm:$0xff]
    %v1946 = vld [vmem:[%s7 + $0x40] sm:$0xff]
    %v1947 = vld [vmem:[%s7 + $0x48] sm:$0xff]
    %v1948 = vld [vmem:[%s7 + $0x50] sm:$0xff]
    %v1949 = vld [vmem:[%s7 + $0x58] sm:$0xff]
    %v1950 = vld [vmem:[%s7 + $0x60] sm:$0xff]
    %v1951 = vld [vmem:[%s7 + $0x68] sm:$0xff]
    %v1952 = vld [vmem:[%s7 + $0x70] sm:$0xff]
    %v1953 = vld [vmem:[%s7 + $0x78] sm:$0xff]
    %v1954 = vld [vmem:[%s11 + $0x8] sm:$0x1]
    %v1955 = vlaneseq
    %v1956 = vshrl.u32 %v1955, 7
    %v1957 = vsub.s32 0, %v1956
    %v1958 = vrot.slane %v1954, %v1957
    %1959 = vmatprep.subr.mxu0 0.0
    %1960 = vmatpush1.msra.mxu0 %v1953
    %1961 = vmatprep.subr.mxu0 0.0
    %1962 = vmatpush1.msra.mxu0 %v1952
    %1963 = vmatprep.subr.mxu0 0.0
    %1964 = vmatpush1.msra.mxu0 %v1951
    %1965 = vmatprep.subr.mxu0 0.0
    %1966 = vmatpush1.msra.mxu0 %v1950
    %1967 = vmatprep.subr.mxu0 0.0
    %1968 = vmatpush1.msra.mxu0 %v1949
    %1969 = vmatprep.subr.mxu0 0.0
    %1970 = vmatpush1.msra.mxu0 %v1948
    %1971 = vmatprep.subr.mxu0 0.0
    %1972 = vmatpush1.msra.mxu0 %v1947
    %1973 = vmatprep.subr.mxu0 0.0
    %1974 = vmatpush1.msra.mxu0 %v1946
    %1975 = vmatprep.subr.mxu0 0.0
    %1976 = vmatpush1.msra.mxu0 %v1945
    %1977 = vmatprep.subr.mxu0 0.0
    %1978 = vmatpush1.msra.mxu0 %v1944
    %1979 = vmatprep.subr.mxu0 0.0
    %1980 = vmatpush1.msra.mxu0 %v1943
    %1981 = vmatprep.subr.mxu0 0.0
    %1982 = vmatpush1.msra.mxu0 %v1942
    %1983 = vmatprep.subr.mxu0 0.0
    %1984 = vmatpush1.msra.mxu0 %v1941
    %1985 = vmatprep.subr.mxu0 0.0
    %1986 = vmatpush1.msra.mxu0 %v1940
    %1987 = vmatprep.subr.mxu0 0.0
    %1988 = vmatpush1.msra.mxu0 %v1939
    %1989 = vmatprep.subr.mxu0 0.0
    %1990 = vmatpush1.msra.mxu0 %v1938
    %1991 = vmatprep.subr.mxu0 0.0
    %1992 = vmatpush2.msra.mxu0 0.0
    %1993 = vmatprep.subr.mxu0 0.0
    %1994 = vmatpush2.msra.mxu0 0.0
    %1995 = vmatprep.subr.mxu0 0.0
    %1996 = vmatpush2.msra.mxu0 0.0
    %1997 = vmatprep.subr.mxu0 0.0
    %1998 = vmatpush2.msra.mxu0 0.0
    %1999 = vmatprep.subr.mxu0 0.0
    %2000 = vmatpush2.msra.mxu0 0.0
    %2001 = vmatprep.subr.mxu0 0.0
    %2002 = vmatpush2.msra.mxu0 0.0
    %2003 = vmatprep.subr.mxu0 0.0
    %2004 = vmatpush2.msra.mxu0 0.0
    %2005 = vmatprep.subr.mxu0 0.0
    %2006 = vmatpush2.msra.mxu0 0.0
    %2007 = vmatprep.subr.mxu0 0.0
    %2008 = vmatpush2.msra.mxu0 0.0
    %2009 = vmatprep.subr.mxu0 0.0
    %2010 = vmatpush2.msra.mxu0 0.0
    %2011 = vmatprep.subr.mxu0 0.0
    %2012 = vmatpush2.msra.mxu0 0.0
    %2013 = vmatprep.subr.mxu0 0.0
    %2014 = vmatpush2.msra.mxu0 0.0
    %2015 = vmatprep.subr.mxu0 0.0
    %2016 = vmatpush2.msra.mxu0 0.0
    %2017 = vmatprep.subr.mxu0 0.0
    %2018 = vmatpush2.msra.mxu0 0.0
    %2019 = vmatprep.subr.mxu0 0.0
    %2020 = vmatpush2.msra.mxu0 0.0
    %2021 = vmatprep.subr.mxu0 0.0
    %2022 = vmatpush2.msra.mxu0 0.0
    %2023 = vmatprep.mubr.f32.mxu0 0.0
    %2024 = vmatmul.mubr.f32.gmra.mxu0 %v1934
    %v2025 = vpop.f32.mrf.mxu0
    %v2026 = vadd.f32 %v1958, %v2025
    %v2027 = vpop.f32.mrf.mxu0
    %2028 = vmatprep.mubr.f32.mxu0 0.0
    %2029 = vmatmul.mubr.f32.gmra.mxu0 %v1935
    %v2030 = vpop.f32.mrf.mxu0
    %v2031 = vadd.f32 %v1958, %v2030
    %v2032 = vpop.f32.mrf.mxu0
    %2033 = vmatprep.mubr.f32.mxu0 0.0
    %2034 = vmatmul.mubr.f32.gmra.mxu0 %v1936
    %v2035 = vpop.f32.mrf.mxu0
    %v2036 = vadd.f32 %v1958, %v2035
    %v2037 = vpop.f32.mrf.mxu0
    %2038 = vmatprep.mubr.f32.mxu0 0.0
    %2039 = vmatmul.mubr.f32.gmra.mxu0 %v1937
    %v2040 = vpop.f32.mrf.mxu0
    %v2041 = vadd.f32 %v1958, %v2040
    %v2042 = vpop.f32.mrf.mxu0
    %2043 = vdwg.mxu0
    %v2044 = vadd.f32 %v2026, %v1652
    %v2045 = vadd.f32 %v2031, %v1653
    %v2046 = vadd.f32 %v2036, %v1654
    %v2047 = vadd.f32 %v2041, %v1655
    %v2048 = vld [vmem:[%s13] sm:$0xff]
    %v2049 = vld [vmem:[%s10] sm:$0xff]
    %v2050 = vld [vmem:[%s10 + $0x8] sm:$0xff]
    %v2051 = vld [vmem:[%s10 + $0x10] sm:$0xff]
    %v2052 = vld [vmem:[%s10 + $0x18] sm:$0xff]
    %v2053 = vmul.f32 %v2044, %v2049
    %v2054 = vmul.f32 %v2045, %v2050
    %v2055 = vmul.f32 %v2046, %v2051
    %v2056 = vmul.f32 %v2047, %v2052
    %v2057 = vld [vmem:[%s11 + $0x9] sm:$0x1]
    %v2058 = vlaneseq
    %v2059 = vshrl.u32 %v2058, 7
    %v2060 = vsub.s32 0, %v2059
    %v2061 = vrot.slane %v2057, %v2060
    %vm2062 = vcmask 261120
    %v2064 = vsel %vm2062, %v2048, 0
    %2066 = vmatprep.subr.mxu0 0.0
    %2067 = vmatpush1.msra.mxu0 0.0
    %2068 = vmatprep.subr.mxu0 0.0
    %2069 = vmatpush1.msra.mxu0 0.0
    %2070 = vmatprep.subr.mxu0 0.0
    %2071 = vmatpush1.msra.mxu0 0.0
    %2072 = vmatprep.subr.mxu0 0.0
    %2073 = vmatpush1.msra.mxu0 0.0
    %2074 = vmatprep.subr.mxu0 0.0
    %2075 = vmatpush1.msra.mxu0 0.0
    %2076 = vmatprep.subr.mxu0 0.0
    %2077 = vmatpush1.msra.mxu0 0.0
    %2078 = vmatprep.subr.mxu0 0.0
    %2079 = vmatpush1.msra.mxu0 0.0
    %2080 = vmatprep.subr.mxu0 0.0
    %2081 = vmatpush1.msra.mxu0 0.0
    %2082 = vmatprep.subr.mxu0 0.0
    %2083 = vmatpush1.msra.mxu0 0.0
    %2084 = vmatprep.subr.mxu0 0.0
    %2085 = vmatpush1.msra.mxu0 0.0
    %2086 = vmatprep.subr.mxu0 0.0
    %2087 = vmatpush1.msra.mxu0 0.0
    %2088 = vmatprep.subr.mxu0 0.0
    %2089 = vmatpush1.msra.mxu0 0.0
    %2090 = vmatprep.subr.mxu0 0.0
    %2091 = vmatpush1.msra.mxu0 %v2056
    %2092 = vmatprep.subr.mxu0 0.0
    %2093 = vmatpush1.msra.mxu0 %v2055
    %2094 = vmatprep.subr.mxu0 0.0
    %2095 = vmatpush1.msra.mxu0 %v2054
    %2096 = vmatprep.subr.mxu0 0.0
    %2097 = vmatpush1.msra.mxu0 %v2053
    %2098 = vmatprep.subr.mxu0 0.0
    %2099 = vmatpush2.msra.mxu0 0.0
    %2100 = vmatprep.subr.mxu0 0.0
    %2101 = vmatpush2.msra.mxu0 0.0
    %2102 = vmatprep.subr.mxu0 0.0
    %2103 = vmatpush2.msra.mxu0 0.0
    %2104 = vmatprep.subr.mxu0 0.0
    %2105 = vmatpush2.msra.mxu0 0.0
    %2106 = vmatprep.subr.mxu0 0.0
    %2107 = vmatpush2.msra.mxu0 0.0
    %2108 = vmatprep.subr.mxu0 0.0
    %2109 = vmatpush2.msra.mxu0 0.0
    %2110 = vmatprep.subr.mxu0 0.0
    %2111 = vmatpush2.msra.mxu0 0.0
    %2112 = vmatprep.subr.mxu0 0.0
    %2113 = vmatpush2.msra.mxu0 0.0
    %2114 = vmatprep.subr.mxu0 0.0
    %2115 = vmatpush2.msra.mxu0 0.0
    %2116 = vmatprep.subr.mxu0 0.0
    %2117 = vmatpush2.msra.mxu0 0.0
    %2118 = vmatprep.subr.mxu0 0.0
    %2119 = vmatpush2.msra.mxu0 0.0
    %2120 = vmatprep.subr.mxu0 0.0
    %2121 = vmatpush2.msra.mxu0 0.0
    %2122 = vmatprep.subr.mxu0 0.0
    %2123 = vmatpush2.msra.mxu0 0.0
    %2124 = vmatprep.subr.mxu0 0.0
    %2125 = vmatpush2.msra.mxu0 0.0
    %2126 = vmatprep.subr.mxu0 0.0
    %2127 = vmatpush2.msra.mxu0 0.0
    %2128 = vmatprep.subr.mxu0 0.0
    %2129 = vmatpush2.msra.mxu0 0.0
    %2130 = vmatprep.mubr.f32.mxu0 0.0
    %2131 = vmatmul.mubr.f32.gmra.mxu0 %v2064
    %v2132 = vpop.f32.mrf.mxu0
    %v2133 = vadd.f32 %v2061, %v2132
    %v2134 = vpop.f32.mrf.mxu0
    %2135 = vdwg.mxu0
    %v2136 = vld [vmem:[%s13 + $0x8] sm:$0x3]
    %v2137 = vld [vmem:[%s13 + $0x10] sm:$0xff]
    %v2138 = vsel %vm245, %v2133, 0.0
    %2139 = vadd.xlane.f32.xlu0 %v2138
    %v2140 = vpop.xlane.xlu0 %2139
    %vm2141 = vcmask 64512
    %v2143 = vsel %vm2141, %v2136, 0
    %2145 = vmatprep.subr.mxu0 0.0
    %2146 = vmatpush1.msra.mxu0 0.0
    %2147 = vmatprep.subr.mxu0 0.0
    %2148 = vmatpush1.msra.mxu0 0.0
    %2149 = vmatprep.subr.mxu0 0.0
    %2150 = vmatpush1.msra.mxu0 0.0
    %2151 = vmatprep.subr.mxu0 0.0
    %2152 = vmatpush1.msra.mxu0 0.0
    %2153 = vmatprep.subr.mxu0 0.0
    %2154 = vmatpush1.msra.mxu0 0.0
    %2155 = vmatprep.subr.mxu0 0.0
    %2156 = vmatpush1.msra.mxu0 0.0
    %2157 = vmatprep.subr.mxu0 0.0
    %2158 = vmatpush1.msra.mxu0 0.0
    %2159 = vmatprep.subr.mxu0 0.0
    %2160 = vmatpush1.msra.mxu0 0.0
    %2161 = vmatprep.subr.mxu0 0.0
    %2162 = vmatpush1.msra.mxu0 0.0
    %2163 = vmatprep.subr.mxu0 0.0
    %2164 = vmatpush1.msra.mxu0 0.0
    %2165 = vmatprep.subr.mxu0 0.0
    %2166 = vmatpush1.msra.mxu0 0.0
    %2167 = vmatprep.subr.mxu0 0.0
    %2168 = vmatpush1.msra.mxu0 0.0
    %2169 = vmatprep.subr.mxu0 0.0
    %2170 = vmatpush1.msra.mxu0 0.0
    %2171 = vmatprep.subr.mxu0 0.0
    %2172 = vmatpush1.msra.mxu0 0.0
    %2173 = vmatprep.subr.mxu0 0.0
    %2174 = vmatpush1.msra.mxu0 0.0
    %2175 = vmatprep.subr.mxu0 0.0
    %2176 = vmatpush1.msra.mxu0 %v2140
    %2177 = vmatprep.subr.mxu0 0.0
    %2178 = vmatpush2.msra.mxu0 0.0
    %2179 = vmatprep.subr.mxu0 0.0
    %2180 = vmatpush2.msra.mxu0 0.0
    %2181 = vmatprep.subr.mxu0 0.0
    %2182 = vmatpush2.msra.mxu0 0.0
    %2183 = vmatprep.subr.mxu0 0.0
    %2184 = vmatpush2.msra.mxu0 0.0
    %2185 = vmatprep.subr.mxu0 0.0
    %2186 = vmatpush2.msra.mxu0 0.0
    %2187 = vmatprep.subr.mxu0 0.0
    %2188 = vmatpush2.msra.mxu0 0.0
    %2189 = vmatprep.subr.mxu0 0.0
    %2190 = vmatpush2.msra.mxu0 0.0
    %2191 = vmatprep.subr.mxu0 0.0
    %2192 = vmatpush2.msra.mxu0 0.0
    %2193 = vmatprep.subr.mxu0 0.0
    %2194 = vmatpush2.msra.mxu0 0.0
    %2195 = vmatprep.subr.mxu0 0.0
    %2196 = vmatpush2.msra.mxu0 0.0
    %2197 = vmatprep.subr.mxu0 0.0
    %2198 = vmatpush2.msra.mxu0 0.0
    %2199 = vmatprep.subr.mxu0 0.0
    %2200 = vmatpush2.msra.mxu0 0.0
    %2201 = vmatprep.subr.mxu0 0.0
    %2202 = vmatpush2.msra.mxu0 0.0
    %2203 = vmatprep.subr.mxu0 0.0
    %2204 = vmatpush2.msra.mxu0 0.0
    %2205 = vmatprep.subr.mxu0 0.0
    %2206 = vmatpush2.msra.mxu0 0.0
    %2207 = vmatprep.subr.mxu0 0.0
    %2208 = vmatpush2.msra.mxu0 0.0
    %2209 = vmatprep.mubr.f32.mxu0 0.0
    %2210 = vmatmul.mubr.f32.gmra.mxu0 %v2143
    %v2211 = vpop.f32.mrf.mxu0
    %v2212 = vadd.f32 0.0, %v2211
    %v2213 = vpop.f32.mrf.mxu0
    %2214 = vdwg.mxu0
    %v2215 = vmul.f32 %v2133, %v2133
    %v2216 = vsel %vm245, %v2215, 0.0
    %2217 = vadd.xlane.f32.xlu0 %v2216
    %v2218 = vpop.xlane.xlu0 %2217
    %2219 = vmatprep.subr.mxu0 0.0
    %2220 = vmatpush1.msra.mxu0 0.0
    %2221 = vmatprep.subr.mxu0 0.0
    %2222 = vmatpush1.msra.mxu0 0.0
    %2223 = vmatprep.subr.mxu0 0.0
    %2224 = vmatpush1.msra.mxu0 0.0
    %2225 = vmatprep.subr.mxu0 0.0
    %2226 = vmatpush1.msra.mxu0 0.0
    %2227 = vmatprep.subr.mxu0 0.0
    %2228 = vmatpush1.msra.mxu0 0.0
    %2229 = vmatprep.subr.mxu0 0.0
    %2230 = vmatpush1.msra.mxu0 0.0
    %2231 = vmatprep.subr.mxu0 0.0
    %2232 = vmatpush1.msra.mxu0 0.0
    %2233 = vmatprep.subr.mxu0 0.0
    %2234 = vmatpush1.msra.mxu0 0.0
    %2235 = vmatprep.subr.mxu0 0.0
    %2236 = vmatpush1.msra.mxu0 0.0
    %2237 = vmatprep.subr.mxu0 0.0
    %2238 = vmatpush1.msra.mxu0 0.0
    %2239 = vmatprep.subr.mxu0 0.0
    %2240 = vmatpush1.msra.mxu0 0.0
    %2241 = vmatprep.subr.mxu0 0.0
    %2242 = vmatpush1.msra.mxu0 0.0
    %2243 = vmatprep.subr.mxu0 0.0
    %2244 = vmatpush1.msra.mxu0 0.0
    %2245 = vmatprep.subr.mxu0 0.0
    %2246 = vmatpush1.msra.mxu0 0.0
    %2247 = vmatprep.subr.mxu0 0.0
    %2248 = vmatpush1.msra.mxu0 0.0
    %2249 = vmatprep.subr.mxu0 0.0
    %2250 = vmatpush1.msra.mxu0 %v2218
    %2251 = vmatprep.subr.mxu0 0.0
    %2252 = vmatpush2.msra.mxu0 0.0
    %2253 = vmatprep.subr.mxu0 0.0
    %2254 = vmatpush2.msra.mxu0 0.0
    %2255 = vmatprep.subr.mxu0 0.0
    %2256 = vmatpush2.msra.mxu0 0.0
    %2257 = vmatprep.subr.mxu0 0.0
    %2258 = vmatpush2.msra.mxu0 0.0
    %2259 = vmatprep.subr.mxu0 0.0
    %2260 = vmatpush2.msra.mxu0 0.0
    %2261 = vmatprep.subr.mxu0 0.0
    %2262 = vmatpush2.msra.mxu0 0.0
    %2263 = vmatprep.subr.mxu0 0.0
    %2264 = vmatpush2.msra.mxu0 0.0
    %2265 = vmatprep.subr.mxu0 0.0
    %2266 = vmatpush2.msra.mxu0 0.0
    %2267 = vmatprep.subr.mxu0 0.0
    %2268 = vmatpush2.msra.mxu0 0.0
    %2269 = vmatprep.subr.mxu0 0.0
    %2270 = vmatpush2.msra.mxu0 0.0
    %2271 = vmatprep.subr.mxu0 0.0
    %2272 = vmatpush2.msra.mxu0 0.0
    %2273 = vmatprep.subr.mxu0 0.0
    %2274 = vmatpush2.msra.mxu0 0.0
    %2275 = vmatprep.subr.mxu0 0.0
    %2276 = vmatpush2.msra.mxu0 0.0
    %2277 = vmatprep.subr.mxu0 0.0
    %2278 = vmatpush2.msra.mxu0 0.0
    %2279 = vmatprep.subr.mxu0 0.0
    %2280 = vmatpush2.msra.mxu0 0.0
    %2281 = vmatprep.subr.mxu0 0.0
    %2282 = vmatpush2.msra.mxu0 0.0
    %2283 = vmatprep.mubr.f32.mxu0 0.0
    %2284 = vmatmul.mubr.f32.gmra.mxu0 %v2143
    %v2285 = vpop.f32.mrf.mxu0
    %v2286 = vadd.f32 0.0, %v2285
    %v2287 = vpop.f32.mrf.mxu0
    %2288 = vdwg.mxu0
    %v2289 = vmul.f32 %v2212, 0.015625
    %v2290 = vmul.f32 %v2286, 0.015625
    %v2291 = vmul.f32 %v2289, %v2289
    %v2292 = vsub.f32 %v2290, %v2291
    %v2293 = vmax.f32 %v2292, 0.0
    %v2294 = vadd.f32 %v2293, 1e-06
    %v2295 = vrsqrt.pop %v2294
    %vm2296 = vcmask 15360
    %v2298 = vsel %vm2296, %v2137, 0
    %vm2300 = vcmask 1041408
    %v2302 = vsel %vm2300, %v2289, 0
    %2304 = vmatprep.subr.mxu0 0.0
    %2305 = vmatpush1.msra.mxu0 0.0
    %2306 = vmatprep.subr.mxu0 0.0
    %2307 = vmatpush1.msra.mxu0 0.0
    %2308 = vmatprep.subr.mxu0 0.0
    %2309 = vmatpush1.msra.mxu0 0.0
    %2310 = vmatprep.subr.mxu0 0.0
    %2311 = vmatpush1.msra.mxu0 0.0
    %2312 = vmatprep.subr.mxu0 0.0
    %2313 = vmatpush1.msra.mxu0 0.0
    %2314 = vmatprep.subr.mxu0 0.0
    %2315 = vmatpush1.msra.mxu0 0.0
    %2316 = vmatprep.subr.mxu0 0.0
    %2317 = vmatpush1.msra.mxu0 0.0
    %2318 = vmatprep.subr.mxu0 0.0
    %2319 = vmatpush1.msra.mxu0 0.0
    %2320 = vmatprep.subr.mxu0 0.0
    %2321 = vmatpush1.msra.mxu0 0.0
    %2322 = vmatprep.subr.mxu0 0.0
    %2323 = vmatpush1.msra.mxu0 0.0
    %2324 = vmatprep.subr.mxu0 0.0
    %2325 = vmatpush1.msra.mxu0 0.0
    %2326 = vmatprep.subr.mxu0 0.0
    %2327 = vmatpush1.msra.mxu0 0.0
    %2328 = vmatprep.subr.mxu0 0.0
    %2329 = vmatpush1.msra.mxu0 0.0
    %2330 = vmatprep.subr.mxu0 0.0
    %2331 = vmatpush1.msra.mxu0 0.0
    %2332 = vmatprep.subr.mxu0 0.0
    %2333 = vmatpush1.msra.mxu0 0.0
    %2334 = vmatprep.subr.mxu0 0.0
    %2335 = vmatpush1.msra.mxu0 %v2302
    %2336 = vmatprep.subr.mxu0 0.0
    %2337 = vmatpush2.msra.mxu0 0.0
    %2338 = vmatprep.subr.mxu0 0.0
    %2339 = vmatpush2.msra.mxu0 0.0
    %2340 = vmatprep.subr.mxu0 0.0
    %2341 = vmatpush2.msra.mxu0 0.0
    %2342 = vmatprep.subr.mxu0 0.0
    %2343 = vmatpush2.msra.mxu0 0.0
    %2344 = vmatprep.subr.mxu0 0.0
    %2345 = vmatpush2.msra.mxu0 0.0
    %2346 = vmatprep.subr.mxu0 0.0
    %2347 = vmatpush2.msra.mxu0 0.0
    %2348 = vmatprep.subr.mxu0 0.0
    %2349 = vmatpush2.msra.mxu0 0.0
    %2350 = vmatprep.subr.mxu0 0.0
    %2351 = vmatpush2.msra.mxu0 0.0
    %2352 = vmatprep.subr.mxu0 0.0
    %2353 = vmatpush2.msra.mxu0 0.0
    %2354 = vmatprep.subr.mxu0 0.0
    %2355 = vmatpush2.msra.mxu0 0.0
    %2356 = vmatprep.subr.mxu0 0.0
    %2357 = vmatpush2.msra.mxu0 0.0
    %2358 = vmatprep.subr.mxu0 0.0
    %2359 = vmatpush2.msra.mxu0 0.0
    %2360 = vmatprep.subr.mxu0 0.0
    %2361 = vmatpush2.msra.mxu0 0.0
    %2362 = vmatprep.subr.mxu0 0.0
    %2363 = vmatpush2.msra.mxu0 0.0
    %2364 = vmatprep.subr.mxu0 0.0
    %2365 = vmatpush2.msra.mxu0 0.0
    %2366 = vmatprep.subr.mxu0 0.0
    %2367 = vmatpush2.msra.mxu0 0.0
    %2368 = vmatprep.mubr.f32.mxu0 0.0
    %2369 = vmatmul.mubr.f32.gmra.mxu0 %v2298
    %v2370 = vpop.f32.mrf.mxu0
    %v2371 = vadd.f32 0.0, %v2370
    %v2372 = vpop.f32.mrf.mxu0
    %2373 = vdwg.mxu0
    %v2375 = vsel %vm2300, %v2295, 0
    %2377 = vmatprep.subr.mxu0 0.0
    %2378 = vmatpush1.msra.mxu0 0.0
    %2379 = vmatprep.subr.mxu0 0.0
    %2380 = vmatpush1.msra.mxu0 0.0
    %2381 = vmatprep.subr.mxu0 0.0
    %2382 = vmatpush1.msra.mxu0 0.0
    %2383 = vmatprep.subr.mxu0 0.0
    %2384 = vmatpush1.msra.mxu0 0.0
    %2385 = vmatprep.subr.mxu0 0.0
    %2386 = vmatpush1.msra.mxu0 0.0
    %2387 = vmatprep.subr.mxu0 0.0
    %2388 = vmatpush1.msra.mxu0 0.0
    %2389 = vmatprep.subr.mxu0 0.0
    %2390 = vmatpush1.msra.mxu0 0.0
    %2391 = vmatprep.subr.mxu0 0.0
    %2392 = vmatpush1.msra.mxu0 0.0
    %2393 = vmatprep.subr.mxu0 0.0
    %2394 = vmatpush1.msra.mxu0 0.0
    %2395 = vmatprep.subr.mxu0 0.0
    %2396 = vmatpush1.msra.mxu0 0.0
    %2397 = vmatprep.subr.mxu0 0.0
    %2398 = vmatpush1.msra.mxu0 0.0
    %2399 = vmatprep.subr.mxu0 0.0
    %2400 = vmatpush1.msra.mxu0 0.0
    %2401 = vmatprep.subr.mxu0 0.0
    %2402 = vmatpush1.msra.mxu0 0.0
    %2403 = vmatprep.subr.mxu0 0.0
    %2404 = vmatpush1.msra.mxu0 0.0
    %2405 = vmatprep.subr.mxu0 0.0
    %2406 = vmatpush1.msra.mxu0 0.0
    %2407 = vmatprep.subr.mxu0 0.0
    %2408 = vmatpush1.msra.mxu0 %v2375
    %2409 = vmatprep.subr.mxu0 0.0
    %2410 = vmatpush2.msra.mxu0 0.0
    %2411 = vmatprep.subr.mxu0 0.0
    %2412 = vmatpush2.msra.mxu0 0.0
    %2413 = vmatprep.subr.mxu0 0.0
    %2414 = vmatpush2.msra.mxu0 0.0
    %2415 = vmatprep.subr.mxu0 0.0
    %2416 = vmatpush2.msra.mxu0 0.0
    %2417 = vmatprep.subr.mxu0 0.0
    %2418 = vmatpush2.msra.mxu0 0.0
    %2419 = vmatprep.subr.mxu0 0.0
    %2420 = vmatpush2.msra.mxu0 0.0
    %2421 = vmatprep.subr.mxu0 0.0
    %2422 = vmatpush2.msra.mxu0 0.0
    %2423 = vmatprep.subr.mxu0 0.0
    %2424 = vmatpush2.msra.mxu0 0.0
    %2425 = vmatprep.subr.mxu0 0.0
    %2426 = vmatpush2.msra.mxu0 0.0
    %2427 = vmatprep.subr.mxu0 0.0
    %2428 = vmatpush2.msra.mxu0 0.0
    %2429 = vmatprep.subr.mxu0 0.0
    %2430 = vmatpush2.msra.mxu0 0.0
    %2431 = vmatprep.subr.mxu0 0.0
    %2432 = vmatpush2.msra.mxu0 0.0
    %2433 = vmatprep.subr.mxu0 0.0
    %2434 = vmatpush2.msra.mxu0 0.0
    %2435 = vmatprep.subr.mxu0 0.0
    %2436 = vmatpush2.msra.mxu0 0.0
    %2437 = vmatprep.subr.mxu0 0.0
    %2438 = vmatpush2.msra.mxu0 0.0
    %2439 = vmatprep.subr.mxu0 0.0
    %2440 = vmatpush2.msra.mxu0 0.0
    %2441 = vmatprep.mubr.f32.mxu0 0.0
    %2442 = vmatmul.mubr.f32.gmra.mxu0 %v2298
    %v2443 = vpop.f32.mrf.mxu0
    %v2444 = vadd.f32 0.0, %v2443
    %v2445 = vpop.f32.mrf.mxu0
    %2446 = vdwg.mxu0
    %2448 = vset.pattern.permute.xlu0 0
    %2449 = vperm.xlu0 %2448, %v2371
    %v2450 = vpop.permute.xlu0 %2449
    %v2452 = vsub.f32 %v2133, %v2450
    %2454 = vset.pattern.permute.xlu0 0
    %2455 = vperm.xlu0 %2454, %v2444
    %v2456 = vpop.permute.xlu0 %2455
    %v2458 = vmul.f32 %v2452, %v2456
    %v2459 = vld [vmem:[%s9 + $0x28] sm:$0xff]
    %v2460 = vld [vmem:[%s9 + $0x30] sm:$0xff]
    %v2462 = vsel %vm245, %v2458, 0
    %2464 = vmatprep.subr.mxu0 0.0
    %2465 = vmatpush1.msra.mxu0 0.0
    %2466 = vmatprep.subr.mxu0 0.0
    %2467 = vmatpush1.msra.mxu0 0.0
    %2468 = vmatprep.subr.mxu0 0.0
    %2469 = vmatpush1.msra.mxu0 0.0
    %2470 = vmatprep.subr.mxu0 0.0
    %2471 = vmatpush1.msra.mxu0 0.0
    %2472 = vmatprep.subr.mxu0 0.0
    %2473 = vmatpush1.msra.mxu0 0.0
    %2474 = vmatprep.subr.mxu0 0.0
    %2475 = vmatpush1.msra.mxu0 0.0
    %2476 = vmatprep.subr.mxu0 0.0
    %2477 = vmatpush1.msra.mxu0 0.0
    %2478 = vmatprep.subr.mxu0 0.0
    %2479 = vmatpush1.msra.mxu0 0.0
    %2480 = vmatprep.subr.mxu0 0.0
    %2481 = vmatpush1.msra.mxu0 0.0
    %2482 = vmatprep.subr.mxu0 0.0
    %2483 = vmatpush1.msra.mxu0 0.0
    %2484 = vmatprep.subr.mxu0 0.0
    %2485 = vmatpush1.msra.mxu0 0.0
    %2486 = vmatprep.subr.mxu0 0.0
    %2487 = vmatpush1.msra.mxu0 0.0
    %2488 = vmatprep.subr.mxu0 0.0
    %2489 = vmatpush1.msra.mxu0 0.0
    %2490 = vmatprep.subr.mxu0 0.0
    %2491 = vmatpush1.msra.mxu0 0.0
    %2492 = vmatprep.subr.mxu0 0.0
    %2493 = vmatpush1.msra.mxu0 %v2460
    %2494 = vmatprep.subr.mxu0 0.0
    %2495 = vmatpush1.msra.mxu0 %v2459
    %2496 = vmatprep.subr.mxu0 0.0
    %2497 = vmatpush2.msra.mxu0 0.0
    %2498 = vmatprep.subr.mxu0 0.0
    %2499 = vmatpush2.msra.mxu0 0.0
    %2500 = vmatprep.subr.mxu0 0.0
    %2501 = vmatpush2.msra.mxu0 0.0
    %2502 = vmatprep.subr.mxu0 0.0
    %2503 = vmatpush2.msra.mxu0 0.0
    %2504 = vmatprep.subr.mxu0 0.0
    %2505 = vmatpush2.msra.mxu0 0.0
    %2506 = vmatprep.subr.mxu0 0.0
    %2507 = vmatpush2.msra.mxu0 0.0
    %2508 = vmatprep.subr.mxu0 0.0
    %2509 = vmatpush2.msra.mxu0 0.0
    %2510 = vmatprep.subr.mxu0 0.0
    %2511 = vmatpush2.msra.mxu0 0.0
    %2512 = vmatprep.subr.mxu0 0.0
    %2513 = vmatpush2.msra.mxu0 0.0
    %2514 = vmatprep.subr.mxu0 0.0
    %2515 = vmatpush2.msra.mxu0 0.0
    %2516 = vmatprep.subr.mxu0 0.0
    %2517 = vmatpush2.msra.mxu0 0.0
    %2518 = vmatprep.subr.mxu0 0.0
    %2519 = vmatpush2.msra.mxu0 0.0
    %2520 = vmatprep.subr.mxu0 0.0
    %2521 = vmatpush2.msra.mxu0 0.0
    %2522 = vmatprep.subr.mxu0 0.0
    %2523 = vmatpush2.msra.mxu0 0.0
    %2524 = vmatprep.subr.mxu0 0.0
    %2525 = vmatpush2.msra.mxu0 0.0
    %2526 = vmatprep.subr.mxu0 0.0
    %2527 = vmatpush2.msra.mxu0 0.0
    %2528 = vmatprep.mubr.f32.mxu0 0.0
    %2529 = vmatmul.mubr.f32.gmra.mxu0 %v2462
    %v2530 = vpop.f32.mrf.mxu0
    %v2531 = vadd.f32 0.0, %v2530
    %v2532 = vpop.f32.mrf.mxu0
    %2533 = vdwg.mxu0
    %v2534 = vld [vmem:[%s9 + $0x20] sm:$0xff]
    %v2535 = vmul.f32 %v2531, %v2534
    %v2536 = vld [vmem:[%s8] sm:$0xff]
    %v2537 = vld [vmem:[%s8 + $0x8] sm:$0xff]
    %v2538 = vld [vmem:[%s8 + $0x10] sm:$0xff]
    %v2539 = vld [vmem:[%s8 + $0x18] sm:$0xff]
    %v2540 = vld [vmem:[%s8 + $0x20] sm:$0xff]
    %v2541 = vld [vmem:[%s8 + $0x28] sm:$0xff]
    %v2542 = vld [vmem:[%s8 + $0x30] sm:$0xff]
    %v2543 = vld [vmem:[%s8 + $0x38] sm:$0xff]
    %v2544 = vld [vmem:[%s8 + $0x40] sm:$0xff]
    %v2545 = vld [vmem:[%s8 + $0x48] sm:$0xff]
    %v2546 = vld [vmem:[%s8 + $0x50] sm:$0xff]
    %v2547 = vld [vmem:[%s8 + $0x58] sm:$0xff]
    %v2548 = vld [vmem:[%s8 + $0x60] sm:$0xff]
    %v2549 = vld [vmem:[%s8 + $0x68] sm:$0xff]
    %v2550 = vld [vmem:[%s8 + $0x70] sm:$0xff]
    %v2551 = vld [vmem:[%s8 + $0x78] sm:$0xff]
    %v2553 = vsel %vm63, %v2535, 0
    %2555 = vmatprep.subr.mxu0 0.0
    %2556 = vmatpush1.msra.mxu0 0.0
    %2557 = vmatprep.subr.mxu0 0.0
    %2558 = vmatpush1.msra.mxu0 0.0
    %2559 = vmatprep.subr.mxu0 0.0
    %2560 = vmatpush1.msra.mxu0 0.0
    %2561 = vmatprep.subr.mxu0 0.0
    %2562 = vmatpush1.msra.mxu0 0.0
    %2563 = vmatprep.subr.mxu0 0.0
    %2564 = vmatpush1.msra.mxu0 0.0
    %2565 = vmatprep.subr.mxu0 0.0
    %2566 = vmatpush1.msra.mxu0 0.0
    %2567 = vmatprep.subr.mxu0 0.0
    %2568 = vmatpush1.msra.mxu0 0.0
    %2569 = vmatprep.subr.mxu0 0.0
    %2570 = vmatpush1.msra.mxu0 0.0
    %2571 = vmatprep.subr.mxu0 %v2551
    %2572 = vmatpush1.msra.mxu0 %v2550
    %2573 = vmatprep.subr.mxu0 %v2549
    %2574 = vmatpush1.msra.mxu0 %v2548
    %2575 = vmatprep.subr.mxu0 %v2547
    %2576 = vmatpush1.msra.mxu0 %v2546
    %2577 = vmatprep.subr.mxu0 %v2545
    %2578 = vmatpush1.msra.mxu0 %v2544
    %2579 = vmatprep.subr.mxu0 %v2543
    %2580 = vmatpush1.msra.mxu0 %v2542
    %2581 = vmatprep.subr.mxu0 %v2541
    %2582 = vmatpush1.msra.mxu0 %v2540
    %2583 = vmatprep.subr.mxu0 %v2539
    %2584 = vmatpush1.msra.mxu0 %v2538
    %2585 = vmatprep.subr.mxu0 %v2537
    %2586 = vmatpush1.msra.mxu0 %v2536
    %2587 = vmatprep.subr.mxu0 0.0
    %2588 = vmatpush2.msra.mxu0 0.0
    %2589 = vmatprep.subr.mxu0 0.0
    %2590 = vmatpush2.msra.mxu0 0.0
    %2591 = vmatprep.subr.mxu0 0.0
    %2592 = vmatpush2.msra.mxu0 0.0
    %2593 = vmatprep.subr.mxu0 0.0
    %2594 = vmatpush2.msra.mxu0 0.0
    %2595 = vmatprep.subr.mxu0 0.0
    %2596 = vmatpush2.msra.mxu0 0.0
    %2597 = vmatprep.subr.mxu0 0.0
    %2598 = vmatpush2.msra.mxu0 0.0
    %2599 = vmatprep.subr.mxu0 0.0
    %2600 = vmatpush2.msra.mxu0 0.0
    %2601 = vmatprep.subr.mxu0 0.0
    %2602 = vmatpush2.msra.mxu0 0.0
    %2603 = vmatprep.subr.mxu0 0.0
    %2604 = vmatpush2.msra.mxu0 0.0
    %2605 = vmatprep.subr.mxu0 0.0
    %2606 = vmatpush2.msra.mxu0 0.0
    %2607 = vmatprep.subr.mxu0 0.0
    %2608 = vmatpush2.msra.mxu0 0.0
    %2609 = vmatprep.subr.mxu0 0.0
    %2610 = vmatpush2.msra.mxu0 0.0
    %2611 = vmatprep.subr.mxu0 0.0
    %2612 = vmatpush2.msra.mxu0 0.0
    %2613 = vmatprep.subr.mxu0 0.0
    %2614 = vmatpush2.msra.mxu0 0.0
    %2615 = vmatprep.subr.mxu0 0.0
    %2616 = vmatpush2.msra.mxu0 0.0
    %2617 = vmatprep.subr.mxu0 0.0
    %2618 = vmatpush2.msra.mxu0 0.0
    %2619 = vmatprep.mubr.f32.mxu0 0.0
    %2620 = vmatmul.mubr.f32.gmra.mxu0 %v2553
    %v2621 = vpop.f32.mrf.mxu0
    %v2622 = vadd.f32 0.0, %v2621
    %v2623 = vpop.f32.mrf.mxu0
    %v2624 = vadd.f32 0.0, %v2623
    %2625 = vdwg.mxu0
    %2627 = vrot.lane.b32.xlu0 %v2622, 64
    %v2628 = vpop.permute.xlu0 %2627
    %2631 = vrot.lane.b32.xlu0 %v2624, 64
    %v2632 = vpop.permute.xlu0 %2631
    %v2634 = vld [vmem:[%s9] sm:$0xff]
    %v2635 = vld [vmem:[%s9 + $0x8] sm:$0xff]
    %v2636 = vld [vmem:[%s9 + $0x10] sm:$0xff]
    %v2637 = vld [vmem:[%s9 + $0x18] sm:$0xff]
    %v2638 = vadd.f32 %v2622, %v2634
    %v2639 = vadd.f32 %v2628, %v2635
    %v2640 = vadd.f32 %v2624, %v2636
    %v2641 = vadd.f32 %v2632, %v2637
  $region62: #{x_net_forward.1} parent=0 // loop_footer
    %s56 = sadd.s32 1, %s52
  $region63: #{x_net_forward.1} parent=0 // loop_footer_branch
    %51 = sbr.rel target = $region59
  $region64: #{x_net_forward.1} parent=0 // loop_exit
    _
  %v2642 = vld [vmem:[%s12] sm:$0x1]
  %v2643 = vld [vmem:[%s12 + $0x1] sm:$0x1]
  %vm2644 = vcmask 523264
  %v2645 = vsel %vm2644, %v57, 0.0
  %2646 = vadd.xlane.f32.xlu0 %v2645
  %v2647 = vpop.xlane.xlu0 %2646
  %v2648 = vsel %vm2644, %v58, 0.0
  %2649 = vadd.xlane.f32.xlu0 %v2648
  %v2650 = vpop.xlane.xlu0 %2649
  %v2651 = vsel %vm2644, %v59, 0.0
  %2652 = vadd.xlane.f32.xlu0 %v2651
  %v2653 = vpop.xlane.xlu0 %2652
  %v2654 = vsel %vm2644, %v60, 0.0
  %2655 = vadd.xlane.f32.xlu0 %v2654
  %v2656 = vpop.xlane.xlu0 %2655
  %v2657 = vrcp.pop 64.0
  %v2658 = vmul.f32 %v2647, %v2657
  %v2659 = vmul.f32 %v2650, %v2657
  %v2660 = vmul.f32 %v2653, %v2657
  %v2661 = vmul.f32 %v2656, %v2657
  %v2662 = vsub.f32 %v57, %v2658
  %v2663 = vsub.f32 %v58, %v2659
  %v2664 = vsub.f32 %v59, %v2660
  %v2665 = vsub.f32 %v60, %v2661
  %v2666 = vmul.f32 %v2662, %v2662
  %v2667 = vmul.f32 %v2663, %v2663
  %v2668 = vmul.f32 %v2664, %v2664
  %v2669 = vmul.f32 %v2665, %v2665
  %v2670 = vsel %vm2644, %v2666, 0.0
  %2671 = vadd.xlane.f32.xlu0 %v2670
  %v2672 = vpop.xlane.xlu0 %2671
  %v2673 = vsel %vm2644, %v2667, 0.0
  %2674 = vadd.xlane.f32.xlu0 %v2673
  %v2675 = vpop.xlane.xlu0 %2674
  %v2676 = vsel %vm2644, %v2668, 0.0
  %2677 = vadd.xlane.f32.xlu0 %v2676
  %v2678 = vpop.xlane.xlu0 %2677
  %v2679 = vsel %vm2644, %v2669, 0.0
  %2680 = vadd.xlane.f32.xlu0 %v2679
  %v2681 = vpop.xlane.xlu0 %2680
  %v2682 = vmul.f32 %v2672, %v2657
  %v2683 = vmul.f32 %v2675, %v2657
  %v2684 = vmul.f32 %v2678, %v2657
  %v2685 = vmul.f32 %v2681, %v2657
  %v2686 = vadd.f32 %v2682, 1e-05
  %v2687 = vadd.f32 %v2683, 1e-05
  %v2688 = vadd.f32 %v2684, 1e-05
  %v2689 = vadd.f32 %v2685, 1e-05
  %v2690 = vrsqrt.pop %v2686
  %v2691 = vrsqrt.pop %v2687
  %v2692 = vrsqrt.pop %v2688
  %v2693 = vrsqrt.pop %v2689
  %v2694 = vmul.f32 %v2662, %v2690
  %v2695 = vmul.f32 %v2663, %v2691
  %v2696 = vmul.f32 %v2664, %v2692
  %v2697 = vmul.f32 %v2665, %v2693
  %v2698 = vlaneseq
  %v2699 = vshrl.u32 %v2698, 7
  %v2700 = vsub.s32 0, %v2699
  %v2701 = vrot.slane %v2642, %v2700
  %v2702 = vmul.f32 %v2694, %v2701
  %v2703 = vmul.f32 %v2695, %v2701
  %v2704 = vmul.f32 %v2696, %v2701
  %v2705 = vmul.f32 %v2697, %v2701
  %v2706 = vlaneseq
  %v2707 = vshrl.u32 %v2706, 7
  %v2708 = vsub.s32 0, %v2707
  %v2709 = vrot.slane %v2643, %v2708
  %v2710 = vadd.f32 %v2702, %v2709
  %v2711 = vadd.f32 %v2703, %v2709
  %v2712 = vadd.f32 %v2704, %v2709
  %v2713 = vadd.f32 %v2705, %v2709
  %v2714 = vld [vmem:[%s3] sm:$0xff]
  %v2715 = vld [vmem:[%s3 + $0x8] sm:$0xff]
  %v2716 = vld [vmem:[%s3 + $0x10] sm:$0xff]
  %v2717 = vld [vmem:[%s3 + $0x18] sm:$0xff]
  %v2718 = vld [vmem:[%s3 + $0x20] sm:$0xff]
  %v2719 = vld [vmem:[%s3 + $0x28] sm:$0xff]
  %v2720 = vld [vmem:[%s3 + $0x30] sm:$0xff]
  %v2721 = vld [vmem:[%s3 + $0x38] sm:$0xff]
  %v2722 = vld [vmem:[%s11 + $0x6] sm:$0x1]
  %v2723 = vlaneseq
  %v2724 = vshrl.u32 %v2723, 7
  %v2725 = vsub.s32 0, %v2724
  %v2726 = vrot.slane %v2722, %v2725
  %v2728 = vsel %vm2644, %v2710, 0
  %v2731 = vsel %vm2644, %v2711, 0
  %v2734 = vsel %vm2644, %v2712, 0
  %v2737 = vsel %vm2644, %v2713, 0
  %2739 = vmatprep.subr.mxu0 0.0
  %2740 = vmatpush1.msra.mxu0 0.0
  %2741 = vmatprep.subr.mxu0 0.0
  %2742 = vmatpush1.msra.mxu0 0.0
  %2743 = vmatprep.subr.mxu0 0.0
  %2744 = vmatpush1.msra.mxu0 0.0
  %2745 = vmatprep.subr.mxu0 0.0
  %2746 = vmatpush1.msra.mxu0 0.0
  %2747 = vmatprep.subr.mxu0 0.0
  %2748 = vmatpush1.msra.mxu0 0.0
  %2749 = vmatprep.subr.mxu0 0.0
  %2750 = vmatpush1.msra.mxu0 0.0
  %2751 = vmatprep.subr.mxu0 0.0
  %2752 = vmatpush1.msra.mxu0 0.0
  %2753 = vmatprep.subr.mxu0 0.0
  %2754 = vmatpush1.msra.mxu0 0.0
  %2755 = vmatprep.subr.mxu0 0.0
  %2756 = vmatpush1.msra.mxu0 %v2721
  %2757 = vmatprep.subr.mxu0 0.0
  %2758 = vmatpush1.msra.mxu0 %v2720
  %2759 = vmatprep.subr.mxu0 0.0
  %2760 = vmatpush1.msra.mxu0 %v2719
  %2761 = vmatprep.subr.mxu0 0.0
  %2762 = vmatpush1.msra.mxu0 %v2718
  %2763 = vmatprep.subr.mxu0 0.0
  %2764 = vmatpush1.msra.mxu0 %v2717
  %2765 = vmatprep.subr.mxu0 0.0
  %2766 = vmatpush1.msra.mxu0 %v2716
  %2767 = vmatprep.subr.mxu0 0.0
  %2768 = vmatpush1.msra.mxu0 %v2715
  %2769 = vmatprep.subr.mxu0 0.0
  %2770 = vmatpush1.msra.mxu0 %v2714
  %2771 = vmatprep.subr.mxu0 0.0
  %2772 = vmatpush2.msra.mxu0 0.0
  %2773 = vmatprep.subr.mxu0 0.0
  %2774 = vmatpush2.msra.mxu0 0.0
  %2775 = vmatprep.subr.mxu0 0.0
  %2776 = vmatpush2.msra.mxu0 0.0
  %2777 = vmatprep.subr.mxu0 0.0
  %2778 = vmatpush2.msra.mxu0 0.0
  %2779 = vmatprep.subr.mxu0 0.0
  %2780 = vmatpush2.msra.mxu0 0.0
  %2781 = vmatprep.subr.mxu0 0.0
  %2782 = vmatpush2.msra.mxu0 0.0
  %2783 = vmatprep.subr.mxu0 0.0
  %2784 = vmatpush2.msra.mxu0 0.0
  %2785 = vmatprep.subr.mxu0 0.0
  %2786 = vmatpush2.msra.mxu0 0.0
  %2787 = vmatprep.subr.mxu0 0.0
  %2788 = vmatpush2.msra.mxu0 0.0
  %2789 = vmatprep.subr.mxu0 0.0
  %2790 = vmatpush2.msra.mxu0 0.0
  %2791 = vmatprep.subr.mxu0 0.0
  %2792 = vmatpush2.msra.mxu0 0.0
  %2793 = vmatprep.subr.mxu0 0.0
  %2794 = vmatpush2.msra.mxu0 0.0
  %2795 = vmatprep.subr.mxu0 0.0
  %2796 = vmatpush2.msra.mxu0 0.0
  %2797 = vmatprep.subr.mxu0 0.0
  %2798 = vmatpush2.msra.mxu0 0.0
  %2799 = vmatprep.subr.mxu0 0.0
  %2800 = vmatpush2.msra.mxu0 0.0
  %2801 = vmatprep.subr.mxu0 0.0
  %2802 = vmatpush2.msra.mxu0 0.0
  %2803 = vmatprep.mubr.f32.mxu0 0.0
  %2804 = vmatmul.mubr.f32.gmra.mxu0 %v2728
  %v2805 = vpop.f32.mrf.mxu0
  %v2806 = vadd.f32 %v2726, %v2805
  %v2807 = vpop.f32.mrf.mxu0
  %2808 = vmatprep.mubr.f32.mxu0 0.0
  %2809 = vmatmul.mubr.f32.gmra.mxu0 %v2731
  %v2810 = vpop.f32.mrf.mxu0
  %v2811 = vadd.f32 %v2726, %v2810
  %v2812 = vpop.f32.mrf.mxu0
  %2813 = vmatprep.mubr.f32.mxu0 0.0
  %2814 = vmatmul.mubr.f32.gmra.mxu0 %v2734
  %v2815 = vpop.f32.mrf.mxu0
  %v2816 = vadd.f32 %v2726, %v2815
  %v2817 = vpop.f32.mrf.mxu0
  %2818 = vmatprep.mubr.f32.mxu0 0.0
  %2819 = vmatmul.mubr.f32.gmra.mxu0 %v2737
  %v2820 = vpop.f32.mrf.mxu0
  %v2821 = vadd.f32 %v2726, %v2820
  %v2822 = vpop.f32.mrf.mxu0
  %2823 = vdwg.mxu0
  %v2824 = vld [vmem:[%s11] sm:$0x1]
  %v2825 = vld [vmem:[%s11 + $0x1] sm:$0x1]
  %vm2826 = vcmask 130048
  %v2827 = vsel %vm2826, %v2806, 0.0
  %2828 = vadd.xlane.f32.xlu0 %v2827
  %v2829 = vpop.xlane.xlu0 %2828
  %v2830 = vsel %vm2826, %v2811, 0.0
  %2831 = vadd.xlane.f32.xlu0 %v2830
  %v2832 = vpop.xlane.xlu0 %2831
  %v2833 = vsel %vm2826, %v2816, 0.0
  %2834 = vadd.xlane.f32.xlu0 %v2833
  %v2835 = vpop.xlane.xlu0 %2834
  %v2836 = vsel %vm2826, %v2821, 0.0
  %2837 = vadd.xlane.f32.xlu0 %v2836
  %v2838 = vpop.xlane.xlu0 %2837
  %v2839 = vrcp.pop 16.0
  %v2840 = vmul.f32 %v2829, %v2839
  %v2841 = vmul.f32 %v2832, %v2839
  %v2842 = vmul.f32 %v2835, %v2839
  %v2843 = vmul.f32 %v2838, %v2839
  %v2844 = vsub.f32 %v2806, %v2840
  %v2845 = vsub.f32 %v2811, %v2841
  %v2846 = vsub.f32 %v2816, %v2842
  %v2847 = vsub.f32 %v2821, %v2843
  %v2848 = vmul.f32 %v2844, %v2844
  %v2849 = vmul.f32 %v2845, %v2845
  %v2850 = vmul.f32 %v2846, %v2846
  %v2851 = vmul.f32 %v2847, %v2847
  %v2852 = vsel %vm2826, %v2848, 0.0
  %2853 = vadd.xlane.f32.xlu0 %v2852
  %v2854 = vpop.xlane.xlu0 %2853
  %v2855 = vsel %vm2826, %v2849, 0.0
  %2856 = vadd.xlane.f32.xlu0 %v2855
  %v2857 = vpop.xlane.xlu0 %2856
  %v2858 = vsel %vm2826, %v2850, 0.0
  %2859 = vadd.xlane.f32.xlu0 %v2858
  %v2860 = vpop.xlane.xlu0 %2859
  %v2861 = vsel %vm2826, %v2851, 0.0
  %2862 = vadd.xlane.f32.xlu0 %v2861
  %v2863 = vpop.xlane.xlu0 %2862
  %v2864 = vmul.f32 %v2854, %v2839
  %v2865 = vmul.f32 %v2857, %v2839
  %v2866 = vmul.f32 %v2860, %v2839
  %v2867 = vmul.f32 %v2863, %v2839
  %v2868 = vadd.f32 %v2864, 1e-05
  %v2869 = vadd.f32 %v2865, 1e-05
  %v2870 = vadd.f32 %v2866, 1e-05
  %v2871 = vadd.f32 %v2867, 1e-05
  %v2872 = vrsqrt.pop %v2868
  %v2873 = vrsqrt.pop %v2869
  %v2874 = vrsqrt.pop %v2870
  %v2875 = vrsqrt.pop %v2871
  %v2876 = vmul.f32 %v2844, %v2872
  %v2877 = vmul.f32 %v2845, %v2873
  %v2878 = vmul.f32 %v2846, %v2874
  %v2879 = vmul.f32 %v2847, %v2875
  %v2880 = vlaneseq
  %v2881 = vshrl.u32 %v2880, 7
  %v2882 = vsub.s32 0, %v2881
  %v2883 = vrot.slane %v2824, %v2882
  %v2884 = vmul.f32 %v2876, %v2883
  %v2885 = vmul.f32 %v2877, %v2883
  %v2886 = vmul.f32 %v2878, %v2883
  %v2887 = vmul.f32 %v2879, %v2883
  %v2888 = vlaneseq
  %v2889 = vshrl.u32 %v2888, 7
  %v2890 = vsub.s32 0, %v2889
  %v2891 = vrot.slane %v2825, %v2890
  %v2892 = vadd.f32 %v2884, %v2891
  %v2893 = vadd.f32 %v2885, %v2891
  %v2894 = vadd.f32 %v2886, %v2891
  %v2895 = vadd.f32 %v2887, %v2891
  %v2896 = vld [vmem:[%s2] sm:$0xff]
  %v2897 = vld [vmem:[%s2 + $0x8] sm:$0xff]
  %v2898 = vld [vmem:[%s2 + $0x10] sm:$0xff]
  %v2899 = vld [vmem:[%s2 + $0x18] sm:$0xff]
  %v2900 = vadd.f32 %v2892, %v2896
  %v2901 = vadd.f32 %v2893, %v2897
  %v2902 = vadd.f32 %v2894, %v2898
  %v2903 = vadd.f32 %v2895, %v2899
  %v2904 = vld [vmem:[%s11 + $0x2] sm:$0x1]
  %v2905 = vld [vmem:[%s11 + $0x3] sm:$0x1]
  %v2906 = vsel %vm2826, %v2900, 0.0
  %2907 = vadd.xlane.f32.xlu0 %v2906
  %v2908 = vpop.xlane.xlu0 %2907
  %v2909 = vsel %vm2826, %v2901, 0.0
  %2910 = vadd.xlane.f32.xlu0 %v2909
  %v2911 = vpop.xlane.xlu0 %2910
  %v2912 = vsel %vm2826, %v2902, 0.0
  %2913 = vadd.xlane.f32.xlu0 %v2912
  %v2914 = vpop.xlane.xlu0 %2913
  %v2915 = vsel %vm2826, %v2903, 0.0
  %2916 = vadd.xlane.f32.xlu0 %v2915
  %v2917 = vpop.xlane.xlu0 %2916
  %v2918 = vmul.f32 %v2908, %v2839
  %v2919 = vmul.f32 %v2911, %v2839
  %v2920 = vmul.f32 %v2914, %v2839
  %v2921 = vmul.f32 %v2917, %v2839
  %v2922 = vsub.f32 %v2900, %v2918
  %v2923 = vsub.f32 %v2901, %v2919
  %v2924 = vsub.f32 %v2902, %v2920
  %v2925 = vsub.f32 %v2903, %v2921
  %v2926 = vmul.f32 %v2922, %v2922
  %v2927 = vmul.f32 %v2923, %v2923
  %v2928 = vmul.f32 %v2924, %v2924
  %v2929 = vmul.f32 %v2925, %v2925
  %v2930 = vsel %vm2826, %v2926, 0.0
  %2931 = vadd.xlane.f32.xlu0 %v2930
  %v2932 = vpop.xlane.xlu0 %2931
  %v2933 = vsel %vm2826, %v2927, 0.0
  %2934 = vadd.xlane.f32.xlu0 %v2933
  %v2935 = vpop.xlane.xlu0 %2934
  %v2936 = vsel %vm2826, %v2928, 0.0
  %2937 = vadd.xlane.f32.xlu0 %v2936
  %v2938 = vpop.xlane.xlu0 %2937
  %v2939 = vsel %vm2826, %v2929, 0.0
  %2940 = vadd.xlane.f32.xlu0 %v2939
  %v2941 = vpop.xlane.xlu0 %2940
  %v2942 = vmul.f32 %v2932, %v2839
  %v2943 = vmul.f32 %v2935, %v2839
  %v2944 = vmul.f32 %v2938, %v2839
  %v2945 = vmul.f32 %v2941, %v2839
  %v2946 = vadd.f32 %v2942, 1e-05
  %v2947 = vadd.f32 %v2943, 1e-05
  %v2948 = vadd.f32 %v2944, 1e-05
  %v2949 = vadd.f32 %v2945, 1e-05
  %v2950 = vrsqrt.pop %v2946
  %v2951 = vrsqrt.pop %v2947
  %v2952 = vrsqrt.pop %v2948
  %v2953 = vrsqrt.pop %v2949
  %v2954 = vmul.f32 %v2922, %v2950
  %v2955 = vmul.f32 %v2923, %v2951
  %v2956 = vmul.f32 %v2924, %v2952
  %v2957 = vmul.f32 %v2925, %v2953
  %v2958 = vlaneseq
  %v2959 = vshrl.u32 %v2958, 7
  %v2960 = vsub.s32 0, %v2959
  %v2961 = vrot.slane %v2904, %v2960
  %v2962 = vmul.f32 %v2954, %v2961
  %v2963 = vmul.f32 %v2955, %v2961
  %v2964 = vmul.f32 %v2956, %v2961
  %v2965 = vmul.f32 %v2957, %v2961
  %v2966 = vlaneseq
  %v2967 = vshrl.u32 %v2966, 7
  %v2968 = vsub.s32 0, %v2967
  %v2969 = vrot.slane %v2905, %v2968
  %v2970 = vadd.f32 %v2962, %v2969
  %v2971 = vadd.f32 %v2963, %v2969
  %v2972 = vadd.f32 %v2964, %v2969
  %v2973 = vadd.f32 %v2965, %v2969
  %v2974 = vld [vmem:[%s4] sm:$0xff]
  %v2975 = vld [vmem:[%s4 + $0x8] sm:$0xff]
  %v2976 = vld [vmem:[%s4 + $0x10] sm:$0xff]
  %v2977 = vld [vmem:[%s4 + $0x18] sm:$0xff]
  %v2978 = vld [vmem:[%s4 + $0x20] sm:$0xff]
  %v2979 = vld [vmem:[%s4 + $0x28] sm:$0xff]
  %v2980 = vld [vmem:[%s4 + $0x30] sm:$0xff]
  %v2981 = vld [vmem:[%s4 + $0x38] sm:$0xff]
  %v2982 = vld [vmem:[%s4 + $0x40] sm:$0xff]
  %v2983 = vld [vmem:[%s4 + $0x48] sm:$0xff]
  %v2984 = vld [vmem:[%s4 + $0x50] sm:$0xff]
  %v2985 = vld [vmem:[%s4 + $0x58] sm:$0xff]
  %v2986 = vld [vmem:[%s4 + $0x60] sm:$0xff]
  %v2987 = vld [vmem:[%s4 + $0x68] sm:$0xff]
  %v2988 = vld [vmem:[%s4 + $0x70] sm:$0xff]
  %v2989 = vld [vmem:[%s4 + $0x78] sm:$0xff]
  %v2990 = vld [vmem:[%s4 + $0x80] sm:$0xff]
  %v2991 = vld [vmem:[%s4 + $0x88] sm:$0xff]
  %v2992 = vld [vmem:[%s4 + $0x90] sm:$0xff]
  %v2993 = vld [vmem:[%s4 + $0x98] sm:$0xff]
  %v2994 = vld [vmem:[%s4 + $0xa0] sm:$0xff]
  %v2995 = vld [vmem:[%s4 + $0xa8] sm:$0xff]
  %v2996 = vld [vmem:[%s4 + $0xb0] sm:$0xff]
  %v2997 = vld [vmem:[%s4 + $0xb8] sm:$0xff]
  %v2999 = vsel %vm2826, %v2970, 0
  %v3002 = vsel %vm2826, %v2971, 0
  %v3005 = vsel %vm2826, %v2972, 0
  %v3008 = vsel %vm2826, %v2973, 0
  %3010 = vmatprep.subr.mxu0 0.0
  %3011 = vmatpush1.msra.mxu0 0.0
  %3012 = vmatprep.subr.mxu0 0.0
  %3013 = vmatpush1.msra.mxu0 0.0
  %3014 = vmatprep.subr.mxu0 0.0
  %3015 = vmatpush1.msra.mxu0 0.0
  %3016 = vmatprep.subr.mxu0 0.0
  %3017 = vmatpush1.msra.mxu0 0.0
  %3018 = vmatprep.subr.mxu0 0.0
  %3019 = vmatpush1.msra.mxu0 0.0
  %3020 = vmatprep.subr.mxu0 0.0
  %3021 = vmatpush1.msra.mxu0 0.0
  %3022 = vmatprep.subr.mxu0 0.0
  %3023 = vmatpush1.msra.mxu0 0.0
  %3024 = vmatprep.subr.mxu0 0.0
  %3025 = vmatpush1.msra.mxu0 0.0
  %3026 = vmatprep.subr.mxu0 0.0
  %3027 = vmatpush1.msra.mxu0 0.0
  %3028 = vmatprep.subr.mxu0 0.0
  %3029 = vmatpush1.msra.mxu0 0.0
  %3030 = vmatprep.subr.mxu0 0.0
  %3031 = vmatpush1.msra.mxu0 0.0
  %3032 = vmatprep.subr.mxu0 0.0
  %3033 = vmatpush1.msra.mxu0 0.0
  %3034 = vmatprep.subr.mxu0 0.0
  %3035 = vmatpush1.msra.mxu0 0.0
  %3036 = vmatprep.subr.mxu0 0.0
  %3037 = vmatpush1.msra.mxu0 0.0
  %3038 = vmatprep.subr.mxu0 %v2987
  %3039 = vmatpush1.msra.mxu0 %v2986
  %3040 = vmatprep.subr.mxu0 %v2975
  %3041 = vmatpush1.msra.mxu0 %v2974
  %3042 = vmatprep.subr.mxu0 0.0
  %3043 = vmatpush2.msra.mxu0 0.0
  %3044 = vmatprep.subr.mxu0 0.0
  %3045 = vmatpush2.msra.mxu0 0.0
  %3046 = vmatprep.subr.mxu0 0.0
  %3047 = vmatpush2.msra.mxu0 0.0
  %3048 = vmatprep.subr.mxu0 0.0
  %3049 = vmatpush2.msra.mxu0 0.0
  %3050 = vmatprep.subr.mxu0 0.0
  %3051 = vmatpush2.msra.mxu0 0.0
  %3052 = vmatprep.subr.mxu0 0.0
  %3053 = vmatpush2.msra.mxu0 0.0
  %3054 = vmatprep.subr.mxu0 0.0
  %3055 = vmatpush2.msra.mxu0 0.0
  %3056 = vmatprep.subr.mxu0 0.0
  %3057 = vmatpush2.msra.mxu0 0.0
  %3058 = vmatprep.subr.mxu0 0.0
  %3059 = vmatpush2.msra.mxu0 0.0
  %3060 = vmatprep.subr.mxu0 0.0
  %3061 = vmatpush2.msra.mxu0 0.0
  %3062 = vmatprep.subr.mxu0 0.0
  %3063 = vmatpush2.msra.mxu0 0.0
  %3064 = vmatprep.subr.mxu0 0.0
  %3065 = vmatpush2.msra.mxu0 0.0
  %3066 = vmatprep.subr.mxu0 0.0
  %3067 = vmatpush2.msra.mxu0 0.0
  %3068 = vmatprep.subr.mxu0 0.0
  %3069 = vmatpush2.msra.mxu0 0.0
  %3070 = vmatprep.subr.mxu0 0.0
  %3071 = vmatpush2.msra.mxu0 0.0
  %3072 = vmatprep.subr.mxu0 0.0
  %3073 = vmatpush2.msra.mxu0 0.0
  %3074 = vmatprep.mubr.f32.mxu0 0.0
  %3075 = vmatmul.mubr.f32.gmra.mxu0 %v2999
  %v3076 = vpop.f32.mrf.mxu0
  %v3077 = vadd.f32 0.0, %v3076
  %v3078 = vpop.f32.mrf.mxu0
  %v3079 = vadd.f32 0.0, %v3078
  %3080 = vmatprep.mubr.f32.mxu0 0.0
  %3081 = vmatmul.mubr.f32.gmra.mxu0 %v3002
  %v3082 = vpop.f32.mrf.mxu0
  %v3083 = vadd.f32 0.0, %v3082
  %v3084 = vpop.f32.mrf.mxu0
  %v3085 = vadd.f32 0.0, %v3084
  %3086 = vmatprep.mubr.f32.mxu0 0.0
  %3087 = vmatmul.mubr.f32.gmra.mxu0 %v3005
  %v3088 = vpop.f32.mrf.mxu0
  %v3089 = vadd.f32 0.0, %v3088
  %v3090 = vpop.f32.mrf.mxu0
  %v3091 = vadd.f32 0.0, %v3090
  %3092 = vmatprep.mubr.f32.mxu0 0.0
  %3093 = vmatmul.mubr.f32.gmra.mxu0 %v3008
  %v3094 = vpop.f32.mrf.mxu0
  %v3095 = vadd.f32 0.0, %v3094
  %v3096 = vpop.f32.mrf.mxu0
  %v3097 = vadd.f32 0.0, %v3096
  %3098 = vdwg.mxu0
  %3099 = vmatprep.subr.mxu0 0.0
  %3100 = vmatpush1.msra.mxu0 0.0
  %3101 = vmatprep.subr.mxu0 0.0
  %3102 = vmatpush1.msra.mxu0 0.0
  %3103 = vmatprep.subr.mxu0 0.0
  %3104 = vmatpush1.msra.mxu0 0.0
  %3105 = vmatprep.subr.mxu0 0.0
  %3106 = vmatpush1.msra.mxu0 0.0
  %3107 = vmatprep.subr.mxu0 0.0
  %3108 = vmatpush1.msra.mxu0 0.0
  %3109 = vmatprep.subr.mxu0 0.0
  %3110 = vmatpush1.msra.mxu0 0.0
  %3111 = vmatprep.subr.mxu0 0.0
  %3112 = vmatpush1.msra.mxu0 0.0
  %3113 = vmatprep.subr.mxu0 0.0
  %3114 = vmatpush1.msra.mxu0 0.0
  %3115 = vmatprep.subr.mxu0 0.0
  %3116 = vmatpush1.msra.mxu0 0.0
  %3117 = vmatprep.subr.mxu0 0.0
  %3118 = vmatpush1.msra.mxu0 0.0
  %3119 = vmatprep.subr.mxu0 0.0
  %3120 = vmatpush1.msra.mxu0 0.0
  %3121 = vmatprep.subr.mxu0 0.0
  %3122 = vmatpush1.msra.mxu0 0.0
  %3123 = vmatprep.subr.mxu0 0.0
  %3124 = vmatpush1.msra.mxu0 0.0
  %3125 = vmatprep.subr.mxu0 0.0
  %3126 = vmatpush1.msra.mxu0 0.0
  %3127 = vmatprep.subr.mxu0 %v2989
  %3128 = vmatpush1.msra.mxu0 %v2988
  %3129 = vmatprep.subr.mxu0 %v2977
  %3130 = vmatpush1.msra.mxu0 %v2976
  %3131 = vmatprep.subr.mxu0 0.0
  %3132 = vmatpush2.msra.mxu0 0.0
  %3133 = vmatprep.subr.mxu0 0.0
  %3134 = vmatpush2.msra.mxu0 0.0
  %3135 = vmatprep.subr.mxu0 0.0
  %3136 = vmatpush2.msra.mxu0 0.0
  %3137 = vmatprep.subr.mxu0 0.0
  %3138 = vmatpush2.msra.mxu0 0.0
  %3139 = vmatprep.subr.mxu0 0.0
  %3140 = vmatpush2.msra.mxu0 0.0
  %3141 = vmatprep.subr.mxu0 0.0
  %3142 = vmatpush2.msra.mxu0 0.0
  %3143 = vmatprep.subr.mxu0 0.0
  %3144 = vmatpush2.msra.mxu0 0.0
  %3145 = vmatprep.subr.mxu0 0.0
  %3146 = vmatpush2.msra.mxu0 0.0
  %3147 = vmatprep.subr.mxu0 0.0
  %3148 = vmatpush2.msra.mxu0 0.0
  %3149 = vmatprep.subr.mxu0 0.0
  %3150 = vmatpush2.msra.mxu0 0.0
  %3151 = vmatprep.subr.mxu0 0.0
  %3152 = vmatpush2.msra.mxu0 0.0
  %3153 = vmatprep.subr.mxu0 0.0
  %3154 = vmatpush2.msra.mxu0 0.0
  %3155 = vmatprep.subr.mxu0 0.0
  %3156 = vmatpush2.msra.mxu0 0.0
  %3157 = vmatprep.subr.mxu0 0.0
  %3158 = vmatpush2.msra.mxu0 0.0
  %3159 = vmatprep.subr.mxu0 0.0
  %3160 = vmatpush2.msra.mxu0 0.0
  %3161 = vmatprep.subr.mxu0 0.0
  %3162 = vmatpush2.msra.mxu0 0.0
  %3163 = vmatprep.mubr.f32.mxu0 0.0
  %3164 = vmatmul.mubr.f32.gmra.mxu0 %v2999
  %v3165 = vpop.f32.mrf.mxu0
  %v3166 = vadd.f32 0.0, %v3165
  %v3167 = vpop.f32.mrf.mxu0
  %v3168 = vadd.f32 0.0, %v3167
  %3169 = vmatprep.mubr.f32.mxu0 0.0
  %3170 = vmatmul.mubr.f32.gmra.mxu0 %v3002
  %v3171 = vpop.f32.mrf.mxu0
  %v3172 = vadd.f32 0.0, %v3171
  %v3173 = vpop.f32.mrf.mxu0
  %v3174 = vadd.f32 0.0, %v3173
  %3175 = vmatprep.mubr.f32.mxu0 0.0
  %3176 = vmatmul.mubr.f32.gmra.mxu0 %v3005
  %v3177 = vpop.f32.mrf.mxu0
  %v3178 = vadd.f32 0.0, %v3177
  %v3179 = vpop.f32.mrf.mxu0
  %v3180 = vadd.f32 0.0, %v3179
  %3181 = vmatprep.mubr.f32.mxu0 0.0
  %3182 = vmatmul.mubr.f32.gmra.mxu0 %v3008
  %v3183 = vpop.f32.mrf.mxu0
  %v3184 = vadd.f32 0.0, %v3183
  %v3185 = vpop.f32.mrf.mxu0
  %v3186 = vadd.f32 0.0, %v3185
  %3187 = vdwg.mxu0
  %3188 = vmatprep.subr.mxu0 0.0
  %3189 = vmatpush1.msra.mxu0 0.0
  %3190 = vmatprep.subr.mxu0 0.0
  %3191 = vmatpush1.msra.mxu0 0.0
  %3192 = vmatprep.subr.mxu0 0.0
  %3193 = vmatpush1.msra.mxu0 0.0
  %3194 = vmatprep.subr.mxu0 0.0
  %3195 = vmatpush1.msra.mxu0 0.0
  %3196 = vmatprep.subr.mxu0 0.0
  %3197 = vmatpush1.msra.mxu0 0.0
  %3198 = vmatprep.subr.mxu0 0.0
  %3199 = vmatpush1.msra.mxu0 0.0
  %3200 = vmatprep.subr.mxu0 0.0
  %3201 = vmatpush1.msra.mxu0 0.0
  %3202 = vmatprep.subr.mxu0 0.0
  %3203 = vmatpush1.msra.mxu0 0.0
  %3204 = vmatprep.subr.mxu0 0.0
  %3205 = vmatpush1.msra.mxu0 0.0
  %3206 = vmatprep.subr.mxu0 0.0
  %3207 = vmatpush1.msra.mxu0 0.0
  %3208 = vmatprep.subr.mxu0 0.0
  %3209 = vmatpush1.msra.mxu0 0.0
  %3210 = vmatprep.subr.mxu0 0.0
  %3211 = vmatpush1.msra.mxu0 0.0
  %3212 = vmatprep.subr.mxu0 0.0
  %3213 = vmatpush1.msra.mxu0 0.0
  %3214 = vmatprep.subr.mxu0 0.0
  %3215 = vmatpush1.msra.mxu0 0.0
  %3216 = vmatprep.subr.mxu0 %v2991
  %3217 = vmatpush1.msra.mxu0 %v2990
  %3218 = vmatprep.subr.mxu0 %v2979
  %3219 = vmatpush1.msra.mxu0 %v2978
  %3220 = vmatprep.subr.mxu0 0.0
  %3221 = vmatpush2.msra.mxu0 0.0
  %3222 = vmatprep.subr.mxu0 0.0
  %3223 = vmatpush2.msra.mxu0 0.0
  %3224 = vmatprep.subr.mxu0 0.0
  %3225 = vmatpush2.msra.mxu0 0.0
  %3226 = vmatprep.subr.mxu0 0.0
  %3227 = vmatpush2.msra.mxu0 0.0
  %3228 = vmatprep.subr.mxu0 0.0
  %3229 = vmatpush2.msra.mxu0 0.0
  %3230 = vmatprep.subr.mxu0 0.0
  %3231 = vmatpush2.msra.mxu0 0.0
  %3232 = vmatprep.subr.mxu0 0.0
  %3233 = vmatpush2.msra.mxu0 0.0
  %3234 = vmatprep.subr.mxu0 0.0
  %3235 = vmatpush2.msra.mxu0 0.0
  %3236 = vmatprep.subr.mxu0 0.0
  %3237 = vmatpush2.msra.mxu0 0.0
  %3238 = vmatprep.subr.mxu0 0.0
  %3239 = vmatpush2.msra.mxu0 0.0
  %3240 = vmatprep.subr.mxu0 0.0
  %3241 = vmatpush2.msra.mxu0 0.0
  %3242 = vmatprep.subr.mxu0 0.0
  %3243 = vmatpush2.msra.mxu0 0.0
  %3244 = vmatprep.subr.mxu0 0.0
  %3245 = vmatpush2.msra.mxu0 0.0
  %3246 = vmatprep.subr.mxu0 0.0
  %3247 = vmatpush2.msra.mxu0 0.0
  %3248 = vmatprep.subr.mxu0 0.0
  %3249 = vmatpush2.msra.mxu0 0.0
  %3250 = vmatprep.subr.mxu0 0.0
  %3251 = vmatpush2.msra.mxu0 0.0
  %3252 = vmatprep.mubr.f32.mxu0 0.0
  %3253 = vmatmul.mubr.f32.gmra.mxu0 %v2999
  %v3254 = vpop.f32.mrf.mxu0
  %v3255 = vadd.f32 0.0, %v3254
  %v3256 = vpop.f32.mrf.mxu0
  %v3257 = vadd.f32 0.0, %v3256
  %3258 = vmatprep.mubr.f32.mxu0 0.0
  %3259 = vmatmul.mubr.f32.gmra.mxu0 %v3002
  %v3260 = vpop.f32.mrf.mxu0
  %v3261 = vadd.f32 0.0, %v3260
  %v3262 = vpop.f32.mrf.mxu0
  %v3263 = vadd.f32 0.0, %v3262
  %3264 = vmatprep.mubr.f32.mxu0 0.0
  %3265 = vmatmul.mubr.f32.gmra.mxu0 %v3005
  %v3266 = vpop.f32.mrf.mxu0
  %v3267 = vadd.f32 0.0, %v3266
  %v3268 = vpop.f32.mrf.mxu0
  %v3269 = vadd.f32 0.0, %v3268
  %3270 = vmatprep.mubr.f32.mxu0 0.0
  %3271 = vmatmul.mubr.f32.gmra.mxu0 %v3008
  %v3272 = vpop.f32.mrf.mxu0
  %v3273 = vadd.f32 0.0, %v3272
  %v3274 = vpop.f32.mrf.mxu0
  %v3275 = vadd.f32 0.0, %v3274
  %3276 = vdwg.mxu0
  %3277 = vmatprep.subr.mxu0 0.0
  %3278 = vmatpush1.msra.mxu0 0.0
  %3279 = vmatprep.subr.mxu0 0.0
  %3280 = vmatpush1.msra.mxu0 0.0
  %3281 = vmatprep.subr.mxu0 0.0
  %3282 = vmatpush1.msra.mxu0 0.0
  %3283 = vmatprep.subr.mxu0 0.0
  %3284 = vmatpush1.msra.mxu0 0.0
  %3285 = vmatprep.subr.mxu0 0.0
  %3286 = vmatpush1.msra.mxu0 0.0
  %3287 = vmatprep.subr.mxu0 0.0
  %3288 = vmatpush1.msra.mxu0 0.0
  %3289 = vmatprep.subr.mxu0 0.0
  %3290 = vmatpush1.msra.mxu0 0.0
  %3291 = vmatprep.subr.mxu0 0.0
  %3292 = vmatpush1.msra.mxu0 0.0
  %3293 = vmatprep.subr.mxu0 0.0
  %3294 = vmatpush1.msra.mxu0 0.0
  %3295 = vmatprep.subr.mxu0 0.0
  %3296 = vmatpush1.msra.mxu0 0.0
  %3297 = vmatprep.subr.mxu0 0.0
  %3298 = vmatpush1.msra.mxu0 0.0
  %3299 = vmatprep.subr.mxu0 0.0
  %3300 = vmatpush1.msra.mxu0 0.0
  %3301 = vmatprep.subr.mxu0 0.0
  %3302 = vmatpush1.msra.mxu0 0.0
  %3303 = vmatprep.subr.mxu0 0.0
  %3304 = vmatpush1.msra.mxu0 0.0
  %3305 = vmatprep.subr.mxu0 %v2993
  %3306 = vmatpush1.msra.mxu0 %v2992
  %3307 = vmatprep.subr.mxu0 %v2981
  %3308 = vmatpush1.msra.mxu0 %v2980
  %3309 = vmatprep.subr.mxu0 0.0
  %3310 = vmatpush2.msra.mxu0 0.0
  %3311 = vmatprep.subr.mxu0 0.0
  %3312 = vmatpush2.msra.mxu0 0.0
  %3313 = vmatprep.subr.mxu0 0.0
  %3314 = vmatpush2.msra.mxu0 0.0
  %3315 = vmatprep.subr.mxu0 0.0
  %3316 = vmatpush2.msra.mxu0 0.0
  %3317 = vmatprep.subr.mxu0 0.0
  %3318 = vmatpush2.msra.mxu0 0.0
  %3319 = vmatprep.subr.mxu0 0.0
  %3320 = vmatpush2.msra.mxu0 0.0
  %3321 = vmatprep.subr.mxu0 0.0
  %3322 = vmatpush2.msra.mxu0 0.0
  %3323 = vmatprep.subr.mxu0 0.0
  %3324 = vmatpush2.msra.mxu0 0.0
  %3325 = vmatprep.subr.mxu0 0.0
  %3326 = vmatpush2.msra.mxu0 0.0
  %3327 = vmatprep.subr.mxu0 0.0
  %3328 = vmatpush2.msra.mxu0 0.0
  %3329 = vmatprep.subr.mxu0 0.0
  %3330 = vmatpush2.msra.mxu0 0.0
  %3331 = vmatprep.subr.mxu0 0.0
  %3332 = vmatpush2.msra.mxu0 0.0
  %3333 = vmatprep.subr.mxu0 0.0
  %3334 = vmatpush2.msra.mxu0 0.0
  %3335 = vmatprep.subr.mxu0 0.0
  %3336 = vmatpush2.msra.mxu0 0.0
  %3337 = vmatprep.subr.mxu0 0.0
  %3338 = vmatpush2.msra.mxu0 0.0
  %3339 = vmatprep.subr.mxu0 0.0
  %3340 = vmatpush2.msra.mxu0 0.0
  %3341 = vmatprep.mubr.f32.mxu0 0.0
  %3342 = vmatmul.mubr.f32.gmra.mxu0 %v2999
  %v3343 = vpop.f32.mrf.mxu0
  %v3344 = vadd.f32 0.0, %v3343
  %v3345 = vpop.f32.mrf.mxu0
  %v3346 = vadd.f32 0.0, %v3345
  %3347 = vmatprep.mubr.f32.mxu0 0.0
  %3348 = vmatmul.mubr.f32.gmra.mxu0 %v3002
  %v3349 = vpop.f32.mrf.mxu0
  %v3350 = vadd.f32 0.0, %v3349
  %v3351 = vpop.f32.mrf.mxu0
  %v3352 = vadd.f32 0.0, %v3351
  %3353 = vmatprep.mubr.f32.mxu0 0.0
  %3354 = vmatmul.mubr.f32.gmra.mxu0 %v3005
  %v3355 = vpop.f32.mrf.mxu0
  %v3356 = vadd.f32 0.0, %v3355
  %v3357 = vpop.f32.mrf.mxu0
  %v3358 = vadd.f32 0.0, %v3357
  %3359 = vmatprep.mubr.f32.mxu0 0.0
  %3360 = vmatmul.mubr.f32.gmra.mxu0 %v3008
  %v3361 = vpop.f32.mrf.mxu0
  %v3362 = vadd.f32 0.0, %v3361
  %v3363 = vpop.f32.mrf.mxu0
  %v3364 = vadd.f32 0.0, %v3363
  %3365 = vdwg.mxu0
  %3366 = vmatprep.subr.mxu0 0.0
  %3367 = vmatpush1.msra.mxu0 0.0
  %3368 = vmatprep.subr.mxu0 0.0
  %3369 = vmatpush1.msra.mxu0 0.0
  %3370 = vmatprep.subr.mxu0 0.0
  %3371 = vmatpush1.msra.mxu0 0.0
  %3372 = vmatprep.subr.mxu0 0.0
  %3373 = vmatpush1.msra.mxu0 0.0
  %3374 = vmatprep.subr.mxu0 0.0
  %3375 = vmatpush1.msra.mxu0 0.0
  %3376 = vmatprep.subr.mxu0 0.0
  %3377 = vmatpush1.msra.mxu0 0.0
  %3378 = vmatprep.subr.mxu0 0.0
  %3379 = vmatpush1.msra.mxu0 0.0
  %3380 = vmatprep.subr.mxu0 0.0
  %3381 = vmatpush1.msra.mxu0 0.0
  %3382 = vmatprep.subr.mxu0 0.0
  %3383 = vmatpush1.msra.mxu0 0.0
  %3384 = vmatprep.subr.mxu0 0.0
  %3385 = vmatpush1.msra.mxu0 0.0
  %3386 = vmatprep.subr.mxu0 0.0
  %3387 = vmatpush1.msra.mxu0 0.0
  %3388 = vmatprep.subr.mxu0 0.0
  %3389 = vmatpush1.msra.mxu0 0.0
  %3390 = vmatprep.subr.mxu0 0.0
  %3391 = vmatpush1.msra.mxu0 0.0
  %3392 = vmatprep.subr.mxu0 0.0
  %3393 = vmatpush1.msra.mxu0 0.0
  %3394 = vmatprep.subr.mxu0 %v2995
  %3395 = vmatpush1.msra.mxu0 %v2994
  %3396 = vmatprep.subr.mxu0 %v2983
  %3397 = vmatpush1.msra.mxu0 %v2982
  %3398 = vmatprep.subr.mxu0 0.0
  %3399 = vmatpush2.msra.mxu0 0.0
  %3400 = vmatprep.subr.mxu0 0.0
  %3401 = vmatpush2.msra.mxu0 0.0
  %3402 = vmatprep.subr.mxu0 0.0
  %3403 = vmatpush2.msra.mxu0 0.0
  %3404 = vmatprep.subr.mxu0 0.0
  %3405 = vmatpush2.msra.mxu0 0.0
  %3406 = vmatprep.subr.mxu0 0.0
  %3407 = vmatpush2.msra.mxu0 0.0
  %3408 = vmatprep.subr.mxu0 0.0
  %3409 = vmatpush2.msra.mxu0 0.0
  %3410 = vmatprep.subr.mxu0 0.0
  %3411 = vmatpush2.msra.mxu0 0.0
  %3412 = vmatprep.subr.mxu0 0.0
  %3413 = vmatpush2.msra.mxu0 0.0
  %3414 = vmatprep.subr.mxu0 0.0
  %3415 = vmatpush2.msra.mxu0 0.0
  %3416 = vmatprep.subr.mxu0 0.0
  %3417 = vmatpush2.msra.mxu0 0.0
  %3418 = vmatprep.subr.mxu0 0.0
  %3419 = vmatpush2.msra.mxu0 0.0
  %3420 = vmatprep.subr.mxu0 0.0
  %3421 = vmatpush2.msra.mxu0 0.0
  %3422 = vmatprep.subr.mxu0 0.0
  %3423 = vmatpush2.msra.mxu0 0.0
  %3424 = vmatprep.subr.mxu0 0.0
  %3425 = vmatpush2.msra.mxu0 0.0
  %3426 = vmatprep.subr.mxu0 0.0
  %3427 = vmatpush2.msra.mxu0 0.0
  %3428 = vmatprep.subr.mxu0 0.0
  %3429 = vmatpush2.msra.mxu0 0.0
  %3430 = vmatprep.mubr.f32.mxu0 0.0
  %3431 = vmatmul.mubr.f32.gmra.mxu0 %v2999
  %v3432 = vpop.f32.mrf.mxu0
  %v3433 = vadd.f32 0.0, %v3432
  %v3434 = vpop.f32.mrf.mxu0
  %v3435 = vadd.f32 0.0, %v3434
  %3436 = vmatprep.mubr.f32.mxu0 0.0
  %3437 = vmatmul.mubr.f32.gmra.mxu0 %v3002
  %v3438 = vpop.f32.mrf.mxu0
  %v3439 = vadd.f32 0.0, %v3438
  %v3440 = vpop.f32.mrf.mxu0
  %v3441 = vadd.f32 0.0, %v3440
  %3442 = vmatprep.mubr.f32.mxu0 0.0
  %3443 = vmatmul.mubr.f32.gmra.mxu0 %v3005
  %v3444 = vpop.f32.mrf.mxu0
  %v3445 = vadd.f32 0.0, %v3444
  %v3446 = vpop.f32.mrf.mxu0
  %v3447 = vadd.f32 0.0, %v3446
  %3448 = vmatprep.mubr.f32.mxu0 0.0
  %3449 = vmatmul.mubr.f32.gmra.mxu0 %v3008
  %v3450 = vpop.f32.mrf.mxu0
  %v3451 = vadd.f32 0.0, %v3450
  %v3452 = vpop.f32.mrf.mxu0
  %v3453 = vadd.f32 0.0, %v3452
  %3454 = vdwg.mxu0
  %3455 = vmatprep.subr.mxu0 0.0
  %3456 = vmatpush1.msra.mxu0 0.0
  %3457 = vmatprep.subr.mxu0 0.0
  %3458 = vmatpush1.msra.mxu0 0.0
  %3459 = vmatprep.subr.mxu0 0.0
  %3460 = vmatpush1.msra.mxu0 0.0
  %3461 = vmatprep.subr.mxu0 0.0
  %3462 = vmatpush1.msra.mxu0 0.0
  %3463 = vmatprep.subr.mxu0 0.0
  %3464 = vmatpush1.msra.mxu0 0.0
  %3465 = vmatprep.subr.mxu0 0.0
  %3466 = vmatpush1.msra.mxu0 0.0
  %3467 = vmatprep.subr.mxu0 0.0
  %3468 = vmatpush1.msra.mxu0 0.0
  %3469 = vmatprep.subr.mxu0 0.0
  %3470 = vmatpush1.msra.mxu0 0.0
  %3471 = vmatprep.subr.mxu0 0.0
  %3472 = vmatpush1.msra.mxu0 0.0
  %3473 = vmatprep.subr.mxu0 0.0
  %3474 = vmatpush1.msra.mxu0 0.0
  %3475 = vmatprep.subr.mxu0 0.0
  %3476 = vmatpush1.msra.mxu0 0.0
  %3477 = vmatprep.subr.mxu0 0.0
  %3478 = vmatpush1.msra.mxu0 0.0
  %3479 = vmatprep.subr.mxu0 0.0
  %3480 = vmatpush1.msra.mxu0 0.0
  %3481 = vmatprep.subr.mxu0 0.0
  %3482 = vmatpush1.msra.mxu0 0.0
  %3483 = vmatprep.subr.mxu0 %v2997
  %3484 = vmatpush1.msra.mxu0 %v2996
  %3485 = vmatprep.subr.mxu0 %v2985
  %3486 = vmatpush1.msra.mxu0 %v2984
  %3487 = vmatprep.subr.mxu0 0.0
  %3488 = vmatpush2.msra.mxu0 0.0
  %3489 = vmatprep.subr.mxu0 0.0
  %3490 = vmatpush2.msra.mxu0 0.0
  %3491 = vmatprep.subr.mxu0 0.0
  %3492 = vmatpush2.msra.mxu0 0.0
  %3493 = vmatprep.subr.mxu0 0.0
  %3494 = vmatpush2.msra.mxu0 0.0
  %3495 = vmatprep.subr.mxu0 0.0
  %3496 = vmatpush2.msra.mxu0 0.0
  %3497 = vmatprep.subr.mxu0 0.0
  %3498 = vmatpush2.msra.mxu0 0.0
  %3499 = vmatprep.subr.mxu0 0.0
  %3500 = vmatpush2.msra.mxu0 0.0
  %3501 = vmatprep.subr.mxu0 0.0
  %3502 = vmatpush2.msra.mxu0 0.0
  %3503 = vmatprep.subr.mxu0 0.0
  %3504 = vmatpush2.msra.mxu0 0.0
  %3505 = vmatprep.subr.mxu0 0.0
  %3506 = vmatpush2.msra.mxu0 0.0
  %3507 = vmatprep.subr.mxu0 0.0
  %3508 = vmatpush2.msra.mxu0 0.0
  %3509 = vmatprep.subr.mxu0 0.0
  %3510 = vmatpush2.msra.mxu0 0.0
  %3511 = vmatprep.subr.mxu0 0.0
  %3512 = vmatpush2.msra.mxu0 0.0
  %3513 = vmatprep.subr.mxu0 0.0
  %3514 = vmatpush2.msra.mxu0 0.0
  %3515 = vmatprep.subr.mxu0 0.0
  %3516 = vmatpush2.msra.mxu0 0.0
  %3517 = vmatprep.subr.mxu0 0.0
  %3518 = vmatpush2.msra.mxu0 0.0
  %3519 = vmatprep.mubr.f32.mxu0 0.0
  %3520 = vmatmul.mubr.f32.gmra.mxu0 %v2999
  %v3521 = vpop.f32.mrf.mxu0
  %v3522 = vadd.f32 0.0, %v3521
  %v3523 = vpop.f32.mrf.mxu0
  %v3524 = vadd.f32 0.0, %v3523
  %3525 = vmatprep.mubr.f32.mxu0 0.0
  %3526 = vmatmul.mubr.f32.gmra.mxu0 %v3002
  %v3527 = vpop.f32.mrf.mxu0
  %v3528 = vadd.f32 0.0, %v3527
  %v3529 = vpop.f32.mrf.mxu0
  %v3530 = vadd.f32 0.0, %v3529
  %3531 = vmatprep.mubr.f32.mxu0 0.0
  %3532 = vmatmul.mubr.f32.gmra.mxu0 %v3005
  %v3533 = vpop.f32.mrf.mxu0
  %v3534 = vadd.f32 0.0, %v3533
  %v3535 = vpop.f32.mrf.mxu0
  %v3536 = vadd.f32 0.0, %v3535
  %3537 = vmatprep.mubr.f32.mxu0 0.0
  %3538 = vmatmul.mubr.f32.gmra.mxu0 %v3008
  %v3539 = vpop.f32.mrf.mxu0
  %v3540 = vadd.f32 0.0, %v3539
  %v3541 = vpop.f32.mrf.mxu0
  %v3542 = vadd.f32 0.0, %v3541
  %3543 = vdwg.mxu0
  %v3544 = vld [vmem:[%s1] sm:$0xff]
  %v3545 = vld [vmem:[%s1 + $0x8] sm:$0xff]
  %v3546 = vld [vmem:[%s1 + $0x10] sm:$0xff]
  %v3547 = vld [vmem:[%s1 + $0x18] sm:$0xff]
  %v3548 = vld [vmem:[%s1 + $0x20] sm:$0xff]
  %v3549 = vld [vmem:[%s1 + $0x28] sm:$0xff]
  %v3550 = vld [vmem:[%s1 + $0x30] sm:$0xff]
  %v3551 = vld [vmem:[%s1 + $0x38] sm:$0xff]
  %v3552 = vld [vmem:[%s1 + $0x40] sm:$0xff]
  %v3553 = vld [vmem:[%s1 + $0x48] sm:$0xff]
  %v3554 = vld [vmem:[%s1 + $0x50] sm:$0xff]
  %v3555 = vld [vmem:[%s1 + $0x58] sm:$0xff]
  %v3556 = vld [vmem:[%s1 + $0x60] sm:$0xff]
  %v3557 = vld [vmem:[%s1 + $0x68] sm:$0xff]
  %v3558 = vld [vmem:[%s1 + $0x70] sm:$0xff]
  %v3559 = vld [vmem:[%s1 + $0x78] sm:$0xff]
  %3560 = vmatprep.subr.mxu0 0.0
  %3561 = vmatpush1.xpose.msra.mxu0 %v3364
  %3562 = vmatprep.subr.mxu0 0.0
  %3563 = vmatpush1.xpose.msra.mxu0 %v3358
  %3564 = vmatprep.subr.mxu0 0.0
  %3565 = vmatpush1.xpose.msra.mxu0 %v3352
  %3566 = vmatprep.subr.mxu0 0.0
  %3567 = vmatpush1.xpose.msra.mxu0 %v3346
  %3568 = vmatprep.subr.mxu0 0.0
  %3569 = vmatpush1.xpose.msra.mxu0 %v3362
  %3570 = vmatprep.subr.mxu0 0.0
  %3571 = vmatpush1.xpose.msra.mxu0 %v3356
  %3572 = vmatprep.subr.mxu0 0.0
  %3573 = vmatpush1.xpose.msra.mxu0 %v3350
  %3574 = vmatprep.subr.mxu0 0.0
  %3575 = vmatpush1.xpose.msra.mxu0 %v3344
  %3576 = vmatprep.subr.mxu0 0.0
  %3577 = vmatpush1.xpose.msra.mxu0 %v3275
  %3578 = vmatprep.subr.mxu0 0.0
  %3579 = vmatpush1.xpose.msra.mxu0 %v3269
  %3580 = vmatprep.subr.mxu0 0.0
  %3581 = vmatpush1.xpose.msra.mxu0 %v3263
  %3582 = vmatprep.subr.mxu0 0.0
  %3583 = vmatpush1.xpose.msra.mxu0 %v3257
  %3584 = vmatprep.subr.mxu0 0.0
  %3585 = vmatpush1.xpose.msra.mxu0 %v3273
  %3586 = vmatprep.subr.mxu0 0.0
  %3587 = vmatpush1.xpose.msra.mxu0 %v3267
  %3588 = vmatprep.subr.mxu0 0.0
  %3589 = vmatpush1.xpose.msra.mxu0 %v3261
  %3590 = vmatprep.subr.mxu0 0.0
  %3591 = vmatpush1.xpose.msra.mxu0 %v3255
  %3592 = vmatprep.subr.mxu0 0.0
  %3593 = vmatpush2.xpose.msra.mxu0 0.0
  %3594 = vmatprep.subr.mxu0 0.0
  %3595 = vmatpush2.xpose.msra.mxu0 0.0
  %3596 = vmatprep.subr.mxu0 0.0
  %3597 = vmatpush2.xpose.msra.mxu0 0.0
  %3598 = vmatprep.subr.mxu0 0.0
  %3599 = vmatpush2.xpose.msra.mxu0 0.0
  %3600 = vmatprep.subr.mxu0 0.0
  %3601 = vmatpush2.xpose.msra.mxu0 0.0
  %3602 = vmatprep.subr.mxu0 0.0
  %3603 = vmatpush2.xpose.msra.mxu0 0.0
  %3604 = vmatprep.subr.mxu0 0.0
  %3605 = vmatpush2.xpose.msra.mxu0 0.0
  %3606 = vmatprep.subr.mxu0 0.0
  %3607 = vmatpush2.xpose.msra.mxu0 0.0
  %3608 = vmatprep.subr.mxu0 0.0
  %3609 = vmatpush2.xpose.msra.mxu0 0.0
  %3610 = vmatprep.subr.mxu0 0.0
  %3611 = vmatpush2.xpose.msra.mxu0 0.0
  %3612 = vmatprep.subr.mxu0 0.0
  %3613 = vmatpush2.xpose.msra.mxu0 0.0
  %3614 = vmatprep.subr.mxu0 0.0
  %3615 = vmatpush2.xpose.msra.mxu0 0.0
  %3616 = vmatprep.subr.mxu0 0.0
  %3617 = vmatpush2.xpose.msra.mxu0 0.0
  %3618 = vmatprep.subr.mxu0 0.0
  %3619 = vmatpush2.xpose.msra.mxu0 0.0
  %3620 = vmatprep.subr.mxu0 0.0
  %3621 = vmatpush2.xpose.msra.mxu0 0.0
  %3622 = vmatprep.subr.mxu0 0.0
  %3623 = vmatpush2.xpose.msra.mxu0 0.0
  %3624 = vmatprep.mubr.f32.mxu0 0.0
  %3625 = vmatmul.mubr.f32.gmra.mxu0 %v3077
  %v3626 = vpop.f32.mrf.mxu0
  %v3627 = vadd.f32 %v3544, %v3626
  %v3628 = vpop.f32.mrf.mxu0
  %3629 = vmatprep.mubr.f32.mxu0 0.0
  %3630 = vmatmul.mubr.f32.gmra.mxu0 %v3083
  %v3631 = vpop.f32.mrf.mxu0
  %v3632 = vadd.f32 %v3545, %v3631
  %v3633 = vpop.f32.mrf.mxu0
  %3634 = vmatprep.mubr.f32.mxu0 0.0
  %3635 = vmatmul.mubr.f32.gmra.mxu0 %v3089
  %v3636 = vpop.f32.mrf.mxu0
  %v3637 = vadd.f32 %v3546, %v3636
  %v3638 = vpop.f32.mrf.mxu0
  %3639 = vmatprep.mubr.f32.mxu0 0.0
  %3640 = vmatmul.mubr.f32.gmra.mxu0 %v3095
  %v3641 = vpop.f32.mrf.mxu0
  %v3642 = vadd.f32 %v3547, %v3641
  %v3643 = vpop.f32.mrf.mxu0
  %3644 = vmatprep.mubr.f32.mxu0 0.0
  %3645 = vmatmul.mubr.f32.gmra.mxu0 %v3079
  %v3646 = vpop.f32.mrf.mxu0
  %v3647 = vadd.f32 %v3548, %v3646
  %v3648 = vpop.f32.mrf.mxu0
  %3649 = vmatprep.mubr.f32.mxu0 0.0
  %3650 = vmatmul.mubr.f32.gmra.mxu0 %v3085
  %v3651 = vpop.f32.mrf.mxu0
  %v3652 = vadd.f32 %v3549, %v3651
  %v3653 = vpop.f32.mrf.mxu0
  %3654 = vmatprep.mubr.f32.mxu0 0.0
  %3655 = vmatmul.mubr.f32.gmra.mxu0 %v3091
  %v3656 = vpop.f32.mrf.mxu0
  %v3657 = vadd.f32 %v3550, %v3656
  %v3658 = vpop.f32.mrf.mxu0
  %3659 = vmatprep.mubr.f32.mxu0 0.0
  %3660 = vmatmul.mubr.f32.gmra.mxu0 %v3097
  %v3661 = vpop.f32.mrf.mxu0
  %v3662 = vadd.f32 %v3551, %v3661
  %v3663 = vpop.f32.mrf.mxu0
  %3664 = vmatprep.mubr.f32.mxu0 0.0
  %3665 = vmatmul.mubr.f32.gmra.mxu0 %v3166
  %v3666 = vpop.f32.mrf.mxu0
  %v3667 = vadd.f32 %v3552, %v3666
  %v3668 = vpop.f32.mrf.mxu0
  %3669 = vmatprep.mubr.f32.mxu0 0.0
  %3670 = vmatmul.mubr.f32.gmra.mxu0 %v3172
  %v3671 = vpop.f32.mrf.mxu0
  %v3672 = vadd.f32 %v3553, %v3671
  %v3673 = vpop.f32.mrf.mxu0
  %3674 = vmatprep.mubr.f32.mxu0 0.0
  %3675 = vmatmul.mubr.f32.gmra.mxu0 %v3178
  %v3676 = vpop.f32.mrf.mxu0
  %v3677 = vadd.f32 %v3554, %v3676
  %v3678 = vpop.f32.mrf.mxu0
  %3679 = vmatprep.mubr.f32.mxu0 0.0
  %3680 = vmatmul.mubr.f32.gmra.mxu0 %v3184
  %v3681 = vpop.f32.mrf.mxu0
  %v3682 = vadd.f32 %v3555, %v3681
  %v3683 = vpop.f32.mrf.mxu0
  %3684 = vmatprep.mubr.f32.mxu0 0.0
  %3685 = vmatmul.mubr.f32.gmra.mxu0 %v3168
  %v3686 = vpop.f32.mrf.mxu0
  %v3687 = vadd.f32 %v3556, %v3686
  %v3688 = vpop.f32.mrf.mxu0
  %3689 = vmatprep.mubr.f32.mxu0 0.0
  %3690 = vmatmul.mubr.f32.gmra.mxu0 %v3174
  %v3691 = vpop.f32.mrf.mxu0
  %v3692 = vadd.f32 %v3557, %v3691
  %v3693 = vpop.f32.mrf.mxu0
  %3694 = vmatprep.mubr.f32.mxu0 0.0
  %3695 = vmatmul.mubr.f32.gmra.mxu0 %v3180
  %v3696 = vpop.f32.mrf.mxu0
  %v3697 = vadd.f32 %v3558, %v3696
  %v3698 = vpop.f32.mrf.mxu0
  %3699 = vmatprep.mubr.f32.mxu0 0.0
  %3700 = vmatmul.mubr.f32.gmra.mxu0 %v3186
  %v3701 = vpop.f32.mrf.mxu0
  %v3702 = vadd.f32 %v3559, %v3701
  %v3703 = vpop.f32.mrf.mxu0
  %3704 = vdwg.mxu0
  %3705 = vmax.xlane.f32.xlu0 %v3627
  %v3706 = vpop.xlane.xlu0 %3705
  %3707 = vmax.xlane.f32.xlu0 %v3632
  %v3708 = vpop.xlane.xlu0 %3707
  %3709 = vmax.xlane.f32.xlu0 %v3637
  %v3710 = vpop.xlane.xlu0 %3709
  %3711 = vmax.xlane.f32.xlu0 %v3642
  %v3712 = vpop.xlane.xlu0 %3711
  %3713 = vmax.xlane.f32.xlu0 %v3647
  %v3714 = vpop.xlane.xlu0 %3713
  %3715 = vmax.xlane.f32.xlu0 %v3652
  %v3716 = vpop.xlane.xlu0 %3715
  %3717 = vmax.xlane.f32.xlu0 %v3657
  %v3718 = vpop.xlane.xlu0 %3717
  %3719 = vmax.xlane.f32.xlu0 %v3662
  %v3720 = vpop.xlane.xlu0 %3719
  %3721 = vmax.xlane.f32.xlu0 %v3667
  %v3722 = vpop.xlane.xlu0 %3721
  %3723 = vmax.xlane.f32.xlu0 %v3672
  %v3724 = vpop.xlane.xlu0 %3723
  %3725 = vmax.xlane.f32.xlu0 %v3677
  %v3726 = vpop.xlane.xlu0 %3725
  %3727 = vmax.xlane.f32.xlu0 %v3682
  %v3728 = vpop.xlane.xlu0 %3727
  %3729 = vmax.xlane.f32.xlu0 %v3687
  %v3730 = vpop.xlane.xlu0 %3729
  %3731 = vmax.xlane.f32.xlu0 %v3692
  %v3732 = vpop.xlane.xlu0 %3731
  %3733 = vmax.xlane.f32.xlu0 %v3697
  %v3734 = vpop.xlane.xlu0 %3733
  %3735 = vmax.xlane.f32.xlu0 %v3702
  %v3736 = vpop.xlane.xlu0 %3735
  %v3737 = vsub.f32 %v3627, %v3706
  %v3738 = vsub.f32 %v3632, %v3708
  %v3739 = vsub.f32 %v3637, %v3710
  %v3740 = vsub.f32 %v3642, %v3712
  %v3741 = vsub.f32 %v3647, %v3714
  %v3742 = vsub.f32 %v3652, %v3716
  %v3743 = vsub.f32 %v3657, %v3718
  %v3744 = vsub.f32 %v3662, %v3720
  %v3745 = vsub.f32 %v3667, %v3722
  %v3746 = vsub.f32 %v3672, %v3724
  %v3747 = vsub.f32 %v3677, %v3726
  %v3748 = vsub.f32 %v3682, %v3728
  %v3749 = vsub.f32 %v3687, %v3730
  %v3750 = vsub.f32 %v3692, %v3732
  %v3751 = vsub.f32 %v3697, %v3734
  %v3752 = vsub.f32 %v3702, %v3736
  %v3753 = vmul.f32 %v3737, 1.442695
  %v3754 = vpow.pop %v3753
  %v3755 = vmul.f32 %v3738, 1.442695
  %v3756 = vpow.pop %v3755
  %v3757 = vmul.f32 %v3739, 1.442695
  %v3758 = vpow.pop %v3757
  %v3759 = vmul.f32 %v3740, 1.442695
  %v3760 = vpow.pop %v3759
  %v3761 = vmul.f32 %v3741, 1.442695
  %v3762 = vpow.pop %v3761
  %v3763 = vmul.f32 %v3742, 1.442695
  %v3764 = vpow.pop %v3763
  %v3765 = vmul.f32 %v3743, 1.442695
  %v3766 = vpow.pop %v3765
  %v3767 = vmul.f32 %v3744, 1.442695
  %v3768 = vpow.pop %v3767
  %v3769 = vmul.f32 %v3745, 1.442695
  %v3770 = vpow.pop %v3769
  %v3771 = vmul.f32 %v3746, 1.442695
  %v3772 = vpow.pop %v3771
  %v3773 = vmul.f32 %v3747, 1.442695
  %v3774 = vpow.pop %v3773
  %v3775 = vmul.f32 %v3748, 1.442695
  %v3776 = vpow.pop %v3775
  %v3777 = vmul.f32 %v3749, 1.442695
  %v3778 = vpow.pop %v3777
  %v3779 = vmul.f32 %v3750, 1.442695
  %v3780 = vpow.pop %v3779
  %v3781 = vmul.f32 %v3751, 1.442695
  %v3782 = vpow.pop %v3781
  %v3783 = vmul.f32 %v3752, 1.442695
  %v3784 = vpow.pop %v3783
  %3785 = vadd.xlane.f32.xlu0 %v3754
  %v3786 = vpop.xlane.xlu0 %3785
  %3787 = vadd.xlane.f32.xlu0 %v3756
  %v3788 = vpop.xlane.xlu0 %3787
  %3789 = vadd.xlane.f32.xlu0 %v3758
  %v3790 = vpop.xlane.xlu0 %3789
  %3791 = vadd.xlane.f32.xlu0 %v3760
  %v3792 = vpop.xlane.xlu0 %3791
  %3793 = vadd.xlane.f32.xlu0 %v3762
  %v3794 = vpop.xlane.xlu0 %3793
  %3795 = vadd.xlane.f32.xlu0 %v3764
  %v3796 = vpop.xlane.xlu0 %3795
  %3797 = vadd.xlane.f32.xlu0 %v3766
  %v3798 = vpop.xlane.xlu0 %3797
  %3799 = vadd.xlane.f32.xlu0 %v3768
  %v3800 = vpop.xlane.xlu0 %3799
  %3801 = vadd.xlane.f32.xlu0 %v3770
  %v3802 = vpop.xlane.xlu0 %3801
  %3803 = vadd.xlane.f32.xlu0 %v3772
  %v3804 = vpop.xlane.xlu0 %3803
  %3805 = vadd.xlane.f32.xlu0 %v3774
  %v3806 = vpop.xlane.xlu0 %3805
  %3807 = vadd.xlane.f32.xlu0 %v3776
  %v3808 = vpop.xlane.xlu0 %3807
  %3809 = vadd.xlane.f32.xlu0 %v3778
  %v3810 = vpop.xlane.xlu0 %3809
  %3811 = vadd.xlane.f32.xlu0 %v3780
  %v3812 = vpop.xlane.xlu0 %3811
  %3813 = vadd.xlane.f32.xlu0 %v3782
  %v3814 = vpop.xlane.xlu0 %3813
  %3815 = vadd.xlane.f32.xlu0 %v3784
  %v3816 = vpop.xlane.xlu0 %3815
  %v3817 = vrcp.pop %v3786
  %v3818 = vrcp.pop %v3788
  %v3819 = vrcp.pop %v3790
  %v3820 = vrcp.pop %v3792
  %v3821 = vrcp.pop %v3794
  %v3822 = vrcp.pop %v3796
  %v3823 = vrcp.pop %v3798
  %v3824 = vrcp.pop %v3800
  %v3825 = vrcp.pop %v3802
  %v3826 = vrcp.pop %v3804
  %v3827 = vrcp.pop %v3806
  %v3828 = vrcp.pop %v3808
  %v3829 = vrcp.pop %v3810
  %v3830 = vrcp.pop %v3812
  %v3831 = vrcp.pop %v3814
  %v3832 = vrcp.pop %v3816
  %v3833 = vmul.f32 %v3754, %v3817
  %v3834 = vmul.f32 %v3756, %v3818
  %v3835 = vmul.f32 %v3758, %v3819
  %v3836 = vmul.f32 %v3760, %v3820
  %v3837 = vmul.f32 %v3762, %v3821
  %v3838 = vmul.f32 %v3764, %v3822
  %v3839 = vmul.f32 %v3766, %v3823
  %v3840 = vmul.f32 %v3768, %v3824
  %v3841 = vmul.f32 %v3770, %v3825
  %v3842 = vmul.f32 %v3772, %v3826
  %v3843 = vmul.f32 %v3774, %v3827
  %v3844 = vmul.f32 %v3776, %v3828
  %v3845 = vmul.f32 %v3778, %v3829
  %v3846 = vmul.f32 %v3780, %v3830
  %v3847 = vmul.f32 %v3782, %v3831
  %v3848 = vmul.f32 %v3784, %v3832
  %3849 = vmatprep.subr.mxu0 0.0
  %3850 = vmatpush1.msra.mxu0 %v3542
  %3851 = vmatprep.subr.mxu0 0.0
  %3852 = vmatpush1.msra.mxu0 %v3536
  %3853 = vmatprep.subr.mxu0 0.0
  %3854 = vmatpush1.msra.mxu0 %v3530
  %3855 = vmatprep.subr.mxu0 0.0
  %3856 = vmatpush1.msra.mxu0 %v3524
  %3857 = vmatprep.subr.mxu0 0.0
  %3858 = vmatpush1.msra.mxu0 %v3540
  %3859 = vmatprep.subr.mxu0 0.0
  %3860 = vmatpush1.msra.mxu0 %v3534
  %3861 = vmatprep.subr.mxu0 0.0
  %3862 = vmatpush1.msra.mxu0 %v3528
  %3863 = vmatprep.subr.mxu0 0.0
  %3864 = vmatpush1.msra.mxu0 %v3522
  %3865 = vmatprep.subr.mxu0 0.0
  %3866 = vmatpush1.msra.mxu0 %v3453
  %3867 = vmatprep.subr.mxu0 0.0
  %3868 = vmatpush1.msra.mxu0 %v3447
  %3869 = vmatprep.subr.mxu0 0.0
  %3870 = vmatpush1.msra.mxu0 %v3441
  %3871 = vmatprep.subr.mxu0 0.0
  %3872 = vmatpush1.msra.mxu0 %v3435
  %3873 = vmatprep.subr.mxu0 0.0
  %3874 = vmatpush1.msra.mxu0 %v3451
  %3875 = vmatprep.subr.mxu0 0.0
  %3876 = vmatpush1.msra.mxu0 %v3445
  %3877 = vmatprep.subr.mxu0 0.0
  %3878 = vmatpush1.msra.mxu0 %v3439
  %3879 = vmatprep.subr.mxu0 0.0
  %3880 = vmatpush1.msra.mxu0 %v3433
  %3881 = vmatprep.subr.mxu0 0.0
  %3882 = vmatpush2.msra.mxu0 0.0
  %3883 = vmatprep.subr.mxu0 0.0
  %3884 = vmatpush2.msra.mxu0 0.0
  %3885 = vmatprep.subr.mxu0 0.0
  %3886 = vmatpush2.msra.mxu0 0.0
  %3887 = vmatprep.subr.mxu0 0.0
  %3888 = vmatpush2.msra.mxu0 0.0
  %3889 = vmatprep.subr.mxu0 0.0
  %3890 = vmatpush2.msra.mxu0 0.0
  %3891 = vmatprep.subr.mxu0 0.0
  %3892 = vmatpush2.msra.mxu0 0.0
  %3893 = vmatprep.subr.mxu0 0.0
  %3894 = vmatpush2.msra.mxu0 0.0
  %3895 = vmatprep.subr.mxu0 0.0
  %3896 = vmatpush2.msra.mxu0 0.0
  %3897 = vmatprep.subr.mxu0 0.0
  %3898 = vmatpush2.msra.mxu0 0.0
  %3899 = vmatprep.subr.mxu0 0.0
  %3900 = vmatpush2.msra.mxu0 0.0
  %3901 = vmatprep.subr.mxu0 0.0
  %3902 = vmatpush2.msra.mxu0 0.0
  %3903 = vmatprep.subr.mxu0 0.0
  %3904 = vmatpush2.msra.mxu0 0.0
  %3905 = vmatprep.subr.mxu0 0.0
  %3906 = vmatpush2.msra.mxu0 0.0
  %3907 = vmatprep.subr.mxu0 0.0
  %3908 = vmatpush2.msra.mxu0 0.0
  %3909 = vmatprep.subr.mxu0 0.0
  %3910 = vmatpush2.msra.mxu0 0.0
  %3911 = vmatprep.subr.mxu0 0.0
  %3912 = vmatpush2.msra.mxu0 0.0
  %3913 = vmatprep.mubr.f32.mxu0 0.0
  %3914 = vmatmul.mubr.f32.gmra.mxu0 %v3833
  %v3915 = vpop.f32.mrf.mxu0
  %v3916 = vadd.f32 0.0, %v3915
  %v3917 = vpop.f32.mrf.mxu0
  %3918 = vmatprep.mubr.f32.mxu0 0.0
  %3919 = vmatmul.mubr.f32.gmra.mxu0 %v3834
  %v3920 = vpop.f32.mrf.mxu0
  %v3921 = vadd.f32 0.0, %v3920
  %v3922 = vpop.f32.mrf.mxu0
  %3923 = vmatprep.mubr.f32.mxu0 0.0
  %3924 = vmatmul.mubr.f32.gmra.mxu0 %v3835
  %v3925 = vpop.f32.mrf.mxu0
  %v3926 = vadd.f32 0.0, %v3925
  %v3927 = vpop.f32.mrf.mxu0
  %3928 = vmatprep.mubr.f32.mxu0 0.0
  %3929 = vmatmul.mubr.f32.gmra.mxu0 %v3836
  %v3930 = vpop.f32.mrf.mxu0
  %v3931 = vadd.f32 0.0, %v3930
  %v3932 = vpop.f32.mrf.mxu0
  %3933 = vmatprep.mubr.f32.mxu0 0.0
  %3934 = vmatmul.mubr.f32.gmra.mxu0 %v3837
  %v3935 = vpop.f32.mrf.mxu0
  %v3936 = vadd.f32 0.0, %v3935
  %v3937 = vpop.f32.mrf.mxu0
  %3938 = vmatprep.mubr.f32.mxu0 0.0
  %3939 = vmatmul.mubr.f32.gmra.mxu0 %v3838
  %v3940 = vpop.f32.mrf.mxu0
  %v3941 = vadd.f32 0.0, %v3940
  %v3942 = vpop.f32.mrf.mxu0
  %3943 = vmatprep.mubr.f32.mxu0 0.0
  %3944 = vmatmul.mubr.f32.gmra.mxu0 %v3839
  %v3945 = vpop.f32.mrf.mxu0
  %v3946 = vadd.f32 0.0, %v3945
  %v3947 = vpop.f32.mrf.mxu0
  %3948 = vmatprep.mubr.f32.mxu0 0.0
  %3949 = vmatmul.mubr.f32.gmra.mxu0 %v3840
  %v3950 = vpop.f32.mrf.mxu0
  %v3951 = vadd.f32 0.0, %v3950
  %v3952 = vpop.f32.mrf.mxu0
  %3953 = vmatprep.mubr.f32.mxu0 0.0
  %3954 = vmatmul.mubr.f32.gmra.mxu0 %v3841
  %v3955 = vpop.f32.mrf.mxu0
  %v3956 = vadd.f32 0.0, %v3955
  %v3957 = vpop.f32.mrf.mxu0
  %3958 = vmatprep.mubr.f32.mxu0 0.0
  %3959 = vmatmul.mubr.f32.gmra.mxu0 %v3842
  %v3960 = vpop.f32.mrf.mxu0
  %v3961 = vadd.f32 0.0, %v3960
  %v3962 = vpop.f32.mrf.mxu0
  %3963 = vmatprep.mubr.f32.mxu0 0.0
  %3964 = vmatmul.mubr.f32.gmra.mxu0 %v3843
  %v3965 = vpop.f32.mrf.mxu0
  %v3966 = vadd.f32 0.0, %v3965
  %v3967 = vpop.f32.mrf.mxu0
  %3968 = vmatprep.mubr.f32.mxu0 0.0
  %3969 = vmatmul.mubr.f32.gmra.mxu0 %v3844
  %v3970 = vpop.f32.mrf.mxu0
  %v3971 = vadd.f32 0.0, %v3970
  %v3972 = vpop.f32.mrf.mxu0
  %3973 = vmatprep.mubr.f32.mxu0 0.0
  %3974 = vmatmul.mubr.f32.gmra.mxu0 %v3845
  %v3975 = vpop.f32.mrf.mxu0
  %v3976 = vadd.f32 0.0, %v3975
  %v3977 = vpop.f32.mrf.mxu0
  %3978 = vmatprep.mubr.f32.mxu0 0.0
  %3979 = vmatmul.mubr.f32.gmra.mxu0 %v3846
  %v3980 = vpop.f32.mrf.mxu0
  %v3981 = vadd.f32 0.0, %v3980
  %v3982 = vpop.f32.mrf.mxu0
  %3983 = vmatprep.mubr.f32.mxu0 0.0
  %3984 = vmatmul.mubr.f32.gmra.mxu0 %v3847
  %v3985 = vpop.f32.mrf.mxu0
  %v3986 = vadd.f32 0.0, %v3985
  %v3987 = vpop.f32.mrf.mxu0
  %3988 = vmatprep.mubr.f32.mxu0 0.0
  %3989 = vmatmul.mubr.f32.gmra.mxu0 %v3848
  %v3990 = vpop.f32.mrf.mxu0
  %v3991 = vadd.f32 0.0, %v3990
  %v3992 = vpop.f32.mrf.mxu0
  %3993 = vdwg.mxu0
  %v3994 = vld [vmem:[%s5] sm:$0xff]
  %v3995 = vld [vmem:[%s5 + $0x8] sm:$0xff]
  %v3996 = vld [vmem:[%s5 + $0x10] sm:$0xff]
  %v3997 = vld [vmem:[%s5 + $0x18] sm:$0xff]
  %v3998 = vld [vmem:[%s5 + $0x20] sm:$0xff]
  %v3999 = vld [vmem:[%s5 + $0x28] sm:$0xff]
  %v4000 = vld [vmem:[%s5 + $0x30] sm:$0xff]
  %v4001 = vld [vmem:[%s5 + $0x38] sm:$0xff]
  %v4002 = vld [vmem:[%s5 + $0x40] sm:$0xff]
  %v4003 = vld [vmem:[%s5 + $0x48] sm:$0xff]
  %v4004 = vld [vmem:[%s5 + $0x50] sm:$0xff]
  %v4005 = vld [vmem:[%s5 + $0x58] sm:$0xff]
  %v4006 = vld [vmem:[%s5 + $0x60] sm:$0xff]
  %v4007 = vld [vmem:[%s5 + $0x68] sm:$0xff]
  %v4008 = vld [vmem:[%s5 + $0x70] sm:$0xff]
  %v4009 = vld [vmem:[%s5 + $0x78] sm:$0xff]
  %v4010 = vld [vmem:[%s5 + $0x80] sm:$0xff]
  %v4011 = vld [vmem:[%s5 + $0x88] sm:$0xff]
  %v4012 = vld [vmem:[%s5 + $0x90] sm:$0xff]
  %v4013 = vld [vmem:[%s5 + $0x98] sm:$0xff]
  %v4014 = vld [vmem:[%s5 + $0xa0] sm:$0xff]
  %v4015 = vld [vmem:[%s5 + $0xa8] sm:$0xff]
  %v4016 = vld [vmem:[%s5 + $0xb0] sm:$0xff]
  %v4017 = vld [vmem:[%s5 + $0xb8] sm:$0xff]
  %v4018 = vld [vmem:[%s5 + $0xc0] sm:$0xff]
  %v4019 = vld [vmem:[%s5 + $0xc8] sm:$0xff]
  %v4020 = vld [vmem:[%s5 + $0xd0] sm:$0xff]
  %v4021 = vld [vmem:[%s5 + $0xd8] sm:$0xff]
  %v4022 = vld [vmem:[%s5 + $0xe0] sm:$0xff]
  %v4023 = vld [vmem:[%s5 + $0xe8] sm:$0xff]
  %v4024 = vld [vmem:[%s5 + $0xf0] sm:$0xff]
  %v4025 = vld [vmem:[%s5 + $0xf8] sm:$0xff]
  %v4026 = vld [vmem:[%s5 + $0x100] sm:$0xff]
  %v4027 = vld [vmem:[%s5 + $0x108] sm:$0xff]
  %v4028 = vld [vmem:[%s5 + $0x110] sm:$0xff]
  %v4029 = vld [vmem:[%s5 + $0x118] sm:$0xff]
  %v4030 = vld [vmem:[%s5 + $0x120] sm:$0xff]
  %v4031 = vld [vmem:[%s5 + $0x128] sm:$0xff]
  %v4032 = vld [vmem:[%s5 + $0x130] sm:$0xff]
  %v4033 = vld [vmem:[%s5 + $0x138] sm:$0xff]
  %v4034 = vld [vmem:[%s5 + $0x140] sm:$0xff]
  %v4035 = vld [vmem:[%s5 + $0x148] sm:$0xff]
  %v4036 = vld [vmem:[%s5 + $0x150] sm:$0xff]
  %v4037 = vld [vmem:[%s5 + $0x158] sm:$0xff]
  %v4038 = vld [vmem:[%s5 + $0x160] sm:$0xff]
  %v4039 = vld [vmem:[%s5 + $0x168] sm:$0xff]
  %v4040 = vld [vmem:[%s5 + $0x170] sm:$0xff]
  %v4041 = vld [vmem:[%s5 + $0x178] sm:$0xff]
  %v4042 = vld [vmem:[%s5 + $0x180] sm:$0xff]
  %v4043 = vld [vmem:[%s5 + $0x188] sm:$0xff]
  %v4044 = vld [vmem:[%s5 + $0x190] sm:$0xff]
  %v4045 = vld [vmem:[%s5 + $0x198] sm:$0xff]
  %v4046 = vld [vmem:[%s5 + $0x1a0] sm:$0xff]
  %v4047 = vld [vmem:[%s5 + $0x1a8] sm:$0xff]
  %v4048 = vld [vmem:[%s5 + $0x1b0] sm:$0xff]
  %v4049 = vld [vmem:[%s5 + $0x1b8] sm:$0xff]
  %v4050 = vld [vmem:[%s5 + $0x1c0] sm:$0xff]
  %v4051 = vld [vmem:[%s5 + $0x1c8] sm:$0xff]
  %v4052 = vld [vmem:[%s5 + $0x1d0] sm:$0xff]
  %v4053 = vld [vmem:[%s5 + $0x1d8] sm:$0xff]
  %v4054 = vld [vmem:[%s5 + $0x1e0] sm:$0xff]
  %v4055 = vld [vmem:[%s5 + $0x1e8] sm:$0xff]
  %v4056 = vld [vmem:[%s5 + $0x1f0] sm:$0xff]
  %v4057 = vld [vmem:[%s5 + $0x1f8] sm:$0xff]
  %v4058 = vld [vmem:[%s11 + $0x7] sm:$0x1]
  %v4059 = vlaneseq
  %v4060 = vshrl.u32 %v4059, 7
  %v4061 = vsub.s32 0, %v4060
  %v4062 = vrot.slane %v4058, %v4061
  %4063 = vmatprep.subr.mxu0 0.0
  %4064 = vmatpush1.msra.mxu0 %v4009
  %4065 = vmatprep.subr.mxu0 0.0
  %4066 = vmatpush1.msra.mxu0 %v4008
  %4067 = vmatprep.subr.mxu0 0.0
  %4068 = vmatpush1.msra.mxu0 %v4007
  %4069 = vmatprep.subr.mxu0 0.0
  %4070 = vmatpush1.msra.mxu0 %v4006
  %4071 = vmatprep.subr.mxu0 0.0
  %4072 = vmatpush1.msra.mxu0 %v4005
  %4073 = vmatprep.subr.mxu0 0.0
  %4074 = vmatpush1.msra.mxu0 %v4004
  %4075 = vmatprep.subr.mxu0 0.0
  %4076 = vmatpush1.msra.mxu0 %v4003
  %4077 = vmatprep.subr.mxu0 0.0
  %4078 = vmatpush1.msra.mxu0 %v4002
  %4079 = vmatprep.subr.mxu0 0.0
  %4080 = vmatpush1.msra.mxu0 %v4001
  %4081 = vmatprep.subr.mxu0 0.0
  %4082 = vmatpush1.msra.mxu0 %v4000
  %4083 = vmatprep.subr.mxu0 0.0
  %4084 = vmatpush1.msra.mxu0 %v3999
  %4085 = vmatprep.subr.mxu0 0.0
  %4086 = vmatpush1.msra.mxu0 %v3998
  %4087 = vmatprep.subr.mxu0 0.0
  %4088 = vmatpush1.msra.mxu0 %v3997
  %4089 = vmatprep.subr.mxu0 0.0
  %4090 = vmatpush1.msra.mxu0 %v3996
  %4091 = vmatprep.subr.mxu0 0.0
  %4092 = vmatpush1.msra.mxu0 %v3995
  %4093 = vmatprep.subr.mxu0 0.0
  %4094 = vmatpush1.msra.mxu0 %v3994
  %4095 = vmatprep.subr.mxu0 0.0
  %4096 = vmatpush2.msra.mxu0 %v4025
  %4097 = vmatprep.subr.mxu0 0.0
  %4098 = vmatpush2.msra.mxu0 %v4024
  %4099 = vmatprep.subr.mxu0 0.0
  %4100 = vmatpush2.msra.mxu0 %v4023
  %4101 = vmatprep.subr.mxu0 0.0
  %4102 = vmatpush2.msra.mxu0 %v4022
  %4103 = vmatprep.subr.mxu0 0.0
  %4104 = vmatpush2.msra.mxu0 %v4021
  %4105 = vmatprep.subr.mxu0 0.0
  %4106 = vmatpush2.msra.mxu0 %v4020
  %4107 = vmatprep.subr.mxu0 0.0
  %4108 = vmatpush2.msra.mxu0 %v4019
  %4109 = vmatprep.subr.mxu0 0.0
  %4110 = vmatpush2.msra.mxu0 %v4018
  %4111 = vmatprep.subr.mxu0 0.0
  %4112 = vmatpush2.msra.mxu0 %v4017
  %4113 = vmatprep.subr.mxu0 0.0
  %4114 = vmatpush2.msra.mxu0 %v4016
  %4115 = vmatprep.subr.mxu0 0.0
  %4116 = vmatpush2.msra.mxu0 %v4015
  %4117 = vmatprep.subr.mxu0 0.0
  %4118 = vmatpush2.msra.mxu0 %v4014
  %4119 = vmatprep.subr.mxu0 0.0
  %4120 = vmatpush2.msra.mxu0 %v4013
  %4121 = vmatprep.subr.mxu0 0.0
  %4122 = vmatpush2.msra.mxu0 %v4012
  %4123 = vmatprep.subr.mxu0 0.0
  %4124 = vmatpush2.msra.mxu0 %v4011
  %4125 = vmatprep.subr.mxu0 0.0
  %4126 = vmatpush2.msra.mxu0 %v4010
  %4127 = vmatprep.mubr.f32.mxu0 %v3936
  %4128 = vmatmul.mubr.f32.gmra.mxu0 %v3916
  %v4129 = vpop.f32.mrf.mxu0
  %v4130 = vadd.f32 %v4062, %v4129
  %v4131 = vpop.f32.mrf.mxu0
  %4132 = vmatprep.mubr.f32.mxu0 %v3941
  %4133 = vmatmul.mubr.f32.gmra.mxu0 %v3921
  %v4134 = vpop.f32.mrf.mxu0
  %v4135 = vadd.f32 %v4062, %v4134
  %v4136 = vpop.f32.mrf.mxu0
  %4137 = vmatprep.mubr.f32.mxu0 %v3946
  %4138 = vmatmul.mubr.f32.gmra.mxu0 %v3926
  %v4139 = vpop.f32.mrf.mxu0
  %v4140 = vadd.f32 %v4062, %v4139
  %v4141 = vpop.f32.mrf.mxu0
  %4142 = vmatprep.mubr.f32.mxu0 %v3951
  %4143 = vmatmul.mubr.f32.gmra.mxu0 %v3931
  %v4144 = vpop.f32.mrf.mxu0
  %v4145 = vadd.f32 %v4062, %v4144
  %v4146 = vpop.f32.mrf.mxu0
  %4147 = vdwg.mxu0
  %4148 = vmatprep.subr.mxu0 0.0
  %4149 = vmatpush1.msra.mxu0 %v4041
  %4150 = vmatprep.subr.mxu0 0.0
  %4151 = vmatpush1.msra.mxu0 %v4040
  %4152 = vmatprep.subr.mxu0 0.0
  %4153 = vmatpush1.msra.mxu0 %v4039
  %4154 = vmatprep.subr.mxu0 0.0
  %4155 = vmatpush1.msra.mxu0 %v4038
  %4156 = vmatprep.subr.mxu0 0.0
  %4157 = vmatpush1.msra.mxu0 %v4037
  %4158 = vmatprep.subr.mxu0 0.0
  %4159 = vmatpush1.msra.mxu0 %v4036
  %4160 = vmatprep.subr.mxu0 0.0
  %4161 = vmatpush1.msra.mxu0 %v4035
  %4162 = vmatprep.subr.mxu0 0.0
  %4163 = vmatpush1.msra.mxu0 %v4034
  %4164 = vmatprep.subr.mxu0 0.0
  %4165 = vmatpush1.msra.mxu0 %v4033
  %4166 = vmatprep.subr.mxu0 0.0
  %4167 = vmatpush1.msra.mxu0 %v4032
  %4168 = vmatprep.subr.mxu0 0.0
  %4169 = vmatpush1.msra.mxu0 %v4031
  %4170 = vmatprep.subr.mxu0 0.0
  %4171 = vmatpush1.msra.mxu0 %v4030
  %4172 = vmatprep.subr.mxu0 0.0
  %4173 = vmatpush1.msra.mxu0 %v4029
  %4174 = vmatprep.subr.mxu0 0.0
  %4175 = vmatpush1.msra.mxu0 %v4028
  %4176 = vmatprep.subr.mxu0 0.0
  %4177 = vmatpush1.msra.mxu0 %v4027
  %4178 = vmatprep.subr.mxu0 0.0
  %4179 = vmatpush1.msra.mxu0 %v4026
  %4180 = vmatprep.subr.mxu0 0.0
  %4181 = vmatpush2.msra.mxu0 %v4057
  %4182 = vmatprep.subr.mxu0 0.0
  %4183 = vmatpush2.msra.mxu0 %v4056
  %4184 = vmatprep.subr.mxu0 0.0
  %4185 = vmatpush2.msra.mxu0 %v4055
  %4186 = vmatprep.subr.mxu0 0.0
  %4187 = vmatpush2.msra.mxu0 %v4054
  %4188 = vmatprep.subr.mxu0 0.0
  %4189 = vmatpush2.msra.mxu0 %v4053
  %4190 = vmatprep.subr.mxu0 0.0
  %4191 = vmatpush2.msra.mxu0 %v4052
  %4192 = vmatprep.subr.mxu0 0.0
  %4193 = vmatpush2.msra.mxu0 %v4051
  %4194 = vmatprep.subr.mxu0 0.0
  %4195 = vmatpush2.msra.mxu0 %v4050
  %4196 = vmatprep.subr.mxu0 0.0
  %4197 = vmatpush2.msra.mxu0 %v4049
  %4198 = vmatprep.subr.mxu0 0.0
  %4199 = vmatpush2.msra.mxu0 %v4048
  %4200 = vmatprep.subr.mxu0 0.0
  %4201 = vmatpush2.msra.mxu0 %v4047
  %4202 = vmatprep.subr.mxu0 0.0
  %4203 = vmatpush2.msra.mxu0 %v4046
  %4204 = vmatprep.subr.mxu0 0.0
  %4205 = vmatpush2.msra.mxu0 %v4045
  %4206 = vmatprep.subr.mxu0 0.0
  %4207 = vmatpush2.msra.mxu0 %v4044
  %4208 = vmatprep.subr.mxu0 0.0
  %4209 = vmatpush2.msra.mxu0 %v4043
  %4210 = vmatprep.subr.mxu0 0.0
  %4211 = vmatpush2.msra.mxu0 %v4042
  %4212 = vmatprep.mubr.f32.mxu0 %v3976
  %4213 = vmatmul.mubr.f32.gmra.mxu0 %v3956
  %v4214 = vpop.f32.mrf.mxu0
  %v4215 = vadd.f32 %v4130, %v4214
  %v4216 = vpop.f32.mrf.mxu0
  %4217 = vmatprep.mubr.f32.mxu0 %v3981
  %4218 = vmatmul.mubr.f32.gmra.mxu0 %v3961
  %v4219 = vpop.f32.mrf.mxu0
  %v4220 = vadd.f32 %v4135, %v4219
  %v4221 = vpop.f32.mrf.mxu0
  %4222 = vmatprep.mubr.f32.mxu0 %v3986
  %4223 = vmatmul.mubr.f32.gmra.mxu0 %v3966
  %v4224 = vpop.f32.mrf.mxu0
  %v4225 = vadd.f32 %v4140, %v4224
  %v4226 = vpop.f32.mrf.mxu0
  %4227 = vmatprep.mubr.f32.mxu0 %v3991
  %4228 = vmatmul.mubr.f32.gmra.mxu0 %v3971
  %v4229 = vpop.f32.mrf.mxu0
  %v4230 = vadd.f32 %v4145, %v4229
  %v4231 = vpop.f32.mrf.mxu0
  %4232 = vdwg.mxu0
  %v4233 = vadd.f32 %v4215, %v2900
  %v4234 = vadd.f32 %v4220, %v2901
  %v4235 = vadd.f32 %v4225, %v2902
  %v4236 = vadd.f32 %v4230, %v2903
  %v4237 = vld [vmem:[%s11 + $0x4] sm:$0x1]
  %v4238 = vld [vmem:[%s11 + $0x5] sm:$0x1]
  %v4239 = vsel %vm2826, %v4233, 0.0
  %4240 = vadd.xlane.f32.xlu0 %v4239
  %v4241 = vpop.xlane.xlu0 %4240
  %v4242 = vsel %vm2826, %v4234, 0.0
  %4243 = vadd.xlane.f32.xlu0 %v4242
  %v4244 = vpop.xlane.xlu0 %4243
  %v4245 = vsel %vm2826, %v4235, 0.0
  %4246 = vadd.xlane.f32.xlu0 %v4245
  %v4247 = vpop.xlane.xlu0 %4246
  %v4248 = vsel %vm2826, %v4236, 0.0
  %4249 = vadd.xlane.f32.xlu0 %v4248
  %v4250 = vpop.xlane.xlu0 %4249
  %v4251 = vmul.f32 %v4241, %v2839
  %v4252 = vmul.f32 %v4244, %v2839
  %v4253 = vmul.f32 %v4247, %v2839
  %v4254 = vmul.f32 %v4250, %v2839
  %v4255 = vsub.f32 %v4233, %v4251
  %v4256 = vsub.f32 %v4234, %v4252
  %v4257 = vsub.f32 %v4235, %v4253
  %v4258 = vsub.f32 %v4236, %v4254
  %v4259 = vmul.f32 %v4255, %v4255
  %v4260 = vmul.f32 %v4256, %v4256
  %v4261 = vmul.f32 %v4257, %v4257
  %v4262 = vmul.f32 %v4258, %v4258
  %v4263 = vsel %vm2826, %v4259, 0.0
  %4264 = vadd.xlane.f32.xlu0 %v4263
  %v4265 = vpop.xlane.xlu0 %4264
  %v4266 = vsel %vm2826, %v4260, 0.0
  %4267 = vadd.xlane.f32.xlu0 %v4266
  %v4268 = vpop.xlane.xlu0 %4267
  %v4269 = vsel %vm2826, %v4261, 0.0
  %4270 = vadd.xlane.f32.xlu0 %v4269
  %v4271 = vpop.xlane.xlu0 %4270
  %v4272 = vsel %vm2826, %v4262, 0.0
  %4273 = vadd.xlane.f32.xlu0 %v4272
  %v4274 = vpop.xlane.xlu0 %4273
  %v4275 = vmul.f32 %v4265, %v2839
  %v4276 = vmul.f32 %v4268, %v2839
  %v4277 = vmul.f32 %v4271, %v2839
  %v4278 = vmul.f32 %v4274, %v2839
  %v4279 = vadd.f32 %v4275, 1e-05
  %v4280 = vadd.f32 %v4276, 1e-05
  %v4281 = vadd.f32 %v4277, 1e-05
  %v4282 = vadd.f32 %v4278, 1e-05
  %v4283 = vrsqrt.pop %v4279
  %v4284 = vrsqrt.pop %v4280
  %v4285 = vrsqrt.pop %v4281
  %v4286 = vrsqrt.pop %v4282
  %v4287 = vmul.f32 %v4255, %v4283
  %v4288 = vmul.f32 %v4256, %v4284
  %v4289 = vmul.f32 %v4257, %v4285
  %v4290 = vmul.f32 %v4258, %v4286
  %v4291 = vlaneseq
  %v4292 = vshrl.u32 %v4291, 7
  %v4293 = vsub.s32 0, %v4292
  %v4294 = vrot.slane %v4237, %v4293
  %v4295 = vmul.f32 %v4287, %v4294
  %v4296 = vmul.f32 %v4288, %v4294
  %v4297 = vmul.f32 %v4289, %v4294
  %v4298 = vmul.f32 %v4290, %v4294
  %v4299 = vlaneseq
  %v4300 = vshrl.u32 %v4299, 7
  %v4301 = vsub.s32 0, %v4300
  %v4302 = vrot.slane %v4238, %v4301
  %v4303 = vadd.f32 %v4295, %v4302
  %v4304 = vadd.f32 %v4296, %v4302
  %v4305 = vadd.f32 %v4297, %v4302
  %v4306 = vadd.f32 %v4298, %v4302
  %v4307 = vld [vmem:[%s6] sm:$0xff]
  %v4308 = vld [vmem:[%s6 + $0x8] sm:$0xff]
  %v4309 = vld [vmem:[%s12 + $0x2] sm:$0x1]
  %v4310 = vlaneseq
  %v4311 = vshrl.u32 %v4310, 7
  %v4312 = vsub.s32 0, %v4311
  %v4313 = vrot.slane %v4309, %v4312
  %v4315 = vsel %vm2826, %v4303, 0
  %v4318 = vsel %vm2826, %v4304, 0
  %v4321 = vsel %vm2826, %v4305, 0
  %v4324 = vsel %vm2826, %v4306, 0
  %4326 = vmatprep.subr.mxu0 0.0
  %4327 = vmatpush1.msra.mxu0 0.0
  %4328 = vmatprep.subr.mxu0 0.0
  %4329 = vmatpush1.msra.mxu0 0.0
  %4330 = vmatprep.subr.mxu0 0.0
  %4331 = vmatpush1.msra.mxu0 0.0
  %4332 = vmatprep.subr.mxu0 0.0
  %4333 = vmatpush1.msra.mxu0 0.0
  %4334 = vmatprep.subr.mxu0 0.0
  %4335 = vmatpush1.msra.mxu0 0.0
  %4336 = vmatprep.subr.mxu0 0.0
  %4337 = vmatpush1.msra.mxu0 0.0
  %4338 = vmatprep.subr.mxu0 0.0
  %4339 = vmatpush1.msra.mxu0 0.0
  %4340 = vmatprep.subr.mxu0 0.0
  %4341 = vmatpush1.msra.mxu0 0.0
  %4342 = vmatprep.subr.mxu0 0.0
  %4343 = vmatpush1.msra.mxu0 0.0
  %4344 = vmatprep.subr.mxu0 0.0
  %4345 = vmatpush1.msra.mxu0 0.0
  %4346 = vmatprep.subr.mxu0 0.0
  %4347 = vmatpush1.msra.mxu0 0.0
  %4348 = vmatprep.subr.mxu0 0.0
  %4349 = vmatpush1.msra.mxu0 0.0
  %4350 = vmatprep.subr.mxu0 0.0
  %4351 = vmatpush1.msra.mxu0 0.0
  %4352 = vmatprep.subr.mxu0 0.0
  %4353 = vmatpush1.msra.mxu0 0.0
  %4354 = vmatprep.subr.mxu0 0.0
  %4355 = vmatpush1.msra.mxu0 %v4308
  %4356 = vmatprep.subr.mxu0 0.0
  %4357 = vmatpush1.msra.mxu0 %v4307
  %4358 = vmatprep.subr.mxu0 0.0
  %4359 = vmatpush2.msra.mxu0 0.0
  %4360 = vmatprep.subr.mxu0 0.0
  %4361 = vmatpush2.msra.mxu0 0.0
  %4362 = vmatprep.subr.mxu0 0.0
  %4363 = vmatpush2.msra.mxu0 0.0
  %4364 = vmatprep.subr.mxu0 0.0
  %4365 = vmatpush2.msra.mxu0 0.0
  %4366 = vmatprep.subr.mxu0 0.0
  %4367 = vmatpush2.msra.mxu0 0.0
  %4368 = vmatprep.subr.mxu0 0.0
  %4369 = vmatpush2.msra.mxu0 0.0
  %4370 = vmatprep.subr.mxu0 0.0
  %4371 = vmatpush2.msra.mxu0 0.0
  %4372 = vmatprep.subr.mxu0 0.0
  %4373 = vmatpush2.msra.mxu0 0.0
  %4374 = vmatprep.subr.mxu0 0.0
  %4375 = vmatpush2.msra.mxu0 0.0
  %4376 = vmatprep.subr.mxu0 0.0
  %4377 = vmatpush2.msra.mxu0 0.0
  %4378 = vmatprep.subr.mxu0 0.0
  %4379 = vmatpush2.msra.mxu0 0.0
  %4380 = vmatprep.subr.mxu0 0.0
  %4381 = vmatpush2.msra.mxu0 0.0
  %4382 = vmatprep.subr.mxu0 0.0
  %4383 = vmatpush2.msra.mxu0 0.0
  %4384 = vmatprep.subr.mxu0 0.0
  %4385 = vmatpush2.msra.mxu0 0.0
  %4386 = vmatprep.subr.mxu0 0.0
  %4387 = vmatpush2.msra.mxu0 0.0
  %4388 = vmatprep.subr.mxu0 0.0
  %4389 = vmatpush2.msra.mxu0 0.0
  %4390 = vmatprep.mubr.f32.mxu0 0.0
  %4391 = vmatmul.mubr.f32.gmra.mxu0 %v4315
  %v4392 = vpop.f32.mrf.mxu0
  %v4393 = vadd.f32 %v4313, %v4392
  %v4394 = vpop.f32.mrf.mxu0
  %4395 = vmatprep.mubr.f32.mxu0 0.0
  %4396 = vmatmul.mubr.f32.gmra.mxu0 %v4318
  %v4397 = vpop.f32.mrf.mxu0
  %v4398 = vadd.f32 %v4313, %v4397
  %v4399 = vpop.f32.mrf.mxu0
  %4400 = vmatprep.mubr.f32.mxu0 0.0
  %4401 = vmatmul.mubr.f32.gmra.mxu0 %v4321
  %v4402 = vpop.f32.mrf.mxu0
  %v4403 = vadd.f32 %v4313, %v4402
  %v4404 = vpop.f32.mrf.mxu0
  %4405 = vmatprep.mubr.f32.mxu0 0.0
  %4406 = vmatmul.mubr.f32.gmra.mxu0 %v4324
  %v4407 = vpop.f32.mrf.mxu0
  %v4408 = vadd.f32 %v4313, %v4407
  %v4409 = vpop.f32.mrf.mxu0
  %4410 = vdwg.mxu0
  %v4411 = vmul.f32 %v4393, 0.5
  %v4412 = vmul.f32 %v4398, 0.5
  %v4413 = vmul.f32 %v4403, 0.5
  %v4414 = vmul.f32 %v4408, 0.5
  %v4415 = vmul.f32 %v4393, 0.70710677
  %v4416 = vmul.f32 %v4398, 0.70710677
  %v4417 = vmul.f32 %v4403, 0.70710677
  %v4418 = vmul.f32 %v4408, 0.70710677
  %v4419 = vand.u32 2147483647, %v4415
  %v4420 = vand.u32 2147483647, %v4416
  %v4421 = vand.u32 2147483647, %v4417
  %v4422 = vand.u32 2147483647, %v4418
  %v4423 = vmul.f32 %v4419, 0.3275911
  %v4424 = vmul.f32 %v4420, 0.3275911
  %v4425 = vmul.f32 %v4421, 0.3275911
  %v4426 = vmul.f32 %v4422, 0.3275911
  %v4427 = vadd.f32 %v4423, 1.0
  %v4428 = vadd.f32 %v4424, 1.0
  %v4429 = vadd.f32 %v4425, 1.0
  %v4430 = vadd.f32 %v4426, 1.0
  %v4431 = vrcp.pop %v4427
  %v4432 = vmul.f32 1.0, %v4431
  %v4433 = vrcp.pop %v4428
  %v4434 = vmul.f32 1.0, %v4433
  %v4435 = vrcp.pop %v4429
  %v4436 = vmul.f32 1.0, %v4435
  %v4437 = vrcp.pop %v4430
  %v4438 = vmul.f32 1.0, %v4437
  %v4439 = vmul.f32 %v4432, 1.0614054
  %v4440 = vmul.f32 %v4434, 1.0614054
  %v4441 = vmul.f32 %v4436, 1.0614054
  %v4442 = vmul.f32 %v4438, 1.0614054
  %v4443 = vadd.f32 %v4439, -1.4531521
  %v4444 = vadd.f32 %v4440, -1.4531521
  %v4445 = vadd.f32 %v4441, -1.4531521
  %v4446 = vadd.f32 %v4442, -1.4531521
  %v4447 = vmul.f32 %v4432, %v4443
  %v4448 = vmul.f32 %v4434, %v4444
  %v4449 = vmul.f32 %v4436, %v4445
  %v4450 = vmul.f32 %v4438, %v4446
  %v4451 = vadd.f32 %v4447, 1.4214138
  %v4452 = vadd.f32 %v4448, 1.4214138
  %v4453 = vadd.f32 %v4449, 1.4214138
  %v4454 = vadd.f32 %v4450, 1.4214138
  %v4455 = vmul.f32 %v4432, %v4451
  %v4456 = vmul.f32 %v4434, %v4452
  %v4457 = vmul.f32 %v4436, %v4453
  %v4458 = vmul.f32 %v4438, %v4454
  %v4459 = vadd.f32 %v4455, -0.28449672
  %v4460 = vadd.f32 %v4456, -0.28449672
  %v4461 = vadd.f32 %v4457, -0.28449672
  %v4462 = vadd.f32 %v4458, -0.28449672
  %v4463 = vmul.f32 %v4432, %v4459
  %v4464 = vmul.f32 %v4434, %v4460
  %v4465 = vmul.f32 %v4436, %v4461
  %v4466 = vmul.f32 %v4438, %v4462
  %v4467 = vadd.f32 %v4463, 0.2548296
  %v4468 = vadd.f32 %v4464, 0.2548296
  %v4469 = vadd.f32 %v4465, 0.2548296
  %v4470 = vadd.f32 %v4466, 0.2548296
  %v4471 = vmul.f32 %v4432, %v4467
  %v4472 = vmul.f32 %v4434, %v4468
  %v4473 = vmul.f32 %v4436, %v4469
  %v4474 = vmul.f32 %v4438, %v4470
  %v4475 = vsub.f32 0.0, %v4419
  %v4476 = vsub.f32 0.0, %v4420
  %v4477 = vsub.f32 0.0, %v4421
  %v4478 = vsub.f32 0.0, %v4422
  %v4479 = vmul.f32 %v4475, %v4419
  %v4480 = vmul.f32 %v4476, %v4420
  %v4481 = vmul.f32 %v4477, %v4421
  %v4482 = vmul.f32 %v4478, %v4422
  %v4483 = vmul.f32 %v4479, 1.442695
  %v4484 = vpow.pop %v4483
  %v4485 = vmul.f32 %v4480, 1.442695
  %v4486 = vpow.pop %v4485
  %v4487 = vmul.f32 %v4481, 1.442695
  %v4488 = vpow.pop %v4487
  %v4489 = vmul.f32 %v4482, 1.442695
  %v4490 = vpow.pop %v4489
  %v4491 = vmul.f32 %v4471, %v4484
  %v4492 = vmul.f32 %v4472, %v4486
  %v4493 = vmul.f32 %v4473, %v4488
  %v4494 = vmul.f32 %v4474, %v4490
  %v4495 = vsub.f32 1.0, %v4491
  %v4496 = vsub.f32 1.0, %v4492
  %v4497 = vsub.f32 1.0, %v4493
  %v4498 = vsub.f32 1.0, %v4494
  %vm4499 = vcmp.ge.f32.partialorder %v4415, 0.0
  %vm4500 = vcmp.ge.f32.partialorder %v4416, 0.0
  %vm4501 = vcmp.ge.f32.partialorder %v4417, 0.0
  %vm4502 = vcmp.ge.f32.partialorder %v4418, 0.0
  %v4503 = vsub.f32 0.0, %v4495
  %v4504 = vsub.f32 0.0, %v4496
  %v4505 = vsub.f32 0.0, %v4497
  %v4506 = vsub.f32 0.0, %v4498
  %v4507 = vsel %vm4499, %v4495, %v4503
  %v4508 = vsel %vm4500, %v4496, %v4504
  %v4509 = vsel %vm4501, %v4497, %v4505
  %v4510 = vsel %vm4502, %v4498, %v4506
  %v4511 = vadd.f32 %v4507, 1.0
  %v4512 = vadd.f32 %v4508, 1.0
  %v4513 = vadd.f32 %v4509, 1.0
  %v4514 = vadd.f32 %v4510, 1.0
  %v4515 = vmul.f32 %v4411, %v4511
  %v4516 = vmul.f32 %v4412, %v4512
  %v4517 = vmul.f32 %v4413, %v4513
  %v4518 = vmul.f32 %v4414, %v4514
  %v4519 = vld [vmem:[%s7] sm:$0xff]
  %v4520 = vld [vmem:[%s7 + $0x8] sm:$0xff]
  %v4521 = vld [vmem:[%s7 + $0x10] sm:$0xff]
  %v4522 = vld [vmem:[%s7 + $0x18] sm:$0xff]
  %v4523 = vld [vmem:[%s7 + $0x20] sm:$0xff]
  %v4524 = vld [vmem:[%s7 + $0x28] sm:$0xff]
  %v4525 = vld [vmem:[%s7 + $0x30] sm:$0xff]
  %v4526 = vld [vmem:[%s7 + $0x38] sm:$0xff]
  %v4527 = vld [vmem:[%s7 + $0x40] sm:$0xff]
  %v4528 = vld [vmem:[%s7 + $0x48] sm:$0xff]
  %v4529 = vld [vmem:[%s7 + $0x50] sm:$0xff]
  %v4530 = vld [vmem:[%s7 + $0x58] sm:$0xff]
  %v4531 = vld [vmem:[%s7 + $0x60] sm:$0xff]
  %v4532 = vld [vmem:[%s7 + $0x68] sm:$0xff]
  %v4533 = vld [vmem:[%s7 + $0x70] sm:$0xff]
  %v4534 = vld [vmem:[%s7 + $0x78] sm:$0xff]
  %v4535 = vld [vmem:[%s11 + $0x8] sm:$0x1]
  %v4536 = vlaneseq
  %v4537 = vshrl.u32 %v4536, 7
  %v4538 = vsub.s32 0, %v4537
  %v4539 = vrot.slane %v4535, %v4538
  %4540 = vmatprep.subr.mxu0 0.0
  %4541 = vmatpush1.msra.mxu0 %v4534
  %4542 = vmatprep.subr.mxu0 0.0
  %4543 = vmatpush1.msra.mxu0 %v4533
  %4544 = vmatprep.subr.mxu0 0.0
  %4545 = vmatpush1.msra.mxu0 %v4532
  %4546 = vmatprep.subr.mxu0 0.0
  %4547 = vmatpush1.msra.mxu0 %v4531
  %4548 = vmatprep.subr.mxu0 0.0
  %4549 = vmatpush1.msra.mxu0 %v4530
  %4550 = vmatprep.subr.mxu0 0.0
  %4551 = vmatpush1.msra.mxu0 %v4529
  %4552 = vmatprep.subr.mxu0 0.0
  %4553 = vmatpush1.msra.mxu0 %v4528
  %4554 = vmatprep.subr.mxu0 0.0
  %4555 = vmatpush1.msra.mxu0 %v4527
  %4556 = vmatprep.subr.mxu0 0.0
  %4557 = vmatpush1.msra.mxu0 %v4526
  %4558 = vmatprep.subr.mxu0 0.0
  %4559 = vmatpush1.msra.mxu0 %v4525
  %4560 = vmatprep.subr.mxu0 0.0
  %4561 = vmatpush1.msra.mxu0 %v4524
  %4562 = vmatprep.subr.mxu0 0.0
  %4563 = vmatpush1.msra.mxu0 %v4523
  %4564 = vmatprep.subr.mxu0 0.0
  %4565 = vmatpush1.msra.mxu0 %v4522
  %4566 = vmatprep.subr.mxu0 0.0
  %4567 = vmatpush1.msra.mxu0 %v4521
  %4568 = vmatprep.subr.mxu0 0.0
  %4569 = vmatpush1.msra.mxu0 %v4520
  %4570 = vmatprep.subr.mxu0 0.0
  %4571 = vmatpush1.msra.mxu0 %v4519
  %4572 = vmatprep.subr.mxu0 0.0
  %4573 = vmatpush2.msra.mxu0 0.0
  %4574 = vmatprep.subr.mxu0 0.0
  %4575 = vmatpush2.msra.mxu0 0.0
  %4576 = vmatprep.subr.mxu0 0.0
  %4577 = vmatpush2.msra.mxu0 0.0
  %4578 = vmatprep.subr.mxu0 0.0
  %4579 = vmatpush2.msra.mxu0 0.0
  %4580 = vmatprep.subr.mxu0 0.0
  %4581 = vmatpush2.msra.mxu0 0.0
  %4582 = vmatprep.subr.mxu0 0.0
  %4583 = vmatpush2.msra.mxu0 0.0
  %4584 = vmatprep.subr.mxu0 0.0
  %4585 = vmatpush2.msra.mxu0 0.0
  %4586 = vmatprep.subr.mxu0 0.0
  %4587 = vmatpush2.msra.mxu0 0.0
  %4588 = vmatprep.subr.mxu0 0.0
  %4589 = vmatpush2.msra.mxu0 0.0
  %4590 = vmatprep.subr.mxu0 0.0
  %4591 = vmatpush2.msra.mxu0 0.0
  %4592 = vmatprep.subr.mxu0 0.0
  %4593 = vmatpush2.msra.mxu0 0.0
  %4594 = vmatprep.subr.mxu0 0.0
  %4595 = vmatpush2.msra.mxu0 0.0
  %4596 = vmatprep.subr.mxu0 0.0
  %4597 = vmatpush2.msra.mxu0 0.0
  %4598 = vmatprep.subr.mxu0 0.0
  %4599 = vmatpush2.msra.mxu0 0.0
  %4600 = vmatprep.subr.mxu0 0.0
  %4601 = vmatpush2.msra.mxu0 0.0
  %4602 = vmatprep.subr.mxu0 0.0
  %4603 = vmatpush2.msra.mxu0 0.0
  %4604 = vmatprep.mubr.f32.mxu0 0.0
  %4605 = vmatmul.mubr.f32.gmra.mxu0 %v4515
  %v4606 = vpop.f32.mrf.mxu0
  %v4607 = vadd.f32 %v4539, %v4606
  %v4608 = vpop.f32.mrf.mxu0
  %4609 = vmatprep.mubr.f32.mxu0 0.0
  %4610 = vmatmul.mubr.f32.gmra.mxu0 %v4516
  %v4611 = vpop.f32.mrf.mxu0
  %v4612 = vadd.f32 %v4539, %v4611
  %v4613 = vpop.f32.mrf.mxu0
  %4614 = vmatprep.mubr.f32.mxu0 0.0
  %4615 = vmatmul.mubr.f32.gmra.mxu0 %v4517
  %v4616 = vpop.f32.mrf.mxu0
  %v4617 = vadd.f32 %v4539, %v4616
  %v4618 = vpop.f32.mrf.mxu0
  %4619 = vmatprep.mubr.f32.mxu0 0.0
  %4620 = vmatmul.mubr.f32.gmra.mxu0 %v4518
  %v4621 = vpop.f32.mrf.mxu0
  %v4622 = vadd.f32 %v4539, %v4621
  %v4623 = vpop.f32.mrf.mxu0
  %4624 = vdwg.mxu0
  %v4625 = vadd.f32 %v4607, %v4233
  %v4626 = vadd.f32 %v4612, %v4234
  %v4627 = vadd.f32 %v4617, %v4235
  %v4628 = vadd.f32 %v4622, %v4236
  %v4629 = vld [vmem:[%s13] sm:$0xff]
  %v4630 = vld [vmem:[%s10] sm:$0xff]
  %v4631 = vld [vmem:[%s10 + $0x8] sm:$0xff]
  %v4632 = vld [vmem:[%s10 + $0x10] sm:$0xff]
  %v4633 = vld [vmem:[%s10 + $0x18] sm:$0xff]
  %v4634 = vmul.f32 %v4625, %v4630
  %v4635 = vmul.f32 %v4626, %v4631
  %v4636 = vmul.f32 %v4627, %v4632
  %v4637 = vmul.f32 %v4628, %v4633
  %v4638 = vld [vmem:[%s11 + $0x9] sm:$0x1]
  %v4639 = vlaneseq
  %v4640 = vshrl.u32 %v4639, 7
  %v4641 = vsub.s32 0, %v4640
  %v4642 = vrot.slane %v4638, %v4641
  %vm4643 = vcmask 261120
  %v4645 = vsel %vm4643, %v4629, 0
  %4647 = vmatprep.subr.mxu0 0.0
  %4648 = vmatpush1.msra.mxu0 0.0
  %4649 = vmatprep.subr.mxu0 0.0
  %4650 = vmatpush1.msra.mxu0 0.0
  %4651 = vmatprep.subr.mxu0 0.0
  %4652 = vmatpush1.msra.mxu0 0.0
  %4653 = vmatprep.subr.mxu0 0.0
  %4654 = vmatpush1.msra.mxu0 0.0
  %4655 = vmatprep.subr.mxu0 0.0
  %4656 = vmatpush1.msra.mxu0 0.0
  %4657 = vmatprep.subr.mxu0 0.0
  %4658 = vmatpush1.msra.mxu0 0.0
  %4659 = vmatprep.subr.mxu0 0.0
  %4660 = vmatpush1.msra.mxu0 0.0
  %4661 = vmatprep.subr.mxu0 0.0
  %4662 = vmatpush1.msra.mxu0 0.0
  %4663 = vmatprep.subr.mxu0 0.0
  %4664 = vmatpush1.msra.mxu0 0.0
  %4665 = vmatprep.subr.mxu0 0.0
  %4666 = vmatpush1.msra.mxu0 0.0
  %4667 = vmatprep.subr.mxu0 0.0
  %4668 = vmatpush1.msra.mxu0 0.0
  %4669 = vmatprep.subr.mxu0 0.0
  %4670 = vmatpush1.msra.mxu0 0.0
  %4671 = vmatprep.subr.mxu0 0.0
  %4672 = vmatpush1.msra.mxu0 %v4637
  %4673 = vmatprep.subr.mxu0 0.0
  %4674 = vmatpush1.msra.mxu0 %v4636
  %4675 = vmatprep.subr.mxu0 0.0
  %4676 = vmatpush1.msra.mxu0 %v4635
  %4677 = vmatprep.subr.mxu0 0.0
  %4678 = vmatpush1.msra.mxu0 %v4634
  %4679 = vmatprep.subr.mxu0 0.0
  %4680 = vmatpush2.msra.mxu0 0.0
  %4681 = vmatprep.subr.mxu0 0.0
  %4682 = vmatpush2.msra.mxu0 0.0
  %4683 = vmatprep.subr.mxu0 0.0
  %4684 = vmatpush2.msra.mxu0 0.0
  %4685 = vmatprep.subr.mxu0 0.0
  %4686 = vmatpush2.msra.mxu0 0.0
  %4687 = vmatprep.subr.mxu0 0.0
  %4688 = vmatpush2.msra.mxu0 0.0
  %4689 = vmatprep.subr.mxu0 0.0
  %4690 = vmatpush2.msra.mxu0 0.0
  %4691 = vmatprep.subr.mxu0 0.0
  %4692 = vmatpush2.msra.mxu0 0.0
  %4693 = vmatprep.subr.mxu0 0.0
  %4694 = vmatpush2.msra.mxu0 0.0
  %4695 = vmatprep.subr.mxu0 0.0
  %4696 = vmatpush2.msra.mxu0 0.0
  %4697 = vmatprep.subr.mxu0 0.0
  %4698 = vmatpush2.msra.mxu0 0.0
  %4699 = vmatprep.subr.mxu0 0.0
  %4700 = vmatpush2.msra.mxu0 0.0
  %4701 = vmatprep.subr.mxu0 0.0
  %4702 = vmatpush2.msra.mxu0 0.0
  %4703 = vmatprep.subr.mxu0 0.0
  %4704 = vmatpush2.msra.mxu0 0.0
  %4705 = vmatprep.subr.mxu0 0.0
  %4706 = vmatpush2.msra.mxu0 0.0
  %4707 = vmatprep.subr.mxu0 0.0
  %4708 = vmatpush2.msra.mxu0 0.0
  %4709 = vmatprep.subr.mxu0 0.0
  %4710 = vmatpush2.msra.mxu0 0.0
  %4711 = vmatprep.mubr.f32.mxu0 0.0
  %4712 = vmatmul.mubr.f32.gmra.mxu0 %v4645
  %v4713 = vpop.f32.mrf.mxu0
  %v4714 = vadd.f32 %v4642, %v4713
  %v4715 = vpop.f32.mrf.mxu0
  %4716 = vdwg.mxu0
  %v4717 = vld [vmem:[%s13 + $0x8] sm:$0x3]
  %v4718 = vld [vmem:[%s13 + $0x10] sm:$0xff]
  %v4719 = vsel %vm2826, %v4714, 0.0
  %4720 = vadd.xlane.f32.xlu0 %v4719
  %v4721 = vpop.xlane.xlu0 %4720
  %vm4722 = vcmask 64512
  %v4724 = vsel %vm4722, %v4717, 0
  %4726 = vmatprep.subr.mxu0 0.0
  %4727 = vmatpush1.msra.mxu0 0.0
  %4728 = vmatprep.subr.mxu0 0.0
  %4729 = vmatpush1.msra.mxu0 0.0
  %4730 = vmatprep.subr.mxu0 0.0
  %4731 = vmatpush1.msra.mxu0 0.0
  %4732 = vmatprep.subr.mxu0 0.0
  %4733 = vmatpush1.msra.mxu0 0.0
  %4734 = vmatprep.subr.mxu0 0.0
  %4735 = vmatpush1.msra.mxu0 0.0
  %4736 = vmatprep.subr.mxu0 0.0
  %4737 = vmatpush1.msra.mxu0 0.0
  %4738 = vmatprep.subr.mxu0 0.0
  %4739 = vmatpush1.msra.mxu0 0.0
  %4740 = vmatprep.subr.mxu0 0.0
  %4741 = vmatpush1.msra.mxu0 0.0
  %4742 = vmatprep.subr.mxu0 0.0
  %4743 = vmatpush1.msra.mxu0 0.0
  %4744 = vmatprep.subr.mxu0 0.0
  %4745 = vmatpush1.msra.mxu0 0.0
  %4746 = vmatprep.subr.mxu0 0.0
  %4747 = vmatpush1.msra.mxu0 0.0
  %4748 = vmatprep.subr.mxu0 0.0
  %4749 = vmatpush1.msra.mxu0 0.0
  %4750 = vmatprep.subr.mxu0 0.0
  %4751 = vmatpush1.msra.mxu0 0.0
  %4752 = vmatprep.subr.mxu0 0.0
  %4753 = vmatpush1.msra.mxu0 0.0
  %4754 = vmatprep.subr.mxu0 0.0
  %4755 = vmatpush1.msra.mxu0 0.0
  %4756 = vmatprep.subr.mxu0 0.0
  %4757 = vmatpush1.msra.mxu0 %v4721
  %4758 = vmatprep.subr.mxu0 0.0
  %4759 = vmatpush2.msra.mxu0 0.0
  %4760 = vmatprep.subr.mxu0 0.0
  %4761 = vmatpush2.msra.mxu0 0.0
  %4762 = vmatprep.subr.mxu0 0.0
  %4763 = vmatpush2.msra.mxu0 0.0
  %4764 = vmatprep.subr.mxu0 0.0
  %4765 = vmatpush2.msra.mxu0 0.0
  %4766 = vmatprep.subr.mxu0 0.0
  %4767 = vmatpush2.msra.mxu0 0.0
  %4768 = vmatprep.subr.mxu0 0.0
  %4769 = vmatpush2.msra.mxu0 0.0
  %4770 = vmatprep.subr.mxu0 0.0
  %4771 = vmatpush2.msra.mxu0 0.0
  %4772 = vmatprep.subr.mxu0 0.0
  %4773 = vmatpush2.msra.mxu0 0.0
  %4774 = vmatprep.subr.mxu0 0.0
  %4775 = vmatpush2.msra.mxu0 0.0
  %4776 = vmatprep.subr.mxu0 0.0
  %4777 = vmatpush2.msra.mxu0 0.0
  %4778 = vmatprep.subr.mxu0 0.0
  %4779 = vmatpush2.msra.mxu0 0.0
  %4780 = vmatprep.subr.mxu0 0.0
  %4781 = vmatpush2.msra.mxu0 0.0
  %4782 = vmatprep.subr.mxu0 0.0
  %4783 = vmatpush2.msra.mxu0 0.0
  %4784 = vmatprep.subr.mxu0 0.0
  %4785 = vmatpush2.msra.mxu0 0.0
  %4786 = vmatprep.subr.mxu0 0.0
  %4787 = vmatpush2.msra.mxu0 0.0
  %4788 = vmatprep.subr.mxu0 0.0
  %4789 = vmatpush2.msra.mxu0 0.0
  %4790 = vmatprep.mubr.f32.mxu0 0.0
  %4791 = vmatmul.mubr.f32.gmra.mxu0 %v4724
  %v4792 = vpop.f32.mrf.mxu0
  %v4793 = vadd.f32 0.0, %v4792
  %v4794 = vpop.f32.mrf.mxu0
  %4795 = vdwg.mxu0
  %v4796 = vmul.f32 %v4714, %v4714
  %v4797 = vsel %vm2826, %v4796, 0.0
  %4798 = vadd.xlane.f32.xlu0 %v4797
  %v4799 = vpop.xlane.xlu0 %4798
  %4800 = vmatprep.subr.mxu0 0.0
  %4801 = vmatpush1.msra.mxu0 0.0
  %4802 = vmatprep.subr.mxu0 0.0
  %4803 = vmatpush1.msra.mxu0 0.0
  %4804 = vmatprep.subr.mxu0 0.0
  %4805 = vmatpush1.msra.mxu0 0.0
  %4806 = vmatprep.subr.mxu0 0.0
  %4807 = vmatpush1.msra.mxu0 0.0
  %4808 = vmatprep.subr.mxu0 0.0
  %4809 = vmatpush1.msra.mxu0 0.0
  %4810 = vmatprep.subr.mxu0 0.0
  %4811 = vmatpush1.msra.mxu0 0.0
  %4812 = vmatprep.subr.mxu0 0.0
  %4813 = vmatpush1.msra.mxu0 0.0
  %4814 = vmatprep.subr.mxu0 0.0
  %4815 = vmatpush1.msra.mxu0 0.0
  %4816 = vmatprep.subr.mxu0 0.0
  %4817 = vmatpush1.msra.mxu0 0.0
  %4818 = vmatprep.subr.mxu0 0.0
  %4819 = vmatpush1.msra.mxu0 0.0
  %4820 = vmatprep.subr.mxu0 0.0
  %4821 = vmatpush1.msra.mxu0 0.0
  %4822 = vmatprep.subr.mxu0 0.0
  %4823 = vmatpush1.msra.mxu0 0.0
  %4824 = vmatprep.subr.mxu0 0.0
  %4825 = vmatpush1.msra.mxu0 0.0
  %4826 = vmatprep.subr.mxu0 0.0
  %4827 = vmatpush1.msra.mxu0 0.0
  %4828 = vmatprep.subr.mxu0 0.0
  %4829 = vmatpush1.msra.mxu0 0.0
  %4830 = vmatprep.subr.mxu0 0.0
  %4831 = vmatpush1.msra.mxu0 %v4799
  %4832 = vmatprep.subr.mxu0 0.0
  %4833 = vmatpush2.msra.mxu0 0.0
  %4834 = vmatprep.subr.mxu0 0.0
  %4835 = vmatpush2.msra.mxu0 0.0
  %4836 = vmatprep.subr.mxu0 0.0
  %4837 = vmatpush2.msra.mxu0 0.0
  %4838 = vmatprep.subr.mxu0 0.0
  %4839 = vmatpush2.msra.mxu0 0.0
  %4840 = vmatprep.subr.mxu0 0.0
  %4841 = vmatpush2.msra.mxu0 0.0
  %4842 = vmatprep.subr.mxu0 0.0
  %4843 = vmatpush2.msra.mxu0 0.0
  %4844 = vmatprep.subr.mxu0 0.0
  %4845 = vmatpush2.msra.mxu0 0.0
  %4846 = vmatprep.subr.mxu0 0.0
  %4847 = vmatpush2.msra.mxu0 0.0
  %4848 = vmatprep.subr.mxu0 0.0
  %4849 = vmatpush2.msra.mxu0 0.0
  %4850 = vmatprep.subr.mxu0 0.0
  %4851 = vmatpush2.msra.mxu0 0.0
  %4852 = vmatprep.subr.mxu0 0.0
  %4853 = vmatpush2.msra.mxu0 0.0
  %4854 = vmatprep.subr.mxu0 0.0
  %4855 = vmatpush2.msra.mxu0 0.0
  %4856 = vmatprep.subr.mxu0 0.0
  %4857 = vmatpush2.msra.mxu0 0.0
  %4858 = vmatprep.subr.mxu0 0.0
  %4859 = vmatpush2.msra.mxu0 0.0
  %4860 = vmatprep.subr.mxu0 0.0
  %4861 = vmatpush2.msra.mxu0 0.0
  %4862 = vmatprep.subr.mxu0 0.0
  %4863 = vmatpush2.msra.mxu0 0.0
  %4864 = vmatprep.mubr.f32.mxu0 0.0
  %4865 = vmatmul.mubr.f32.gmra.mxu0 %v4724
  %v4866 = vpop.f32.mrf.mxu0
  %v4867 = vadd.f32 0.0, %v4866
  %v4868 = vpop.f32.mrf.mxu0
  %4869 = vdwg.mxu0
  %v4870 = vmul.f32 %v4793, 0.015625
  %v4871 = vmul.f32 %v4867, 0.015625
  %v4872 = vmul.f32 %v4870, %v4870
  %v4873 = vsub.f32 %v4871, %v4872
  %v4874 = vmax.f32 %v4873, 0.0
  %v4875 = vadd.f32 %v4874, 1e-06
  %v4876 = vrsqrt.pop %v4875
  %vm4877 = vcmask 15360
  %v4879 = vsel %vm4877, %v4718, 0
  %vm4881 = vcmask 1041408
  %v4883 = vsel %vm4881, %v4870, 0
  %4885 = vmatprep.subr.mxu0 0.0
  %4886 = vmatpush1.msra.mxu0 0.0
  %4887 = vmatprep.subr.mxu0 0.0
  %4888 = vmatpush1.msra.mxu0 0.0
  %4889 = vmatprep.subr.mxu0 0.0
  %4890 = vmatpush1.msra.mxu0 0.0
  %4891 = vmatprep.subr.mxu0 0.0
  %4892 = vmatpush1.msra.mxu0 0.0
  %4893 = vmatprep.subr.mxu0 0.0
  %4894 = vmatpush1.msra.mxu0 0.0
  %4895 = vmatprep.subr.mxu0 0.0
  %4896 = vmatpush1.msra.mxu0 0.0
  %4897 = vmatprep.subr.mxu0 0.0
  %4898 = vmatpush1.msra.mxu0 0.0
  %4899 = vmatprep.subr.mxu0 0.0
  %4900 = vmatpush1.msra.mxu0 0.0
  %4901 = vmatprep.subr.mxu0 0.0
  %4902 = vmatpush1.msra.mxu0 0.0
  %4903 = vmatprep.subr.mxu0 0.0
  %4904 = vmatpush1.msra.mxu0 0.0
  %4905 = vmatprep.subr.mxu0 0.0
  %4906 = vmatpush1.msra.mxu0 0.0
  %4907 = vmatprep.subr.mxu0 0.0
  %4908 = vmatpush1.msra.mxu0 0.0
  %4909 = vmatprep.subr.mxu0 0.0
  %4910 = vmatpush1.msra.mxu0 0.0
  %4911 = vmatprep.subr.mxu0 0.0
  %4912 = vmatpush1.msra.mxu0 0.0
  %4913 = vmatprep.subr.mxu0 0.0
  %4914 = vmatpush1.msra.mxu0 0.0
  %4915 = vmatprep.subr.mxu0 0.0
  %4916 = vmatpush1.msra.mxu0 %v4883
  %4917 = vmatprep.subr.mxu0 0.0
  %4918 = vmatpush2.msra.mxu0 0.0
  %4919 = vmatprep.subr.mxu0 0.0
  %4920 = vmatpush2.msra.mxu0 0.0
  %4921 = vmatprep.subr.mxu0 0.0
  %4922 = vmatpush2.msra.mxu0 0.0
  %4923 = vmatprep.subr.mxu0 0.0
  %4924 = vmatpush2.msra.mxu0 0.0
  %4925 = vmatprep.subr.mxu0 0.0
  %4926 = vmatpush2.msra.mxu0 0.0
  %4927 = vmatprep.subr.mxu0 0.0
  %4928 = vmatpush2.msra.mxu0 0.0
  %4929 = vmatprep.subr.mxu0 0.0
  %4930 = vmatpush2.msra.mxu0 0.0
  %4931 = vmatprep.subr.mxu0 0.0
  %4932 = vmatpush2.msra.mxu0 0.0
  %4933 = vmatprep.subr.mxu0 0.0
  %4934 = vmatpush2.msra.mxu0 0.0
  %4935 = vmatprep.subr.mxu0 0.0
  %4936 = vmatpush2.msra.mxu0 0.0
  %4937 = vmatprep.subr.mxu0 0.0
  %4938 = vmatpush2.msra.mxu0 0.0
  %4939 = vmatprep.subr.mxu0 0.0
  %4940 = vmatpush2.msra.mxu0 0.0
  %4941 = vmatprep.subr.mxu0 0.0
  %4942 = vmatpush2.msra.mxu0 0.0
  %4943 = vmatprep.subr.mxu0 0.0
  %4944 = vmatpush2.msra.mxu0 0.0
  %4945 = vmatprep.subr.mxu0 0.0
  %4946 = vmatpush2.msra.mxu0 0.0
  %4947 = vmatprep.subr.mxu0 0.0
  %4948 = vmatpush2.msra.mxu0 0.0
  %4949 = vmatprep.mubr.f32.mxu0 0.0
  %4950 = vmatmul.mubr.f32.gmra.mxu0 %v4879
  %v4951 = vpop.f32.mrf.mxu0
  %v4952 = vadd.f32 0.0, %v4951
  %v4953 = vpop.f32.mrf.mxu0
  %4954 = vdwg.mxu0
  %v4956 = vsel %vm4881, %v4876, 0
  %4958 = vmatprep.subr.mxu0 0.0
  %4959 = vmatpush1.msra.mxu0 0.0
  %4960 = vmatprep.subr.mxu0 0.0
  %4961 = vmatpush1.msra.mxu0 0.0
  %4962 = vmatprep.subr.mxu0 0.0
  %4963 = vmatpush1.msra.mxu0 0.0
  %4964 = vmatprep.subr.mxu0 0.0
  %4965 = vmatpush1.msra.mxu0 0.0
  %4966 = vmatprep.subr.mxu0 0.0
  %4967 = vmatpush1.msra.mxu0 0.0
  %4968 = vmatprep.subr.mxu0 0.0
  %4969 = vmatpush1.msra.mxu0 0.0
  %4970 = vmatprep.subr.mxu0 0.0
  %4971 = vmatpush1.msra.mxu0 0.0
  %4972 = vmatprep.subr.mxu0 0.0
  %4973 = vmatpush1.msra.mxu0 0.0
  %4974 = vmatprep.subr.mxu0 0.0
  %4975 = vmatpush1.msra.mxu0 0.0
  %4976 = vmatprep.subr.mxu0 0.0
  %4977 = vmatpush1.msra.mxu0 0.0
  %4978 = vmatprep.subr.mxu0 0.0
  %4979 = vmatpush1.msra.mxu0 0.0
  %4980 = vmatprep.subr.mxu0 0.0
  %4981 = vmatpush1.msra.mxu0 0.0
  %4982 = vmatprep.subr.mxu0 0.0
  %4983 = vmatpush1.msra.mxu0 0.0
  %4984 = vmatprep.subr.mxu0 0.0
  %4985 = vmatpush1.msra.mxu0 0.0
  %4986 = vmatprep.subr.mxu0 0.0
  %4987 = vmatpush1.msra.mxu0 0.0
  %4988 = vmatprep.subr.mxu0 0.0
  %4989 = vmatpush1.msra.mxu0 %v4956
  %4990 = vmatprep.subr.mxu0 0.0
  %4991 = vmatpush2.msra.mxu0 0.0
  %4992 = vmatprep.subr.mxu0 0.0
  %4993 = vmatpush2.msra.mxu0 0.0
  %4994 = vmatprep.subr.mxu0 0.0
  %4995 = vmatpush2.msra.mxu0 0.0
  %4996 = vmatprep.subr.mxu0 0.0
  %4997 = vmatpush2.msra.mxu0 0.0
  %4998 = vmatprep.subr.mxu0 0.0
  %4999 = vmatpush2.msra.mxu0 0.0
  %5000 = vmatprep.subr.mxu0 0.0
  %5001 = vmatpush2.msra.mxu0 0.0
  %5002 = vmatprep.subr.mxu0 0.0
  %5003 = vmatpush2.msra.mxu0 0.0
  %5004 = vmatprep.subr.mxu0 0.0
  %5005 = vmatpush2.msra.mxu0 0.0
  %5006 = vmatprep.subr.mxu0 0.0
  %5007 = vmatpush2.msra.mxu0 0.0
  %5008 = vmatprep.subr.mxu0 0.0
  %5009 = vmatpush2.msra.mxu0 0.0
  %5010 = vmatprep.subr.mxu0 0.0
  %5011 = vmatpush2.msra.mxu0 0.0
  %5012 = vmatprep.subr.mxu0 0.0
  %5013 = vmatpush2.msra.mxu0 0.0
  %5014 = vmatprep.subr.mxu0 0.0
  %5015 = vmatpush2.msra.mxu0 0.0
  %5016 = vmatprep.subr.mxu0 0.0
  %5017 = vmatpush2.msra.mxu0 0.0
  %5018 = vmatprep.subr.mxu0 0.0
  %5019 = vmatpush2.msra.mxu0 0.0
  %5020 = vmatprep.subr.mxu0 0.0
  %5021 = vmatpush2.msra.mxu0 0.0
  %5022 = vmatprep.mubr.f32.mxu0 0.0
  %5023 = vmatmul.mubr.f32.gmra.mxu0 %v4879
  %v5024 = vpop.f32.mrf.mxu0
  %v5025 = vadd.f32 0.0, %v5024
  %v5026 = vpop.f32.mrf.mxu0
  %5027 = vdwg.mxu0
  %5029 = vset.pattern.permute.xlu0 0
  %5030 = vperm.xlu0 %5029, %v4952
  %v5031 = vpop.permute.xlu0 %5030
  %v5033 = vsub.f32 %v4714, %v5031
  %5035 = vset.pattern.permute.xlu0 0
  %5036 = vperm.xlu0 %5035, %v5025
  %v5037 = vpop.permute.xlu0 %5036
  %v5039 = vmul.f32 %v5033, %v5037
  %5040 = vst.msk [vmem:[%s14] sm:$0xff] %vm2826, %v5039
  // Predicated region
  $region65: #{x_net_forward.1} parent=0 // pred_check
    _
  $region66: #{x_net_forward.1} parent=0 // pred_check_branch
    %5042 = sbr.rel (0) target = $region68
  $region67: #{x_net_forward.1} parent=0 // pred_region
    _
  $region68: #{x_net_forward.1} parent=0 // pred_fallthru
    _
  // Predicated region
  $region69: #{x_net_forward.1} parent=0 // pred_check
    _
  $region70: #{x_net_forward.1} parent=0 // pred_check_branch
    %5044 = sbr.rel (0) target = $region72
  $region71: #{x_net_forward.1} parent=0 // pred_region
    _
  $region72: #{x_net_forward.1} parent=0 // pred_fallthru
    _

</llo_original>
